<compile_context>
chip_gen: v7x
topology: tpu7x:2x2x1
jax: 0.10.0
libtpu: 0.0.40
codegen_flags: <defaults>
</compile_context>

<pallas_src>
import jax
import jax.numpy as jnp
from jax.experimental import pallas as pl
from jax.experimental.pallas import tpu as pltpu


def _round_up(x, m):
    return (x + m - 1) // m * m


# ----------------------------------------------------------------------------
# Fused DSConv Pallas kernel:  relu -> dw3x3 -> pw1x1 -> BN(scale,shift) [+res]
# ----------------------------------------------------------------------------
def _fused_dsconv(x_pad, dw, pw, scale, shift, residuals, tn):
    """x_pad: (N, H+2, W+2, Cp) f32  spatially + channel padded input
       dw:    (9, 1, Cp)        f32  depthwise taps (taps-major)
       pw:    (Cp, Cop)         bf16 pointwise weight
       scale, shift: (1, Cop)   f32  folded eval-mode BatchNorm
       residuals: tuple of (N, H, W, Cop) f32 arrays added in the epilogue
       tn:    output-channel tile (multiple of 128, divides Cop)"""
    N, Hp, Wp, Cp = x_pad.shape
    H, W = Hp - 2, Wp - 2
    Cop = pw.shape[1]
    n_res = len(residuals)
    n_j = Cop // tn

    def kernel(x_ref, dw_ref, pw_ref, s_ref, b_ref, *rest):
        res_refs = rest[:n_res]
        o_ref = rest[n_res]
        acc_ref = rest[n_res + 1]
        j = pl.program_id(1)

        # Depthwise (VPU) once per batch element; the result lives in a VMEM
        # scratch and is reused by every output-channel tile.
        @pl.when(j == 0)
        def _():
            x = jnp.maximum(x_ref[0], 0.0)          # leading ReLU, applied once
            acc = x[0:H, 0:W, :] * dw_ref[0]        # init with tap0 * w0
            for k in range(1, 9):                   # static unroll over 3x3 taps
                kh, kw = divmod(k, 3)
                acc = acc + x[kh:kh + H, kw:kw + W, :] * dw_ref[k]
            acc_ref[...] = acc.reshape(H * W, Cp).astype(jnp.bfloat16)

        # Pointwise 1x1 on the MXU (bf16 operands, f32 accumulate) + epilogue.
        y = jnp.dot(acc_ref[...], pw_ref[...], preferred_element_type=jnp.float32)
        y = y * s_ref[...] + b_ref[...]             # folded BatchNorm (f32)
        y = y.reshape(H, W, tn)
        for r_ref in res_refs:                      # fused residual add(s)
            y = y + r_ref[0]
        o_ref[0] = y                                # single lane-dense store

    in_specs = [
        pl.BlockSpec((1, Hp, Wp, Cp), lambda b, j: (b, 0, 0, 0)),
        pl.BlockSpec((9, 1, Cp), lambda b, j: (0, 0, 0)),
        pl.BlockSpec((Cp, tn), lambda b, j: (0, j)),
        pl.BlockSpec((1, tn), lambda b, j: (0, j)),
        pl.BlockSpec((1, tn), lambda b, j: (0, j)),
    ] + [pl.BlockSpec((1, H, W, tn), lambda b, j: (b, 0, 0, j))] * n_res

    return pl.pallas_call(
        kernel,
        out_shape=jax.ShapeDtypeStruct((N, H, W, Cop), jnp.float32),
        grid=(N, n_j),
        in_specs=in_specs,
        out_specs=pl.BlockSpec((1, H, W, tn), lambda b, j: (b, 0, 0, j)),
        scratch_shapes=[pltpu.VMEM((H * W, Cp), jnp.bfloat16)],
        compiler_params=pltpu.CompilerParams(
            dimension_semantics=("parallel", "arbitrary"),
            vmem_limit_bytes=48 * 1024 * 1024),
    )(x_pad, dw, pw, scale, shift, *residuals)


def dsconv(x_nhwc, p, residuals=()):
    """One DepthwiseSeparableConv (+ preceding ReLU, + following BN) unit."""
    x_pad = jnp.pad(x_nhwc, ((0, 0), (1, 1), (1, 1), (0, 0)))  # fixed_padding k=3
    cop = p["pw"].shape[1]
    tn = cop if cop <= 512 else max(t for t in (512, 256, 128) if cop % t == 0)
    return _fused_dsconv(x_pad, p["dw"], p["pw"], p["scale"], p["shift"],
                         tuple(residuals), tn)


# ----------------------------------------------------------------------------
# Model (Middle flow): Block(n_convs=3, stride=1, no skip conv) repeated
# ----------------------------------------------------------------------------
def _bn_fold(gamma, beta, mean, var, eps=1e-5):
    scale = gamma / jnp.sqrt(var + eps)
    shift = beta - mean * scale
    return scale, shift


def _prep_dsconv(dw, pw, bn, c, cp):
    """Fold eval-mode BN into scale/shift, pad channels to a multiple of 128
    lanes, cast the MXU (pointwise) weight to bf16."""
    scale, shift = _bn_fold(**bn)
    pad_c = cp - c
    return {
        "dw": jnp.pad(dw, ((0, 0), (0, 0), (0, pad_c))),
        "pw": jnp.pad(pw, ((0, pad_c), (0, pad_c))).astype(jnp.bfloat16),
        "scale": jnp.pad(scale, (0, pad_c)).reshape(1, cp).astype(jnp.float32),
        "shift": jnp.pad(shift, (0, pad_c)).reshape(1, cp).astype(jnp.float32),
    }


def block_forward(x, bp, extra_residual=None):
    """Block(C, 3, C, C, stride=1, maxpool_out=False, n_convs=3):
    (ReLU,DS,BN) x 3 then + x.  The block residual (and optionally the Middle
    top-level residual) is fused into the last DSConv's epilogue."""
    h = dsconv(x, bp["ds1"])
    h = dsconv(h, bp["ds2"])
    res = (x,) if extra_residual is None else (x, extra_residual)
    return dsconv(h, bp["ds3"], residuals=res)


def middle_forward(params, x_nchw):
    """Middle(channels, repeat).forward — NCHW in, NCHW out."""
    blocks = params["blocks"]
    c = blocks[0]["pw1"].shape[0]
    cp = _round_up(c, 128)
    prepped = [
        {"ds1": _prep_dsconv(bp["dw1"], bp["pw1"], bp["bn1"], c, cp),
         "ds2": _prep_dsconv(bp["dw2"], bp["pw2"], bp["bn2"], c, cp),
         "ds3": _prep_dsconv(bp["dw3"], bp["pw3"], bp["bn3"], c, cp)}
        for bp in blocks
    ]

    x = jnp.transpose(x_nchw, (0, 2, 3, 1)).astype(jnp.float32)  # NCHW -> NHWC
    # TODO(synk): general W support (in-kernel (H,W,C)<->(H*W,C) reshape is
    # layout-preserving only when W is a multiple of 8).
    assert x.shape[2] % 8 == 0, "W must be a multiple of 8"
    if cp != c:
        x = jnp.pad(x, ((0, 0), (0, 0), (0, 0), (0, cp - c)))

    h = x
    last = len(prepped) - 1
    for i, bp in enumerate(prepped):
        # Middle's final `+ x` is fused into the last block's last DSConv.
        h = block_forward(h, bp, extra_residual=x if i == last else None)
    return jnp.transpose(h[..., :c], (0, 3, 1, 2))               # NHWC -> NCHW


# ----------------------------------------------------------------------------
# Pure-JAX reference (mirrors the PyTorch module, same bf16 matmul casts)
# ----------------------------------------------------------------------------
def _dsconv_ref(x, dw, pw, bn):
    scale, shift = _bn_fold(**bn)
    xp = jnp.pad(jnp.maximum(x, 0.0), ((0, 0), (1, 1), (1, 1), (0, 0)))
    n, hp, wp, c = xp.shape
    h, w = hp - 2, wp - 2
    acc = xp[:, 0:h, 0:w, :] * dw[0, 0]
    for k in range(1, 9):
        kh, kw = divmod(k, 3)
        acc = acc + xp[:, kh:kh + h, kw:kw + w, :] * dw[k, 0]
    y = jnp.dot(acc.astype(jnp.bfloat16).reshape(-1, c), pw.astype(jnp.bfloat16),
                preferred_element_type=jnp.float32)
    y = y * scale[None, :] + shift[None, :]
    return y.reshape(n, h, w, c)


def middle_ref(params, x_nchw):
    x = jnp.transpose(x_nchw, (0, 2, 3, 1)).astype(jnp.float32)
    h = x
    for bp in params["blocks"]:
        y = _dsconv_ref(h, bp["dw1"], bp["pw1"], bp["bn1"])
        y = _dsconv_ref(y, bp["dw2"], bp["pw2"], bp["bn2"])
        y = _dsconv_ref(y, bp["dw3"], bp["pw3"], bp["bn3"])
        h = y + h                      # Block residual (skip is None here)
    out = h + x                        # Middle: self.net(x) + x
    return jnp.transpose(out, (0, 3, 1, 2))


# ----------------------------------------------------------------------------
# Deterministic synthetic parameters (shapes follow Middle.__init__)
# ----------------------------------------------------------------------------
def _init_params(key, channels, repeat):
    keys = iter(jax.random.split(key, 256))

    def nrm(shape, s=0.1):
        return s * jax.random.normal(next(keys), shape, jnp.float32)

    def bn(c):
        return dict(
            gamma=1.0 + 0.1 * jax.random.normal(next(keys), (c,), jnp.float32),
            beta=nrm((c,)),
            mean=nrm((c,)),
            var=1.0 + 0.1 * jax.random.uniform(next(keys), (c,), jnp.float32),
        )

    def block(c):
        return dict(
            dw1=nrm((9, 1, c)), pw1=nrm((c, c)), bn1=bn(c),
            dw2=nrm((9, 1, c)), pw2=nrm((c, c)), bn2=bn(c),
            dw3=nrm((9, 1, c)), pw3=nrm((c, c)), bn3=bn(c),
        )

    return {"blocks": [block(channels) for _ in range(repeat)]}


if __name__ == "__main__":
    key = jax.random.PRNGKey(0)
    kparams, kx = jax.random.split(key)

    channels, repeat = 96, 2       # small demo; real Xception middle: 728, 16
    batch, hh, ww = 2, 16, 16

    params = _init_params(kparams, channels, repeat)
    x = jax.random.normal(kx, (batch, channels, hh, ww), jnp.float32)

    fwd = jax.jit(middle_forward)
    out = fwd(params, x)
    jax.block_until_ready(out)

    assert out.shape == (batch, channels, hh, ww), out.shape
    assert bool(jnp.all(jnp.isfinite(out)))

    ref = jax.jit(middle_ref)(params, x)
    max_err = float(jnp.max(jnp.abs(out - ref)))
    assert max_err < 5e-2, f"mismatch vs reference: max abs err {max_err}"

    print("KERNEL_OK")
</pallas_src>

<mosaic_0001>
module attributes {stable_mosaic.version = 11 : i64} {
  func.func @kernel(%arg0: i32, %arg1: i32, %arg2: memref<1x18x18x128xf32, #tpu.memory_space<vmem>>, %arg3: memref<9x1x128xf32, #tpu.memory_space<vmem>>, %arg4: memref<128x128xbf16, #tpu.memory_space<vmem>>, %arg5: memref<1x128xf32, #tpu.memory_space<vmem>>, %arg6: memref<1x128xf32, #tpu.memory_space<vmem>>, %arg7: memref<1x16x16x128xf32, #tpu.memory_space<vmem>>, %arg8: memref<256x128xbf16, #tpu.memory_space<vmem>>) attributes {dimension_semantics = [#tpu.dimension_semantics<parallel>, #tpu.dimension_semantics<arbitrary>], iteration_bounds = array<i64: 2, 1>, scalar_prefetch = 0 : i64, scratch_operands = 1 : i64, tpu.core_type = #tpu.core_type<tc>, window_params = [{transform_indices = @transform_0, window_bounds = array<i64: 1, 18, 18, 128>}, {pipeline_mode = #tpu.pipeline_mode<synchronous>, transform_indices = @transform_1, window_bounds = array<i64: 9, 1, 128>}, {transform_indices = @transform_2, window_bounds = array<i64: 128, 128>}, {transform_indices = @transform_3, window_bounds = array<i64: 1, 128>}, {transform_indices = @transform_4, window_bounds = array<i64: 1, 128>}, {transform_indices = @transform_5, window_bounds = array<i64: 1, 16, 16, 128>}]} {
    %c0_i32 = arith.constant 0 : i32
    %0 = arith.cmpi eq, %arg1, %c0_i32 : i32
    %1 = arith.extui %0 : i1 to i32
    %c0_i32_0 = arith.constant 0 : i32
    %2 = arith.cmpi ne, %1, %c0_i32_0 : i32
    scf.if %2 {
      %c0_12 = arith.constant 0 : index
      %c0_13 = arith.constant 0 : index
      %c0_14 = arith.constant 0 : index
      %c0_15 = arith.constant 0 : index
      %16 = vector.load %arg2[%c0_12, %c0_13, %c0_14, %c0_15] : memref<1x18x18x128xf32, #tpu.memory_space<vmem>>, vector<1x18x18x128xf32>
      %17 = vector.shape_cast %16 : vector<1x18x18x128xf32> to vector<18x18x128xf32>
      %cst_16 = arith.constant 0.000000e+00 : f32
      %18 = vector.broadcast %cst_16 : f32 to vector<18x18x128xf32>
      %19 = arith.maximumf %17, %18 : vector<18x18x128xf32>
      %20 = vector.extract_strided_slice %19 {offsets = [0, 0, 0], sizes = [16, 16, 128], strides = [1, 1, 1]} : vector<18x18x128xf32> to vector<16x16x128xf32>
      %c0_17 = arith.constant 0 : index
      %c0_18 = arith.constant 0 : index
      %c0_19 = arith.constant 0 : index
      %21 = vector.load %arg3[%c0_17, %c0_18, %c0_19] : memref<9x1x128xf32, #tpu.memory_space<vmem>>, vector<1x1x128xf32>
      %22 = vector.shape_cast %21 : vector<1x1x128xf32> to vector<1x128xf32>
      %23 = vector.shape_cast %22 : vector<1x128xf32> to vector<1x1x128xf32>
      %24 = vector.broadcast %23 : vector<1x1x128xf32> to vector<16x16x128xf32>
      %25 = arith.mulf %20, %24 : vector<16x16x128xf32>
      %26 = vector.extract_strided_slice %19 {offsets = [0, 1, 0], sizes = [16, 16, 128], strides = [1, 1, 1]} : vector<18x18x128xf32> to vector<16x16x128xf32>
      %c1 = arith.constant 1 : index
      %c0_20 = arith.constant 0 : index
      %c0_21 = arith.constant 0 : index
      %27 = vector.load %arg3[%c1, %c0_20, %c0_21] : memref<9x1x128xf32, #tpu.memory_space<vmem>>, vector<1x1x128xf32>
      %28 = vector.shape_cast %27 : vector<1x1x128xf32> to vector<1x128xf32>
      %29 = vector.shape_cast %28 : vector<1x128xf32> to vector<1x1x128xf32>
      %30 = vector.broadcast %29 : vector<1x1x128xf32> to vector<16x16x128xf32>
      %31 = arith.mulf %26, %30 : vector<16x16x128xf32>
      %32 = arith.addf %25, %31 : vector<16x16x128xf32>
      %33 = vector.extract_strided_slice %19 {offsets = [0, 2, 0], sizes = [16, 16, 128], strides = [1, 1, 1]} : vector<18x18x128xf32> to vector<16x16x128xf32>
      %c2 = arith.constant 2 : index
      %c0_22 = arith.constant 0 : index
      %c0_23 = arith.constant 0 : index
      %34 = vector.load %arg3[%c2, %c0_22, %c0_23] : memref<9x1x128xf32, #tpu.memory_space<vmem>>, vector<1x1x128xf32>
      %35 = vector.shape_cast %34 : vector<1x1x128xf32> to vector<1x128xf32>
      %36 = vector.shape_cast %35 : vector<1x128xf32> to vector<1x1x128xf32>
      %37 = vector.broadcast %36 : vector<1x1x128xf32> to vector<16x16x128xf32>
      %38 = arith.mulf %33, %37 : vector<16x16x128xf32>
      %39 = arith.addf %32, %38 : vector<16x16x128xf32>
      %40 = vector.extract_strided_slice %19 {offsets = [1, 0, 0], sizes = [16, 16, 128], strides = [1, 1, 1]} : vector<18x18x128xf32> to vector<16x16x128xf32>
      %c3 = arith.constant 3 : index
      %c0_24 = arith.constant 0 : index
      %c0_25 = arith.constant 0 : index
      %41 = vector.load %arg3[%c3, %c0_24, %c0_25] : memref<9x1x128xf32, #tpu.memory_space<vmem>>, vector<1x1x128xf32>
      %42 = vector.shape_cast %41 : vector<1x1x128xf32> to vector<1x128xf32>
      %43 = vector.shape_cast %42 : vector<1x128xf32> to vector<1x1x128xf32>
      %44 = vector.broadcast %43 : vector<1x1x128xf32> to vector<16x16x128xf32>
      %45 = arith.mulf %40, %44 : vector<16x16x128xf32>
      %46 = arith.addf %39, %45 : vector<16x16x128xf32>
      %47 = vector.extract_strided_slice %19 {offsets = [1, 1, 0], sizes = [16, 16, 128], strides = [1, 1, 1]} : vector<18x18x128xf32> to vector<16x16x128xf32>
      %c4 = arith.constant 4 : index
      %c0_26 = arith.constant 0 : index
      %c0_27 = arith.constant 0 : index
      %48 = vector.load %arg3[%c4, %c0_26, %c0_27] : memref<9x1x128xf32, #tpu.memory_space<vmem>>, vector<1x1x128xf32>
      %49 = vector.shape_cast %48 : vector<1x1x128xf32> to vector<1x128xf32>
      %50 = vector.shape_cast %49 : vector<1x128xf32> to vector<1x1x128xf32>
      %51 = vector.broadcast %50 : vector<1x1x128xf32> to vector<16x16x128xf32>
      %52 = arith.mulf %47, %51 : vector<16x16x128xf32>
      %53 = arith.addf %46, %52 : vector<16x16x128xf32>
      %54 = vector.extract_strided_slice %19 {offsets = [1, 2, 0], sizes = [16, 16, 128], strides = [1, 1, 1]} : vector<18x18x128xf32> to vector<16x16x128xf32>
      %c5 = arith.constant 5 : index
      %c0_28 = arith.constant 0 : index
      %c0_29 = arith.constant 0 : index
      %55 = vector.load %arg3[%c5, %c0_28, %c0_29] : memref<9x1x128xf32, #tpu.memory_space<vmem>>, vector<1x1x128xf32>
      %56 = vector.shape_cast %55 : vector<1x1x128xf32> to vector<1x128xf32>
      %57 = vector.shape_cast %56 : vector<1x128xf32> to vector<1x1x128xf32>
      %58 = vector.broadcast %57 : vector<1x1x128xf32> to vector<16x16x128xf32>
      %59 = arith.mulf %54, %58 : vector<16x16x128xf32>
      %60 = arith.addf %53, %59 : vector<16x16x128xf32>
      %61 = vector.extract_strided_slice %19 {offsets = [2, 0, 0], sizes = [16, 16, 128], strides = [1, 1, 1]} : vector<18x18x128xf32> to vector<16x16x128xf32>
      %c6 = arith.constant 6 : index
      %c0_30 = arith.constant 0 : index
      %c0_31 = arith.constant 0 : index
      %62 = vector.load %arg3[%c6, %c0_30, %c0_31] : memref<9x1x128xf32, #tpu.memory_space<vmem>>, vector<1x1x128xf32>
      %63 = vector.shape_cast %62 : vector<1x1x128xf32> to vector<1x128xf32>
      %64 = vector.shape_cast %63 : vector<1x128xf32> to vector<1x1x128xf32>
      %65 = vector.broadcast %64 : vector<1x1x128xf32> to vector<16x16x128xf32>
      %66 = arith.mulf %61, %65 : vector<16x16x128xf32>
      %67 = arith.addf %60, %66 : vector<16x16x128xf32>
      %68 = vector.extract_strided_slice %19 {offsets = [2, 1, 0], sizes = [16, 16, 128], strides = [1, 1, 1]} : vector<18x18x128xf32> to vector<16x16x128xf32>
      %c7 = arith.constant 7 : index
      %c0_32 = arith.constant 0 : index
      %c0_33 = arith.constant 0 : index
      %69 = vector.load %arg3[%c7, %c0_32, %c0_33] : memref<9x1x128xf32, #tpu.memory_space<vmem>>, vector<1x1x128xf32>
      %70 = vector.shape_cast %69 : vector<1x1x128xf32> to vector<1x128xf32>
      %71 = vector.shape_cast %70 : vector<1x128xf32> to vector<1x1x128xf32>
      %72 = vector.broadcast %71 : vector<1x1x128xf32> to vector<16x16x128xf32>
      %73 = arith.mulf %68, %72 : vector<16x16x128xf32>
      %74 = arith.addf %67, %73 : vector<16x16x128xf32>
      %75 = vector.extract_strided_slice %19 {offsets = [2, 2, 0], sizes = [16, 16, 128], strides = [1, 1, 1]} : vector<18x18x128xf32> to vector<16x16x128xf32>
      %c8 = arith.constant 8 : index
      %c0_34 = arith.constant 0 : index
      %c0_35 = arith.constant 0 : index
      %76 = vector.load %arg3[%c8, %c0_34, %c0_35] : memref<9x1x128xf32, #tpu.memory_space<vmem>>, vector<1x1x128xf32>
      %77 = vector.shape_cast %76 : vector<1x1x128xf32> to vector<1x128xf32>
      %78 = vector.shape_cast %77 : vector<1x128xf32> to vector<1x1x128xf32>
      %79 = vector.broadcast %78 : vector<1x1x128xf32> to vector<16x16x128xf32>
      %80 = arith.mulf %75, %79 : vector<16x16x128xf32>
      %81 = arith.addf %74, %80 : vector<16x16x128xf32>
      %82 = vector.shape_cast %81 : vector<16x16x128xf32> to vector<256x128xf32>
      %83 = arith.truncf %82 : vector<256x128xf32> to vector<256x128xbf16>
      %c0_36 = arith.constant 0 : index
      %c0_37 = arith.constant 0 : index
      %84 = vector.load %arg8[%c0_36, %c0_37] : memref<256x128xbf16, #tpu.memory_space<vmem>>, vector<256x128xbf16>
      tpu.vector_store %arg8[%c0_36, %c0_37], %83 {strides = array<i32>} : memref<256x128xbf16, #tpu.memory_space<vmem>>, vector<256x128xbf16>,
    } else {
    }
    %c0 = arith.constant 0 : index
    %c0_1 = arith.constant 0 : index
    %3 = vector.load %arg8[%c0, %c0_1] : memref<256x128xbf16, #tpu.memory_space<vmem>>, vector<256x128xbf16>
    %c0_2 = arith.constant 0 : index
    %c0_3 = arith.constant 0 : index
    %4 = vector.load %arg4[%c0_2, %c0_3] : memref<128x128xbf16, #tpu.memory_space<vmem>>, vector<128x128xbf16>
    %cst = arith.constant dense<0.000000e+00> : vector<256x128xf32>
    %5 = tpu.matmul %3, %4, %cst {dimension_numbers = #tpu.dot_dimension_numbers<[1], [0], [0], [1], [0, 0, 1, 1], [], []>} : vector<256x128xbf16>, vector<128x128xbf16>, vector<256x128xf32> -> vector<256x128xf32>
    %c0_4 = arith.constant 0 : index
    %c0_5 = arith.constant 0 : index
    %6 = vector.load %arg5[%c0_4, %c0_5] : memref<1x128xf32, #tpu.memory_space<vmem>>, vector<1x128xf32>
    %7 = vector.broadcast %6 : vector<1x128xf32> to vector<256x128xf32>
    %8 = arith.mulf %5, %7 : vector<256x128xf32>
    %c0_6 = arith.constant 0 : index
    %c0_7 = arith.constant 0 : index
    %9 = vector.load %arg6[%c0_6, %c0_7] : memref<1x128xf32, #tpu.memory_space<vmem>>, vector<1x128xf32>
    %10 = vector.broadcast %9 : vector<1x128xf32> to vector<256x128xf32>
    %11 = arith.addf %8, %10 : vector<256x128xf32>
    %12 = vector.shape_cast %11 : vector<256x128xf32> to vector<16x16x128xf32>
    %c0_8 = arith.constant 0 : index
    %c0_9 = arith.constant 0 : index
    %c0_10 = arith.constant 0 : index
    %c0_11 = arith.constant 0 : index
    %13 = vector.load %arg7[%c0_8, %c0_9, %c0_10, %c0_11] : memref<1x16x16x128xf32, #tpu.memory_space<vmem>>, vector<1x16x16x128xf32>
    %14 = vector.shape_cast %13 : vector<1x16x16x128xf32> to vector<16x16x128xf32>
    %15 = vector.shape_cast %12 : vector<16x16x128xf32> to vector<1x16x16x128xf32>
    tpu.vector_store %arg7[%c0_8, %c0_9, %c0_10, %c0_11], %15 {strides = array<i32>} : memref<1x16x16x128xf32, #tpu.memory_space<vmem>>, vector<1x16x16x128xf32>,
    return
  }
  func.func @transform_0(%arg0: i32, %arg1: i32) -> (i32, i32, i32, i32) {
    %c0_i32 = arith.constant 0 : i32
    %c0_i32_0 = arith.constant 0 : i32
    %c0_i32_1 = arith.constant 0 : i32
    %c0_i32_2 = arith.constant 0 : i32
    return %arg0, %c0_i32, %c0_i32_0, %c0_i32_1 : i32, i32, i32, i32
  }
  func.func @transform_1(%arg0: i32, %arg1: i32) -> (i32, i32, i32) {
    %c0_i32 = arith.constant 0 : i32
    %c0_i32_0 = arith.constant 0 : i32
    %c0_i32_1 = arith.constant 0 : i32
    %c0_i32_2 = arith.constant 0 : i32
    return %c0_i32, %c0_i32_0, %c0_i32_1 : i32, i32, i32
  }
  func.func @transform_2(%arg0: i32, %arg1: i32) -> (i32, i32) {
    %c0_i32 = arith.constant 0 : i32
    %c0_i32_0 = arith.constant 0 : i32
    return %c0_i32, %arg1 : i32, i32
  }
  func.func @transform_3(%arg0: i32, %arg1: i32) -> (i32, i32) {
    %c0_i32 = arith.constant 0 : i32
    %c0_i32_0 = arith.constant 0 : i32
    return %c0_i32, %arg1 : i32, i32
  }
  func.func @transform_4(%arg0: i32, %arg1: i32) -> (i32, i32) {
    %c0_i32 = arith.constant 0 : i32
    %c0_i32_0 = arith.constant 0 : i32
    return %c0_i32, %arg1 : i32, i32
  }
  func.func @transform_5(%arg0: i32, %arg1: i32) -> (i32, i32, i32, i32) {
    %c0_i32 = arith.constant 0 : i32
    %c0_i32_0 = arith.constant 0 : i32
    %c0_i32_1 = arith.constant 0 : i32
    return %arg0, %c0_i32, %c0_i32_0, %arg1 : i32, i32, i32, i32
  }
}

module attributes {stable_mosaic.version = 11 : i64} {
  func.func @kernel(%arg0: i32, %arg1: i32, %arg2: memref<1x18x18x128xf32, #tpu.memory_space<vmem>>, %arg3: memref<9x1x128xf32, #tpu.memory_space<vmem>>, %arg4: memref<128x128xbf16, #tpu.memory_space<vmem>>, %arg5: memref<1x128xf32, #tpu.memory_space<vmem>>, %arg6: memref<1x128xf32, #tpu.memory_space<vmem>>, %arg7: memref<1x16x16x128xf32, #tpu.memory_space<vmem>>, %arg8: memref<1x16x16x128xf32, #tpu.memory_space<vmem>>, %arg9: memref<256x128xbf16, #tpu.memory_space<vmem>>) attributes {dimension_semantics = [#tpu.dimension_semantics<parallel>, #tpu.dimension_semantics<arbitrary>], iteration_bounds = array<i64: 2, 1>, scalar_prefetch = 0 : i64, scratch_operands = 1 : i64, tpu.core_type = #tpu.core_type<tc>, window_params = [{transform_indices = @transform_0, window_bounds = array<i64: 1, 18, 18, 128>}, {pipeline_mode = #tpu.pipeline_mode<synchronous>, transform_indices = @transform_1, window_bounds = array<i64: 9, 1, 128>}, {transform_indices = @transform_2, window_bounds = array<i64: 128, 128>}, {transform_indices = @transform_3, window_bounds = array<i64: 1, 128>}, {transform_indices = @transform_4, window_bounds = array<i64: 1, 128>}, {transform_indices = @transform_5, window_bounds = array<i64: 1, 16, 16, 128>}, {transform_indices = @transform_6, window_bounds = array<i64: 1, 16, 16, 128>}]} {
    %c0_i32 = arith.constant 0 : i32
    %0 = arith.cmpi eq, %arg1, %c0_i32 : i32
    %1 = arith.extui %0 : i1 to i32
    %c0_i32_0 = arith.constant 0 : i32
    %2 = arith.cmpi ne, %1, %c0_i32_0 : i32
    scf.if %2 {
      %c0_16 = arith.constant 0 : index
      %c0_17 = arith.constant 0 : index
      %c0_18 = arith.constant 0 : index
      %c0_19 = arith.constant 0 : index
      %19 = vector.load %arg2[%c0_16, %c0_17, %c0_18, %c0_19] : memref<1x18x18x128xf32, #tpu.memory_space<vmem>>, vector<1x18x18x128xf32>
      %20 = vector.shape_cast %19 : vector<1x18x18x128xf32> to vector<18x18x128xf32>
      %cst_20 = arith.constant 0.000000e+00 : f32
      %21 = vector.broadcast %cst_20 : f32 to vector<18x18x128xf32>
      %22 = arith.maximumf %20, %21 : vector<18x18x128xf32>
      %23 = vector.extract_strided_slice %22 {offsets = [0, 0, 0], sizes = [16, 16, 128], strides = [1, 1, 1]} : vector<18x18x128xf32> to vector<16x16x128xf32>
      %c0_21 = arith.constant 0 : index
      %c0_22 = arith.constant 0 : index
      %c0_23 = arith.constant 0 : index
      %24 = vector.load %arg3[%c0_21, %c0_22, %c0_23] : memref<9x1x128xf32, #tpu.memory_space<vmem>>, vector<1x1x128xf32>
      %25 = vector.shape_cast %24 : vector<1x1x128xf32> to vector<1x128xf32>
      %26 = vector.shape_cast %25 : vector<1x128xf32> to vector<1x1x128xf32>
      %27 = vector.broadcast %26 : vector<1x1x128xf32> to vector<16x16x128xf32>
      %28 = arith.mulf %23, %27 : vector<16x16x128xf32>
      %29 = vector.extract_strided_slice %22 {offsets = [0, 1, 0], sizes = [16, 16, 128], strides = [1, 1, 1]} : vector<18x18x128xf32> to vector<16x16x128xf32>
      %c1 = arith.constant 1 : index
      %c0_24 = arith.constant 0 : index
      %c0_25 = arith.constant 0 : index
      %30 = vector.load %arg3[%c1, %c0_24, %c0_25] : memref<9x1x128xf32, #tpu.memory_space<vmem>>, vector<1x1x128xf32>
      %31 = vector.shape_cast %30 : vector<1x1x128xf32> to vector<1x128xf32>
      %32 = vector.shape_cast %31 : vector<1x128xf32> to vector<1x1x128xf32>
      %33 = vector.broadcast %32 : vector<1x1x128xf32> to vector<16x16x128xf32>
      %34 = arith.mulf %29, %33 : vector<16x16x128xf32>
      %35 = arith.addf %28, %34 : vector<16x16x128xf32>
      %36 = vector.extract_strided_slice %22 {offsets = [0, 2, 0], sizes = [16, 16, 128], strides = [1, 1, 1]} : vector<18x18x128xf32> to vector<16x16x128xf32>
      %c2 = arith.constant 2 : index
      %c0_26 = arith.constant 0 : index
      %c0_27 = arith.constant 0 : index
      %37 = vector.load %arg3[%c2, %c0_26, %c0_27] : memref<9x1x128xf32, #tpu.memory_space<vmem>>, vector<1x1x128xf32>
      %38 = vector.shape_cast %37 : vector<1x1x128xf32> to vector<1x128xf32>
      %39 = vector.shape_cast %38 : vector<1x128xf32> to vector<1x1x128xf32>
      %40 = vector.broadcast %39 : vector<1x1x128xf32> to vector<16x16x128xf32>
      %41 = arith.mulf %36, %40 : vector<16x16x128xf32>
      %42 = arith.addf %35, %41 : vector<16x16x128xf32>
      %43 = vector.extract_strided_slice %22 {offsets = [1, 0, 0], sizes = [16, 16, 128], strides = [1, 1, 1]} : vector<18x18x128xf32> to vector<16x16x128xf32>
      %c3 = arith.constant 3 : index
      %c0_28 = arith.constant 0 : index
      %c0_29 = arith.constant 0 : index
      %44 = vector.load %arg3[%c3, %c0_28, %c0_29] : memref<9x1x128xf32, #tpu.memory_space<vmem>>, vector<1x1x128xf32>
      %45 = vector.shape_cast %44 : vector<1x1x128xf32> to vector<1x128xf32>
      %46 = vector.shape_cast %45 : vector<1x128xf32> to vector<1x1x128xf32>
      %47 = vector.broadcast %46 : vector<1x1x128xf32> to vector<16x16x128xf32>
      %48 = arith.mulf %43, %47 : vector<16x16x128xf32>
      %49 = arith.addf %42, %48 : vector<16x16x128xf32>
      %50 = vector.extract_strided_slice %22 {offsets = [1, 1, 0], sizes = [16, 16, 128], strides = [1, 1, 1]} : vector<18x18x128xf32> to vector<16x16x128xf32>
      %c4 = arith.constant 4 : index
      %c0_30 = arith.constant 0 : index
      %c0_31 = arith.constant 0 : index
      %51 = vector.load %arg3[%c4, %c0_30, %c0_31] : memref<9x1x128xf32, #tpu.memory_space<vmem>>, vector<1x1x128xf32>
      %52 = vector.shape_cast %51 : vector<1x1x128xf32> to vector<1x128xf32>
      %53 = vector.shape_cast %52 : vector<1x128xf32> to vector<1x1x128xf32>
      %54 = vector.broadcast %53 : vector<1x1x128xf32> to vector<16x16x128xf32>
      %55 = arith.mulf %50, %54 : vector<16x16x128xf32>
      %56 = arith.addf %49, %55 : vector<16x16x128xf32>
      %57 = vector.extract_strided_slice %22 {offsets = [1, 2, 0], sizes = [16, 16, 128], strides = [1, 1, 1]} : vector<18x18x128xf32> to vector<16x16x128xf32>
      %c5 = arith.constant 5 : index
      %c0_32 = arith.constant 0 : index
      %c0_33 = arith.constant 0 : index
      %58 = vector.load %arg3[%c5, %c0_32, %c0_33] : memref<9x1x128xf32, #tpu.memory_space<vmem>>, vector<1x1x128xf32>
      %59 = vector.shape_cast %58 : vector<1x1x128xf32> to vector<1x128xf32>
      %60 = vector.shape_cast %59 : vector<1x128xf32> to vector<1x1x128xf32>
      %61 = vector.broadcast %60 : vector<1x1x128xf32> to vector<16x16x128xf32>
      %62 = arith.mulf %57, %61 : vector<16x16x128xf32>
      %63 = arith.addf %56, %62 : vector<16x16x128xf32>
      %64 = vector.extract_strided_slice %22 {offsets = [2, 0, 0], sizes = [16, 16, 128], strides = [1, 1, 1]} : vector<18x18x128xf32> to vector<16x16x128xf32>
      %c6 = arith.constant 6 : index
      %c0_34 = arith.constant 0 : index
      %c0_35 = arith.constant 0 : index
      %65 = vector.load %arg3[%c6, %c0_34, %c0_35] : memref<9x1x128xf32, #tpu.memory_space<vmem>>, vector<1x1x128xf32>
      %66 = vector.shape_cast %65 : vector<1x1x128xf32> to vector<1x128xf32>
      %67 = vector.shape_cast %66 : vector<1x128xf32> to vector<1x1x128xf32>
      %68 = vector.broadcast %67 : vector<1x1x128xf32> to vector<16x16x128xf32>
      %69 = arith.mulf %64, %68 : vector<16x16x128xf32>
      %70 = arith.addf %63, %69 : vector<16x16x128xf32>
      %71 = vector.extract_strided_slice %22 {offsets = [2, 1, 0], sizes = [16, 16, 128], strides = [1, 1, 1]} : vector<18x18x128xf32> to vector<16x16x128xf32>
      %c7 = arith.constant 7 : index
      %c0_36 = arith.constant 0 : index
      %c0_37 = arith.constant 0 : index
      %72 = vector.load %arg3[%c7, %c0_36, %c0_37] : memref<9x1x128xf32, #tpu.memory_space<vmem>>, vector<1x1x128xf32>
      %73 = vector.shape_cast %72 : vector<1x1x128xf32> to vector<1x128xf32>
      %74 = vector.shape_cast %73 : vector<1x128xf32> to vector<1x1x128xf32>
      %75 = vector.broadcast %74 : vector<1x1x128xf32> to vector<16x16x128xf32>
      %76 = arith.mulf %71, %75 : vector<16x16x128xf32>
      %77 = arith.addf %70, %76 : vector<16x16x128xf32>
      %78 = vector.extract_strided_slice %22 {offsets = [2, 2, 0], sizes = [16, 16, 128], strides = [1, 1, 1]} : vector<18x18x128xf32> to vector<16x16x128xf32>
      %c8 = arith.constant 8 : index
      %c0_38 = arith.constant 0 : index
      %c0_39 = arith.constant 0 : index
      %79 = vector.load %arg3[%c8, %c0_38, %c0_39] : memref<9x1x128xf32, #tpu.memory_space<vmem>>, vector<1x1x128xf32>
      %80 = vector.shape_cast %79 : vector<1x1x128xf32> to vector<1x128xf32>
      %81 = vector.shape_cast %80 : vector<1x128xf32> to vector<1x1x128xf32>
      %82 = vector.broadcast %81 : vector<1x1x128xf32> to vector<16x16x128xf32>
      %83 = arith.mulf %78, %82 : vector<16x16x128xf32>
      %84 = arith.addf %77, %83 : vector<16x16x128xf32>
      %85 = vector.shape_cast %84 : vector<16x16x128xf32> to vector<256x128xf32>
      %86 = arith.truncf %85 : vector<256x128xf32> to vector<256x128xbf16>
      %c0_40 = arith.constant 0 : index
      %c0_41 = arith.constant 0 : index
      %87 = vector.load %arg9[%c0_40, %c0_41] : memref<256x128xbf16, #tpu.memory_space<vmem>>, vector<256x128xbf16>
      tpu.vector_store %arg9[%c0_40, %c0_41], %86 {strides = array<i32>} : memref<256x128xbf16, #tpu.memory_space<vmem>>, vector<256x128xbf16>,
    } else {
    }
    %c0 = arith.constant 0 : index
    %c0_1 = arith.constant 0 : index
    %3 = vector.load %arg9[%c0, %c0_1] : memref<256x128xbf16, #tpu.memory_space<vmem>>, vector<256x128xbf16>
    %c0_2 = arith.constant 0 : index
    %c0_3 = arith.constant 0 : index
    %4 = vector.load %arg4[%c0_2, %c0_3] : memref<128x128xbf16, #tpu.memory_space<vmem>>, vector<128x128xbf16>
    %cst = arith.constant dense<0.000000e+00> : vector<256x128xf32>
    %5 = tpu.matmul %3, %4, %cst {dimension_numbers = #tpu.dot_dimension_numbers<[1], [0], [0], [1], [0, 0, 1, 1], [], []>} : vector<256x128xbf16>, vector<128x128xbf16>, vector<256x128xf32> -> vector<256x128xf32>
    %c0_4 = arith.constant 0 : index
    %c0_5 = arith.constant 0 : index
    %6 = vector.load %arg5[%c0_4, %c0_5] : memref<1x128xf32, #tpu.memory_space<vmem>>, vector<1x128xf32>
    %7 = vector.broadcast %6 : vector<1x128xf32> to vector<256x128xf32>
    %8 = arith.mulf %5, %7 : vector<256x128xf32>
    %c0_6 = arith.constant 0 : index
    %c0_7 = arith.constant 0 : index
    %9 = vector.load %arg6[%c0_6, %c0_7] : memref<1x128xf32, #tpu.memory_space<vmem>>, vector<1x128xf32>
    %10 = vector.broadcast %9 : vector<1x128xf32> to vector<256x128xf32>
    %11 = arith.addf %8, %10 : vector<256x128xf32>
    %12 = vector.shape_cast %11 : vector<256x128xf32> to vector<16x16x128xf32>
    %c0_8 = arith.constant 0 : index
    %c0_9 = arith.constant 0 : index
    %c0_10 = arith.constant 0 : index
    %c0_11 = arith.constant 0 : index
    %13 = vector.load %arg7[%c0_8, %c0_9, %c0_10, %c0_11] : memref<1x16x16x128xf32, #tpu.memory_space<vmem>>, vector<1x16x16x128xf32>
    %14 = vector.shape_cast %13 : vector<1x16x16x128xf32> to vector<16x16x128xf32>
    %15 = arith.addf %12, %14 : vector<16x16x128xf32>
    %c0_12 = arith.constant 0 : index
    %c0_13 = arith.constant 0 : index
    %c0_14 = arith.constant 0 : index
    %c0_15 = arith.constant 0 : index
    %16 = vector.load %arg8[%c0_12, %c0_13, %c0_14, %c0_15] : memref<1x16x16x128xf32, #tpu.memory_space<vmem>>, vector<1x16x16x128xf32>
    %17 = vector.shape_cast %16 : vector<1x16x16x128xf32> to vector<16x16x128xf32>
    %18 = vector.shape_cast %15 : vector<16x16x128xf32> to vector<1x16x16x128xf32>
    tpu.vector_store %arg8[%c0_12, %c0_13, %c0_14, %c0_15], %18 {strides = array<i32>} : memref<1x16x16x128xf32, #tpu.memory_space<vmem>>, vector<1x16x16x128xf32>,
    return
  }
  func.func @transform_0(%arg0: i32, %arg1: i32) -> (i32, i32, i32, i32) {
    %c0_i32 = arith.constant 0 : i32
    %c0_i32_0 = arith.constant 0 : i32
    %c0_i32_1 = arith.constant 0 : i32
    %c0_i32_2 = arith.constant 0 : i32
    return %arg0, %c0_i32, %c0_i32_0, %c0_i32_1 : i32, i32, i32, i32
  }
  func.func @transform_1(%arg0: i32, %arg1: i32) -> (i32, i32, i32) {
    %c0_i32 = arith.constant 0 : i32
    %c0_i32_0 = arith.constant 0 : i32
    %c0_i32_1 = arith.constant 0 : i32
    %c0_i32_2 = arith.constant 0 : i32
    return %c0_i32, %c0_i32_0, %c0_i32_1 : i32, i32, i32
  }
  func.func @transform_2(%arg0: i32, %arg1: i32) -> (i32, i32) {
    %c0_i32 = arith.constant 0 : i32
    %c0_i32_0 = arith.constant 0 : i32
    return %c0_i32, %arg1 : i32, i32
  }
  func.func @transform_3(%arg0: i32, %arg1: i32) -> (i32, i32) {
    %c0_i32 = arith.constant 0 : i32
    %c0_i32_0 = arith.constant 0 : i32
    return %c0_i32, %arg1 : i32, i32
  }
  func.func @transform_4(%arg0: i32, %arg1: i32) -> (i32, i32) {
    %c0_i32 = arith.constant 0 : i32
    %c0_i32_0 = arith.constant 0 : i32
    return %c0_i32, %arg1 : i32, i32
  }
  func.func @transform_5(%arg0: i32, %arg1: i32) -> (i32, i32, i32, i32) {
    %c0_i32 = arith.constant 0 : i32
    %c0_i32_0 = arith.constant 0 : i32
    %c0_i32_1 = arith.constant 0 : i32
    return %arg0, %c0_i32, %c0_i32_0, %arg1 : i32, i32, i32, i32
  }
  func.func @transform_6(%arg0: i32, %arg1: i32) -> (i32, i32, i32, i32) {
    %c0_i32 = arith.constant 0 : i32
    %c0_i32_0 = arith.constant 0 : i32
    %c0_i32_1 = arith.constant 0 : i32
    return %arg0, %c0_i32, %c0_i32_0, %arg1 : i32, i32, i32, i32
  }
}

module attributes {stable_mosaic.version = 11 : i64} {
  func.func @kernel(%arg0: i32, %arg1: i32, %arg2: memref<1x18x18x128xf32, #tpu.memory_space<vmem>>, %arg3: memref<9x1x128xf32, #tpu.memory_space<vmem>>, %arg4: memref<128x128xbf16, #tpu.memory_space<vmem>>, %arg5: memref<1x128xf32, #tpu.memory_space<vmem>>, %arg6: memref<1x128xf32, #tpu.memory_space<vmem>>, %arg7: memref<1x16x16x128xf32, #tpu.memory_space<vmem>>, %arg8: memref<1x16x16x128xf32, #tpu.memory_space<vmem>>, %arg9: memref<1x16x16x128xf32, #tpu.memory_space<vmem>>, %arg10: memref<256x128xbf16, #tpu.memory_space<vmem>>) attributes {dimension_semantics = [#tpu.dimension_semantics<parallel>, #tpu.dimension_semantics<arbitrary>], iteration_bounds = array<i64: 2, 1>, scalar_prefetch = 0 : i64, scratch_operands = 1 : i64, tpu.core_type = #tpu.core_type<tc>, window_params = [{transform_indices = @transform_0, window_bounds = array<i64: 1, 18, 18, 128>}, {pipeline_mode = #tpu.pipeline_mode<synchronous>, transform_indices = @transform_1, window_bounds = array<i64: 9, 1, 128>}, {transform_indices = @transform_2, window_bounds = array<i64: 128, 128>}, {transform_indices = @transform_3, window_bounds = array<i64: 1, 128>}, {transform_indices = @transform_4, window_bounds = array<i64: 1, 128>}, {transform_indices = @transform_5, window_bounds = array<i64: 1, 16, 16, 128>}, {transform_indices = @transform_6, window_bounds = array<i64: 1, 16, 16, 128>}, {transform_indices = @transform_7, window_bounds = array<i64: 1, 16, 16, 128>}]} {
    %c0_i32 = arith.constant 0 : i32
    %0 = arith.cmpi eq, %arg1, %c0_i32 : i32
    %1 = arith.extui %0 : i1 to i32
    %c0_i32_0 = arith.constant 0 : i32
    %2 = arith.cmpi ne, %1, %c0_i32_0 : i32
    scf.if %2 {
      %c0_20 = arith.constant 0 : index
      %c0_21 = arith.constant 0 : index
      %c0_22 = arith.constant 0 : index
      %c0_23 = arith.constant 0 : index
      %22 = vector.load %arg2[%c0_20, %c0_21, %c0_22, %c0_23] : memref<1x18x18x128xf32, #tpu.memory_space<vmem>>, vector<1x18x18x128xf32>
      %23 = vector.shape_cast %22 : vector<1x18x18x128xf32> to vector<18x18x128xf32>
      %cst_24 = arith.constant 0.000000e+00 : f32
      %24 = vector.broadcast %cst_24 : f32 to vector<18x18x128xf32>
      %25 = arith.maximumf %23, %24 : vector<18x18x128xf32>
      %26 = vector.extract_strided_slice %25 {offsets = [0, 0, 0], sizes = [16, 16, 128], strides = [1, 1, 1]} : vector<18x18x128xf32> to vector<16x16x128xf32>
      %c0_25 = arith.constant 0 : index
      %c0_26 = arith.constant 0 : index
      %c0_27 = arith.constant 0 : index
      %27 = vector.load %arg3[%c0_25, %c0_26, %c0_27] : memref<9x1x128xf32, #tpu.memory_space<vmem>>, vector<1x1x128xf32>
      %28 = vector.shape_cast %27 : vector<1x1x128xf32> to vector<1x128xf32>
      %29 = vector.shape_cast %28 : vector<1x128xf32> to vector<1x1x128xf32>
      %30 = vector.broadcast %29 : vector<1x1x128xf32> to vector<16x16x128xf32>
      %31 = arith.mulf %26, %30 : vector<16x16x128xf32>
      %32 = vector.extract_strided_slice %25 {offsets = [0, 1, 0], sizes = [16, 16, 128], strides = [1, 1, 1]} : vector<18x18x128xf32> to vector<16x16x128xf32>
      %c1 = arith.constant 1 : index
      %c0_28 = arith.constant 0 : index
      %c0_29 = arith.constant 0 : index
      %33 = vector.load %arg3[%c1, %c0_28, %c0_29] : memref<9x1x128xf32, #tpu.memory_space<vmem>>, vector<1x1x128xf32>
      %34 = vector.shape_cast %33 : vector<1x1x128xf32> to vector<1x128xf32>
      %35 = vector.shape_cast %34 : vector<1x128xf32> to vector<1x1x128xf32>
      %36 = vector.broadcast %35 : vector<1x1x128xf32> to vector<16x16x128xf32>
      %37 = arith.mulf %32, %36 : vector<16x16x128xf32>
      %38 = arith.addf %31, %37 : vector<16x16x128xf32>
      %39 = vector.extract_strided_slice %25 {offsets = [0, 2, 0], sizes = [16, 16, 128], strides = [1, 1, 1]} : vector<18x18x128xf32> to vector<16x16x128xf32>
      %c2 = arith.constant 2 : index
      %c0_30 = arith.constant 0 : index
      %c0_31 = arith.constant 0 : index
      %40 = vector.load %arg3[%c2, %c0_30, %c0_31] : memref<9x1x128xf32, #tpu.memory_space<vmem>>, vector<1x1x128xf32>
      %41 = vector.shape_cast %40 : vector<1x1x128xf32> to vector<1x128xf32>
      %42 = vector.shape_cast %41 : vector<1x128xf32> to vector<1x1x128xf32>
      %43 = vector.broadcast %42 : vector<1x1x128xf32> to vector<16x16x128xf32>
      %44 = arith.mulf %39, %43 : vector<16x16x128xf32>
      %45 = arith.addf %38, %44 : vector<16x16x128xf32>
      %46 = vector.extract_strided_slice %25 {offsets = [1, 0, 0], sizes = [16, 16, 128], strides = [1, 1, 1]} : vector<18x18x128xf32> to vector<16x16x128xf32>
      %c3 = arith.constant 3 : index
      %c0_32 = arith.constant 0 : index
      %c0_33 = arith.constant 0 : index
      %47 = vector.load %arg3[%c3, %c0_32, %c0_33] : memref<9x1x128xf32, #tpu.memory_space<vmem>>, vector<1x1x128xf32>
      %48 = vector.shape_cast %47 : vector<1x1x128xf32> to vector<1x128xf32>
      %49 = vector.shape_cast %48 : vector<1x128xf32> to vector<1x1x128xf32>
      %50 = vector.broadcast %49 : vector<1x1x128xf32> to vector<16x16x128xf32>
      %51 = arith.mulf %46, %50 : vector<16x16x128xf32>
      %52 = arith.addf %45, %51 : vector<16x16x128xf32>
      %53 = vector.extract_strided_slice %25 {offsets = [1, 1, 0], sizes = [16, 16, 128], strides = [1, 1, 1]} : vector<18x18x128xf32> to vector<16x16x128xf32>
      %c4 = arith.constant 4 : index
      %c0_34 = arith.constant 0 : index
      %c0_35 = arith.constant 0 : index
      %54 = vector.load %arg3[%c4, %c0_34, %c0_35] : memref<9x1x128xf32, #tpu.memory_space<vmem>>, vector<1x1x128xf32>
      %55 = vector.shape_cast %54 : vector<1x1x128xf32> to vector<1x128xf32>
      %56 = vector.shape_cast %55 : vector<1x128xf32> to vector<1x1x128xf32>
      %57 = vector.broadcast %56 : vector<1x1x128xf32> to vector<16x16x128xf32>
      %58 = arith.mulf %53, %57 : vector<16x16x128xf32>
      %59 = arith.addf %52, %58 : vector<16x16x128xf32>
      %60 = vector.extract_strided_slice %25 {offsets = [1, 2, 0], sizes = [16, 16, 128], strides = [1, 1, 1]} : vector<18x18x128xf32> to vector<16x16x128xf32>
      %c5 = arith.constant 5 : index
      %c0_36 = arith.constant 0 : index
      %c0_37 = arith.constant 0 : index
      %61 = vector.load %arg3[%c5, %c0_36, %c0_37] : memref<9x1x128xf32, #tpu.memory_space<vmem>>, vector<1x1x128xf32>
      %62 = vector.shape_cast %61 : vector<1x1x128xf32> to vector<1x128xf32>
      %63 = vector.shape_cast %62 : vector<1x128xf32> to vector<1x1x128xf32>
      %64 = vector.broadcast %63 : vector<1x1x128xf32> to vector<16x16x128xf32>
      %65 = arith.mulf %60, %64 : vector<16x16x128xf32>
      %66 = arith.addf %59, %65 : vector<16x16x128xf32>
      %67 = vector.extract_strided_slice %25 {offsets = [2, 0, 0], sizes = [16, 16, 128], strides = [1, 1, 1]} : vector<18x18x128xf32> to vector<16x16x128xf32>
      %c6 = arith.constant 6 : index
      %c0_38 = arith.constant 0 : index
      %c0_39 = arith.constant 0 : index
      %68 = vector.load %arg3[%c6, %c0_38, %c0_39] : memref<9x1x128xf32, #tpu.memory_space<vmem>>, vector<1x1x128xf32>
      %69 = vector.shape_cast %68 : vector<1x1x128xf32> to vector<1x128xf32>
      %70 = vector.shape_cast %69 : vector<1x128xf32> to vector<1x1x128xf32>
      %71 = vector.broadcast %70 : vector<1x1x128xf32> to vector<16x16x128xf32>
      %72 = arith.mulf %67, %71 : vector<16x16x128xf32>
      %73 = arith.addf %66, %72 : vector<16x16x128xf32>
      %74 = vector.extract_strided_slice %25 {offsets = [2, 1, 0], sizes = [16, 16, 128], strides = [1, 1, 1]} : vector<18x18x128xf32> to vector<16x16x128xf32>
      %c7 = arith.constant 7 : index
      %c0_40 = arith.constant 0 : index
      %c0_41 = arith.constant 0 : index
      %75 = vector.load %arg3[%c7, %c0_40, %c0_41] : memref<9x1x128xf32, #tpu.memory_space<vmem>>, vector<1x1x128xf32>
      %76 = vector.shape_cast %75 : vector<1x1x128xf32> to vector<1x128xf32>
      %77 = vector.shape_cast %76 : vector<1x128xf32> to vector<1x1x128xf32>
      %78 = vector.broadcast %77 : vector<1x1x128xf32> to vector<16x16x128xf32>
      %79 = arith.mulf %74, %78 : vector<16x16x128xf32>
      %80 = arith.addf %73, %79 : vector<16x16x128xf32>
      %81 = vector.extract_strided_slice %25 {offsets = [2, 2, 0], sizes = [16, 16, 128], strides = [1, 1, 1]} : vector<18x18x128xf32> to vector<16x16x128xf32>
      %c8 = arith.constant 8 : index
      %c0_42 = arith.constant 0 : index
      %c0_43 = arith.constant 0 : index
      %82 = vector.load %arg3[%c8, %c0_42, %c0_43] : memref<9x1x128xf32, #tpu.memory_space<vmem>>, vector<1x1x128xf32>
      %83 = vector.shape_cast %82 : vector<1x1x128xf32> to vector<1x128xf32>
      %84 = vector.shape_cast %83 : vector<1x128xf32> to vector<1x1x128xf32>
      %85 = vector.broadcast %84 : vector<1x1x128xf32> to vector<16x16x128xf32>
      %86 = arith.mulf %81, %85 : vector<16x16x128xf32>
      %87 = arith.addf %80, %86 : vector<16x16x128xf32>
      %88 = vector.shape_cast %87 : vector<16x16x128xf32> to vector<256x128xf32>
      %89 = arith.truncf %88 : vector<256x128xf32> to vector<256x128xbf16>
      %c0_44 = arith.constant 0 : index
      %c0_45 = arith.constant 0 : index
      %90 = vector.load %arg10[%c0_44, %c0_45] : memref<256x128xbf16, #tpu.memory_space<vmem>>, vector<256x128xbf16>
      tpu.vector_store %arg10[%c0_44, %c0_45], %89 {strides = array<i32>} : memref<256x128xbf16, #tpu.memory_space<vmem>>, vector<256x128xbf16>,
    } else {
    }
    %c0 = arith.constant 0 : index
    %c0_1 = arith.constant 0 : index
    %3 = vector.load %arg10[%c0, %c0_1] : memref<256x128xbf16, #tpu.memory_space<vmem>>, vector<256x128xbf16>
    %c0_2 = arith.constant 0 : index
    %c0_3 = arith.constant 0 : index
    %4 = vector.load %arg4[%c0_2, %c0_3] : memref<128x128xbf16, #tpu.memory_space<vmem>>, vector<128x128xbf16>
    %cst = arith.constant dense<0.000000e+00> : vector<256x128xf32>
    %5 = tpu.matmul %3, %4, %cst {dimension_numbers = #tpu.dot_dimension_numbers<[1], [0], [0], [1], [0, 0, 1, 1], [], []>} : vector<256x128xbf16>, vector<128x128xbf16>, vector<256x128xf32> -> vector<256x128xf32>
    %c0_4 = arith.constant 0 : index
    %c0_5 = arith.constant 0 : index
    %6 = vector.load %arg5[%c0_4, %c0_5] : memref<1x128xf32, #tpu.memory_space<vmem>>, vector<1x128xf32>
    %7 = vector.broadcast %6 : vector<1x128xf32> to vector<256x128xf32>
    %8 = arith.mulf %5, %7 : vector<256x128xf32>
    %c0_6 = arith.constant 0 : index
    %c0_7 = arith.constant 0 : index
    %9 = vector.load %arg6[%c0_6, %c0_7] : memref<1x128xf32, #tpu.memory_space<vmem>>, vector<1x128xf32>
    %10 = vector.broadcast %9 : vector<1x128xf32> to vector<256x128xf32>
    %11 = arith.addf %8, %10 : vector<256x128xf32>
    %12 = vector.shape_cast %11 : vector<256x128xf32> to vector<16x16x128xf32>
    %c0_8 = arith.constant 0 : index
    %c0_9 = arith.constant 0 : index
    %c0_10 = arith.constant 0 : index
    %c0_11 = arith.constant 0 : index
    %13 = vector.load %arg7[%c0_8, %c0_9, %c0_10, %c0_11] : memref<1x16x16x128xf32, #tpu.memory_space<vmem>>, vector<1x16x16x128xf32>
    %14 = vector.shape_cast %13 : vector<1x16x16x128xf32> to vector<16x16x128xf32>
    %15 = arith.addf %12, %14 : vector<16x16x128xf32>
    %c0_12 = arith.constant 0 : index
    %c0_13 = arith.constant 0 : index
    %c0_14 = arith.constant 0 : index
    %c0_15 = arith.constant 0 : index
    %16 = vector.load %arg8[%c0_12, %c0_13, %c0_14, %c0_15] : memref<1x16x16x128xf32, #tpu.memory_space<vmem>>, vector<1x16x16x128xf32>
    %17 = vector.shape_cast %16 : vector<1x16x16x128xf32> to vector<16x16x128xf32>
    %18 = arith.addf %15, %17 : vector<16x16x128xf32>
    %c0_16 = arith.constant 0 : index
    %c0_17 = arith.constant 0 : index
    %c0_18 = arith.constant 0 : index
    %c0_19 = arith.constant 0 : index
    %19 = vector.load %arg9[%c0_16, %c0_17, %c0_18, %c0_19] : memref<1x16x16x128xf32, #tpu.memory_space<vmem>>, vector<1x16x16x128xf32>
    %20 = vector.shape_cast %19 : vector<1x16x16x128xf32> to vector<16x16x128xf32>
    %21 = vector.shape_cast %18 : vector<16x16x128xf32> to vector<1x16x16x128xf32>
    tpu.vector_store %arg9[%c0_16, %c0_17, %c0_18, %c0_19], %21 {strides = array<i32>} : memref<1x16x16x128xf32, #tpu.memory_space<vmem>>, vector<1x16x16x128xf32>,
    return
  }
  func.func @transform_0(%arg0: i32, %arg1: i32) -> (i32, i32, i32, i32) {
    %c0_i32 = arith.constant 0 : i32
    %c0_i32_0 = arith.constant 0 : i32
    %c0_i32_1 = arith.constant 0 : i32
    %c0_i32_2 = arith.constant 0 : i32
    return %arg0, %c0_i32, %c0_i32_0, %c0_i32_1 : i32, i32, i32, i32
  }
  func.func @transform_1(%arg0: i32, %arg1: i32) -> (i32, i32, i32) {
    %c0_i32 = arith.constant 0 : i32
    %c0_i32_0 = arith.constant 0 : i32
    %c0_i32_1 = arith.constant 0 : i32
    %c0_i32_2 = arith.constant 0 : i32
    return %c0_i32, %c0_i32_0, %c0_i32_1 : i32, i32, i32
  }
  func.func @transform_2(%arg0: i32, %arg1: i32) -> (i32, i32) {
    %c0_i32 = arith.constant 0 : i32
    %c0_i32_0 = arith.constant 0 : i32
    return %c0_i32, %arg1 : i32, i32
  }
  func.func @transform_3(%arg0: i32, %arg1: i32) -> (i32, i32) {
    %c0_i32 = arith.constant 0 : i32
    %c0_i32_0 = arith.constant 0 : i32
    return %c0_i32, %arg1 : i32, i32
  }
  func.func @transform_4(%arg0: i32, %arg1: i32) -> (i32, i32) {
    %c0_i32 = arith.constant 0 : i32
    %c0_i32_0 = arith.constant 0 : i32
    return %c0_i32, %arg1 : i32, i32
  }
  func.func @transform_5(%arg0: i32, %arg1: i32) -> (i32, i32, i32, i32) {
    %c0_i32 = arith.constant 0 : i32
    %c0_i32_0 = arith.constant 0 : i32
    %c0_i32_1 = arith.constant 0 : i32
    return %arg0, %c0_i32, %c0_i32_0, %arg1 : i32, i32, i32, i32
  }
  func.func @transform_6(%arg0: i32, %arg1: i32) -> (i32, i32, i32, i32) {
    %c0_i32 = arith.constant 0 : i32
    %c0_i32_0 = arith.constant 0 : i32
    %c0_i32_1 = arith.constant 0 : i32
    return %arg0, %c0_i32, %c0_i32_0, %arg1 : i32, i32, i32, i32
  }
  func.func @transform_7(%arg0: i32, %arg1: i32) -> (i32, i32, i32, i32) {
    %c0_i32 = arith.constant 0 : i32
    %c0_i32_0 = arith.constant 0 : i32
    %c0_i32_1 = arith.constant 0 : i32
    return %arg0, %c0_i32, %c0_i32_0, %arg1 : i32, i32, i32, i32
  }
}

</mosaic_0001>

<llo_original>
// kernel: middle_forward.6
$region0: #{middle_forward.6}
  #allocation0 [shape = 'u32[]', space=smem, size = 0x4, offset = 0x4, fixed_abs, tag = 'smem constant byte address 0x4 - core index']
  #allocation1 [shape = 'u32[144,128]{1,0:T(1,128)}', space=vmem, size = 0x12000, scoped, tag = 'internal scratch']
  #allocation2 [shape = 'bf16[256,128]{1,0:T(16,128)(2,1)}', space=vmem, size = 0x10000, scoped, tag = 'scratch operand']
  %s0 = inlined_call_operand.vmem [shape: f32[2,18,18,128], index: 0, kind: input, shape index: {}]
  %s1 = inlined_call_operand.vmem [shape: f32[9,1,128], index: 1, kind: input, shape index: {}]
  %s2 = inlined_call_operand.vmem [shape: bf16[128,128], index: 2, kind: input, shape index: {}]
  %s3 = inlined_call_operand.vmem [shape: f32[1,128], index: 3, kind: input, shape index: {}]
  %s4 = inlined_call_operand.vmem [shape: f32[1,128], index: 4, kind: input, shape index: {}]
  %s5 = inlined_call_operand.vmem [shape: f32[2,16,16,128], index: 5, kind: output, shape index: {}]
  %s6 = sld [smem:[#allocation0]]
  $region57: #{middle_forward.6} parent=0
    _
  %s8 = ssub.s32 1, %s6
  %s9 = scalar_select 0, %s8, %s6
  loop: start=0, step=1, limit=4
  $region2: #{middle_forward.6} parent=0 // loop_pre_header
    _
  $region3: #{middle_forward.6} parent=0 // loop_header
    %s11 = sphi 0, %s15
    %p12 = scmp.ge.s32.totalorder %s11, 4
    %s18 = sphi 0, %s30
    %s19 = sphi 0, %s26
    %s20 = sphi 0, %s18
    %s21 = sphi 0, %s19
    %s22 = sphi 0, %s20
    %s23 = sphi 0, %s21
    %s33 = sphi 0, %s35
    %s36 = sphi 0, %s33
    %s37 = sphi 0, %s36
    %s53 = sphi 0, %s37
    %s57 = sphi 0, %s57
    %s59 = sphi 0, %s57
    %s60 = sphi 0, %s59
    %s74 = sphi 0, %s60
    %s80 = sphi 0, %s82
    %s83 = sphi 0, %s80
    %s84 = sphi 0, %s83
    %s100 = sphi 0, %s84
    %s106 = sphi 0, %s108
    %s109 = sphi 0, %s106
    %s110 = sphi 0, %s109
    %s126 = sphi 0, %s110
    %s132 = sphi 0, %s134
    %s135 = sphi 0, %s132
    %s136 = sphi 0, %s135
    %s152 = sphi 0, %s136
    %s160 = sphi 0, %s162
    %s163 = sphi 0, %s160
    %s164 = sphi 0, %s163
    %s180 = sphi 0, %s164
  $region4: #{middle_forward.6} parent=0 // loop_header_branch
    %14 = sbr.rel (%p12) target = $region8
  $region5: #{middle_forward.6} parent=0 // loop_body
    %s16 = ssub.s32 %s11, 1
    %s17 = ssub.s32 %s11, 2
    %s24 = sadd.s32 1, %s19
    %p25 = scmp.ge.s32.totalorder %s24, 1
    %s26 = scalar_select %p25, 0, %s24
    %s27 = sadd.s32 1, %s18
    %s28 = scalar_select %p25, %s27, %s18
    %p29 = scmp.ge.s32.totalorder %s28, 2
    %s30 = scalar_select %p29, 0, %s28
    %s31 = ssub.s32 %s18, %s30
    %p32 = scmp.eq.s32.totalorder %s31, 0
    %s34 = sadd.s32 %s33, 1
    %s35 = scalar_select %p32, %s33, %s34
    %p38 = pneg %p32
    %p39 = scmp.eq.s32.totalorder %s11, 1
    %p40 = por %p38, %p39
    %p41 = scmp.ne.s32.totalorder %s33, %s36
    %p42 = scmp.eq.s32.totalorder %s11, 0
    %p43 = por %p41, %p42
    %p44 = scmp.ne.s32.totalorder %s33, %s36
    %p45 = scmp.eq.s32.totalorder %s16, 1
    %p46 = por %p44, %p45
    %p47 = scmp.ne.s32.totalorder %s36, %s37
    %p48 = scmp.eq.s32.totalorder %s16, 0
    %p49 = por %p47, %p48
    %p50 = scmp.ne.s32.totalorder %s36, %s37
    %p51 = scmp.eq.s32.totalorder %s17, 1
    %p52 = por %p50, %p51
    %p54 = scmp.ne.s32.totalorder %s37, %s53
    %p55 = scmp.eq.s32.totalorder %s17, 0
    %p56 = por %p54, %p55
    %s58 = sadd.s32 %s57, 1
    %p61 = scmp.eq.s32.totalorder %s11, 1
    %p62 = scmp.ne.s32.totalorder %s57, %s59
    %p63 = scmp.eq.s32.totalorder %s11, 0
    %p64 = por %p62, %p63
    %p65 = scmp.ne.s32.totalorder %s57, %s59
    %p66 = scmp.eq.s32.totalorder %s16, 1
    %p67 = por %p65, %p66
    %p68 = scmp.ne.s32.totalorder %s59, %s60
    %p69 = scmp.eq.s32.totalorder %s16, 0
    %p70 = por %p68, %p69
    %p71 = scmp.ne.s32.totalorder %s59, %s60
    %p72 = scmp.eq.s32.totalorder %s17, 1
    %p73 = por %p71, %p72
    %p75 = scmp.ne.s32.totalorder %s60, %s74
    %p76 = scmp.eq.s32.totalorder %s17, 0
    %p77 = por %p75, %p76
    %s78 = ssub.s32 %s19, %s26
    %p79 = scmp.eq.s32.totalorder %s78, 0
    %s81 = sadd.s32 %s80, 1
    %s82 = scalar_select %p79, %s80, %s81
    %p85 = pneg %p79
    %p86 = scmp.eq.s32.totalorder %s11, 1
    %p87 = por %p85, %p86
    %p88 = scmp.ne.s32.totalorder %s80, %s83
    %p89 = scmp.eq.s32.totalorder %s11, 0
    %p90 = por %p88, %p89
    %p91 = scmp.ne.s32.totalorder %s80, %s83
    %p92 = scmp.eq.s32.totalorder %s16, 1
    %p93 = por %p91, %p92
    %p94 = scmp.ne.s32.totalorder %s83, %s84
    %p95 = scmp.eq.s32.totalorder %s16, 0
    %p96 = por %p94, %p95
    %p97 = scmp.ne.s32.totalorder %s83, %s84
    %p98 = scmp.eq.s32.totalorder %s17, 1
    %p99 = por %p97, %p98
    %p101 = scmp.ne.s32.totalorder %s84, %s100
    %p102 = scmp.eq.s32.totalorder %s17, 0
    %p103 = por %p101, %p102
    %s104 = ssub.s32 %s19, %s26
    %p105 = scmp.eq.s32.totalorder %s104, 0
    %s107 = sadd.s32 %s106, 1
    %s108 = scalar_select %p105, %s106, %s107
    %p111 = pneg %p105
    %p112 = scmp.eq.s32.totalorder %s11, 1
    %p113 = por %p111, %p112
    %p114 = scmp.ne.s32.totalorder %s106, %s109
    %p115 = scmp.eq.s32.totalorder %s11, 0
    %p116 = por %p114, %p115
    %p117 = scmp.ne.s32.totalorder %s106, %s109
    %p118 = scmp.eq.s32.totalorder %s16, 1
    %p119 = por %p117, %p118
    %p120 = scmp.ne.s32.totalorder %s109, %s110
    %p121 = scmp.eq.s32.totalorder %s16, 0
    %p122 = por %p120, %p121
    %p123 = scmp.ne.s32.totalorder %s109, %s110
    %p124 = scmp.eq.s32.totalorder %s17, 1
    %p125 = por %p123, %p124
    %p127 = scmp.ne.s32.totalorder %s110, %s126
    %p128 = scmp.eq.s32.totalorder %s17, 0
    %p129 = por %p127, %p128
    %s130 = ssub.s32 %s19, %s26
    %p131 = scmp.eq.s32.totalorder %s130, 0
    %s133 = sadd.s32 %s132, 1
    %s134 = scalar_select %p131, %s132, %s133
    %p137 = pneg %p131
    %p138 = scmp.eq.s32.totalorder %s11, 1
    %p139 = por %p137, %p138
    %p140 = scmp.ne.s32.totalorder %s132, %s135
    %p141 = scmp.eq.s32.totalorder %s11, 0
    %p142 = por %p140, %p141
    %p143 = scmp.ne.s32.totalorder %s132, %s135
    %p144 = scmp.eq.s32.totalorder %s16, 1
    %p145 = por %p143, %p144
    %p146 = scmp.ne.s32.totalorder %s135, %s136
    %p147 = scmp.eq.s32.totalorder %s16, 0
    %p148 = por %p146, %p147
    %p149 = scmp.ne.s32.totalorder %s135, %s136
    %p150 = scmp.eq.s32.totalorder %s17, 1
    %p151 = por %p149, %p150
    %p153 = scmp.ne.s32.totalorder %s136, %s152
    %p154 = scmp.eq.s32.totalorder %s17, 0
    %p155 = por %p153, %p154
    %s156 = ssub.s32 %s18, %s30
    %s157 = ssub.s32 %s19, %s26
    %s158 = sor.u32 %s156, %s157
    %p159 = scmp.eq.s32.totalorder %s158, 0
    %s161 = sadd.s32 %s160, 1
    %s162 = scalar_select %p159, %s160, %s161
    %p165 = pneg %p159
    %p166 = scmp.eq.s32.totalorder %s11, 1
    %p167 = por %p165, %p166
    %p168 = scmp.ne.s32.totalorder %s160, %s163
    %p169 = scmp.eq.s32.totalorder %s11, 0
    %p170 = por %p168, %p169
    %p171 = scmp.ne.s32.totalorder %s160, %s163
    %p172 = scmp.eq.s32.totalorder %s16, 1
    %p173 = por %p171, %p172
    %p174 = scmp.ne.s32.totalorder %s163, %s164
    %p175 = scmp.eq.s32.totalorder %s16, 0
    %p176 = por %p174, %p175
    %p177 = scmp.ne.s32.totalorder %s163, %s164
    %p178 = scmp.eq.s32.totalorder %s17, 1
    %p179 = por %p177, %p178
    %p181 = scmp.ne.s32.totalorder %s164, %s180
    %p182 = scmp.eq.s32.totalorder %s17, 0
    %p183 = por %p181, %p182
    %p184 = scmp.le.s32.totalorder 1, %s11
    %p185 = scmp.lt.s32.totalorder %s11, 3
    %p186 = pnand %p184, %p185
    %p187 = pneg %p186
    // Predicated region
    $region9: #{middle_forward.6} parent=5 // pred_check
      _
    $region10: #{middle_forward.6} parent=5 // pred_check_branch
      %189 = sbr.rel (%p186) target = $region12
    $region11: #{middle_forward.6} parent=5 // pred_region
      %s190 = ssub.s32 %s11, 1
      // Predicated region
      $region13: #{middle_forward.6} parent=11 // pred_check
        %p191 = pneg %p70
      $region14: #{middle_forward.6} parent=11 // pred_check_branch
        %193 = sbr.rel (%p191) target = $region16
      $region15: #{middle_forward.6} parent=11 // pred_region
        _
      $region16: #{middle_forward.6} parent=11 // pred_fallthru
        _
      // Predicated region
      $region17: #{middle_forward.6} parent=11 // pred_check
        %p194 = pneg %p96
      $region18: #{middle_forward.6} parent=11 // pred_check_branch
        %196 = sbr.rel (%p194) target = $region20
      $region19: #{middle_forward.6} parent=11 // pred_region
        %p197 = scmp.lt.s32.totalorder %s21, 0
        %s198 = scalar_select %p197, %s21, 0
        %s199 = smul.addr %s198, 4
        %s200 = scalar_lea.vmem %s2, %s199
      $region20: #{middle_forward.6} parent=11 // pred_fallthru
        _
      // Predicated region
      $region21: #{middle_forward.6} parent=11 // pred_check
        %p201 = pneg %p122
      $region22: #{middle_forward.6} parent=11 // pred_check_branch
        %203 = sbr.rel (%p201) target = $region24
      $region23: #{middle_forward.6} parent=11 // pred_region
        %p204 = scmp.lt.s32.totalorder %s21, 0
        %s205 = scalar_select %p204, %s21, 0
        %s206 = scalar_lea.vmem %s3, %s205
      $region24: #{middle_forward.6} parent=11 // pred_fallthru
        _
      // Predicated region
      $region25: #{middle_forward.6} parent=11 // pred_check
        %p207 = pneg %p148
      $region26: #{middle_forward.6} parent=11 // pred_check_branch
        %209 = sbr.rel (%p207) target = $region28
      $region27: #{middle_forward.6} parent=11 // pred_region
        %p210 = scmp.lt.s32.totalorder %s21, 0
        %s211 = scalar_select %p210, %s21, 0
        %s212 = scalar_lea.vmem %s4, %s211
      $region28: #{middle_forward.6} parent=11 // pred_fallthru
        _
    $region12: #{middle_forward.6} parent=5 // pred_fallthru
      _
    %p213 = scmp.lt.s32.totalorder %s11, 2
    // Predicated region
    $region29: #{middle_forward.6} parent=5 // pred_check
      %p214 = pneg %p213
    $region30: #{middle_forward.6} parent=5 // pred_check_branch
      %216 = sbr.rel (%p214) target = $region32
    $region31: #{middle_forward.6} parent=5 // pred_region
      // Predicated region
      $region33: #{middle_forward.6} parent=31 // pred_check
        %p217 = pneg %p43
      $region34: #{middle_forward.6} parent=31 // pred_check_branch
        %219 = sbr.rel (%p217) target = $region36
      $region35: #{middle_forward.6} parent=31 // pred_region
        %p220 = scmp.lt.s32.totalorder %s18, 1
        %s221 = scalar_select %p220, %s18, 1
        %s222 = smul.addr %s221, 54
        %s223 = smul.addr %s222, 8
        %s224 = scalar_lea.vmem %s0, %s223
      $region36: #{middle_forward.6} parent=31 // pred_fallthru
        _
    $region32: #{middle_forward.6} parent=5 // pred_fallthru
      _
    %p225 = scmp.le.s32.totalorder 1, %s11
    %p226 = scmp.lt.s32.totalorder %s11, 3
    %p227 = pnand %p225, %p226
    %p228 = pneg %p227
    // Predicated region
    $region37: #{middle_forward.6} parent=5 // pred_check
      _
    $region38: #{middle_forward.6} parent=5 // pred_check_branch
      %230 = sbr.rel (%p227) target = $region40
    $region39: #{middle_forward.6} parent=5 // pred_region
      %s231 = ssub.s32 %s11, 1
      %p232 = scmp.lt.s32.totalorder %s20, 1
      %s233 = scalar_select %p232, %s20, 1
      %s234 = smul.addr %s233, 54
      %s235 = smul.addr %s234, 8
      %s236 = scalar_lea.vmem %s0, %s235
      %p237 = pneg %p49
      %p238 = pneg %p46
      %p239 = pneg %p70
      %p240 = pneg %p67
      %p241 = scmp.lt.s32.totalorder %s21, 0
      %s242 = scalar_select %p241, %s21, 0
      %s243 = smul.addr %s242, 4
      %s244 = scalar_lea.vmem %s2, %s243
      %p245 = pneg %p96
      %p246 = pneg %p93
      %p247 = scmp.lt.s32.totalorder %s21, 0
      %s248 = scalar_select %p247, %s21, 0
      %s249 = scalar_lea.vmem %s3, %s248
      %p250 = pneg %p122
      %p251 = pneg %p119
      %p252 = scmp.lt.s32.totalorder %s21, 0
      %s253 = scalar_select %p252, %s21, 0
      %s254 = scalar_lea.vmem %s4, %s253
      %p255 = pneg %p148
      %p256 = pneg %p145
      %p257 = pneg %p176
      %p258 = pneg %p173
      %p259 = scmp.lt.s32.totalorder %s20, 1
      %s260 = scalar_select %p259, %s20, 1
      %p261 = scmp.lt.s32.totalorder %s21, 0
      %s262 = scalar_select %p261, %s21, 0
      %s263 = smul.addr %s260, 32
      %s264 = sadd.s32 %s262, %s263
      %s265 = smul.addr %s264, 8
      %s266 = scalar_lea.vmem %s5, %s265
      %p267 = scmp.lt.s32.totalorder %s20, 1
      %s268 = scalar_select %p267, %s20, 1
      %s269 = smul.addr %s268, 54
      %s270 = smul.addr %s269, 8
      %s271 = scalar_lea.vmem %s0, %s270
      %p272 = scmp.lt.s32.totalorder %s21, 0
      %s273 = scalar_select %p272, %s21, 0
      %s274 = smul.addr %s273, 4
      %s275 = scalar_lea.vmem %s2, %s274
      %p276 = scmp.lt.s32.totalorder %s21, 0
      %s277 = scalar_select %p276, %s21, 0
      %s278 = scalar_lea.vmem %s3, %s277
      %p279 = scmp.lt.s32.totalorder %s21, 0
      %s280 = scalar_select %p279, %s21, 0
      %s281 = scalar_lea.vmem %s4, %s280
      %p282 = scmp.lt.s32.totalorder %s20, 1
      %s283 = scalar_select %p282, %s20, 1
      %p284 = scmp.lt.s32.totalorder %s21, 0
      %s285 = scalar_select %p284, %s21, 0
      %s286 = smul.addr %s283, 32
      %s287 = sadd.s32 %s285, %s286
      %s288 = smul.addr %s287, 8
      %s289 = scalar_lea.vmem %s5, %s288
      %p291 = scmp.eq.s32.totalorder %s21, 0
      // Predicated region
      $region41: #{middle_forward.6} parent=39 // pred_check
        %p292 = pneg %p291
      $region42: #{middle_forward.6} parent=39 // pred_check_branch
        %294 = sbr.rel (%p292) target = $region44
      $region43: #{middle_forward.6} parent=39 // pred_region
        %v295 = vld [vmem:[%s271] sm:$0xff]
        %v296 = vld [vmem:[%s271 + $0x8] sm:$0xff]
        %v297 = vld [vmem:[%s271 + $0x10] sm:$0x3]
        %v298 = vld [vmem:[%s271 + $0x18] sm:$0xff]
        %v299 = vld [vmem:[%s271 + $0x20] sm:$0xff]
        %v300 = vld [vmem:[%s271 + $0x28] sm:$0x3]
        %v301 = vld [vmem:[%s271 + $0x30] sm:$0xff]
        %v302 = vld [vmem:[%s271 + $0x38] sm:$0xff]
        %v303 = vld [vmem:[%s271 + $0x40] sm:$0x3]
        %v304 = vld [vmem:[%s271 + $0x48] sm:$0xff]
        %v305 = vld [vmem:[%s271 + $0x50] sm:$0xff]
        %v306 = vld [vmem:[%s271 + $0x58] sm:$0x3]
        %v307 = vld [vmem:[%s271 + $0x60] sm:$0xff]
        %v308 = vld [vmem:[%s271 + $0x68] sm:$0xff]
        %v309 = vld [vmem:[%s271 + $0x70] sm:$0x3]
        %v310 = vld [vmem:[%s271 + $0x78] sm:$0xff]
        %v311 = vld [vmem:[%s271 + $0x80] sm:$0xff]
        %v312 = vld [vmem:[%s271 + $0x88] sm:$0x3]
        %v313 = vld [vmem:[%s271 + $0x90] sm:$0xff]
        %v314 = vld [vmem:[%s271 + $0x98] sm:$0xff]
        %v315 = vld [vmem:[%s271 + $0xa0] sm:$0x3]
        %v316 = vld [vmem:[%s271 + $0xa8] sm:$0xff]
        %v317 = vld [vmem:[%s271 + $0xb0] sm:$0xff]
        %v318 = vld [vmem:[%s271 + $0xb8] sm:$0x3]
        %v319 = vld [vmem:[%s271 + $0xc0] sm:$0xff]
        %v320 = vld [vmem:[%s271 + $0xc8] sm:$0xff]
        %v321 = vld [vmem:[%s271 + $0xd0] sm:$0x3]
        %v322 = vld [vmem:[%s271 + $0xd8] sm:$0xff]
        %v323 = vld [vmem:[%s271 + $0xe0] sm:$0xff]
        %v324 = vld [vmem:[%s271 + $0xe8] sm:$0x3]
        %v325 = vld [vmem:[%s271 + $0xf0] sm:$0xff]
        %v326 = vld [vmem:[%s271 + $0xf8] sm:$0xff]
        %v327 = vld [vmem:[%s271 + $0x100] sm:$0x3]
        %v328 = vld [vmem:[%s271 + $0x108] sm:$0xff]
        %v329 = vld [vmem:[%s271 + $0x110] sm:$0xff]
        %v330 = vld [vmem:[%s271 + $0x118] sm:$0x3]
        %v331 = vld [vmem:[%s271 + $0x120] sm:$0xff]
        %v332 = vld [vmem:[%s271 + $0x128] sm:$0xff]
        %v333 = vld [vmem:[%s271 + $0x130] sm:$0x3]
        %v334 = vld [vmem:[%s271 + $0x138] sm:$0xff]
        %v335 = vld [vmem:[%s271 + $0x140] sm:$0xff]
        %v336 = vld [vmem:[%s271 + $0x148] sm:$0x3]
        %v337 = vld [vmem:[%s271 + $0x150] sm:$0xff]
        %v338 = vld [vmem:[%s271 + $0x158] sm:$0xff]
        %v339 = vld [vmem:[%s271 + $0x160] sm:$0x3]
        %v340 = vld [vmem:[%s271 + $0x168] sm:$0xff]
        %v341 = vld [vmem:[%s271 + $0x170] sm:$0xff]
        %v342 = vld [vmem:[%s271 + $0x178] sm:$0x3]
        %v343 = vld [vmem:[%s271 + $0x180] sm:$0xff]
        %v344 = vld [vmem:[%s271 + $0x188] sm:$0xff]
        %v345 = vld [vmem:[%s271 + $0x190] sm:$0x3]
        %v346 = vld [vmem:[%s271 + $0x198] sm:$0xff]
        %v347 = vld [vmem:[%s271 + $0x1a0] sm:$0xff]
        %v348 = vld [vmem:[%s271 + $0x1a8] sm:$0x3]
        %v349 = vmax.f32 %v295, 0.0
        %v350 = vmax.f32 %v296, 0.0
        %v351 = vmax.f32 %v297, 0.0
        %v352 = vmax.f32 %v298, 0.0
        %v353 = vmax.f32 %v299, 0.0
        %v354 = vmax.f32 %v300, 0.0
        %v355 = vmax.f32 %v301, 0.0
        %v356 = vmax.f32 %v302, 0.0
        %v357 = vmax.f32 %v303, 0.0
        %v358 = vmax.f32 %v304, 0.0
        %v359 = vmax.f32 %v305, 0.0
        %v360 = vmax.f32 %v306, 0.0
        %v361 = vmax.f32 %v307, 0.0
        %v362 = vmax.f32 %v308, 0.0
        %v363 = vmax.f32 %v309, 0.0
        %v364 = vmax.f32 %v310, 0.0
        %v365 = vmax.f32 %v311, 0.0
        %v366 = vmax.f32 %v312, 0.0
        %v367 = vmax.f32 %v313, 0.0
        %v368 = vmax.f32 %v314, 0.0
        %v369 = vmax.f32 %v315, 0.0
        %v370 = vmax.f32 %v316, 0.0
        %v371 = vmax.f32 %v317, 0.0
        %v372 = vmax.f32 %v318, 0.0
        %v373 = vmax.f32 %v319, 0.0
        %v374 = vmax.f32 %v320, 0.0
        %v375 = vmax.f32 %v321, 0.0
        %v376 = vmax.f32 %v322, 0.0
        %v377 = vmax.f32 %v323, 0.0
        %v378 = vmax.f32 %v324, 0.0
        %v379 = vmax.f32 %v325, 0.0
        %v380 = vmax.f32 %v326, 0.0
        %v381 = vmax.f32 %v327, 0.0
        %v382 = vmax.f32 %v328, 0.0
        %v383 = vmax.f32 %v329, 0.0
        %v384 = vmax.f32 %v330, 0.0
        %v385 = vmax.f32 %v331, 0.0
        %v386 = vmax.f32 %v332, 0.0
        %v387 = vmax.f32 %v333, 0.0
        %v388 = vmax.f32 %v334, 0.0
        %v389 = vmax.f32 %v335, 0.0
        %v390 = vmax.f32 %v336, 0.0
        %v391 = vmax.f32 %v337, 0.0
        %v392 = vmax.f32 %v338, 0.0
        %v393 = vmax.f32 %v339, 0.0
        %v394 = vmax.f32 %v340, 0.0
        %v395 = vmax.f32 %v341, 0.0
        %v396 = vmax.f32 %v342, 0.0
        %v397 = vmax.f32 %v343, 0.0
        %v398 = vmax.f32 %v344, 0.0
        %v399 = vmax.f32 %v345, 0.0
        %v400 = vmax.f32 %v346, 0.0
        %v401 = vmax.f32 %v347, 0.0
        %v402 = vmax.f32 %v348, 0.0
        %v403 = vld [vmem:[%s1] sm:$0x1]
        %v405 = vlaneseq
        %v406 = vshrl.u32 %v405, 7
        %v407 = vsub.s32 0, %v406
        %v408 = vrot.slane %v403, %v407
        %v410 = vmul.f32 %v349, %v408
        %v411 = vmul.f32 %v350, %v408
        %v412 = vmul.f32 %v352, %v408
        %v413 = vmul.f32 %v353, %v408
        %v414 = vmul.f32 %v355, %v408
        %v415 = vmul.f32 %v356, %v408
        %v416 = vmul.f32 %v358, %v408
        %v417 = vmul.f32 %v359, %v408
        %v418 = vmul.f32 %v361, %v408
        %v419 = vmul.f32 %v362, %v408
        %v420 = vmul.f32 %v364, %v408
        %v421 = vmul.f32 %v365, %v408
        %v422 = vmul.f32 %v367, %v408
        %v423 = vmul.f32 %v368, %v408
        %v424 = vmul.f32 %v370, %v408
        %v425 = vmul.f32 %v371, %v408
        %v426 = vmul.f32 %v373, %v408
        %v427 = vmul.f32 %v374, %v408
        %v428 = vmul.f32 %v376, %v408
        %v429 = vmul.f32 %v377, %v408
        %v430 = vmul.f32 %v379, %v408
        %v431 = vmul.f32 %v380, %v408
        %v432 = vmul.f32 %v382, %v408
        %v433 = vmul.f32 %v383, %v408
        %v434 = vmul.f32 %v385, %v408
        %v435 = vmul.f32 %v386, %v408
        %v436 = vmul.f32 %v388, %v408
        %v437 = vmul.f32 %v389, %v408
        %v438 = vmul.f32 %v391, %v408
        %v439 = vmul.f32 %v392, %v408
        %v440 = vmul.f32 %v394, %v408
        %v441 = vmul.f32 %v395, %v408
        %s442 = scalar_lea.vmem %s1, 1
        %v443 = vld [vmem:[%s442] sm:$0x1]
        %v445 = vlaneseq
        %v446 = vshrl.u32 %v445, 7
        %v447 = vsub.s32 0, %v446
        %v448 = vrot.slane %v443, %v447
        %v450 = vmul.f32 %v349, %v448
        %v451 = vmul.f32 %v350, %v448
        %v452 = vmul.f32 %v351, %v448
        %v453 = vmul.f32 %v352, %v448
        %v454 = vmul.f32 %v353, %v448
        %v455 = vmul.f32 %v354, %v448
        %v456 = vmul.f32 %v355, %v448
        %v457 = vmul.f32 %v356, %v448
        %v458 = vmul.f32 %v357, %v448
        %v459 = vmul.f32 %v358, %v448
        %v460 = vmul.f32 %v359, %v448
        %v461 = vmul.f32 %v360, %v448
        %v462 = vmul.f32 %v361, %v448
        %v463 = vmul.f32 %v362, %v448
        %v464 = vmul.f32 %v363, %v448
        %v465 = vmul.f32 %v364, %v448
        %v466 = vmul.f32 %v365, %v448
        %v467 = vmul.f32 %v366, %v448
        %v468 = vmul.f32 %v367, %v448
        %v469 = vmul.f32 %v368, %v448
        %v470 = vmul.f32 %v369, %v448
        %v471 = vmul.f32 %v370, %v448
        %v472 = vmul.f32 %v371, %v448
        %v473 = vmul.f32 %v372, %v448
        %v474 = vmul.f32 %v373, %v448
        %v475 = vmul.f32 %v374, %v448
        %v476 = vmul.f32 %v375, %v448
        %v477 = vmul.f32 %v376, %v448
        %v478 = vmul.f32 %v377, %v448
        %v479 = vmul.f32 %v378, %v448
        %v480 = vmul.f32 %v379, %v448
        %v481 = vmul.f32 %v380, %v448
        %v482 = vmul.f32 %v381, %v448
        %v483 = vmul.f32 %v382, %v448
        %v484 = vmul.f32 %v383, %v448
        %v485 = vmul.f32 %v384, %v448
        %v486 = vmul.f32 %v385, %v448
        %v487 = vmul.f32 %v386, %v448
        %v488 = vmul.f32 %v387, %v448
        %v489 = vmul.f32 %v388, %v448
        %v490 = vmul.f32 %v389, %v448
        %v491 = vmul.f32 %v390, %v448
        %v492 = vmul.f32 %v391, %v448
        %v493 = vmul.f32 %v392, %v448
        %v494 = vmul.f32 %v393, %v448
        %v495 = vmul.f32 %v394, %v448
        %v496 = vmul.f32 %v395, %v448
        %v497 = vmul.f32 %v396, %v448
        %vm546 = vcmask 1046528
        %v547 = vrot.slane %v450, 1
        %v548 = vrot.slane %v451, 1
        %v549 = vsel %vm546, %v547, %v548
        %v550 = vrot.slane %v452, 1
        %v551 = vsel %vm546, %v548, %v550
        %v552 = vrot.slane %v453, 1
        %v553 = vrot.slane %v454, 1
        %v554 = vsel %vm546, %v552, %v553
        %v555 = vrot.slane %v455, 1
        %v556 = vsel %vm546, %v553, %v555
        %v557 = vrot.slane %v456, 1
        %v558 = vrot.slane %v457, 1
        %v559 = vsel %vm546, %v557, %v558
        %v560 = vrot.slane %v458, 1
        %v561 = vsel %vm546, %v558, %v560
        %v562 = vrot.slane %v459, 1
        %v563 = vrot.slane %v460, 1
        %v564 = vsel %vm546, %v562, %v563
        %v565 = vrot.slane %v461, 1
        %v566 = vsel %vm546, %v563, %v565
        %v567 = vrot.slane %v462, 1
        %v568 = vrot.slane %v463, 1
        %v569 = vsel %vm546, %v567, %v568
        %v570 = vrot.slane %v464, 1
        %v571 = vsel %vm546, %v568, %v570
        %v572 = vrot.slane %v465, 1
        %v573 = vrot.slane %v466, 1
        %v574 = vsel %vm546, %v572, %v573
        %v575 = vrot.slane %v467, 1
        %v576 = vsel %vm546, %v573, %v575
        %v577 = vrot.slane %v468, 1
        %v578 = vrot.slane %v469, 1
        %v579 = vsel %vm546, %v577, %v578
        %v580 = vrot.slane %v470, 1
        %v581 = vsel %vm546, %v578, %v580
        %v582 = vrot.slane %v471, 1
        %v583 = vrot.slane %v472, 1
        %v584 = vsel %vm546, %v582, %v583
        %v585 = vrot.slane %v473, 1
        %v586 = vsel %vm546, %v583, %v585
        %v587 = vrot.slane %v474, 1
        %v588 = vrot.slane %v475, 1
        %v589 = vsel %vm546, %v587, %v588
        %v590 = vrot.slane %v476, 1
        %v591 = vsel %vm546, %v588, %v590
        %v592 = vrot.slane %v477, 1
        %v593 = vrot.slane %v478, 1
        %v594 = vsel %vm546, %v592, %v593
        %v595 = vrot.slane %v479, 1
        %v596 = vsel %vm546, %v593, %v595
        %v597 = vrot.slane %v480, 1
        %v598 = vrot.slane %v481, 1
        %v599 = vsel %vm546, %v597, %v598
        %v600 = vrot.slane %v482, 1
        %v601 = vsel %vm546, %v598, %v600
        %v602 = vrot.slane %v483, 1
        %v603 = vrot.slane %v484, 1
        %v604 = vsel %vm546, %v602, %v603
        %v605 = vrot.slane %v485, 1
        %v606 = vsel %vm546, %v603, %v605
        %v607 = vrot.slane %v486, 1
        %v608 = vrot.slane %v487, 1
        %v609 = vsel %vm546, %v607, %v608
        %v610 = vrot.slane %v488, 1
        %v611 = vsel %vm546, %v608, %v610
        %v612 = vrot.slane %v489, 1
        %v613 = vrot.slane %v490, 1
        %v614 = vsel %vm546, %v612, %v613
        %v615 = vrot.slane %v491, 1
        %v616 = vsel %vm546, %v613, %v615
        %v617 = vrot.slane %v492, 1
        %v618 = vrot.slane %v493, 1
        %v619 = vsel %vm546, %v617, %v618
        %v620 = vrot.slane %v494, 1
        %v621 = vsel %vm546, %v618, %v620
        %v622 = vrot.slane %v495, 1
        %v623 = vrot.slane %v496, 1
        %v624 = vsel %vm546, %v622, %v623
        %v625 = vrot.slane %v497, 1
        %v626 = vsel %vm546, %v623, %v625
        %v659 = vadd.f32 %v410, %v549
        %v660 = vadd.f32 %v411, %v551
        %v661 = vadd.f32 %v412, %v554
        %v662 = vadd.f32 %v413, %v556
        %v663 = vadd.f32 %v414, %v559
        %v664 = vadd.f32 %v415, %v561
        %v665 = vadd.f32 %v416, %v564
        %v666 = vadd.f32 %v417, %v566
        %v667 = vadd.f32 %v418, %v569
        %v668 = vadd.f32 %v419, %v571
        %v669 = vadd.f32 %v420, %v574
        %v670 = vadd.f32 %v421, %v576
        %v671 = vadd.f32 %v422, %v579
        %v672 = vadd.f32 %v423, %v581
        %v673 = vadd.f32 %v424, %v584
        %v674 = vadd.f32 %v425, %v586
        %v675 = vadd.f32 %v426, %v589
        %v676 = vadd.f32 %v427, %v591
        %v677 = vadd.f32 %v428, %v594
        %v678 = vadd.f32 %v429, %v596
        %v679 = vadd.f32 %v430, %v599
        %v680 = vadd.f32 %v431, %v601
        %v681 = vadd.f32 %v432, %v604
        %v682 = vadd.f32 %v433, %v606
        %v683 = vadd.f32 %v434, %v609
        %v684 = vadd.f32 %v435, %v611
        %v685 = vadd.f32 %v436, %v614
        %v686 = vadd.f32 %v437, %v616
        %v687 = vadd.f32 %v438, %v619
        %v688 = vadd.f32 %v439, %v621
        %v689 = vadd.f32 %v440, %v624
        %v690 = vadd.f32 %v441, %v626
        %s691 = scalar_lea.vmem %s1, 2
        %v692 = vld [vmem:[%s691] sm:$0x1]
        %v694 = vlaneseq
        %v695 = vshrl.u32 %v694, 7
        %v696 = vsub.s32 0, %v695
        %v697 = vrot.slane %v692, %v696
        %v699 = vmul.f32 %v349, %v697
        %v700 = vmul.f32 %v350, %v697
        %v701 = vmul.f32 %v351, %v697
        %v702 = vmul.f32 %v352, %v697
        %v703 = vmul.f32 %v353, %v697
        %v704 = vmul.f32 %v354, %v697
        %v705 = vmul.f32 %v355, %v697
        %v706 = vmul.f32 %v356, %v697
        %v707 = vmul.f32 %v357, %v697
        %v708 = vmul.f32 %v358, %v697
        %v709 = vmul.f32 %v359, %v697
        %v710 = vmul.f32 %v360, %v697
        %v711 = vmul.f32 %v361, %v697
        %v712 = vmul.f32 %v362, %v697
        %v713 = vmul.f32 %v363, %v697
        %v714 = vmul.f32 %v364, %v697
        %v715 = vmul.f32 %v365, %v697
        %v716 = vmul.f32 %v366, %v697
        %v717 = vmul.f32 %v367, %v697
        %v718 = vmul.f32 %v368, %v697
        %v719 = vmul.f32 %v369, %v697
        %v720 = vmul.f32 %v370, %v697
        %v721 = vmul.f32 %v371, %v697
        %v722 = vmul.f32 %v372, %v697
        %v723 = vmul.f32 %v373, %v697
        %v724 = vmul.f32 %v374, %v697
        %v725 = vmul.f32 %v375, %v697
        %v726 = vmul.f32 %v376, %v697
        %v727 = vmul.f32 %v377, %v697
        %v728 = vmul.f32 %v378, %v697
        %v729 = vmul.f32 %v379, %v697
        %v730 = vmul.f32 %v380, %v697
        %v731 = vmul.f32 %v381, %v697
        %v732 = vmul.f32 %v382, %v697
        %v733 = vmul.f32 %v383, %v697
        %v734 = vmul.f32 %v384, %v697
        %v735 = vmul.f32 %v385, %v697
        %v736 = vmul.f32 %v386, %v697
        %v737 = vmul.f32 %v387, %v697
        %v738 = vmul.f32 %v388, %v697
        %v739 = vmul.f32 %v389, %v697
        %v740 = vmul.f32 %v390, %v697
        %v741 = vmul.f32 %v391, %v697
        %v742 = vmul.f32 %v392, %v697
        %v743 = vmul.f32 %v393, %v697
        %v744 = vmul.f32 %v394, %v697
        %v745 = vmul.f32 %v395, %v697
        %v746 = vmul.f32 %v396, %v697
        %vm795 = vcmask 1045504
        %v796 = vrot.slane %v699, 2
        %v797 = vrot.slane %v700, 2
        %v798 = vsel %vm795, %v796, %v797
        %v799 = vrot.slane %v701, 2
        %v800 = vsel %vm795, %v797, %v799
        %v801 = vrot.slane %v702, 2
        %v802 = vrot.slane %v703, 2
        %v803 = vsel %vm795, %v801, %v802
        %v804 = vrot.slane %v704, 2
        %v805 = vsel %vm795, %v802, %v804
        %v806 = vrot.slane %v705, 2
        %v807 = vrot.slane %v706, 2
        %v808 = vsel %vm795, %v806, %v807
        %v809 = vrot.slane %v707, 2
        %v810 = vsel %vm795, %v807, %v809
        %v811 = vrot.slane %v708, 2
        %v812 = vrot.slane %v709, 2
        %v813 = vsel %vm795, %v811, %v812
        %v814 = vrot.slane %v710, 2
        %v815 = vsel %vm795, %v812, %v814
        %v816 = vrot.slane %v711, 2
        %v817 = vrot.slane %v712, 2
        %v818 = vsel %vm795, %v816, %v817
        %v819 = vrot.slane %v713, 2
        %v820 = vsel %vm795, %v817, %v819
        %v821 = vrot.slane %v714, 2
        %v822 = vrot.slane %v715, 2
        %v823 = vsel %vm795, %v821, %v822
        %v824 = vrot.slane %v716, 2
        %v825 = vsel %vm795, %v822, %v824
        %v826 = vrot.slane %v717, 2
        %v827 = vrot.slane %v718, 2
        %v828 = vsel %vm795, %v826, %v827
        %v829 = vrot.slane %v719, 2
        %v830 = vsel %vm795, %v827, %v829
        %v831 = vrot.slane %v720, 2
        %v832 = vrot.slane %v721, 2
        %v833 = vsel %vm795, %v831, %v832
        %v834 = vrot.slane %v722, 2
        %v835 = vsel %vm795, %v832, %v834
        %v836 = vrot.slane %v723, 2
        %v837 = vrot.slane %v724, 2
        %v838 = vsel %vm795, %v836, %v837
        %v839 = vrot.slane %v725, 2
        %v840 = vsel %vm795, %v837, %v839
        %v841 = vrot.slane %v726, 2
        %v842 = vrot.slane %v727, 2
        %v843 = vsel %vm795, %v841, %v842
        %v844 = vrot.slane %v728, 2
        %v845 = vsel %vm795, %v842, %v844
        %v846 = vrot.slane %v729, 2
        %v847 = vrot.slane %v730, 2
        %v848 = vsel %vm795, %v846, %v847
        %v849 = vrot.slane %v731, 2
        %v850 = vsel %vm795, %v847, %v849
        %v851 = vrot.slane %v732, 2
        %v852 = vrot.slane %v733, 2
        %v853 = vsel %vm795, %v851, %v852
        %v854 = vrot.slane %v734, 2
        %v855 = vsel %vm795, %v852, %v854
        %v856 = vrot.slane %v735, 2
        %v857 = vrot.slane %v736, 2
        %v858 = vsel %vm795, %v856, %v857
        %v859 = vrot.slane %v737, 2
        %v860 = vsel %vm795, %v857, %v859
        %v861 = vrot.slane %v738, 2
        %v862 = vrot.slane %v739, 2
        %v863 = vsel %vm795, %v861, %v862
        %v864 = vrot.slane %v740, 2
        %v865 = vsel %vm795, %v862, %v864
        %v866 = vrot.slane %v741, 2
        %v867 = vrot.slane %v742, 2
        %v868 = vsel %vm795, %v866, %v867
        %v869 = vrot.slane %v743, 2
        %v870 = vsel %vm795, %v867, %v869
        %v871 = vrot.slane %v744, 2
        %v872 = vrot.slane %v745, 2
        %v873 = vsel %vm795, %v871, %v872
        %v874 = vrot.slane %v746, 2
        %v875 = vsel %vm795, %v872, %v874
        %v908 = vadd.f32 %v659, %v798
        %v909 = vadd.f32 %v660, %v800
        %v910 = vadd.f32 %v661, %v803
        %v911 = vadd.f32 %v662, %v805
        %v912 = vadd.f32 %v663, %v808
        %v913 = vadd.f32 %v664, %v810
        %v914 = vadd.f32 %v665, %v813
        %v915 = vadd.f32 %v666, %v815
        %v916 = vadd.f32 %v667, %v818
        %v917 = vadd.f32 %v668, %v820
        %v918 = vadd.f32 %v669, %v823
        %v919 = vadd.f32 %v670, %v825
        %v920 = vadd.f32 %v671, %v828
        %v921 = vadd.f32 %v672, %v830
        %v922 = vadd.f32 %v673, %v833
        %v923 = vadd.f32 %v674, %v835
        %v924 = vadd.f32 %v675, %v838
        %v925 = vadd.f32 %v676, %v840
        %v926 = vadd.f32 %v677, %v843
        %v927 = vadd.f32 %v678, %v845
        %v928 = vadd.f32 %v679, %v848
        %v929 = vadd.f32 %v680, %v850
        %v930 = vadd.f32 %v681, %v853
        %v931 = vadd.f32 %v682, %v855
        %v932 = vadd.f32 %v683, %v858
        %v933 = vadd.f32 %v684, %v860
        %v934 = vadd.f32 %v685, %v863
        %v935 = vadd.f32 %v686, %v865
        %v936 = vadd.f32 %v687, %v868
        %v937 = vadd.f32 %v688, %v870
        %v938 = vadd.f32 %v689, %v873
        %v939 = vadd.f32 %v690, %v875
        %s940 = scalar_lea.vmem %s1, 3
        %v941 = vld [vmem:[%s940] sm:$0x1]
        %v943 = vlaneseq
        %v944 = vshrl.u32 %v943, 7
        %v945 = vsub.s32 0, %v944
        %v946 = vrot.slane %v941, %v945
        %v948 = vmul.f32 %v352, %v946
        %v949 = vmul.f32 %v353, %v946
        %v950 = vmul.f32 %v355, %v946
        %v951 = vmul.f32 %v356, %v946
        %v952 = vmul.f32 %v358, %v946
        %v953 = vmul.f32 %v359, %v946
        %v954 = vmul.f32 %v361, %v946
        %v955 = vmul.f32 %v362, %v946
        %v956 = vmul.f32 %v364, %v946
        %v957 = vmul.f32 %v365, %v946
        %v958 = vmul.f32 %v367, %v946
        %v959 = vmul.f32 %v368, %v946
        %v960 = vmul.f32 %v370, %v946
        %v961 = vmul.f32 %v371, %v946
        %v962 = vmul.f32 %v373, %v946
        %v963 = vmul.f32 %v374, %v946
        %v964 = vmul.f32 %v376, %v946
        %v965 = vmul.f32 %v377, %v946
        %v966 = vmul.f32 %v379, %v946
        %v967 = vmul.f32 %v380, %v946
        %v968 = vmul.f32 %v382, %v946
        %v969 = vmul.f32 %v383, %v946
        %v970 = vmul.f32 %v385, %v946
        %v971 = vmul.f32 %v386, %v946
        %v972 = vmul.f32 %v388, %v946
        %v973 = vmul.f32 %v389, %v946
        %v974 = vmul.f32 %v391, %v946
        %v975 = vmul.f32 %v392, %v946
        %v976 = vmul.f32 %v394, %v946
        %v977 = vmul.f32 %v395, %v946
        %v978 = vmul.f32 %v397, %v946
        %v979 = vmul.f32 %v398, %v946
        %v980 = vadd.f32 %v908, %v948
        %v981 = vadd.f32 %v909, %v949
        %v982 = vadd.f32 %v910, %v950
        %v983 = vadd.f32 %v911, %v951
        %v984 = vadd.f32 %v912, %v952
        %v985 = vadd.f32 %v913, %v953
        %v986 = vadd.f32 %v914, %v954
        %v987 = vadd.f32 %v915, %v955
        %v988 = vadd.f32 %v916, %v956
        %v989 = vadd.f32 %v917, %v957
        %v990 = vadd.f32 %v918, %v958
        %v991 = vadd.f32 %v919, %v959
        %v992 = vadd.f32 %v920, %v960
        %v993 = vadd.f32 %v921, %v961
        %v994 = vadd.f32 %v922, %v962
        %v995 = vadd.f32 %v923, %v963
        %v996 = vadd.f32 %v924, %v964
        %v997 = vadd.f32 %v925, %v965
        %v998 = vadd.f32 %v926, %v966
        %v999 = vadd.f32 %v927, %v967
        %v1000 = vadd.f32 %v928, %v968
        %v1001 = vadd.f32 %v929, %v969
        %v1002 = vadd.f32 %v930, %v970
        %v1003 = vadd.f32 %v931, %v971
        %v1004 = vadd.f32 %v932, %v972
        %v1005 = vadd.f32 %v933, %v973
        %v1006 = vadd.f32 %v934, %v974
        %v1007 = vadd.f32 %v935, %v975
        %v1008 = vadd.f32 %v936, %v976
        %v1009 = vadd.f32 %v937, %v977
        %v1010 = vadd.f32 %v938, %v978
        %v1011 = vadd.f32 %v939, %v979
        %s1012 = scalar_lea.vmem %s1, 4
        %v1013 = vld [vmem:[%s1012] sm:$0x1]
        %v1015 = vlaneseq
        %v1016 = vshrl.u32 %v1015, 7
        %v1017 = vsub.s32 0, %v1016
        %v1018 = vrot.slane %v1013, %v1017
        %v1020 = vmul.f32 %v352, %v1018
        %v1021 = vmul.f32 %v353, %v1018
        %v1022 = vmul.f32 %v354, %v1018
        %v1023 = vmul.f32 %v355, %v1018
        %v1024 = vmul.f32 %v356, %v1018
        %v1025 = vmul.f32 %v357, %v1018
        %v1026 = vmul.f32 %v358, %v1018
        %v1027 = vmul.f32 %v359, %v1018
        %v1028 = vmul.f32 %v360, %v1018
        %v1029 = vmul.f32 %v361, %v1018
        %v1030 = vmul.f32 %v362, %v1018
        %v1031 = vmul.f32 %v363, %v1018
        %v1032 = vmul.f32 %v364, %v1018
        %v1033 = vmul.f32 %v365, %v1018
        %v1034 = vmul.f32 %v366, %v1018
        %v1035 = vmul.f32 %v367, %v1018
        %v1036 = vmul.f32 %v368, %v1018
        %v1037 = vmul.f32 %v369, %v1018
        %v1038 = vmul.f32 %v370, %v1018
        %v1039 = vmul.f32 %v371, %v1018
        %v1040 = vmul.f32 %v372, %v1018
        %v1041 = vmul.f32 %v373, %v1018
        %v1042 = vmul.f32 %v374, %v1018
        %v1043 = vmul.f32 %v375, %v1018
        %v1044 = vmul.f32 %v376, %v1018
        %v1045 = vmul.f32 %v377, %v1018
        %v1046 = vmul.f32 %v378, %v1018
        %v1047 = vmul.f32 %v379, %v1018
        %v1048 = vmul.f32 %v380, %v1018
        %v1049 = vmul.f32 %v381, %v1018
        %v1050 = vmul.f32 %v382, %v1018
        %v1051 = vmul.f32 %v383, %v1018
        %v1052 = vmul.f32 %v384, %v1018
        %v1053 = vmul.f32 %v385, %v1018
        %v1054 = vmul.f32 %v386, %v1018
        %v1055 = vmul.f32 %v387, %v1018
        %v1056 = vmul.f32 %v388, %v1018
        %v1057 = vmul.f32 %v389, %v1018
        %v1058 = vmul.f32 %v390, %v1018
        %v1059 = vmul.f32 %v391, %v1018
        %v1060 = vmul.f32 %v392, %v1018
        %v1061 = vmul.f32 %v393, %v1018
        %v1062 = vmul.f32 %v394, %v1018
        %v1063 = vmul.f32 %v395, %v1018
        %v1064 = vmul.f32 %v396, %v1018
        %v1065 = vmul.f32 %v397, %v1018
        %v1066 = vmul.f32 %v398, %v1018
        %v1067 = vmul.f32 %v399, %v1018
        %v1116 = vrot.slane %v1020, 1
        %v1117 = vrot.slane %v1021, 1
        %v1118 = vsel %vm546, %v1116, %v1117
        %v1119 = vrot.slane %v1022, 1
        %v1120 = vsel %vm546, %v1117, %v1119
        %v1121 = vrot.slane %v1023, 1
        %v1122 = vrot.slane %v1024, 1
        %v1123 = vsel %vm546, %v1121, %v1122
        %v1124 = vrot.slane %v1025, 1
        %v1125 = vsel %vm546, %v1122, %v1124
        %v1126 = vrot.slane %v1026, 1
        %v1127 = vrot.slane %v1027, 1
        %v1128 = vsel %vm546, %v1126, %v1127
        %v1129 = vrot.slane %v1028, 1
        %v1130 = vsel %vm546, %v1127, %v1129
        %v1131 = vrot.slane %v1029, 1
        %v1132 = vrot.slane %v1030, 1
        %v1133 = vsel %vm546, %v1131, %v1132
        %v1134 = vrot.slane %v1031, 1
        %v1135 = vsel %vm546, %v1132, %v1134
        %v1136 = vrot.slane %v1032, 1
        %v1137 = vrot.slane %v1033, 1
        %v1138 = vsel %vm546, %v1136, %v1137
        %v1139 = vrot.slane %v1034, 1
        %v1140 = vsel %vm546, %v1137, %v1139
        %v1141 = vrot.slane %v1035, 1
        %v1142 = vrot.slane %v1036, 1
        %v1143 = vsel %vm546, %v1141, %v1142
        %v1144 = vrot.slane %v1037, 1
        %v1145 = vsel %vm546, %v1142, %v1144
        %v1146 = vrot.slane %v1038, 1
        %v1147 = vrot.slane %v1039, 1
        %v1148 = vsel %vm546, %v1146, %v1147
        %v1149 = vrot.slane %v1040, 1
        %v1150 = vsel %vm546, %v1147, %v1149
        %v1151 = vrot.slane %v1041, 1
        %v1152 = vrot.slane %v1042, 1
        %v1153 = vsel %vm546, %v1151, %v1152
        %v1154 = vrot.slane %v1043, 1
        %v1155 = vsel %vm546, %v1152, %v1154
        %v1156 = vrot.slane %v1044, 1
        %v1157 = vrot.slane %v1045, 1
        %v1158 = vsel %vm546, %v1156, %v1157
        %v1159 = vrot.slane %v1046, 1
        %v1160 = vsel %vm546, %v1157, %v1159
        %v1161 = vrot.slane %v1047, 1
        %v1162 = vrot.slane %v1048, 1
        %v1163 = vsel %vm546, %v1161, %v1162
        %v1164 = vrot.slane %v1049, 1
        %v1165 = vsel %vm546, %v1162, %v1164
        %v1166 = vrot.slane %v1050, 1
        %v1167 = vrot.slane %v1051, 1
        %v1168 = vsel %vm546, %v1166, %v1167
        %v1169 = vrot.slane %v1052, 1
        %v1170 = vsel %vm546, %v1167, %v1169
        %v1171 = vrot.slane %v1053, 1
        %v1172 = vrot.slane %v1054, 1
        %v1173 = vsel %vm546, %v1171, %v1172
        %v1174 = vrot.slane %v1055, 1
        %v1175 = vsel %vm546, %v1172, %v1174
        %v1176 = vrot.slane %v1056, 1
        %v1177 = vrot.slane %v1057, 1
        %v1178 = vsel %vm546, %v1176, %v1177
        %v1179 = vrot.slane %v1058, 1
        %v1180 = vsel %vm546, %v1177, %v1179
        %v1181 = vrot.slane %v1059, 1
        %v1182 = vrot.slane %v1060, 1
        %v1183 = vsel %vm546, %v1181, %v1182
        %v1184 = vrot.slane %v1061, 1
        %v1185 = vsel %vm546, %v1182, %v1184
        %v1186 = vrot.slane %v1062, 1
        %v1187 = vrot.slane %v1063, 1
        %v1188 = vsel %vm546, %v1186, %v1187
        %v1189 = vrot.slane %v1064, 1
        %v1190 = vsel %vm546, %v1187, %v1189
        %v1191 = vrot.slane %v1065, 1
        %v1192 = vrot.slane %v1066, 1
        %v1193 = vsel %vm546, %v1191, %v1192
        %v1194 = vrot.slane %v1067, 1
        %v1195 = vsel %vm546, %v1192, %v1194
        %v1228 = vadd.f32 %v980, %v1118
        %v1229 = vadd.f32 %v981, %v1120
        %v1230 = vadd.f32 %v982, %v1123
        %v1231 = vadd.f32 %v983, %v1125
        %v1232 = vadd.f32 %v984, %v1128
        %v1233 = vadd.f32 %v985, %v1130
        %v1234 = vadd.f32 %v986, %v1133
        %v1235 = vadd.f32 %v987, %v1135
        %v1236 = vadd.f32 %v988, %v1138
        %v1237 = vadd.f32 %v989, %v1140
        %v1238 = vadd.f32 %v990, %v1143
        %v1239 = vadd.f32 %v991, %v1145
        %v1240 = vadd.f32 %v992, %v1148
        %v1241 = vadd.f32 %v993, %v1150
        %v1242 = vadd.f32 %v994, %v1153
        %v1243 = vadd.f32 %v995, %v1155
        %v1244 = vadd.f32 %v996, %v1158
        %v1245 = vadd.f32 %v997, %v1160
        %v1246 = vadd.f32 %v998, %v1163
        %v1247 = vadd.f32 %v999, %v1165
        %v1248 = vadd.f32 %v1000, %v1168
        %v1249 = vadd.f32 %v1001, %v1170
        %v1250 = vadd.f32 %v1002, %v1173
        %v1251 = vadd.f32 %v1003, %v1175
        %v1252 = vadd.f32 %v1004, %v1178
        %v1253 = vadd.f32 %v1005, %v1180
        %v1254 = vadd.f32 %v1006, %v1183
        %v1255 = vadd.f32 %v1007, %v1185
        %v1256 = vadd.f32 %v1008, %v1188
        %v1257 = vadd.f32 %v1009, %v1190
        %v1258 = vadd.f32 %v1010, %v1193
        %v1259 = vadd.f32 %v1011, %v1195
        %s1260 = scalar_lea.vmem %s1, 5
        %v1261 = vld [vmem:[%s1260] sm:$0x1]
        %v1263 = vlaneseq
        %v1264 = vshrl.u32 %v1263, 7
        %v1265 = vsub.s32 0, %v1264
        %v1266 = vrot.slane %v1261, %v1265
        %v1268 = vmul.f32 %v352, %v1266
        %v1269 = vmul.f32 %v353, %v1266
        %v1270 = vmul.f32 %v354, %v1266
        %v1271 = vmul.f32 %v355, %v1266
        %v1272 = vmul.f32 %v356, %v1266
        %v1273 = vmul.f32 %v357, %v1266
        %v1274 = vmul.f32 %v358, %v1266
        %v1275 = vmul.f32 %v359, %v1266
        %v1276 = vmul.f32 %v360, %v1266
        %v1277 = vmul.f32 %v361, %v1266
        %v1278 = vmul.f32 %v362, %v1266
        %v1279 = vmul.f32 %v363, %v1266
        %v1280 = vmul.f32 %v364, %v1266
        %v1281 = vmul.f32 %v365, %v1266
        %v1282 = vmul.f32 %v366, %v1266
        %v1283 = vmul.f32 %v367, %v1266
        %v1284 = vmul.f32 %v368, %v1266
        %v1285 = vmul.f32 %v369, %v1266
        %v1286 = vmul.f32 %v370, %v1266
        %v1287 = vmul.f32 %v371, %v1266
        %v1288 = vmul.f32 %v372, %v1266
        %v1289 = vmul.f32 %v373, %v1266
        %v1290 = vmul.f32 %v374, %v1266
        %v1291 = vmul.f32 %v375, %v1266
        %v1292 = vmul.f32 %v376, %v1266
        %v1293 = vmul.f32 %v377, %v1266
        %v1294 = vmul.f32 %v378, %v1266
        %v1295 = vmul.f32 %v379, %v1266
        %v1296 = vmul.f32 %v380, %v1266
        %v1297 = vmul.f32 %v381, %v1266
        %v1298 = vmul.f32 %v382, %v1266
        %v1299 = vmul.f32 %v383, %v1266
        %v1300 = vmul.f32 %v384, %v1266
        %v1301 = vmul.f32 %v385, %v1266
        %v1302 = vmul.f32 %v386, %v1266
        %v1303 = vmul.f32 %v387, %v1266
        %v1304 = vmul.f32 %v388, %v1266
        %v1305 = vmul.f32 %v389, %v1266
        %v1306 = vmul.f32 %v390, %v1266
        %v1307 = vmul.f32 %v391, %v1266
        %v1308 = vmul.f32 %v392, %v1266
        %v1309 = vmul.f32 %v393, %v1266
        %v1310 = vmul.f32 %v394, %v1266
        %v1311 = vmul.f32 %v395, %v1266
        %v1312 = vmul.f32 %v396, %v1266
        %v1313 = vmul.f32 %v397, %v1266
        %v1314 = vmul.f32 %v398, %v1266
        %v1315 = vmul.f32 %v399, %v1266
        %v1364 = vrot.slane %v1268, 2
        %v1365 = vrot.slane %v1269, 2
        %v1366 = vsel %vm795, %v1364, %v1365
        %v1367 = vrot.slane %v1270, 2
        %v1368 = vsel %vm795, %v1365, %v1367
        %v1369 = vrot.slane %v1271, 2
        %v1370 = vrot.slane %v1272, 2
        %v1371 = vsel %vm795, %v1369, %v1370
        %v1372 = vrot.slane %v1273, 2
        %v1373 = vsel %vm795, %v1370, %v1372
        %v1374 = vrot.slane %v1274, 2
        %v1375 = vrot.slane %v1275, 2
        %v1376 = vsel %vm795, %v1374, %v1375
        %v1377 = vrot.slane %v1276, 2
        %v1378 = vsel %vm795, %v1375, %v1377
        %v1379 = vrot.slane %v1277, 2
        %v1380 = vrot.slane %v1278, 2
        %v1381 = vsel %vm795, %v1379, %v1380
        %v1382 = vrot.slane %v1279, 2
        %v1383 = vsel %vm795, %v1380, %v1382
        %v1384 = vrot.slane %v1280, 2
        %v1385 = vrot.slane %v1281, 2
        %v1386 = vsel %vm795, %v1384, %v1385
        %v1387 = vrot.slane %v1282, 2
        %v1388 = vsel %vm795, %v1385, %v1387
        %v1389 = vrot.slane %v1283, 2
        %v1390 = vrot.slane %v1284, 2
        %v1391 = vsel %vm795, %v1389, %v1390
        %v1392 = vrot.slane %v1285, 2
        %v1393 = vsel %vm795, %v1390, %v1392
        %v1394 = vrot.slane %v1286, 2
        %v1395 = vrot.slane %v1287, 2
        %v1396 = vsel %vm795, %v1394, %v1395
        %v1397 = vrot.slane %v1288, 2
        %v1398 = vsel %vm795, %v1395, %v1397
        %v1399 = vrot.slane %v1289, 2
        %v1400 = vrot.slane %v1290, 2
        %v1401 = vsel %vm795, %v1399, %v1400
        %v1402 = vrot.slane %v1291, 2
        %v1403 = vsel %vm795, %v1400, %v1402
        %v1404 = vrot.slane %v1292, 2
        %v1405 = vrot.slane %v1293, 2
        %v1406 = vsel %vm795, %v1404, %v1405
        %v1407 = vrot.slane %v1294, 2
        %v1408 = vsel %vm795, %v1405, %v1407
        %v1409 = vrot.slane %v1295, 2
        %v1410 = vrot.slane %v1296, 2
        %v1411 = vsel %vm795, %v1409, %v1410
        %v1412 = vrot.slane %v1297, 2
        %v1413 = vsel %vm795, %v1410, %v1412
        %v1414 = vrot.slane %v1298, 2
        %v1415 = vrot.slane %v1299, 2
        %v1416 = vsel %vm795, %v1414, %v1415
        %v1417 = vrot.slane %v1300, 2
        %v1418 = vsel %vm795, %v1415, %v1417
        %v1419 = vrot.slane %v1301, 2
        %v1420 = vrot.slane %v1302, 2
        %v1421 = vsel %vm795, %v1419, %v1420
        %v1422 = vrot.slane %v1303, 2
        %v1423 = vsel %vm795, %v1420, %v1422
        %v1424 = vrot.slane %v1304, 2
        %v1425 = vrot.slane %v1305, 2
        %v1426 = vsel %vm795, %v1424, %v1425
        %v1427 = vrot.slane %v1306, 2
        %v1428 = vsel %vm795, %v1425, %v1427
        %v1429 = vrot.slane %v1307, 2
        %v1430 = vrot.slane %v1308, 2
        %v1431 = vsel %vm795, %v1429, %v1430
        %v1432 = vrot.slane %v1309, 2
        %v1433 = vsel %vm795, %v1430, %v1432
        %v1434 = vrot.slane %v1310, 2
        %v1435 = vrot.slane %v1311, 2
        %v1436 = vsel %vm795, %v1434, %v1435
        %v1437 = vrot.slane %v1312, 2
        %v1438 = vsel %vm795, %v1435, %v1437
        %v1439 = vrot.slane %v1313, 2
        %v1440 = vrot.slane %v1314, 2
        %v1441 = vsel %vm795, %v1439, %v1440
        %v1442 = vrot.slane %v1315, 2
        %v1443 = vsel %vm795, %v1440, %v1442
        %v1476 = vadd.f32 %v1228, %v1366
        %v1477 = vadd.f32 %v1229, %v1368
        %v1478 = vadd.f32 %v1230, %v1371
        %v1479 = vadd.f32 %v1231, %v1373
        %v1480 = vadd.f32 %v1232, %v1376
        %v1481 = vadd.f32 %v1233, %v1378
        %v1482 = vadd.f32 %v1234, %v1381
        %v1483 = vadd.f32 %v1235, %v1383
        %v1484 = vadd.f32 %v1236, %v1386
        %v1485 = vadd.f32 %v1237, %v1388
        %v1486 = vadd.f32 %v1238, %v1391
        %v1487 = vadd.f32 %v1239, %v1393
        %v1488 = vadd.f32 %v1240, %v1396
        %v1489 = vadd.f32 %v1241, %v1398
        %v1490 = vadd.f32 %v1242, %v1401
        %v1491 = vadd.f32 %v1243, %v1403
        %v1492 = vadd.f32 %v1244, %v1406
        %v1493 = vadd.f32 %v1245, %v1408
        %v1494 = vadd.f32 %v1246, %v1411
        %v1495 = vadd.f32 %v1247, %v1413
        %v1496 = vadd.f32 %v1248, %v1416
        %v1497 = vadd.f32 %v1249, %v1418
        %v1498 = vadd.f32 %v1250, %v1421
        %v1499 = vadd.f32 %v1251, %v1423
        %v1500 = vadd.f32 %v1252, %v1426
        %v1501 = vadd.f32 %v1253, %v1428
        %v1502 = vadd.f32 %v1254, %v1431
        %v1503 = vadd.f32 %v1255, %v1433
        %v1504 = vadd.f32 %v1256, %v1436
        %v1505 = vadd.f32 %v1257, %v1438
        %v1506 = vadd.f32 %v1258, %v1441
        %v1507 = vadd.f32 %v1259, %v1443
        %s1508 = scalar_lea.vmem %s1, 6
        %v1509 = vld [vmem:[%s1508] sm:$0x1]
        %v1511 = vlaneseq
        %v1512 = vshrl.u32 %v1511, 7
        %v1513 = vsub.s32 0, %v1512
        %v1514 = vrot.slane %v1509, %v1513
        %v1516 = vmul.f32 %v355, %v1514
        %v1517 = vmul.f32 %v356, %v1514
        %v1518 = vmul.f32 %v358, %v1514
        %v1519 = vmul.f32 %v359, %v1514
        %v1520 = vmul.f32 %v361, %v1514
        %v1521 = vmul.f32 %v362, %v1514
        %v1522 = vmul.f32 %v364, %v1514
        %v1523 = vmul.f32 %v365, %v1514
        %v1524 = vmul.f32 %v367, %v1514
        %v1525 = vmul.f32 %v368, %v1514
        %v1526 = vmul.f32 %v370, %v1514
        %v1527 = vmul.f32 %v371, %v1514
        %v1528 = vmul.f32 %v373, %v1514
        %v1529 = vmul.f32 %v374, %v1514
        %v1530 = vmul.f32 %v376, %v1514
        %v1531 = vmul.f32 %v377, %v1514
        %v1532 = vmul.f32 %v379, %v1514
        %v1533 = vmul.f32 %v380, %v1514
        %v1534 = vmul.f32 %v382, %v1514
        %v1535 = vmul.f32 %v383, %v1514
        %v1536 = vmul.f32 %v385, %v1514
        %v1537 = vmul.f32 %v386, %v1514
        %v1538 = vmul.f32 %v388, %v1514
        %v1539 = vmul.f32 %v389, %v1514
        %v1540 = vmul.f32 %v391, %v1514
        %v1541 = vmul.f32 %v392, %v1514
        %v1542 = vmul.f32 %v394, %v1514
        %v1543 = vmul.f32 %v395, %v1514
        %v1544 = vmul.f32 %v397, %v1514
        %v1545 = vmul.f32 %v398, %v1514
        %v1546 = vmul.f32 %v400, %v1514
        %v1547 = vmul.f32 %v401, %v1514
        %v1548 = vadd.f32 %v1476, %v1516
        %v1549 = vadd.f32 %v1477, %v1517
        %v1550 = vadd.f32 %v1478, %v1518
        %v1551 = vadd.f32 %v1479, %v1519
        %v1552 = vadd.f32 %v1480, %v1520
        %v1553 = vadd.f32 %v1481, %v1521
        %v1554 = vadd.f32 %v1482, %v1522
        %v1555 = vadd.f32 %v1483, %v1523
        %v1556 = vadd.f32 %v1484, %v1524
        %v1557 = vadd.f32 %v1485, %v1525
        %v1558 = vadd.f32 %v1486, %v1526
        %v1559 = vadd.f32 %v1487, %v1527
        %v1560 = vadd.f32 %v1488, %v1528
        %v1561 = vadd.f32 %v1489, %v1529
        %v1562 = vadd.f32 %v1490, %v1530
        %v1563 = vadd.f32 %v1491, %v1531
        %v1564 = vadd.f32 %v1492, %v1532
        %v1565 = vadd.f32 %v1493, %v1533
        %v1566 = vadd.f32 %v1494, %v1534
        %v1567 = vadd.f32 %v1495, %v1535
        %v1568 = vadd.f32 %v1496, %v1536
        %v1569 = vadd.f32 %v1497, %v1537
        %v1570 = vadd.f32 %v1498, %v1538
        %v1571 = vadd.f32 %v1499, %v1539
        %v1572 = vadd.f32 %v1500, %v1540
        %v1573 = vadd.f32 %v1501, %v1541
        %v1574 = vadd.f32 %v1502, %v1542
        %v1575 = vadd.f32 %v1503, %v1543
        %v1576 = vadd.f32 %v1504, %v1544
        %v1577 = vadd.f32 %v1505, %v1545
        %v1578 = vadd.f32 %v1506, %v1546
        %v1579 = vadd.f32 %v1507, %v1547
        %s1580 = scalar_lea.vmem %s1, 7
        %v1581 = vld [vmem:[%s1580] sm:$0x1]
        %v1583 = vlaneseq
        %v1584 = vshrl.u32 %v1583, 7
        %v1585 = vsub.s32 0, %v1584
        %v1586 = vrot.slane %v1581, %v1585
        %v1588 = vmul.f32 %v355, %v1586
        %v1589 = vmul.f32 %v356, %v1586
        %v1590 = vmul.f32 %v357, %v1586
        %v1591 = vmul.f32 %v358, %v1586
        %v1592 = vmul.f32 %v359, %v1586
        %v1593 = vmul.f32 %v360, %v1586
        %v1594 = vmul.f32 %v361, %v1586
        %v1595 = vmul.f32 %v362, %v1586
        %v1596 = vmul.f32 %v363, %v1586
        %v1597 = vmul.f32 %v364, %v1586
        %v1598 = vmul.f32 %v365, %v1586
        %v1599 = vmul.f32 %v366, %v1586
        %v1600 = vmul.f32 %v367, %v1586
        %v1601 = vmul.f32 %v368, %v1586
        %v1602 = vmul.f32 %v369, %v1586
        %v1603 = vmul.f32 %v370, %v1586
        %v1604 = vmul.f32 %v371, %v1586
        %v1605 = vmul.f32 %v372, %v1586
        %v1606 = vmul.f32 %v373, %v1586
        %v1607 = vmul.f32 %v374, %v1586
        %v1608 = vmul.f32 %v375, %v1586
        %v1609 = vmul.f32 %v376, %v1586
        %v1610 = vmul.f32 %v377, %v1586
        %v1611 = vmul.f32 %v378, %v1586
        %v1612 = vmul.f32 %v379, %v1586
        %v1613 = vmul.f32 %v380, %v1586
        %v1614 = vmul.f32 %v381, %v1586
        %v1615 = vmul.f32 %v382, %v1586
        %v1616 = vmul.f32 %v383, %v1586
        %v1617 = vmul.f32 %v384, %v1586
        %v1618 = vmul.f32 %v385, %v1586
        %v1619 = vmul.f32 %v386, %v1586
        %v1620 = vmul.f32 %v387, %v1586
        %v1621 = vmul.f32 %v388, %v1586
        %v1622 = vmul.f32 %v389, %v1586
        %v1623 = vmul.f32 %v390, %v1586
        %v1624 = vmul.f32 %v391, %v1586
        %v1625 = vmul.f32 %v392, %v1586
        %v1626 = vmul.f32 %v393, %v1586
        %v1627 = vmul.f32 %v394, %v1586
        %v1628 = vmul.f32 %v395, %v1586
        %v1629 = vmul.f32 %v396, %v1586
        %v1630 = vmul.f32 %v397, %v1586
        %v1631 = vmul.f32 %v398, %v1586
        %v1632 = vmul.f32 %v399, %v1586
        %v1633 = vmul.f32 %v400, %v1586
        %v1634 = vmul.f32 %v401, %v1586
        %v1635 = vmul.f32 %v402, %v1586
        %v1684 = vrot.slane %v1588, 1
        %v1685 = vrot.slane %v1589, 1
        %v1686 = vsel %vm546, %v1684, %v1685
        %v1687 = vrot.slane %v1590, 1
        %v1688 = vsel %vm546, %v1685, %v1687
        %v1689 = vrot.slane %v1591, 1
        %v1690 = vrot.slane %v1592, 1
        %v1691 = vsel %vm546, %v1689, %v1690
        %v1692 = vrot.slane %v1593, 1
        %v1693 = vsel %vm546, %v1690, %v1692
        %v1694 = vrot.slane %v1594, 1
        %v1695 = vrot.slane %v1595, 1
        %v1696 = vsel %vm546, %v1694, %v1695
        %v1697 = vrot.slane %v1596, 1
        %v1698 = vsel %vm546, %v1695, %v1697
        %v1699 = vrot.slane %v1597, 1
        %v1700 = vrot.slane %v1598, 1
        %v1701 = vsel %vm546, %v1699, %v1700
        %v1702 = vrot.slane %v1599, 1
        %v1703 = vsel %vm546, %v1700, %v1702
        %v1704 = vrot.slane %v1600, 1
        %v1705 = vrot.slane %v1601, 1
        %v1706 = vsel %vm546, %v1704, %v1705
        %v1707 = vrot.slane %v1602, 1
        %v1708 = vsel %vm546, %v1705, %v1707
        %v1709 = vrot.slane %v1603, 1
        %v1710 = vrot.slane %v1604, 1
        %v1711 = vsel %vm546, %v1709, %v1710
        %v1712 = vrot.slane %v1605, 1
        %v1713 = vsel %vm546, %v1710, %v1712
        %v1714 = vrot.slane %v1606, 1
        %v1715 = vrot.slane %v1607, 1
        %v1716 = vsel %vm546, %v1714, %v1715
        %v1717 = vrot.slane %v1608, 1
        %v1718 = vsel %vm546, %v1715, %v1717
        %v1719 = vrot.slane %v1609, 1
        %v1720 = vrot.slane %v1610, 1
        %v1721 = vsel %vm546, %v1719, %v1720
        %v1722 = vrot.slane %v1611, 1
        %v1723 = vsel %vm546, %v1720, %v1722
        %v1724 = vrot.slane %v1612, 1
        %v1725 = vrot.slane %v1613, 1
        %v1726 = vsel %vm546, %v1724, %v1725
        %v1727 = vrot.slane %v1614, 1
        %v1728 = vsel %vm546, %v1725, %v1727
        %v1729 = vrot.slane %v1615, 1
        %v1730 = vrot.slane %v1616, 1
        %v1731 = vsel %vm546, %v1729, %v1730
        %v1732 = vrot.slane %v1617, 1
        %v1733 = vsel %vm546, %v1730, %v1732
        %v1734 = vrot.slane %v1618, 1
        %v1735 = vrot.slane %v1619, 1
        %v1736 = vsel %vm546, %v1734, %v1735
        %v1737 = vrot.slane %v1620, 1
        %v1738 = vsel %vm546, %v1735, %v1737
        %v1739 = vrot.slane %v1621, 1
        %v1740 = vrot.slane %v1622, 1
        %v1741 = vsel %vm546, %v1739, %v1740
        %v1742 = vrot.slane %v1623, 1
        %v1743 = vsel %vm546, %v1740, %v1742
        %v1744 = vrot.slane %v1624, 1
        %v1745 = vrot.slane %v1625, 1
        %v1746 = vsel %vm546, %v1744, %v1745
        %v1747 = vrot.slane %v1626, 1
        %v1748 = vsel %vm546, %v1745, %v1747
        %v1749 = vrot.slane %v1627, 1
        %v1750 = vrot.slane %v1628, 1
        %v1751 = vsel %vm546, %v1749, %v1750
        %v1752 = vrot.slane %v1629, 1
        %v1753 = vsel %vm546, %v1750, %v1752
        %v1754 = vrot.slane %v1630, 1
        %v1755 = vrot.slane %v1631, 1
        %v1756 = vsel %vm546, %v1754, %v1755
        %v1757 = vrot.slane %v1632, 1
        %v1758 = vsel %vm546, %v1755, %v1757
        %v1759 = vrot.slane %v1633, 1
        %v1760 = vrot.slane %v1634, 1
        %v1761 = vsel %vm546, %v1759, %v1760
        %v1762 = vrot.slane %v1635, 1
        %v1763 = vsel %vm546, %v1760, %v1762
        %v1796 = vadd.f32 %v1548, %v1686
        %v1797 = vadd.f32 %v1549, %v1688
        %v1798 = vadd.f32 %v1550, %v1691
        %v1799 = vadd.f32 %v1551, %v1693
        %v1800 = vadd.f32 %v1552, %v1696
        %v1801 = vadd.f32 %v1553, %v1698
        %v1802 = vadd.f32 %v1554, %v1701
        %v1803 = vadd.f32 %v1555, %v1703
        %v1804 = vadd.f32 %v1556, %v1706
        %v1805 = vadd.f32 %v1557, %v1708
        %v1806 = vadd.f32 %v1558, %v1711
        %v1807 = vadd.f32 %v1559, %v1713
        %v1808 = vadd.f32 %v1560, %v1716
        %v1809 = vadd.f32 %v1561, %v1718
        %v1810 = vadd.f32 %v1562, %v1721
        %v1811 = vadd.f32 %v1563, %v1723
        %v1812 = vadd.f32 %v1564, %v1726
        %v1813 = vadd.f32 %v1565, %v1728
        %v1814 = vadd.f32 %v1566, %v1731
        %v1815 = vadd.f32 %v1567, %v1733
        %v1816 = vadd.f32 %v1568, %v1736
        %v1817 = vadd.f32 %v1569, %v1738
        %v1818 = vadd.f32 %v1570, %v1741
        %v1819 = vadd.f32 %v1571, %v1743
        %v1820 = vadd.f32 %v1572, %v1746
        %v1821 = vadd.f32 %v1573, %v1748
        %v1822 = vadd.f32 %v1574, %v1751
        %v1823 = vadd.f32 %v1575, %v1753
        %v1824 = vadd.f32 %v1576, %v1756
        %v1825 = vadd.f32 %v1577, %v1758
        %v1826 = vadd.f32 %v1578, %v1761
        %v1827 = vadd.f32 %v1579, %v1763
        %s1828 = scalar_lea.vmem %s1, 8
        %v1829 = vld [vmem:[%s1828] sm:$0x1]
        %v1831 = vlaneseq
        %v1832 = vshrl.u32 %v1831, 7
        %v1833 = vsub.s32 0, %v1832
        %v1834 = vrot.slane %v1829, %v1833
        %v1836 = vmul.f32 %v355, %v1834
        %v1837 = vmul.f32 %v356, %v1834
        %v1838 = vmul.f32 %v357, %v1834
        %v1839 = vmul.f32 %v358, %v1834
        %v1840 = vmul.f32 %v359, %v1834
        %v1841 = vmul.f32 %v360, %v1834
        %v1842 = vmul.f32 %v361, %v1834
        %v1843 = vmul.f32 %v362, %v1834
        %v1844 = vmul.f32 %v363, %v1834
        %v1845 = vmul.f32 %v364, %v1834
        %v1846 = vmul.f32 %v365, %v1834
        %v1847 = vmul.f32 %v366, %v1834
        %v1848 = vmul.f32 %v367, %v1834
        %v1849 = vmul.f32 %v368, %v1834
        %v1850 = vmul.f32 %v369, %v1834
        %v1851 = vmul.f32 %v370, %v1834
        %v1852 = vmul.f32 %v371, %v1834
        %v1853 = vmul.f32 %v372, %v1834
        %v1854 = vmul.f32 %v373, %v1834
        %v1855 = vmul.f32 %v374, %v1834
        %v1856 = vmul.f32 %v375, %v1834
        %v1857 = vmul.f32 %v376, %v1834
        %v1858 = vmul.f32 %v377, %v1834
        %v1859 = vmul.f32 %v378, %v1834
        %v1860 = vmul.f32 %v379, %v1834
        %v1861 = vmul.f32 %v380, %v1834
        %v1862 = vmul.f32 %v381, %v1834
        %v1863 = vmul.f32 %v382, %v1834
        %v1864 = vmul.f32 %v383, %v1834
        %v1865 = vmul.f32 %v384, %v1834
        %v1866 = vmul.f32 %v385, %v1834
        %v1867 = vmul.f32 %v386, %v1834
        %v1868 = vmul.f32 %v387, %v1834
        %v1869 = vmul.f32 %v388, %v1834
        %v1870 = vmul.f32 %v389, %v1834
        %v1871 = vmul.f32 %v390, %v1834
        %v1872 = vmul.f32 %v391, %v1834
        %v1873 = vmul.f32 %v392, %v1834
        %v1874 = vmul.f32 %v393, %v1834
        %v1875 = vmul.f32 %v394, %v1834
        %v1876 = vmul.f32 %v395, %v1834
        %v1877 = vmul.f32 %v396, %v1834
        %v1878 = vmul.f32 %v397, %v1834
        %v1879 = vmul.f32 %v398, %v1834
        %v1880 = vmul.f32 %v399, %v1834
        %v1881 = vmul.f32 %v400, %v1834
        %v1882 = vmul.f32 %v401, %v1834
        %v1883 = vmul.f32 %v402, %v1834
        %v1932 = vrot.slane %v1836, 2
        %v1933 = vrot.slane %v1837, 2
        %v1934 = vsel %vm795, %v1932, %v1933
        %v1935 = vrot.slane %v1838, 2
        %v1936 = vsel %vm795, %v1933, %v1935
        %v1937 = vrot.slane %v1839, 2
        %v1938 = vrot.slane %v1840, 2
        %v1939 = vsel %vm795, %v1937, %v1938
        %v1940 = vrot.slane %v1841, 2
        %v1941 = vsel %vm795, %v1938, %v1940
        %v1942 = vrot.slane %v1842, 2
        %v1943 = vrot.slane %v1843, 2
        %v1944 = vsel %vm795, %v1942, %v1943
        %v1945 = vrot.slane %v1844, 2
        %v1946 = vsel %vm795, %v1943, %v1945
        %v1947 = vrot.slane %v1845, 2
        %v1948 = vrot.slane %v1846, 2
        %v1949 = vsel %vm795, %v1947, %v1948
        %v1950 = vrot.slane %v1847, 2
        %v1951 = vsel %vm795, %v1948, %v1950
        %v1952 = vrot.slane %v1848, 2
        %v1953 = vrot.slane %v1849, 2
        %v1954 = vsel %vm795, %v1952, %v1953
        %v1955 = vrot.slane %v1850, 2
        %v1956 = vsel %vm795, %v1953, %v1955
        %v1957 = vrot.slane %v1851, 2
        %v1958 = vrot.slane %v1852, 2
        %v1959 = vsel %vm795, %v1957, %v1958
        %v1960 = vrot.slane %v1853, 2
        %v1961 = vsel %vm795, %v1958, %v1960
        %v1962 = vrot.slane %v1854, 2
        %v1963 = vrot.slane %v1855, 2
        %v1964 = vsel %vm795, %v1962, %v1963
        %v1965 = vrot.slane %v1856, 2
        %v1966 = vsel %vm795, %v1963, %v1965
        %v1967 = vrot.slane %v1857, 2
        %v1968 = vrot.slane %v1858, 2
        %v1969 = vsel %vm795, %v1967, %v1968
        %v1970 = vrot.slane %v1859, 2
        %v1971 = vsel %vm795, %v1968, %v1970
        %v1972 = vrot.slane %v1860, 2
        %v1973 = vrot.slane %v1861, 2
        %v1974 = vsel %vm795, %v1972, %v1973
        %v1975 = vrot.slane %v1862, 2
        %v1976 = vsel %vm795, %v1973, %v1975
        %v1977 = vrot.slane %v1863, 2
        %v1978 = vrot.slane %v1864, 2
        %v1979 = vsel %vm795, %v1977, %v1978
        %v1980 = vrot.slane %v1865, 2
        %v1981 = vsel %vm795, %v1978, %v1980
        %v1982 = vrot.slane %v1866, 2
        %v1983 = vrot.slane %v1867, 2
        %v1984 = vsel %vm795, %v1982, %v1983
        %v1985 = vrot.slane %v1868, 2
        %v1986 = vsel %vm795, %v1983, %v1985
        %v1987 = vrot.slane %v1869, 2
        %v1988 = vrot.slane %v1870, 2
        %v1989 = vsel %vm795, %v1987, %v1988
        %v1990 = vrot.slane %v1871, 2
        %v1991 = vsel %vm795, %v1988, %v1990
        %v1992 = vrot.slane %v1872, 2
        %v1993 = vrot.slane %v1873, 2
        %v1994 = vsel %vm795, %v1992, %v1993
        %v1995 = vrot.slane %v1874, 2
        %v1996 = vsel %vm795, %v1993, %v1995
        %v1997 = vrot.slane %v1875, 2
        %v1998 = vrot.slane %v1876, 2
        %v1999 = vsel %vm795, %v1997, %v1998
        %v2000 = vrot.slane %v1877, 2
        %v2001 = vsel %vm795, %v1998, %v2000
        %v2002 = vrot.slane %v1878, 2
        %v2003 = vrot.slane %v1879, 2
        %v2004 = vsel %vm795, %v2002, %v2003
        %v2005 = vrot.slane %v1880, 2
        %v2006 = vsel %vm795, %v2003, %v2005
        %v2007 = vrot.slane %v1881, 2
        %v2008 = vrot.slane %v1882, 2
        %v2009 = vsel %vm795, %v2007, %v2008
        %v2010 = vrot.slane %v1883, 2
        %v2011 = vsel %vm795, %v2008, %v2010
        %v2044 = vadd.f32 %v1796, %v1934
        %v2045 = vadd.f32 %v1797, %v1936
        %v2046 = vadd.f32 %v1798, %v1939
        %v2047 = vadd.f32 %v1799, %v1941
        %v2048 = vadd.f32 %v1800, %v1944
        %v2049 = vadd.f32 %v1801, %v1946
        %v2050 = vadd.f32 %v1802, %v1949
        %v2051 = vadd.f32 %v1803, %v1951
        %v2052 = vadd.f32 %v1804, %v1954
        %v2053 = vadd.f32 %v1805, %v1956
        %v2054 = vadd.f32 %v1806, %v1959
        %v2055 = vadd.f32 %v1807, %v1961
        %v2056 = vadd.f32 %v1808, %v1964
        %v2057 = vadd.f32 %v1809, %v1966
        %v2058 = vadd.f32 %v1810, %v1969
        %v2059 = vadd.f32 %v1811, %v1971
        %v2060 = vadd.f32 %v1812, %v1974
        %v2061 = vadd.f32 %v1813, %v1976
        %v2062 = vadd.f32 %v1814, %v1979
        %v2063 = vadd.f32 %v1815, %v1981
        %v2064 = vadd.f32 %v1816, %v1984
        %v2065 = vadd.f32 %v1817, %v1986
        %v2066 = vadd.f32 %v1818, %v1989
        %v2067 = vadd.f32 %v1819, %v1991
        %v2068 = vadd.f32 %v1820, %v1994
        %v2069 = vadd.f32 %v1821, %v1996
        %v2070 = vadd.f32 %v1822, %v1999
        %v2071 = vadd.f32 %v1823, %v2001
        %v2072 = vadd.f32 %v1824, %v2004
        %v2073 = vadd.f32 %v1825, %v2006
        %v2074 = vadd.f32 %v1826, %v2009
        %v2075 = vadd.f32 %v1827, %v2011
        %v2076 = vpack.c.bf16 %v2045, %v2044
        %v2077 = vpack.c.bf16 %v2047, %v2046
        %v2078 = vpack.c.bf16 %v2049, %v2048
        %v2079 = vpack.c.bf16 %v2051, %v2050
        %v2080 = vpack.c.bf16 %v2053, %v2052
        %v2081 = vpack.c.bf16 %v2055, %v2054
        %v2082 = vpack.c.bf16 %v2057, %v2056
        %v2083 = vpack.c.bf16 %v2059, %v2058
        %v2084 = vpack.c.bf16 %v2061, %v2060
        %v2085 = vpack.c.bf16 %v2063, %v2062
        %v2086 = vpack.c.bf16 %v2065, %v2064
        %v2087 = vpack.c.bf16 %v2067, %v2066
        %v2088 = vpack.c.bf16 %v2069, %v2068
        %v2089 = vpack.c.bf16 %v2071, %v2070
        %v2090 = vpack.c.bf16 %v2073, %v2072
        %v2091 = vpack.c.bf16 %v2075, %v2074
        %2092 = vst [vmem:[#allocation2] sm:$0xff] %v2076
        %2093 = vst [vmem:[#allocation2 + $0x8] sm:$0xff] %v2077
        %2094 = vst [vmem:[#allocation2 + $0x10] sm:$0xff] %v2078
        %2095 = vst [vmem:[#allocation2 + $0x18] sm:$0xff] %v2079
        %2096 = vst [vmem:[#allocation2 + $0x20] sm:$0xff] %v2080
        %2097 = vst [vmem:[#allocation2 + $0x28] sm:$0xff] %v2081
        %2098 = vst [vmem:[#allocation2 + $0x30] sm:$0xff] %v2082
        %2099 = vst [vmem:[#allocation2 + $0x38] sm:$0xff] %v2083
        %2100 = vst [vmem:[#allocation2 + $0x40] sm:$0xff] %v2084
        %2101 = vst [vmem:[#allocation2 + $0x48] sm:$0xff] %v2085
        %2102 = vst [vmem:[#allocation2 + $0x50] sm:$0xff] %v2086
        %2103 = vst [vmem:[#allocation2 + $0x58] sm:$0xff] %v2087
        %2104 = vst [vmem:[#allocation2 + $0x60] sm:$0xff] %v2088
        %2105 = vst [vmem:[#allocation2 + $0x68] sm:$0xff] %v2089
        %2106 = vst [vmem:[#allocation2 + $0x70] sm:$0xff] %v2090
        %2107 = vst [vmem:[#allocation2 + $0x78] sm:$0xff] %v2091
      $region44: #{middle_forward.6} parent=39 // pred_fallthru
        _
      %v2108 = vld [vmem:[#allocation2] sm:$0xff]
      %v2109 = vld [vmem:[#allocation2 + $0x8] sm:$0xff]
      %v2110 = vld [vmem:[#allocation2 + $0x10] sm:$0xff]
      %v2111 = vld [vmem:[#allocation2 + $0x18] sm:$0xff]
      %v2112 = vld [vmem:[#allocation2 + $0x20] sm:$0xff]
      %v2113 = vld [vmem:[#allocation2 + $0x28] sm:$0xff]
      %v2114 = vld [vmem:[#allocation2 + $0x30] sm:$0xff]
      %v2115 = vld [vmem:[#allocation2 + $0x38] sm:$0xff]
      %v2116 = vld [vmem:[#allocation2 + $0x40] sm:$0xff]
      %v2117 = vld [vmem:[#allocation2 + $0x48] sm:$0xff]
      %v2118 = vld [vmem:[#allocation2 + $0x50] sm:$0xff]
      %v2119 = vld [vmem:[#allocation2 + $0x58] sm:$0xff]
      %v2120 = vld [vmem:[#allocation2 + $0x60] sm:$0xff]
      %v2121 = vld [vmem:[#allocation2 + $0x68] sm:$0xff]
      %v2122 = vld [vmem:[#allocation2 + $0x70] sm:$0xff]
      %v2123 = vld [vmem:[#allocation2 + $0x78] sm:$0xff]
      %v2124 = vld [vmem:[%s275] sm:$0xf]
      %v2125 = vld [vmem:[%s275 + $0x4] sm:$0xf]
      %v2126 = vld [vmem:[%s275 + $0x8] sm:$0xf]
      %v2127 = vld [vmem:[%s275 + $0xc] sm:$0xf]
      %v2128 = vld [vmem:[%s275 + $0x10] sm:$0xf]
      %v2129 = vld [vmem:[%s275 + $0x14] sm:$0xf]
      %v2130 = vld [vmem:[%s275 + $0x18] sm:$0xf]
      %v2131 = vld [vmem:[%s275 + $0x1c] sm:$0xf]
      %v2132 = vld [vmem:[%s275 + $0x20] sm:$0xf]
      %v2133 = vld [vmem:[%s275 + $0x24] sm:$0xf]
      %v2134 = vld [vmem:[%s275 + $0x28] sm:$0xf]
      %v2135 = vld [vmem:[%s275 + $0x2c] sm:$0xf]
      %v2136 = vld [vmem:[%s275 + $0x30] sm:$0xf]
      %v2137 = vld [vmem:[%s275 + $0x34] sm:$0xf]
      %v2138 = vld [vmem:[%s275 + $0x38] sm:$0xf]
      %v2139 = vld [vmem:[%s275 + $0x3c] sm:$0xf]
      %v2156 = vunpack.c.l.b16 %v2124
      %v2157 = vunpack.c.l.b16 %v2125
      %v2158 = vunpack.c.l.b16 %v2126
      %v2159 = vunpack.c.l.b16 %v2127
      %v2160 = vunpack.c.l.b16 %v2128
      %v2161 = vunpack.c.l.b16 %v2129
      %v2162 = vunpack.c.l.b16 %v2130
      %v2163 = vunpack.c.l.b16 %v2131
      %v2164 = vunpack.c.l.b16 %v2132
      %v2165 = vunpack.c.l.b16 %v2133
      %v2166 = vunpack.c.l.b16 %v2134
      %v2167 = vunpack.c.l.b16 %v2135
      %v2168 = vunpack.c.l.b16 %v2136
      %v2169 = vunpack.c.l.b16 %v2137
      %v2170 = vunpack.c.l.b16 %v2138
      %v2171 = vunpack.c.l.b16 %v2139
      %v2172 = vpack.c.b16 %v2157, %v2156
      %v2173 = vpack.c.b16 %v2159, %v2158
      %v2174 = vpack.c.b16 %v2161, %v2160
      %v2175 = vpack.c.b16 %v2163, %v2162
      %v2176 = vpack.c.b16 %v2165, %v2164
      %v2177 = vpack.c.b16 %v2167, %v2166
      %v2178 = vpack.c.b16 %v2169, %v2168
      %v2179 = vpack.c.b16 %v2171, %v2170
      %2188 = vmatprep.subr.bf16.mxu0 0
      %2189 = vmatpush1.bf16.msra.mxu0 %v2172
      %2190 = vmatprep.subr.bf16.mxu0 0
      %2191 = vmatpush1.bf16.msra.mxu0 %v2173
      %2192 = vmatprep.subr.bf16.mxu0 0
      %2193 = vmatpush1.bf16.msra.mxu0 %v2174
      %2194 = vmatprep.subr.bf16.mxu0 0
      %2195 = vmatpush1.bf16.msra.mxu0 %v2175
      %2196 = vmatprep.subr.bf16.mxu0 0
      %2197 = vmatpush1.bf16.msra.mxu0 %v2176
      %2198 = vmatprep.subr.bf16.mxu0 0
      %2199 = vmatpush1.bf16.msra.mxu0 %v2177
      %2200 = vmatprep.subr.bf16.mxu0 0
      %2201 = vmatpush1.bf16.msra.mxu0 %v2178
      %2202 = vmatprep.subr.bf16.mxu0 0
      %2203 = vmatpush1.bf16.msra.mxu0 %v2179
      %2204 = vmatprep.subr.bf16.mxu0 0
      %2205 = vmatpush1.bf16.msra.mxu0 0
      %2206 = vmatprep.subr.bf16.mxu0 0
      %2207 = vmatpush1.bf16.msra.mxu0 0
      %2208 = vmatprep.subr.bf16.mxu0 0
      %2209 = vmatpush1.bf16.msra.mxu0 0
      %2210 = vmatprep.subr.bf16.mxu0 0
      %2211 = vmatpush1.bf16.msra.mxu0 0
      %2212 = vmatprep.subr.bf16.mxu0 0
      %2213 = vmatpush1.bf16.msra.mxu0 0
      %2214 = vmatprep.subr.bf16.mxu0 0
      %2215 = vmatpush1.bf16.msra.mxu0 0
      %2216 = vmatprep.subr.bf16.mxu0 0
      %2217 = vmatpush1.bf16.msra.mxu0 0
      %2218 = vmatprep.subr.bf16.mxu0 0
      %2219 = vmatpush1.bf16.msra.mxu0 0
      %2220 = vmatprep.mubr.bf16.mxu0 0
      %2221 = vmatmul.mubr.bf16.gmra.mrb[0].mxu0 %v2108
      %v2222 = vpop.f32.mrb[0].mxu0
      %v2223 = vadd.f32 0.0, %v2222
      %v2224 = vpop.f32.mrb[0].mxu0
      %v2225 = vpop.f32.mrb[0].mxu0
      %v2226 = vadd.f32 0.0, %v2225
      %v2227 = vpop.f32.mrb[0].mxu0
      %2228 = vmatprep.mubr.bf16.mxu0 0
      %2229 = vmatmul.mubr.bf16.gmra.mrb[0].mxu0 %v2109
      %v2230 = vpop.f32.mrb[0].mxu0
      %v2231 = vadd.f32 0.0, %v2230
      %v2232 = vpop.f32.mrb[0].mxu0
      %v2233 = vpop.f32.mrb[0].mxu0
      %v2234 = vadd.f32 0.0, %v2233
      %v2235 = vpop.f32.mrb[0].mxu0
      %2236 = vmatprep.mubr.bf16.mxu0 0
      %2237 = vmatmul.mubr.bf16.gmra.mrb[0].mxu0 %v2110
      %v2238 = vpop.f32.mrb[0].mxu0
      %v2239 = vadd.f32 0.0, %v2238
      %v2240 = vpop.f32.mrb[0].mxu0
      %v2241 = vpop.f32.mrb[0].mxu0
      %v2242 = vadd.f32 0.0, %v2241
      %v2243 = vpop.f32.mrb[0].mxu0
      %2244 = vmatprep.mubr.bf16.mxu0 0
      %2245 = vmatmul.mubr.bf16.gmra.mrb[0].mxu0 %v2111
      %v2246 = vpop.f32.mrb[0].mxu0
      %v2247 = vadd.f32 0.0, %v2246
      %v2248 = vpop.f32.mrb[0].mxu0
      %v2249 = vpop.f32.mrb[0].mxu0
      %v2250 = vadd.f32 0.0, %v2249
      %v2251 = vpop.f32.mrb[0].mxu0
      %2252 = vmatprep.mubr.bf16.mxu0 0
      %2253 = vmatmul.mubr.bf16.gmra.mrb[0].mxu0 %v2112
      %v2254 = vpop.f32.mrb[0].mxu0
      %v2255 = vadd.f32 0.0, %v2254
      %v2256 = vpop.f32.mrb[0].mxu0
      %v2257 = vpop.f32.mrb[0].mxu0
      %v2258 = vadd.f32 0.0, %v2257
      %v2259 = vpop.f32.mrb[0].mxu0
      %2260 = vmatprep.mubr.bf16.mxu0 0
      %2261 = vmatmul.mubr.bf16.gmra.mrb[0].mxu0 %v2113
      %v2262 = vpop.f32.mrb[0].mxu0
      %v2263 = vadd.f32 0.0, %v2262
      %v2264 = vpop.f32.mrb[0].mxu0
      %v2265 = vpop.f32.mrb[0].mxu0
      %v2266 = vadd.f32 0.0, %v2265
      %v2267 = vpop.f32.mrb[0].mxu0
      %2268 = vmatprep.mubr.bf16.mxu0 0
      %2269 = vmatmul.mubr.bf16.gmra.mrb[0].mxu0 %v2114
      %v2270 = vpop.f32.mrb[0].mxu0
      %v2271 = vadd.f32 0.0, %v2270
      %v2272 = vpop.f32.mrb[0].mxu0
      %v2273 = vpop.f32.mrb[0].mxu0
      %v2274 = vadd.f32 0.0, %v2273
      %v2275 = vpop.f32.mrb[0].mxu0
      %2276 = vmatprep.mubr.bf16.mxu0 0
      %2277 = vmatmul.mubr.bf16.gmra.mrb[0].mxu0 %v2115
      %v2278 = vpop.f32.mrb[0].mxu0
      %v2279 = vadd.f32 0.0, %v2278
      %v2280 = vpop.f32.mrb[0].mxu0
      %v2281 = vpop.f32.mrb[0].mxu0
      %v2282 = vadd.f32 0.0, %v2281
      %v2283 = vpop.f32.mrb[0].mxu0
      %2284 = vmatprep.mubr.bf16.mxu0 0
      %2285 = vmatmul.mubr.bf16.gmra.mrb[0].mxu0 %v2116
      %v2286 = vpop.f32.mrb[0].mxu0
      %v2287 = vadd.f32 0.0, %v2286
      %v2288 = vpop.f32.mrb[0].mxu0
      %v2289 = vpop.f32.mrb[0].mxu0
      %v2290 = vadd.f32 0.0, %v2289
      %v2291 = vpop.f32.mrb[0].mxu0
      %2292 = vmatprep.mubr.bf16.mxu0 0
      %2293 = vmatmul.mubr.bf16.gmra.mrb[0].mxu0 %v2117
      %v2294 = vpop.f32.mrb[0].mxu0
      %v2295 = vadd.f32 0.0, %v2294
      %v2296 = vpop.f32.mrb[0].mxu0
      %v2297 = vpop.f32.mrb[0].mxu0
      %v2298 = vadd.f32 0.0, %v2297
      %v2299 = vpop.f32.mrb[0].mxu0
      %2300 = vmatprep.mubr.bf16.mxu0 0
      %2301 = vmatmul.mubr.bf16.gmra.mrb[0].mxu0 %v2118
      %v2302 = vpop.f32.mrb[0].mxu0
      %v2303 = vadd.f32 0.0, %v2302
      %v2304 = vpop.f32.mrb[0].mxu0
      %v2305 = vpop.f32.mrb[0].mxu0
      %v2306 = vadd.f32 0.0, %v2305
      %v2307 = vpop.f32.mrb[0].mxu0
      %2308 = vmatprep.mubr.bf16.mxu0 0
      %2309 = vmatmul.mubr.bf16.gmra.mrb[0].mxu0 %v2119
      %v2310 = vpop.f32.mrb[0].mxu0
      %v2311 = vadd.f32 0.0, %v2310
      %v2312 = vpop.f32.mrb[0].mxu0
      %v2313 = vpop.f32.mrb[0].mxu0
      %v2314 = vadd.f32 0.0, %v2313
      %v2315 = vpop.f32.mrb[0].mxu0
      %2316 = vmatprep.mubr.bf16.mxu0 0
      %2317 = vmatmul.mubr.bf16.gmra.mrb[0].mxu0 %v2120
      %v2318 = vpop.f32.mrb[0].mxu0
      %v2319 = vadd.f32 0.0, %v2318
      %v2320 = vpop.f32.mrb[0].mxu0
      %v2321 = vpop.f32.mrb[0].mxu0
      %v2322 = vadd.f32 0.0, %v2321
      %v2323 = vpop.f32.mrb[0].mxu0
      %2324 = vmatprep.mubr.bf16.mxu0 0
      %2325 = vmatmul.mubr.bf16.gmra.mrb[0].mxu0 %v2121
      %v2326 = vpop.f32.mrb[0].mxu0
      %v2327 = vadd.f32 0.0, %v2326
      %v2328 = vpop.f32.mrb[0].mxu0
      %v2329 = vpop.f32.mrb[0].mxu0
      %v2330 = vadd.f32 0.0, %v2329
      %v2331 = vpop.f32.mrb[0].mxu0
      %2332 = vmatprep.mubr.bf16.mxu0 0
      %2333 = vmatmul.mubr.bf16.gmra.mrb[0].mxu0 %v2122
      %v2334 = vpop.f32.mrb[0].mxu0
      %v2335 = vadd.f32 0.0, %v2334
      %v2336 = vpop.f32.mrb[0].mxu0
      %v2337 = vpop.f32.mrb[0].mxu0
      %v2338 = vadd.f32 0.0, %v2337
      %v2339 = vpop.f32.mrb[0].mxu0
      %2340 = vmatprep.mubr.bf16.mxu0 0
      %2341 = vmatmul.mubr.bf16.gmra.mrb[0].mxu0 %v2123
      %v2342 = vpop.f32.mrb[0].mxu0
      %v2343 = vadd.f32 0.0, %v2342
      %v2344 = vpop.f32.mrb[0].mxu0
      %v2345 = vpop.f32.mrb[0].mxu0
      %v2346 = vadd.f32 0.0, %v2345
      %v2347 = vpop.f32.mrb[0].mxu0
      %2348 = vdwg.mxu0
      %v2349 = vld [vmem:[%s278] sm:$0x1]
      %v2351 = vlaneseq
      %v2352 = vshrl.u32 %v2351, 7
      %v2353 = vsub.s32 0, %v2352
      %v2354 = vrot.slane %v2349, %v2353
      %v2356 = vmul.f32 %v2223, %v2354
      %v2357 = vmul.f32 %v2226, %v2354
      %v2358 = vmul.f32 %v2231, %v2354
      %v2359 = vmul.f32 %v2234, %v2354
      %v2360 = vmul.f32 %v2239, %v2354
      %v2361 = vmul.f32 %v2242, %v2354
      %v2362 = vmul.f32 %v2247, %v2354
      %v2363 = vmul.f32 %v2250, %v2354
      %v2364 = vmul.f32 %v2255, %v2354
      %v2365 = vmul.f32 %v2258, %v2354
      %v2366 = vmul.f32 %v2263, %v2354
      %v2367 = vmul.f32 %v2266, %v2354
      %v2368 = vmul.f32 %v2271, %v2354
      %v2369 = vmul.f32 %v2274, %v2354
      %v2370 = vmul.f32 %v2279, %v2354
      %v2371 = vmul.f32 %v2282, %v2354
      %v2372 = vmul.f32 %v2287, %v2354
      %v2373 = vmul.f32 %v2290, %v2354
      %v2374 = vmul.f32 %v2295, %v2354
      %v2375 = vmul.f32 %v2298, %v2354
      %v2376 = vmul.f32 %v2303, %v2354
      %v2377 = vmul.f32 %v2306, %v2354
      %v2378 = vmul.f32 %v2311, %v2354
      %v2379 = vmul.f32 %v2314, %v2354
      %v2380 = vmul.f32 %v2319, %v2354
      %v2381 = vmul.f32 %v2322, %v2354
      %v2382 = vmul.f32 %v2327, %v2354
      %v2383 = vmul.f32 %v2330, %v2354
      %v2384 = vmul.f32 %v2335, %v2354
      %v2385 = vmul.f32 %v2338, %v2354
      %v2386 = vmul.f32 %v2343, %v2354
      %v2387 = vmul.f32 %v2346, %v2354
      %v2388 = vld [vmem:[%s281] sm:$0x1]
      %v2390 = vlaneseq
      %v2391 = vshrl.u32 %v2390, 7
      %v2392 = vsub.s32 0, %v2391
      %v2393 = vrot.slane %v2388, %v2392
      %v2395 = vadd.f32 %v2356, %v2393
      %v2396 = vadd.f32 %v2357, %v2393
      %v2397 = vadd.f32 %v2358, %v2393
      %v2398 = vadd.f32 %v2359, %v2393
      %v2399 = vadd.f32 %v2360, %v2393
      %v2400 = vadd.f32 %v2361, %v2393
      %v2401 = vadd.f32 %v2362, %v2393
      %v2402 = vadd.f32 %v2363, %v2393
      %v2403 = vadd.f32 %v2364, %v2393
      %v2404 = vadd.f32 %v2365, %v2393
      %v2405 = vadd.f32 %v2366, %v2393
      %v2406 = vadd.f32 %v2367, %v2393
      %v2407 = vadd.f32 %v2368, %v2393
      %v2408 = vadd.f32 %v2369, %v2393
      %v2409 = vadd.f32 %v2370, %v2393
      %v2410 = vadd.f32 %v2371, %v2393
      %v2411 = vadd.f32 %v2372, %v2393
      %v2412 = vadd.f32 %v2373, %v2393
      %v2413 = vadd.f32 %v2374, %v2393
      %v2414 = vadd.f32 %v2375, %v2393
      %v2415 = vadd.f32 %v2376, %v2393
      %v2416 = vadd.f32 %v2377, %v2393
      %v2417 = vadd.f32 %v2378, %v2393
      %v2418 = vadd.f32 %v2379, %v2393
      %v2419 = vadd.f32 %v2380, %v2393
      %v2420 = vadd.f32 %v2381, %v2393
      %v2421 = vadd.f32 %v2382, %v2393
      %v2422 = vadd.f32 %v2383, %v2393
      %v2423 = vadd.f32 %v2384, %v2393
      %v2424 = vadd.f32 %v2385, %v2393
      %v2425 = vadd.f32 %v2386, %v2393
      %v2426 = vadd.f32 %v2387, %v2393
      %2427 = vst [vmem:[%s289] sm:$0xff] %v2395
      %2428 = vst [vmem:[%s289 + $0x8] sm:$0xff] %v2396
      %2429 = vst [vmem:[%s289 + $0x10] sm:$0xff] %v2397
      %2430 = vst [vmem:[%s289 + $0x18] sm:$0xff] %v2398
      %2431 = vst [vmem:[%s289 + $0x20] sm:$0xff] %v2399
      %2432 = vst [vmem:[%s289 + $0x28] sm:$0xff] %v2400
      %2433 = vst [vmem:[%s289 + $0x30] sm:$0xff] %v2401
      %2434 = vst [vmem:[%s289 + $0x38] sm:$0xff] %v2402
      %2435 = vst [vmem:[%s289 + $0x40] sm:$0xff] %v2403
      %2436 = vst [vmem:[%s289 + $0x48] sm:$0xff] %v2404
      %2437 = vst [vmem:[%s289 + $0x50] sm:$0xff] %v2405
      %2438 = vst [vmem:[%s289 + $0x58] sm:$0xff] %v2406
      %2439 = vst [vmem:[%s289 + $0x60] sm:$0xff] %v2407
      %2440 = vst [vmem:[%s289 + $0x68] sm:$0xff] %v2408
      %2441 = vst [vmem:[%s289 + $0x70] sm:$0xff] %v2409
      %2442 = vst [vmem:[%s289 + $0x78] sm:$0xff] %v2410
      %2443 = vst [vmem:[%s289 + $0x80] sm:$0xff] %v2411
      %2444 = vst [vmem:[%s289 + $0x88] sm:$0xff] %v2412
      %2445 = vst [vmem:[%s289 + $0x90] sm:$0xff] %v2413
      %2446 = vst [vmem:[%s289 + $0x98] sm:$0xff] %v2414
      %2447 = vst [vmem:[%s289 + $0xa0] sm:$0xff] %v2415
      %2448 = vst [vmem:[%s289 + $0xa8] sm:$0xff] %v2416
      %2449 = vst [vmem:[%s289 + $0xb0] sm:$0xff] %v2417
      %2450 = vst [vmem:[%s289 + $0xb8] sm:$0xff] %v2418
      %2451 = vst [vmem:[%s289 + $0xc0] sm:$0xff] %v2419
      %2452 = vst [vmem:[%s289 + $0xc8] sm:$0xff] %v2420
      %2453 = vst [vmem:[%s289 + $0xd0] sm:$0xff] %v2421
      %2454 = vst [vmem:[%s289 + $0xd8] sm:$0xff] %v2422
      %2455 = vst [vmem:[%s289 + $0xe0] sm:$0xff] %v2423
      %2456 = vst [vmem:[%s289 + $0xe8] sm:$0xff] %v2424
      %2457 = vst [vmem:[%s289 + $0xf0] sm:$0xff] %v2425
      %2458 = vst [vmem:[%s289 + $0xf8] sm:$0xff] %v2426
      %p2459 = scmp.lt.s32.totalorder %s20, 1
      %s2460 = scalar_select %p2459, %s20, 1
      %p2461 = scmp.lt.s32.totalorder %s21, 0
      %s2462 = scalar_select %p2461, %s21, 0
      %s2463 = smul.addr %s2460, 32
      %s2464 = sadd.s32 %s2462, %s2463
      %s2465 = smul.addr %s2464, 8
      %s2466 = scalar_lea.vmem %s5, %s2465
      // Predicated region
      $region45: #{middle_forward.6} parent=39 // pred_check
        %p2467 = pneg %p173
      $region46: #{middle_forward.6} parent=39 // pred_check_branch
        %2469 = sbr.rel (%p2467) target = $region48
      $region47: #{middle_forward.6} parent=39 // pred_region
        _
      $region48: #{middle_forward.6} parent=39 // pred_fallthru
        _
    $region40: #{middle_forward.6} parent=5 // pred_fallthru
      _
    %p2470 = scmp.le.s32.totalorder 2, %s11
    // Predicated region
    $region49: #{middle_forward.6} parent=5 // pred_check
      %p2471 = pneg %p2470
    $region50: #{middle_forward.6} parent=5 // pred_check_branch
      %2473 = sbr.rel (%p2471) target = $region52
    $region51: #{middle_forward.6} parent=5 // pred_region
      %s2474 = ssub.s32 %s11, 2
      // Predicated region
      $region53: #{middle_forward.6} parent=51 // pred_check
        %p2475 = pneg %p179
      $region54: #{middle_forward.6} parent=51 // pred_check_branch
        %2477 = sbr.rel (%p2475) target = $region56
      $region55: #{middle_forward.6} parent=51 // pred_region
        %p2478 = scmp.lt.s32.totalorder %s22, 1
        %s2479 = scalar_select %p2478, %s22, 1
        %p2480 = scmp.lt.s32.totalorder %s23, 0
        %s2481 = scalar_select %p2480, %s23, 0
        %s2482 = smul.addr %s2479, 32
        %s2483 = sadd.s32 %s2481, %s2482
        %s2484 = smul.addr %s2483, 8
        %s2485 = scalar_lea.vmem %s5, %s2484
      $region56: #{middle_forward.6} parent=51 // pred_fallthru
        _
    $region52: #{middle_forward.6} parent=5 // pred_fallthru
      _
  $region6: #{middle_forward.6} parent=0 // loop_footer
    %s15 = sadd.s32 1, %s11
  $region7: #{middle_forward.6} parent=0 // loop_footer_branch
    %10 = sbr.rel target = $region3
  $region8: #{middle_forward.6} parent=0 // loop_exit
    _

// kernel: middle_forward.8
$region0: #{middle_forward.8}
  #allocation0 [shape = 'u32[]', space=smem, size = 0x4, offset = 0x4, fixed_abs, tag = 'smem constant byte address 0x4 - core index']
  #allocation1 [shape = 'u32[144,128]{1,0:T(1,128)}', space=vmem, size = 0x12000, scoped, tag = 'internal scratch']
  #allocation2 [shape = 'bf16[256,128]{1,0:T(16,128)(2,1)}', space=vmem, size = 0x10000, scoped, tag = 'scratch operand']
  %s0 = inlined_call_operand.vmem [shape: f32[2,18,18,128], index: 0, kind: input, shape index: {}]
  %s1 = inlined_call_operand.vmem [shape: f32[9,1,128], index: 1, kind: input, shape index: {}]
  %s2 = inlined_call_operand.vmem [shape: bf16[128,128], index: 2, kind: input, shape index: {}]
  %s3 = inlined_call_operand.vmem [shape: f32[1,128], index: 3, kind: input, shape index: {}]
  %s4 = inlined_call_operand.vmem [shape: f32[1,128], index: 4, kind: input, shape index: {}]
  %s5 = inlined_call_operand.vmem [shape: f32[2,16,16,128], index: 5, kind: input, shape index: {}]
  %s6 = inlined_call_operand.vmem [shape: f32[2,16,16,128], index: 6, kind: output, shape index: {}]
  %s7 = sld [smem:[#allocation0]]
  $region61: #{middle_forward.8} parent=0
    _
  %s9 = ssub.s32 1, %s7
  %s10 = scalar_select 0, %s9, %s7
  loop: start=0, step=1, limit=4
  $region2: #{middle_forward.8} parent=0 // loop_pre_header
    _
  $region3: #{middle_forward.8} parent=0 // loop_header
    %s12 = sphi 0, %s16
    %p13 = scmp.ge.s32.totalorder %s12, 4
    %s19 = sphi 0, %s31
    %s20 = sphi 0, %s27
    %s21 = sphi 0, %s19
    %s22 = sphi 0, %s20
    %s23 = sphi 0, %s21
    %s24 = sphi 0, %s22
    %s34 = sphi 0, %s36
    %s37 = sphi 0, %s34
    %s38 = sphi 0, %s37
    %s54 = sphi 0, %s38
    %s58 = sphi 0, %s58
    %s60 = sphi 0, %s58
    %s61 = sphi 0, %s60
    %s75 = sphi 0, %s61
    %s81 = sphi 0, %s83
    %s84 = sphi 0, %s81
    %s85 = sphi 0, %s84
    %s101 = sphi 0, %s85
    %s107 = sphi 0, %s109
    %s110 = sphi 0, %s107
    %s111 = sphi 0, %s110
    %s127 = sphi 0, %s111
    %s133 = sphi 0, %s135
    %s136 = sphi 0, %s133
    %s137 = sphi 0, %s136
    %s153 = sphi 0, %s137
    %s161 = sphi 0, %s163
    %s164 = sphi 0, %s161
    %s165 = sphi 0, %s164
    %s181 = sphi 0, %s165
    %s189 = sphi 0, %s191
    %s192 = sphi 0, %s189
    %s193 = sphi 0, %s192
    %s209 = sphi 0, %s193
  $region4: #{middle_forward.8} parent=0 // loop_header_branch
    %15 = sbr.rel (%p13) target = $region8
  $region5: #{middle_forward.8} parent=0 // loop_body
    %s17 = ssub.s32 %s12, 1
    %s18 = ssub.s32 %s12, 2
    %s25 = sadd.s32 1, %s20
    %p26 = scmp.ge.s32.totalorder %s25, 1
    %s27 = scalar_select %p26, 0, %s25
    %s28 = sadd.s32 1, %s19
    %s29 = scalar_select %p26, %s28, %s19
    %p30 = scmp.ge.s32.totalorder %s29, 2
    %s31 = scalar_select %p30, 0, %s29
    %s32 = ssub.s32 %s19, %s31
    %p33 = scmp.eq.s32.totalorder %s32, 0
    %s35 = sadd.s32 %s34, 1
    %s36 = scalar_select %p33, %s34, %s35
    %p39 = pneg %p33
    %p40 = scmp.eq.s32.totalorder %s12, 1
    %p41 = por %p39, %p40
    %p42 = scmp.ne.s32.totalorder %s34, %s37
    %p43 = scmp.eq.s32.totalorder %s12, 0
    %p44 = por %p42, %p43
    %p45 = scmp.ne.s32.totalorder %s34, %s37
    %p46 = scmp.eq.s32.totalorder %s17, 1
    %p47 = por %p45, %p46
    %p48 = scmp.ne.s32.totalorder %s37, %s38
    %p49 = scmp.eq.s32.totalorder %s17, 0
    %p50 = por %p48, %p49
    %p51 = scmp.ne.s32.totalorder %s37, %s38
    %p52 = scmp.eq.s32.totalorder %s18, 1
    %p53 = por %p51, %p52
    %p55 = scmp.ne.s32.totalorder %s38, %s54
    %p56 = scmp.eq.s32.totalorder %s18, 0
    %p57 = por %p55, %p56
    %s59 = sadd.s32 %s58, 1
    %p62 = scmp.eq.s32.totalorder %s12, 1
    %p63 = scmp.ne.s32.totalorder %s58, %s60
    %p64 = scmp.eq.s32.totalorder %s12, 0
    %p65 = por %p63, %p64
    %p66 = scmp.ne.s32.totalorder %s58, %s60
    %p67 = scmp.eq.s32.totalorder %s17, 1
    %p68 = por %p66, %p67
    %p69 = scmp.ne.s32.totalorder %s60, %s61
    %p70 = scmp.eq.s32.totalorder %s17, 0
    %p71 = por %p69, %p70
    %p72 = scmp.ne.s32.totalorder %s60, %s61
    %p73 = scmp.eq.s32.totalorder %s18, 1
    %p74 = por %p72, %p73
    %p76 = scmp.ne.s32.totalorder %s61, %s75
    %p77 = scmp.eq.s32.totalorder %s18, 0
    %p78 = por %p76, %p77
    %s79 = ssub.s32 %s20, %s27
    %p80 = scmp.eq.s32.totalorder %s79, 0
    %s82 = sadd.s32 %s81, 1
    %s83 = scalar_select %p80, %s81, %s82
    %p86 = pneg %p80
    %p87 = scmp.eq.s32.totalorder %s12, 1
    %p88 = por %p86, %p87
    %p89 = scmp.ne.s32.totalorder %s81, %s84
    %p90 = scmp.eq.s32.totalorder %s12, 0
    %p91 = por %p89, %p90
    %p92 = scmp.ne.s32.totalorder %s81, %s84
    %p93 = scmp.eq.s32.totalorder %s17, 1
    %p94 = por %p92, %p93
    %p95 = scmp.ne.s32.totalorder %s84, %s85
    %p96 = scmp.eq.s32.totalorder %s17, 0
    %p97 = por %p95, %p96
    %p98 = scmp.ne.s32.totalorder %s84, %s85
    %p99 = scmp.eq.s32.totalorder %s18, 1
    %p100 = por %p98, %p99
    %p102 = scmp.ne.s32.totalorder %s85, %s101
    %p103 = scmp.eq.s32.totalorder %s18, 0
    %p104 = por %p102, %p103
    %s105 = ssub.s32 %s20, %s27
    %p106 = scmp.eq.s32.totalorder %s105, 0
    %s108 = sadd.s32 %s107, 1
    %s109 = scalar_select %p106, %s107, %s108
    %p112 = pneg %p106
    %p113 = scmp.eq.s32.totalorder %s12, 1
    %p114 = por %p112, %p113
    %p115 = scmp.ne.s32.totalorder %s107, %s110
    %p116 = scmp.eq.s32.totalorder %s12, 0
    %p117 = por %p115, %p116
    %p118 = scmp.ne.s32.totalorder %s107, %s110
    %p119 = scmp.eq.s32.totalorder %s17, 1
    %p120 = por %p118, %p119
    %p121 = scmp.ne.s32.totalorder %s110, %s111
    %p122 = scmp.eq.s32.totalorder %s17, 0
    %p123 = por %p121, %p122
    %p124 = scmp.ne.s32.totalorder %s110, %s111
    %p125 = scmp.eq.s32.totalorder %s18, 1
    %p126 = por %p124, %p125
    %p128 = scmp.ne.s32.totalorder %s111, %s127
    %p129 = scmp.eq.s32.totalorder %s18, 0
    %p130 = por %p128, %p129
    %s131 = ssub.s32 %s20, %s27
    %p132 = scmp.eq.s32.totalorder %s131, 0
    %s134 = sadd.s32 %s133, 1
    %s135 = scalar_select %p132, %s133, %s134
    %p138 = pneg %p132
    %p139 = scmp.eq.s32.totalorder %s12, 1
    %p140 = por %p138, %p139
    %p141 = scmp.ne.s32.totalorder %s133, %s136
    %p142 = scmp.eq.s32.totalorder %s12, 0
    %p143 = por %p141, %p142
    %p144 = scmp.ne.s32.totalorder %s133, %s136
    %p145 = scmp.eq.s32.totalorder %s17, 1
    %p146 = por %p144, %p145
    %p147 = scmp.ne.s32.totalorder %s136, %s137
    %p148 = scmp.eq.s32.totalorder %s17, 0
    %p149 = por %p147, %p148
    %p150 = scmp.ne.s32.totalorder %s136, %s137
    %p151 = scmp.eq.s32.totalorder %s18, 1
    %p152 = por %p150, %p151
    %p154 = scmp.ne.s32.totalorder %s137, %s153
    %p155 = scmp.eq.s32.totalorder %s18, 0
    %p156 = por %p154, %p155
    %s157 = ssub.s32 %s19, %s31
    %s158 = ssub.s32 %s20, %s27
    %s159 = sor.u32 %s157, %s158
    %p160 = scmp.eq.s32.totalorder %s159, 0
    %s162 = sadd.s32 %s161, 1
    %s163 = scalar_select %p160, %s161, %s162
    %p166 = pneg %p160
    %p167 = scmp.eq.s32.totalorder %s12, 1
    %p168 = por %p166, %p167
    %p169 = scmp.ne.s32.totalorder %s161, %s164
    %p170 = scmp.eq.s32.totalorder %s12, 0
    %p171 = por %p169, %p170
    %p172 = scmp.ne.s32.totalorder %s161, %s164
    %p173 = scmp.eq.s32.totalorder %s17, 1
    %p174 = por %p172, %p173
    %p175 = scmp.ne.s32.totalorder %s164, %s165
    %p176 = scmp.eq.s32.totalorder %s17, 0
    %p177 = por %p175, %p176
    %p178 = scmp.ne.s32.totalorder %s164, %s165
    %p179 = scmp.eq.s32.totalorder %s18, 1
    %p180 = por %p178, %p179
    %p182 = scmp.ne.s32.totalorder %s165, %s181
    %p183 = scmp.eq.s32.totalorder %s18, 0
    %p184 = por %p182, %p183
    %s185 = ssub.s32 %s19, %s31
    %s186 = ssub.s32 %s20, %s27
    %s187 = sor.u32 %s185, %s186
    %p188 = scmp.eq.s32.totalorder %s187, 0
    %s190 = sadd.s32 %s189, 1
    %s191 = scalar_select %p188, %s189, %s190
    %p194 = pneg %p188
    %p195 = scmp.eq.s32.totalorder %s12, 1
    %p196 = por %p194, %p195
    %p197 = scmp.ne.s32.totalorder %s189, %s192
    %p198 = scmp.eq.s32.totalorder %s12, 0
    %p199 = por %p197, %p198
    %p200 = scmp.ne.s32.totalorder %s189, %s192
    %p201 = scmp.eq.s32.totalorder %s17, 1
    %p202 = por %p200, %p201
    %p203 = scmp.ne.s32.totalorder %s192, %s193
    %p204 = scmp.eq.s32.totalorder %s17, 0
    %p205 = por %p203, %p204
    %p206 = scmp.ne.s32.totalorder %s192, %s193
    %p207 = scmp.eq.s32.totalorder %s18, 1
    %p208 = por %p206, %p207
    %p210 = scmp.ne.s32.totalorder %s193, %s209
    %p211 = scmp.eq.s32.totalorder %s18, 0
    %p212 = por %p210, %p211
    %p213 = scmp.le.s32.totalorder 1, %s12
    %p214 = scmp.lt.s32.totalorder %s12, 3
    %p215 = pnand %p213, %p214
    %p216 = pneg %p215
    // Predicated region
    $region9: #{middle_forward.8} parent=5 // pred_check
      _
    $region10: #{middle_forward.8} parent=5 // pred_check_branch
      %218 = sbr.rel (%p215) target = $region12
    $region11: #{middle_forward.8} parent=5 // pred_region
      %s219 = ssub.s32 %s12, 1
      // Predicated region
      $region13: #{middle_forward.8} parent=11 // pred_check
        %p220 = pneg %p71
      $region14: #{middle_forward.8} parent=11 // pred_check_branch
        %222 = sbr.rel (%p220) target = $region16
      $region15: #{middle_forward.8} parent=11 // pred_region
        _
      $region16: #{middle_forward.8} parent=11 // pred_fallthru
        _
      // Predicated region
      $region17: #{middle_forward.8} parent=11 // pred_check
        %p223 = pneg %p97
      $region18: #{middle_forward.8} parent=11 // pred_check_branch
        %225 = sbr.rel (%p223) target = $region20
      $region19: #{middle_forward.8} parent=11 // pred_region
        %p226 = scmp.lt.s32.totalorder %s22, 0
        %s227 = scalar_select %p226, %s22, 0
        %s228 = smul.addr %s227, 4
        %s229 = scalar_lea.vmem %s2, %s228
      $region20: #{middle_forward.8} parent=11 // pred_fallthru
        _
      // Predicated region
      $region21: #{middle_forward.8} parent=11 // pred_check
        %p230 = pneg %p123
      $region22: #{middle_forward.8} parent=11 // pred_check_branch
        %232 = sbr.rel (%p230) target = $region24
      $region23: #{middle_forward.8} parent=11 // pred_region
        %p233 = scmp.lt.s32.totalorder %s22, 0
        %s234 = scalar_select %p233, %s22, 0
        %s235 = scalar_lea.vmem %s3, %s234
      $region24: #{middle_forward.8} parent=11 // pred_fallthru
        _
      // Predicated region
      $region25: #{middle_forward.8} parent=11 // pred_check
        %p236 = pneg %p149
      $region26: #{middle_forward.8} parent=11 // pred_check_branch
        %238 = sbr.rel (%p236) target = $region28
      $region27: #{middle_forward.8} parent=11 // pred_region
        %p239 = scmp.lt.s32.totalorder %s22, 0
        %s240 = scalar_select %p239, %s22, 0
        %s241 = scalar_lea.vmem %s4, %s240
      $region28: #{middle_forward.8} parent=11 // pred_fallthru
        _
    $region12: #{middle_forward.8} parent=5 // pred_fallthru
      _
    %p242 = scmp.lt.s32.totalorder %s12, 2
    // Predicated region
    $region29: #{middle_forward.8} parent=5 // pred_check
      %p243 = pneg %p242
    $region30: #{middle_forward.8} parent=5 // pred_check_branch
      %245 = sbr.rel (%p243) target = $region32
    $region31: #{middle_forward.8} parent=5 // pred_region
      // Predicated region
      $region33: #{middle_forward.8} parent=31 // pred_check
        %p246 = pneg %p44
      $region34: #{middle_forward.8} parent=31 // pred_check_branch
        %248 = sbr.rel (%p246) target = $region36
      $region35: #{middle_forward.8} parent=31 // pred_region
        %p249 = scmp.lt.s32.totalorder %s19, 1
        %s250 = scalar_select %p249, %s19, 1
        %s251 = smul.addr %s250, 54
        %s252 = smul.addr %s251, 8
        %s253 = scalar_lea.vmem %s0, %s252
      $region36: #{middle_forward.8} parent=31 // pred_fallthru
        _
      // Predicated region
      $region37: #{middle_forward.8} parent=31 // pred_check
        %p254 = pneg %p171
      $region38: #{middle_forward.8} parent=31 // pred_check_branch
        %256 = sbr.rel (%p254) target = $region40
      $region39: #{middle_forward.8} parent=31 // pred_region
        %p257 = scmp.lt.s32.totalorder %s19, 1
        %s258 = scalar_select %p257, %s19, 1
        %p259 = scmp.lt.s32.totalorder %s20, 0
        %s260 = scalar_select %p259, %s20, 0
        %s261 = smul.addr %s258, 32
        %s262 = sadd.s32 %s260, %s261
        %s263 = smul.addr %s262, 8
        %s264 = scalar_lea.vmem %s5, %s263
      $region40: #{middle_forward.8} parent=31 // pred_fallthru
        _
    $region32: #{middle_forward.8} parent=5 // pred_fallthru
      _
    %p265 = scmp.le.s32.totalorder 1, %s12
    %p266 = scmp.lt.s32.totalorder %s12, 3
    %p267 = pnand %p265, %p266
    %p268 = pneg %p267
    // Predicated region
    $region41: #{middle_forward.8} parent=5 // pred_check
      _
    $region42: #{middle_forward.8} parent=5 // pred_check_branch
      %270 = sbr.rel (%p267) target = $region44
    $region43: #{middle_forward.8} parent=5 // pred_region
      %s271 = ssub.s32 %s12, 1
      %p272 = scmp.lt.s32.totalorder %s21, 1
      %s273 = scalar_select %p272, %s21, 1
      %s274 = smul.addr %s273, 54
      %s275 = smul.addr %s274, 8
      %s276 = scalar_lea.vmem %s0, %s275
      %p277 = pneg %p50
      %p278 = pneg %p47
      %p279 = pneg %p71
      %p280 = pneg %p68
      %p281 = scmp.lt.s32.totalorder %s22, 0
      %s282 = scalar_select %p281, %s22, 0
      %s283 = smul.addr %s282, 4
      %s284 = scalar_lea.vmem %s2, %s283
      %p285 = pneg %p97
      %p286 = pneg %p94
      %p287 = scmp.lt.s32.totalorder %s22, 0
      %s288 = scalar_select %p287, %s22, 0
      %s289 = scalar_lea.vmem %s3, %s288
      %p290 = pneg %p123
      %p291 = pneg %p120
      %p292 = scmp.lt.s32.totalorder %s22, 0
      %s293 = scalar_select %p292, %s22, 0
      %s294 = scalar_lea.vmem %s4, %s293
      %p295 = pneg %p149
      %p296 = pneg %p146
      %p297 = scmp.lt.s32.totalorder %s21, 1
      %s298 = scalar_select %p297, %s21, 1
      %p299 = scmp.lt.s32.totalorder %s22, 0
      %s300 = scalar_select %p299, %s22, 0
      %s301 = smul.addr %s298, 32
      %s302 = sadd.s32 %s300, %s301
      %s303 = smul.addr %s302, 8
      %s304 = scalar_lea.vmem %s5, %s303
      %p305 = pneg %p177
      %p306 = pneg %p174
      %p307 = pneg %p205
      %p308 = pneg %p202
      %p309 = scmp.lt.s32.totalorder %s21, 1
      %s310 = scalar_select %p309, %s21, 1
      %p311 = scmp.lt.s32.totalorder %s22, 0
      %s312 = scalar_select %p311, %s22, 0
      %s313 = smul.addr %s310, 32
      %s314 = sadd.s32 %s312, %s313
      %s315 = smul.addr %s314, 8
      %s316 = scalar_lea.vmem %s6, %s315
      %p317 = scmp.lt.s32.totalorder %s21, 1
      %s318 = scalar_select %p317, %s21, 1
      %s319 = smul.addr %s318, 54
      %s320 = smul.addr %s319, 8
      %s321 = scalar_lea.vmem %s0, %s320
      %p322 = scmp.lt.s32.totalorder %s22, 0
      %s323 = scalar_select %p322, %s22, 0
      %s324 = smul.addr %s323, 4
      %s325 = scalar_lea.vmem %s2, %s324
      %p326 = scmp.lt.s32.totalorder %s22, 0
      %s327 = scalar_select %p326, %s22, 0
      %s328 = scalar_lea.vmem %s3, %s327
      %p329 = scmp.lt.s32.totalorder %s22, 0
      %s330 = scalar_select %p329, %s22, 0
      %s331 = scalar_lea.vmem %s4, %s330
      %p332 = scmp.lt.s32.totalorder %s21, 1
      %s333 = scalar_select %p332, %s21, 1
      %p334 = scmp.lt.s32.totalorder %s22, 0
      %s335 = scalar_select %p334, %s22, 0
      %s336 = smul.addr %s333, 32
      %s337 = sadd.s32 %s335, %s336
      %s338 = smul.addr %s337, 8
      %s339 = scalar_lea.vmem %s5, %s338
      %p340 = scmp.lt.s32.totalorder %s21, 1
      %s341 = scalar_select %p340, %s21, 1
      %p342 = scmp.lt.s32.totalorder %s22, 0
      %s343 = scalar_select %p342, %s22, 0
      %s344 = smul.addr %s341, 32
      %s345 = sadd.s32 %s343, %s344
      %s346 = smul.addr %s345, 8
      %s347 = scalar_lea.vmem %s6, %s346
      %p349 = scmp.eq.s32.totalorder %s22, 0
      // Predicated region
      $region45: #{middle_forward.8} parent=43 // pred_check
        %p350 = pneg %p349
      $region46: #{middle_forward.8} parent=43 // pred_check_branch
        %352 = sbr.rel (%p350) target = $region48
      $region47: #{middle_forward.8} parent=43 // pred_region
        %v353 = vld [vmem:[%s321] sm:$0xff]
        %v354 = vld [vmem:[%s321 + $0x8] sm:$0xff]
        %v355 = vld [vmem:[%s321 + $0x10] sm:$0x3]
        %v356 = vld [vmem:[%s321 + $0x18] sm:$0xff]
        %v357 = vld [vmem:[%s321 + $0x20] sm:$0xff]
        %v358 = vld [vmem:[%s321 + $0x28] sm:$0x3]
        %v359 = vld [vmem:[%s321 + $0x30] sm:$0xff]
        %v360 = vld [vmem:[%s321 + $0x38] sm:$0xff]
        %v361 = vld [vmem:[%s321 + $0x40] sm:$0x3]
        %v362 = vld [vmem:[%s321 + $0x48] sm:$0xff]
        %v363 = vld [vmem:[%s321 + $0x50] sm:$0xff]
        %v364 = vld [vmem:[%s321 + $0x58] sm:$0x3]
        %v365 = vld [vmem:[%s321 + $0x60] sm:$0xff]
        %v366 = vld [vmem:[%s321 + $0x68] sm:$0xff]
        %v367 = vld [vmem:[%s321 + $0x70] sm:$0x3]
        %v368 = vld [vmem:[%s321 + $0x78] sm:$0xff]
        %v369 = vld [vmem:[%s321 + $0x80] sm:$0xff]
        %v370 = vld [vmem:[%s321 + $0x88] sm:$0x3]
        %v371 = vld [vmem:[%s321 + $0x90] sm:$0xff]
        %v372 = vld [vmem:[%s321 + $0x98] sm:$0xff]
        %v373 = vld [vmem:[%s321 + $0xa0] sm:$0x3]
        %v374 = vld [vmem:[%s321 + $0xa8] sm:$0xff]
        %v375 = vld [vmem:[%s321 + $0xb0] sm:$0xff]
        %v376 = vld [vmem:[%s321 + $0xb8] sm:$0x3]
        %v377 = vld [vmem:[%s321 + $0xc0] sm:$0xff]
        %v378 = vld [vmem:[%s321 + $0xc8] sm:$0xff]
        %v379 = vld [vmem:[%s321 + $0xd0] sm:$0x3]
        %v380 = vld [vmem:[%s321 + $0xd8] sm:$0xff]
        %v381 = vld [vmem:[%s321 + $0xe0] sm:$0xff]
        %v382 = vld [vmem:[%s321 + $0xe8] sm:$0x3]
        %v383 = vld [vmem:[%s321 + $0xf0] sm:$0xff]
        %v384 = vld [vmem:[%s321 + $0xf8] sm:$0xff]
        %v385 = vld [vmem:[%s321 + $0x100] sm:$0x3]
        %v386 = vld [vmem:[%s321 + $0x108] sm:$0xff]
        %v387 = vld [vmem:[%s321 + $0x110] sm:$0xff]
        %v388 = vld [vmem:[%s321 + $0x118] sm:$0x3]
        %v389 = vld [vmem:[%s321 + $0x120] sm:$0xff]
        %v390 = vld [vmem:[%s321 + $0x128] sm:$0xff]
        %v391 = vld [vmem:[%s321 + $0x130] sm:$0x3]
        %v392 = vld [vmem:[%s321 + $0x138] sm:$0xff]
        %v393 = vld [vmem:[%s321 + $0x140] sm:$0xff]
        %v394 = vld [vmem:[%s321 + $0x148] sm:$0x3]
        %v395 = vld [vmem:[%s321 + $0x150] sm:$0xff]
        %v396 = vld [vmem:[%s321 + $0x158] sm:$0xff]
        %v397 = vld [vmem:[%s321 + $0x160] sm:$0x3]
        %v398 = vld [vmem:[%s321 + $0x168] sm:$0xff]
        %v399 = vld [vmem:[%s321 + $0x170] sm:$0xff]
        %v400 = vld [vmem:[%s321 + $0x178] sm:$0x3]
        %v401 = vld [vmem:[%s321 + $0x180] sm:$0xff]
        %v402 = vld [vmem:[%s321 + $0x188] sm:$0xff]
        %v403 = vld [vmem:[%s321 + $0x190] sm:$0x3]
        %v404 = vld [vmem:[%s321 + $0x198] sm:$0xff]
        %v405 = vld [vmem:[%s321 + $0x1a0] sm:$0xff]
        %v406 = vld [vmem:[%s321 + $0x1a8] sm:$0x3]
        %v407 = vmax.f32 %v353, 0.0
        %v408 = vmax.f32 %v354, 0.0
        %v409 = vmax.f32 %v355, 0.0
        %v410 = vmax.f32 %v356, 0.0
        %v411 = vmax.f32 %v357, 0.0
        %v412 = vmax.f32 %v358, 0.0
        %v413 = vmax.f32 %v359, 0.0
        %v414 = vmax.f32 %v360, 0.0
        %v415 = vmax.f32 %v361, 0.0
        %v416 = vmax.f32 %v362, 0.0
        %v417 = vmax.f32 %v363, 0.0
        %v418 = vmax.f32 %v364, 0.0
        %v419 = vmax.f32 %v365, 0.0
        %v420 = vmax.f32 %v366, 0.0
        %v421 = vmax.f32 %v367, 0.0
        %v422 = vmax.f32 %v368, 0.0
        %v423 = vmax.f32 %v369, 0.0
        %v424 = vmax.f32 %v370, 0.0
        %v425 = vmax.f32 %v371, 0.0
        %v426 = vmax.f32 %v372, 0.0
        %v427 = vmax.f32 %v373, 0.0
        %v428 = vmax.f32 %v374, 0.0
        %v429 = vmax.f32 %v375, 0.0
        %v430 = vmax.f32 %v376, 0.0
        %v431 = vmax.f32 %v377, 0.0
        %v432 = vmax.f32 %v378, 0.0
        %v433 = vmax.f32 %v379, 0.0
        %v434 = vmax.f32 %v380, 0.0
        %v435 = vmax.f32 %v381, 0.0
        %v436 = vmax.f32 %v382, 0.0
        %v437 = vmax.f32 %v383, 0.0
        %v438 = vmax.f32 %v384, 0.0
        %v439 = vmax.f32 %v385, 0.0
        %v440 = vmax.f32 %v386, 0.0
        %v441 = vmax.f32 %v387, 0.0
        %v442 = vmax.f32 %v388, 0.0
        %v443 = vmax.f32 %v389, 0.0
        %v444 = vmax.f32 %v390, 0.0
        %v445 = vmax.f32 %v391, 0.0
        %v446 = vmax.f32 %v392, 0.0
        %v447 = vmax.f32 %v393, 0.0
        %v448 = vmax.f32 %v394, 0.0
        %v449 = vmax.f32 %v395, 0.0
        %v450 = vmax.f32 %v396, 0.0
        %v451 = vmax.f32 %v397, 0.0
        %v452 = vmax.f32 %v398, 0.0
        %v453 = vmax.f32 %v399, 0.0
        %v454 = vmax.f32 %v400, 0.0
        %v455 = vmax.f32 %v401, 0.0
        %v456 = vmax.f32 %v402, 0.0
        %v457 = vmax.f32 %v403, 0.0
        %v458 = vmax.f32 %v404, 0.0
        %v459 = vmax.f32 %v405, 0.0
        %v460 = vmax.f32 %v406, 0.0
        %v461 = vld [vmem:[%s1] sm:$0x1]
        %v463 = vlaneseq
        %v464 = vshrl.u32 %v463, 7
        %v465 = vsub.s32 0, %v464
        %v466 = vrot.slane %v461, %v465
        %v468 = vmul.f32 %v407, %v466
        %v469 = vmul.f32 %v408, %v466
        %v470 = vmul.f32 %v410, %v466
        %v471 = vmul.f32 %v411, %v466
        %v472 = vmul.f32 %v413, %v466
        %v473 = vmul.f32 %v414, %v466
        %v474 = vmul.f32 %v416, %v466
        %v475 = vmul.f32 %v417, %v466
        %v476 = vmul.f32 %v419, %v466
        %v477 = vmul.f32 %v420, %v466
        %v478 = vmul.f32 %v422, %v466
        %v479 = vmul.f32 %v423, %v466
        %v480 = vmul.f32 %v425, %v466
        %v481 = vmul.f32 %v426, %v466
        %v482 = vmul.f32 %v428, %v466
        %v483 = vmul.f32 %v429, %v466
        %v484 = vmul.f32 %v431, %v466
        %v485 = vmul.f32 %v432, %v466
        %v486 = vmul.f32 %v434, %v466
        %v487 = vmul.f32 %v435, %v466
        %v488 = vmul.f32 %v437, %v466
        %v489 = vmul.f32 %v438, %v466
        %v490 = vmul.f32 %v440, %v466
        %v491 = vmul.f32 %v441, %v466
        %v492 = vmul.f32 %v443, %v466
        %v493 = vmul.f32 %v444, %v466
        %v494 = vmul.f32 %v446, %v466
        %v495 = vmul.f32 %v447, %v466
        %v496 = vmul.f32 %v449, %v466
        %v497 = vmul.f32 %v450, %v466
        %v498 = vmul.f32 %v452, %v466
        %v499 = vmul.f32 %v453, %v466
        %s500 = scalar_lea.vmem %s1, 1
        %v501 = vld [vmem:[%s500] sm:$0x1]
        %v503 = vlaneseq
        %v504 = vshrl.u32 %v503, 7
        %v505 = vsub.s32 0, %v504
        %v506 = vrot.slane %v501, %v505
        %v508 = vmul.f32 %v407, %v506
        %v509 = vmul.f32 %v408, %v506
        %v510 = vmul.f32 %v409, %v506
        %v511 = vmul.f32 %v410, %v506
        %v512 = vmul.f32 %v411, %v506
        %v513 = vmul.f32 %v412, %v506
        %v514 = vmul.f32 %v413, %v506
        %v515 = vmul.f32 %v414, %v506
        %v516 = vmul.f32 %v415, %v506
        %v517 = vmul.f32 %v416, %v506
        %v518 = vmul.f32 %v417, %v506
        %v519 = vmul.f32 %v418, %v506
        %v520 = vmul.f32 %v419, %v506
        %v521 = vmul.f32 %v420, %v506
        %v522 = vmul.f32 %v421, %v506
        %v523 = vmul.f32 %v422, %v506
        %v524 = vmul.f32 %v423, %v506
        %v525 = vmul.f32 %v424, %v506
        %v526 = vmul.f32 %v425, %v506
        %v527 = vmul.f32 %v426, %v506
        %v528 = vmul.f32 %v427, %v506
        %v529 = vmul.f32 %v428, %v506
        %v530 = vmul.f32 %v429, %v506
        %v531 = vmul.f32 %v430, %v506
        %v532 = vmul.f32 %v431, %v506
        %v533 = vmul.f32 %v432, %v506
        %v534 = vmul.f32 %v433, %v506
        %v535 = vmul.f32 %v434, %v506
        %v536 = vmul.f32 %v435, %v506
        %v537 = vmul.f32 %v436, %v506
        %v538 = vmul.f32 %v437, %v506
        %v539 = vmul.f32 %v438, %v506
        %v540 = vmul.f32 %v439, %v506
        %v541 = vmul.f32 %v440, %v506
        %v542 = vmul.f32 %v441, %v506
        %v543 = vmul.f32 %v442, %v506
        %v544 = vmul.f32 %v443, %v506
        %v545 = vmul.f32 %v444, %v506
        %v546 = vmul.f32 %v445, %v506
        %v547 = vmul.f32 %v446, %v506
        %v548 = vmul.f32 %v447, %v506
        %v549 = vmul.f32 %v448, %v506
        %v550 = vmul.f32 %v449, %v506
        %v551 = vmul.f32 %v450, %v506
        %v552 = vmul.f32 %v451, %v506
        %v553 = vmul.f32 %v452, %v506
        %v554 = vmul.f32 %v453, %v506
        %v555 = vmul.f32 %v454, %v506
        %vm604 = vcmask 1046528
        %v605 = vrot.slane %v508, 1
        %v606 = vrot.slane %v509, 1
        %v607 = vsel %vm604, %v605, %v606
        %v608 = vrot.slane %v510, 1
        %v609 = vsel %vm604, %v606, %v608
        %v610 = vrot.slane %v511, 1
        %v611 = vrot.slane %v512, 1
        %v612 = vsel %vm604, %v610, %v611
        %v613 = vrot.slane %v513, 1
        %v614 = vsel %vm604, %v611, %v613
        %v615 = vrot.slane %v514, 1
        %v616 = vrot.slane %v515, 1
        %v617 = vsel %vm604, %v615, %v616
        %v618 = vrot.slane %v516, 1
        %v619 = vsel %vm604, %v616, %v618
        %v620 = vrot.slane %v517, 1
        %v621 = vrot.slane %v518, 1
        %v622 = vsel %vm604, %v620, %v621
        %v623 = vrot.slane %v519, 1
        %v624 = vsel %vm604, %v621, %v623
        %v625 = vrot.slane %v520, 1
        %v626 = vrot.slane %v521, 1
        %v627 = vsel %vm604, %v625, %v626
        %v628 = vrot.slane %v522, 1
        %v629 = vsel %vm604, %v626, %v628
        %v630 = vrot.slane %v523, 1
        %v631 = vrot.slane %v524, 1
        %v632 = vsel %vm604, %v630, %v631
        %v633 = vrot.slane %v525, 1
        %v634 = vsel %vm604, %v631, %v633
        %v635 = vrot.slane %v526, 1
        %v636 = vrot.slane %v527, 1
        %v637 = vsel %vm604, %v635, %v636
        %v638 = vrot.slane %v528, 1
        %v639 = vsel %vm604, %v636, %v638
        %v640 = vrot.slane %v529, 1
        %v641 = vrot.slane %v530, 1
        %v642 = vsel %vm604, %v640, %v641
        %v643 = vrot.slane %v531, 1
        %v644 = vsel %vm604, %v641, %v643
        %v645 = vrot.slane %v532, 1
        %v646 = vrot.slane %v533, 1
        %v647 = vsel %vm604, %v645, %v646
        %v648 = vrot.slane %v534, 1
        %v649 = vsel %vm604, %v646, %v648
        %v650 = vrot.slane %v535, 1
        %v651 = vrot.slane %v536, 1
        %v652 = vsel %vm604, %v650, %v651
        %v653 = vrot.slane %v537, 1
        %v654 = vsel %vm604, %v651, %v653
        %v655 = vrot.slane %v538, 1
        %v656 = vrot.slane %v539, 1
        %v657 = vsel %vm604, %v655, %v656
        %v658 = vrot.slane %v540, 1
        %v659 = vsel %vm604, %v656, %v658
        %v660 = vrot.slane %v541, 1
        %v661 = vrot.slane %v542, 1
        %v662 = vsel %vm604, %v660, %v661
        %v663 = vrot.slane %v543, 1
        %v664 = vsel %vm604, %v661, %v663
        %v665 = vrot.slane %v544, 1
        %v666 = vrot.slane %v545, 1
        %v667 = vsel %vm604, %v665, %v666
        %v668 = vrot.slane %v546, 1
        %v669 = vsel %vm604, %v666, %v668
        %v670 = vrot.slane %v547, 1
        %v671 = vrot.slane %v548, 1
        %v672 = vsel %vm604, %v670, %v671
        %v673 = vrot.slane %v549, 1
        %v674 = vsel %vm604, %v671, %v673
        %v675 = vrot.slane %v550, 1
        %v676 = vrot.slane %v551, 1
        %v677 = vsel %vm604, %v675, %v676
        %v678 = vrot.slane %v552, 1
        %v679 = vsel %vm604, %v676, %v678
        %v680 = vrot.slane %v553, 1
        %v681 = vrot.slane %v554, 1
        %v682 = vsel %vm604, %v680, %v681
        %v683 = vrot.slane %v555, 1
        %v684 = vsel %vm604, %v681, %v683
        %v717 = vadd.f32 %v468, %v607
        %v718 = vadd.f32 %v469, %v609
        %v719 = vadd.f32 %v470, %v612
        %v720 = vadd.f32 %v471, %v614
        %v721 = vadd.f32 %v472, %v617
        %v722 = vadd.f32 %v473, %v619
        %v723 = vadd.f32 %v474, %v622
        %v724 = vadd.f32 %v475, %v624
        %v725 = vadd.f32 %v476, %v627
        %v726 = vadd.f32 %v477, %v629
        %v727 = vadd.f32 %v478, %v632
        %v728 = vadd.f32 %v479, %v634
        %v729 = vadd.f32 %v480, %v637
        %v730 = vadd.f32 %v481, %v639
        %v731 = vadd.f32 %v482, %v642
        %v732 = vadd.f32 %v483, %v644
        %v733 = vadd.f32 %v484, %v647
        %v734 = vadd.f32 %v485, %v649
        %v735 = vadd.f32 %v486, %v652
        %v736 = vadd.f32 %v487, %v654
        %v737 = vadd.f32 %v488, %v657
        %v738 = vadd.f32 %v489, %v659
        %v739 = vadd.f32 %v490, %v662
        %v740 = vadd.f32 %v491, %v664
        %v741 = vadd.f32 %v492, %v667
        %v742 = vadd.f32 %v493, %v669
        %v743 = vadd.f32 %v494, %v672
        %v744 = vadd.f32 %v495, %v674
        %v745 = vadd.f32 %v496, %v677
        %v746 = vadd.f32 %v497, %v679
        %v747 = vadd.f32 %v498, %v682
        %v748 = vadd.f32 %v499, %v684
        %s749 = scalar_lea.vmem %s1, 2
        %v750 = vld [vmem:[%s749] sm:$0x1]
        %v752 = vlaneseq
        %v753 = vshrl.u32 %v752, 7
        %v754 = vsub.s32 0, %v753
        %v755 = vrot.slane %v750, %v754
        %v757 = vmul.f32 %v407, %v755
        %v758 = vmul.f32 %v408, %v755
        %v759 = vmul.f32 %v409, %v755
        %v760 = vmul.f32 %v410, %v755
        %v761 = vmul.f32 %v411, %v755
        %v762 = vmul.f32 %v412, %v755
        %v763 = vmul.f32 %v413, %v755
        %v764 = vmul.f32 %v414, %v755
        %v765 = vmul.f32 %v415, %v755
        %v766 = vmul.f32 %v416, %v755
        %v767 = vmul.f32 %v417, %v755
        %v768 = vmul.f32 %v418, %v755
        %v769 = vmul.f32 %v419, %v755
        %v770 = vmul.f32 %v420, %v755
        %v771 = vmul.f32 %v421, %v755
        %v772 = vmul.f32 %v422, %v755
        %v773 = vmul.f32 %v423, %v755
        %v774 = vmul.f32 %v424, %v755
        %v775 = vmul.f32 %v425, %v755
        %v776 = vmul.f32 %v426, %v755
        %v777 = vmul.f32 %v427, %v755
        %v778 = vmul.f32 %v428, %v755
        %v779 = vmul.f32 %v429, %v755
        %v780 = vmul.f32 %v430, %v755
        %v781 = vmul.f32 %v431, %v755
        %v782 = vmul.f32 %v432, %v755
        %v783 = vmul.f32 %v433, %v755
        %v784 = vmul.f32 %v434, %v755
        %v785 = vmul.f32 %v435, %v755
        %v786 = vmul.f32 %v436, %v755
        %v787 = vmul.f32 %v437, %v755
        %v788 = vmul.f32 %v438, %v755
        %v789 = vmul.f32 %v439, %v755
        %v790 = vmul.f32 %v440, %v755
        %v791 = vmul.f32 %v441, %v755
        %v792 = vmul.f32 %v442, %v755
        %v793 = vmul.f32 %v443, %v755
        %v794 = vmul.f32 %v444, %v755
        %v795 = vmul.f32 %v445, %v755
        %v796 = vmul.f32 %v446, %v755
        %v797 = vmul.f32 %v447, %v755
        %v798 = vmul.f32 %v448, %v755
        %v799 = vmul.f32 %v449, %v755
        %v800 = vmul.f32 %v450, %v755
        %v801 = vmul.f32 %v451, %v755
        %v802 = vmul.f32 %v452, %v755
        %v803 = vmul.f32 %v453, %v755
        %v804 = vmul.f32 %v454, %v755
        %vm853 = vcmask 1045504
        %v854 = vrot.slane %v757, 2
        %v855 = vrot.slane %v758, 2
        %v856 = vsel %vm853, %v854, %v855
        %v857 = vrot.slane %v759, 2
        %v858 = vsel %vm853, %v855, %v857
        %v859 = vrot.slane %v760, 2
        %v860 = vrot.slane %v761, 2
        %v861 = vsel %vm853, %v859, %v860
        %v862 = vrot.slane %v762, 2
        %v863 = vsel %vm853, %v860, %v862
        %v864 = vrot.slane %v763, 2
        %v865 = vrot.slane %v764, 2
        %v866 = vsel %vm853, %v864, %v865
        %v867 = vrot.slane %v765, 2
        %v868 = vsel %vm853, %v865, %v867
        %v869 = vrot.slane %v766, 2
        %v870 = vrot.slane %v767, 2
        %v871 = vsel %vm853, %v869, %v870
        %v872 = vrot.slane %v768, 2
        %v873 = vsel %vm853, %v870, %v872
        %v874 = vrot.slane %v769, 2
        %v875 = vrot.slane %v770, 2
        %v876 = vsel %vm853, %v874, %v875
        %v877 = vrot.slane %v771, 2
        %v878 = vsel %vm853, %v875, %v877
        %v879 = vrot.slane %v772, 2
        %v880 = vrot.slane %v773, 2
        %v881 = vsel %vm853, %v879, %v880
        %v882 = vrot.slane %v774, 2
        %v883 = vsel %vm853, %v880, %v882
        %v884 = vrot.slane %v775, 2
        %v885 = vrot.slane %v776, 2
        %v886 = vsel %vm853, %v884, %v885
        %v887 = vrot.slane %v777, 2
        %v888 = vsel %vm853, %v885, %v887
        %v889 = vrot.slane %v778, 2
        %v890 = vrot.slane %v779, 2
        %v891 = vsel %vm853, %v889, %v890
        %v892 = vrot.slane %v780, 2
        %v893 = vsel %vm853, %v890, %v892
        %v894 = vrot.slane %v781, 2
        %v895 = vrot.slane %v782, 2
        %v896 = vsel %vm853, %v894, %v895
        %v897 = vrot.slane %v783, 2
        %v898 = vsel %vm853, %v895, %v897
        %v899 = vrot.slane %v784, 2
        %v900 = vrot.slane %v785, 2
        %v901 = vsel %vm853, %v899, %v900
        %v902 = vrot.slane %v786, 2
        %v903 = vsel %vm853, %v900, %v902
        %v904 = vrot.slane %v787, 2
        %v905 = vrot.slane %v788, 2
        %v906 = vsel %vm853, %v904, %v905
        %v907 = vrot.slane %v789, 2
        %v908 = vsel %vm853, %v905, %v907
        %v909 = vrot.slane %v790, 2
        %v910 = vrot.slane %v791, 2
        %v911 = vsel %vm853, %v909, %v910
        %v912 = vrot.slane %v792, 2
        %v913 = vsel %vm853, %v910, %v912
        %v914 = vrot.slane %v793, 2
        %v915 = vrot.slane %v794, 2
        %v916 = vsel %vm853, %v914, %v915
        %v917 = vrot.slane %v795, 2
        %v918 = vsel %vm853, %v915, %v917
        %v919 = vrot.slane %v796, 2
        %v920 = vrot.slane %v797, 2
        %v921 = vsel %vm853, %v919, %v920
        %v922 = vrot.slane %v798, 2
        %v923 = vsel %vm853, %v920, %v922
        %v924 = vrot.slane %v799, 2
        %v925 = vrot.slane %v800, 2
        %v926 = vsel %vm853, %v924, %v925
        %v927 = vrot.slane %v801, 2
        %v928 = vsel %vm853, %v925, %v927
        %v929 = vrot.slane %v802, 2
        %v930 = vrot.slane %v803, 2
        %v931 = vsel %vm853, %v929, %v930
        %v932 = vrot.slane %v804, 2
        %v933 = vsel %vm853, %v930, %v932
        %v966 = vadd.f32 %v717, %v856
        %v967 = vadd.f32 %v718, %v858
        %v968 = vadd.f32 %v719, %v861
        %v969 = vadd.f32 %v720, %v863
        %v970 = vadd.f32 %v721, %v866
        %v971 = vadd.f32 %v722, %v868
        %v972 = vadd.f32 %v723, %v871
        %v973 = vadd.f32 %v724, %v873
        %v974 = vadd.f32 %v725, %v876
        %v975 = vadd.f32 %v726, %v878
        %v976 = vadd.f32 %v727, %v881
        %v977 = vadd.f32 %v728, %v883
        %v978 = vadd.f32 %v729, %v886
        %v979 = vadd.f32 %v730, %v888
        %v980 = vadd.f32 %v731, %v891
        %v981 = vadd.f32 %v732, %v893
        %v982 = vadd.f32 %v733, %v896
        %v983 = vadd.f32 %v734, %v898
        %v984 = vadd.f32 %v735, %v901
        %v985 = vadd.f32 %v736, %v903
        %v986 = vadd.f32 %v737, %v906
        %v987 = vadd.f32 %v738, %v908
        %v988 = vadd.f32 %v739, %v911
        %v989 = vadd.f32 %v740, %v913
        %v990 = vadd.f32 %v741, %v916
        %v991 = vadd.f32 %v742, %v918
        %v992 = vadd.f32 %v743, %v921
        %v993 = vadd.f32 %v744, %v923
        %v994 = vadd.f32 %v745, %v926
        %v995 = vadd.f32 %v746, %v928
        %v996 = vadd.f32 %v747, %v931
        %v997 = vadd.f32 %v748, %v933
        %s998 = scalar_lea.vmem %s1, 3
        %v999 = vld [vmem:[%s998] sm:$0x1]
        %v1001 = vlaneseq
        %v1002 = vshrl.u32 %v1001, 7
        %v1003 = vsub.s32 0, %v1002
        %v1004 = vrot.slane %v999, %v1003
        %v1006 = vmul.f32 %v410, %v1004
        %v1007 = vmul.f32 %v411, %v1004
        %v1008 = vmul.f32 %v413, %v1004
        %v1009 = vmul.f32 %v414, %v1004
        %v1010 = vmul.f32 %v416, %v1004
        %v1011 = vmul.f32 %v417, %v1004
        %v1012 = vmul.f32 %v419, %v1004
        %v1013 = vmul.f32 %v420, %v1004
        %v1014 = vmul.f32 %v422, %v1004
        %v1015 = vmul.f32 %v423, %v1004
        %v1016 = vmul.f32 %v425, %v1004
        %v1017 = vmul.f32 %v426, %v1004
        %v1018 = vmul.f32 %v428, %v1004
        %v1019 = vmul.f32 %v429, %v1004
        %v1020 = vmul.f32 %v431, %v1004
        %v1021 = vmul.f32 %v432, %v1004
        %v1022 = vmul.f32 %v434, %v1004
        %v1023 = vmul.f32 %v435, %v1004
        %v1024 = vmul.f32 %v437, %v1004
        %v1025 = vmul.f32 %v438, %v1004
        %v1026 = vmul.f32 %v440, %v1004
        %v1027 = vmul.f32 %v441, %v1004
        %v1028 = vmul.f32 %v443, %v1004
        %v1029 = vmul.f32 %v444, %v1004
        %v1030 = vmul.f32 %v446, %v1004
        %v1031 = vmul.f32 %v447, %v1004
        %v1032 = vmul.f32 %v449, %v1004
        %v1033 = vmul.f32 %v450, %v1004
        %v1034 = vmul.f32 %v452, %v1004
        %v1035 = vmul.f32 %v453, %v1004
        %v1036 = vmul.f32 %v455, %v1004
        %v1037 = vmul.f32 %v456, %v1004
        %v1038 = vadd.f32 %v966, %v1006
        %v1039 = vadd.f32 %v967, %v1007
        %v1040 = vadd.f32 %v968, %v1008
        %v1041 = vadd.f32 %v969, %v1009
        %v1042 = vadd.f32 %v970, %v1010
        %v1043 = vadd.f32 %v971, %v1011
        %v1044 = vadd.f32 %v972, %v1012
        %v1045 = vadd.f32 %v973, %v1013
        %v1046 = vadd.f32 %v974, %v1014
        %v1047 = vadd.f32 %v975, %v1015
        %v1048 = vadd.f32 %v976, %v1016
        %v1049 = vadd.f32 %v977, %v1017
        %v1050 = vadd.f32 %v978, %v1018
        %v1051 = vadd.f32 %v979, %v1019
        %v1052 = vadd.f32 %v980, %v1020
        %v1053 = vadd.f32 %v981, %v1021
        %v1054 = vadd.f32 %v982, %v1022
        %v1055 = vadd.f32 %v983, %v1023
        %v1056 = vadd.f32 %v984, %v1024
        %v1057 = vadd.f32 %v985, %v1025
        %v1058 = vadd.f32 %v986, %v1026
        %v1059 = vadd.f32 %v987, %v1027
        %v1060 = vadd.f32 %v988, %v1028
        %v1061 = vadd.f32 %v989, %v1029
        %v1062 = vadd.f32 %v990, %v1030
        %v1063 = vadd.f32 %v991, %v1031
        %v1064 = vadd.f32 %v992, %v1032
        %v1065 = vadd.f32 %v993, %v1033
        %v1066 = vadd.f32 %v994, %v1034
        %v1067 = vadd.f32 %v995, %v1035
        %v1068 = vadd.f32 %v996, %v1036
        %v1069 = vadd.f32 %v997, %v1037
        %s1070 = scalar_lea.vmem %s1, 4
        %v1071 = vld [vmem:[%s1070] sm:$0x1]
        %v1073 = vlaneseq
        %v1074 = vshrl.u32 %v1073, 7
        %v1075 = vsub.s32 0, %v1074
        %v1076 = vrot.slane %v1071, %v1075
        %v1078 = vmul.f32 %v410, %v1076
        %v1079 = vmul.f32 %v411, %v1076
        %v1080 = vmul.f32 %v412, %v1076
        %v1081 = vmul.f32 %v413, %v1076
        %v1082 = vmul.f32 %v414, %v1076
        %v1083 = vmul.f32 %v415, %v1076
        %v1084 = vmul.f32 %v416, %v1076
        %v1085 = vmul.f32 %v417, %v1076
        %v1086 = vmul.f32 %v418, %v1076
        %v1087 = vmul.f32 %v419, %v1076
        %v1088 = vmul.f32 %v420, %v1076
        %v1089 = vmul.f32 %v421, %v1076
        %v1090 = vmul.f32 %v422, %v1076
        %v1091 = vmul.f32 %v423, %v1076
        %v1092 = vmul.f32 %v424, %v1076
        %v1093 = vmul.f32 %v425, %v1076
        %v1094 = vmul.f32 %v426, %v1076
        %v1095 = vmul.f32 %v427, %v1076
        %v1096 = vmul.f32 %v428, %v1076
        %v1097 = vmul.f32 %v429, %v1076
        %v1098 = vmul.f32 %v430, %v1076
        %v1099 = vmul.f32 %v431, %v1076
        %v1100 = vmul.f32 %v432, %v1076
        %v1101 = vmul.f32 %v433, %v1076
        %v1102 = vmul.f32 %v434, %v1076
        %v1103 = vmul.f32 %v435, %v1076
        %v1104 = vmul.f32 %v436, %v1076
        %v1105 = vmul.f32 %v437, %v1076
        %v1106 = vmul.f32 %v438, %v1076
        %v1107 = vmul.f32 %v439, %v1076
        %v1108 = vmul.f32 %v440, %v1076
        %v1109 = vmul.f32 %v441, %v1076
        %v1110 = vmul.f32 %v442, %v1076
        %v1111 = vmul.f32 %v443, %v1076
        %v1112 = vmul.f32 %v444, %v1076
        %v1113 = vmul.f32 %v445, %v1076
        %v1114 = vmul.f32 %v446, %v1076
        %v1115 = vmul.f32 %v447, %v1076
        %v1116 = vmul.f32 %v448, %v1076
        %v1117 = vmul.f32 %v449, %v1076
        %v1118 = vmul.f32 %v450, %v1076
        %v1119 = vmul.f32 %v451, %v1076
        %v1120 = vmul.f32 %v452, %v1076
        %v1121 = vmul.f32 %v453, %v1076
        %v1122 = vmul.f32 %v454, %v1076
        %v1123 = vmul.f32 %v455, %v1076
        %v1124 = vmul.f32 %v456, %v1076
        %v1125 = vmul.f32 %v457, %v1076
        %v1174 = vrot.slane %v1078, 1
        %v1175 = vrot.slane %v1079, 1
        %v1176 = vsel %vm604, %v1174, %v1175
        %v1177 = vrot.slane %v1080, 1
        %v1178 = vsel %vm604, %v1175, %v1177
        %v1179 = vrot.slane %v1081, 1
        %v1180 = vrot.slane %v1082, 1
        %v1181 = vsel %vm604, %v1179, %v1180
        %v1182 = vrot.slane %v1083, 1
        %v1183 = vsel %vm604, %v1180, %v1182
        %v1184 = vrot.slane %v1084, 1
        %v1185 = vrot.slane %v1085, 1
        %v1186 = vsel %vm604, %v1184, %v1185
        %v1187 = vrot.slane %v1086, 1
        %v1188 = vsel %vm604, %v1185, %v1187
        %v1189 = vrot.slane %v1087, 1
        %v1190 = vrot.slane %v1088, 1
        %v1191 = vsel %vm604, %v1189, %v1190
        %v1192 = vrot.slane %v1089, 1
        %v1193 = vsel %vm604, %v1190, %v1192
        %v1194 = vrot.slane %v1090, 1
        %v1195 = vrot.slane %v1091, 1
        %v1196 = vsel %vm604, %v1194, %v1195
        %v1197 = vrot.slane %v1092, 1
        %v1198 = vsel %vm604, %v1195, %v1197
        %v1199 = vrot.slane %v1093, 1
        %v1200 = vrot.slane %v1094, 1
        %v1201 = vsel %vm604, %v1199, %v1200
        %v1202 = vrot.slane %v1095, 1
        %v1203 = vsel %vm604, %v1200, %v1202
        %v1204 = vrot.slane %v1096, 1
        %v1205 = vrot.slane %v1097, 1
        %v1206 = vsel %vm604, %v1204, %v1205
        %v1207 = vrot.slane %v1098, 1
        %v1208 = vsel %vm604, %v1205, %v1207
        %v1209 = vrot.slane %v1099, 1
        %v1210 = vrot.slane %v1100, 1
        %v1211 = vsel %vm604, %v1209, %v1210
        %v1212 = vrot.slane %v1101, 1
        %v1213 = vsel %vm604, %v1210, %v1212
        %v1214 = vrot.slane %v1102, 1
        %v1215 = vrot.slane %v1103, 1
        %v1216 = vsel %vm604, %v1214, %v1215
        %v1217 = vrot.slane %v1104, 1
        %v1218 = vsel %vm604, %v1215, %v1217
        %v1219 = vrot.slane %v1105, 1
        %v1220 = vrot.slane %v1106, 1
        %v1221 = vsel %vm604, %v1219, %v1220
        %v1222 = vrot.slane %v1107, 1
        %v1223 = vsel %vm604, %v1220, %v1222
        %v1224 = vrot.slane %v1108, 1
        %v1225 = vrot.slane %v1109, 1
        %v1226 = vsel %vm604, %v1224, %v1225
        %v1227 = vrot.slane %v1110, 1
        %v1228 = vsel %vm604, %v1225, %v1227
        %v1229 = vrot.slane %v1111, 1
        %v1230 = vrot.slane %v1112, 1
        %v1231 = vsel %vm604, %v1229, %v1230
        %v1232 = vrot.slane %v1113, 1
        %v1233 = vsel %vm604, %v1230, %v1232
        %v1234 = vrot.slane %v1114, 1
        %v1235 = vrot.slane %v1115, 1
        %v1236 = vsel %vm604, %v1234, %v1235
        %v1237 = vrot.slane %v1116, 1
        %v1238 = vsel %vm604, %v1235, %v1237
        %v1239 = vrot.slane %v1117, 1
        %v1240 = vrot.slane %v1118, 1
        %v1241 = vsel %vm604, %v1239, %v1240
        %v1242 = vrot.slane %v1119, 1
        %v1243 = vsel %vm604, %v1240, %v1242
        %v1244 = vrot.slane %v1120, 1
        %v1245 = vrot.slane %v1121, 1
        %v1246 = vsel %vm604, %v1244, %v1245
        %v1247 = vrot.slane %v1122, 1
        %v1248 = vsel %vm604, %v1245, %v1247
        %v1249 = vrot.slane %v1123, 1
        %v1250 = vrot.slane %v1124, 1
        %v1251 = vsel %vm604, %v1249, %v1250
        %v1252 = vrot.slane %v1125, 1
        %v1253 = vsel %vm604, %v1250, %v1252
        %v1286 = vadd.f32 %v1038, %v1176
        %v1287 = vadd.f32 %v1039, %v1178
        %v1288 = vadd.f32 %v1040, %v1181
        %v1289 = vadd.f32 %v1041, %v1183
        %v1290 = vadd.f32 %v1042, %v1186
        %v1291 = vadd.f32 %v1043, %v1188
        %v1292 = vadd.f32 %v1044, %v1191
        %v1293 = vadd.f32 %v1045, %v1193
        %v1294 = vadd.f32 %v1046, %v1196
        %v1295 = vadd.f32 %v1047, %v1198
        %v1296 = vadd.f32 %v1048, %v1201
        %v1297 = vadd.f32 %v1049, %v1203
        %v1298 = vadd.f32 %v1050, %v1206
        %v1299 = vadd.f32 %v1051, %v1208
        %v1300 = vadd.f32 %v1052, %v1211
        %v1301 = vadd.f32 %v1053, %v1213
        %v1302 = vadd.f32 %v1054, %v1216
        %v1303 = vadd.f32 %v1055, %v1218
        %v1304 = vadd.f32 %v1056, %v1221
        %v1305 = vadd.f32 %v1057, %v1223
        %v1306 = vadd.f32 %v1058, %v1226
        %v1307 = vadd.f32 %v1059, %v1228
        %v1308 = vadd.f32 %v1060, %v1231
        %v1309 = vadd.f32 %v1061, %v1233
        %v1310 = vadd.f32 %v1062, %v1236
        %v1311 = vadd.f32 %v1063, %v1238
        %v1312 = vadd.f32 %v1064, %v1241
        %v1313 = vadd.f32 %v1065, %v1243
        %v1314 = vadd.f32 %v1066, %v1246
        %v1315 = vadd.f32 %v1067, %v1248
        %v1316 = vadd.f32 %v1068, %v1251
        %v1317 = vadd.f32 %v1069, %v1253
        %s1318 = scalar_lea.vmem %s1, 5
        %v1319 = vld [vmem:[%s1318] sm:$0x1]
        %v1321 = vlaneseq
        %v1322 = vshrl.u32 %v1321, 7
        %v1323 = vsub.s32 0, %v1322
        %v1324 = vrot.slane %v1319, %v1323
        %v1326 = vmul.f32 %v410, %v1324
        %v1327 = vmul.f32 %v411, %v1324
        %v1328 = vmul.f32 %v412, %v1324
        %v1329 = vmul.f32 %v413, %v1324
        %v1330 = vmul.f32 %v414, %v1324
        %v1331 = vmul.f32 %v415, %v1324
        %v1332 = vmul.f32 %v416, %v1324
        %v1333 = vmul.f32 %v417, %v1324
        %v1334 = vmul.f32 %v418, %v1324
        %v1335 = vmul.f32 %v419, %v1324
        %v1336 = vmul.f32 %v420, %v1324
        %v1337 = vmul.f32 %v421, %v1324
        %v1338 = vmul.f32 %v422, %v1324
        %v1339 = vmul.f32 %v423, %v1324
        %v1340 = vmul.f32 %v424, %v1324
        %v1341 = vmul.f32 %v425, %v1324
        %v1342 = vmul.f32 %v426, %v1324
        %v1343 = vmul.f32 %v427, %v1324
        %v1344 = vmul.f32 %v428, %v1324
        %v1345 = vmul.f32 %v429, %v1324
        %v1346 = vmul.f32 %v430, %v1324
        %v1347 = vmul.f32 %v431, %v1324
        %v1348 = vmul.f32 %v432, %v1324
        %v1349 = vmul.f32 %v433, %v1324
        %v1350 = vmul.f32 %v434, %v1324
        %v1351 = vmul.f32 %v435, %v1324
        %v1352 = vmul.f32 %v436, %v1324
        %v1353 = vmul.f32 %v437, %v1324
        %v1354 = vmul.f32 %v438, %v1324
        %v1355 = vmul.f32 %v439, %v1324
        %v1356 = vmul.f32 %v440, %v1324
        %v1357 = vmul.f32 %v441, %v1324
        %v1358 = vmul.f32 %v442, %v1324
        %v1359 = vmul.f32 %v443, %v1324
        %v1360 = vmul.f32 %v444, %v1324
        %v1361 = vmul.f32 %v445, %v1324
        %v1362 = vmul.f32 %v446, %v1324
        %v1363 = vmul.f32 %v447, %v1324
        %v1364 = vmul.f32 %v448, %v1324
        %v1365 = vmul.f32 %v449, %v1324
        %v1366 = vmul.f32 %v450, %v1324
        %v1367 = vmul.f32 %v451, %v1324
        %v1368 = vmul.f32 %v452, %v1324
        %v1369 = vmul.f32 %v453, %v1324
        %v1370 = vmul.f32 %v454, %v1324
        %v1371 = vmul.f32 %v455, %v1324
        %v1372 = vmul.f32 %v456, %v1324
        %v1373 = vmul.f32 %v457, %v1324
        %v1422 = vrot.slane %v1326, 2
        %v1423 = vrot.slane %v1327, 2
        %v1424 = vsel %vm853, %v1422, %v1423
        %v1425 = vrot.slane %v1328, 2
        %v1426 = vsel %vm853, %v1423, %v1425
        %v1427 = vrot.slane %v1329, 2
        %v1428 = vrot.slane %v1330, 2
        %v1429 = vsel %vm853, %v1427, %v1428
        %v1430 = vrot.slane %v1331, 2
        %v1431 = vsel %vm853, %v1428, %v1430
        %v1432 = vrot.slane %v1332, 2
        %v1433 = vrot.slane %v1333, 2
        %v1434 = vsel %vm853, %v1432, %v1433
        %v1435 = vrot.slane %v1334, 2
        %v1436 = vsel %vm853, %v1433, %v1435
        %v1437 = vrot.slane %v1335, 2
        %v1438 = vrot.slane %v1336, 2
        %v1439 = vsel %vm853, %v1437, %v1438
        %v1440 = vrot.slane %v1337, 2
        %v1441 = vsel %vm853, %v1438, %v1440
        %v1442 = vrot.slane %v1338, 2
        %v1443 = vrot.slane %v1339, 2
        %v1444 = vsel %vm853, %v1442, %v1443
        %v1445 = vrot.slane %v1340, 2
        %v1446 = vsel %vm853, %v1443, %v1445
        %v1447 = vrot.slane %v1341, 2
        %v1448 = vrot.slane %v1342, 2
        %v1449 = vsel %vm853, %v1447, %v1448
        %v1450 = vrot.slane %v1343, 2
        %v1451 = vsel %vm853, %v1448, %v1450
        %v1452 = vrot.slane %v1344, 2
        %v1453 = vrot.slane %v1345, 2
        %v1454 = vsel %vm853, %v1452, %v1453
        %v1455 = vrot.slane %v1346, 2
        %v1456 = vsel %vm853, %v1453, %v1455
        %v1457 = vrot.slane %v1347, 2
        %v1458 = vrot.slane %v1348, 2
        %v1459 = vsel %vm853, %v1457, %v1458
        %v1460 = vrot.slane %v1349, 2
        %v1461 = vsel %vm853, %v1458, %v1460
        %v1462 = vrot.slane %v1350, 2
        %v1463 = vrot.slane %v1351, 2
        %v1464 = vsel %vm853, %v1462, %v1463
        %v1465 = vrot.slane %v1352, 2
        %v1466 = vsel %vm853, %v1463, %v1465
        %v1467 = vrot.slane %v1353, 2
        %v1468 = vrot.slane %v1354, 2
        %v1469 = vsel %vm853, %v1467, %v1468
        %v1470 = vrot.slane %v1355, 2
        %v1471 = vsel %vm853, %v1468, %v1470
        %v1472 = vrot.slane %v1356, 2
        %v1473 = vrot.slane %v1357, 2
        %v1474 = vsel %vm853, %v1472, %v1473
        %v1475 = vrot.slane %v1358, 2
        %v1476 = vsel %vm853, %v1473, %v1475
        %v1477 = vrot.slane %v1359, 2
        %v1478 = vrot.slane %v1360, 2
        %v1479 = vsel %vm853, %v1477, %v1478
        %v1480 = vrot.slane %v1361, 2
        %v1481 = vsel %vm853, %v1478, %v1480
        %v1482 = vrot.slane %v1362, 2
        %v1483 = vrot.slane %v1363, 2
        %v1484 = vsel %vm853, %v1482, %v1483
        %v1485 = vrot.slane %v1364, 2
        %v1486 = vsel %vm853, %v1483, %v1485
        %v1487 = vrot.slane %v1365, 2
        %v1488 = vrot.slane %v1366, 2
        %v1489 = vsel %vm853, %v1487, %v1488
        %v1490 = vrot.slane %v1367, 2
        %v1491 = vsel %vm853, %v1488, %v1490
        %v1492 = vrot.slane %v1368, 2
        %v1493 = vrot.slane %v1369, 2
        %v1494 = vsel %vm853, %v1492, %v1493
        %v1495 = vrot.slane %v1370, 2
        %v1496 = vsel %vm853, %v1493, %v1495
        %v1497 = vrot.slane %v1371, 2
        %v1498 = vrot.slane %v1372, 2
        %v1499 = vsel %vm853, %v1497, %v1498
        %v1500 = vrot.slane %v1373, 2
        %v1501 = vsel %vm853, %v1498, %v1500
        %v1534 = vadd.f32 %v1286, %v1424
        %v1535 = vadd.f32 %v1287, %v1426
        %v1536 = vadd.f32 %v1288, %v1429
        %v1537 = vadd.f32 %v1289, %v1431
        %v1538 = vadd.f32 %v1290, %v1434
        %v1539 = vadd.f32 %v1291, %v1436
        %v1540 = vadd.f32 %v1292, %v1439
        %v1541 = vadd.f32 %v1293, %v1441
        %v1542 = vadd.f32 %v1294, %v1444
        %v1543 = vadd.f32 %v1295, %v1446
        %v1544 = vadd.f32 %v1296, %v1449
        %v1545 = vadd.f32 %v1297, %v1451
        %v1546 = vadd.f32 %v1298, %v1454
        %v1547 = vadd.f32 %v1299, %v1456
        %v1548 = vadd.f32 %v1300, %v1459
        %v1549 = vadd.f32 %v1301, %v1461
        %v1550 = vadd.f32 %v1302, %v1464
        %v1551 = vadd.f32 %v1303, %v1466
        %v1552 = vadd.f32 %v1304, %v1469
        %v1553 = vadd.f32 %v1305, %v1471
        %v1554 = vadd.f32 %v1306, %v1474
        %v1555 = vadd.f32 %v1307, %v1476
        %v1556 = vadd.f32 %v1308, %v1479
        %v1557 = vadd.f32 %v1309, %v1481
        %v1558 = vadd.f32 %v1310, %v1484
        %v1559 = vadd.f32 %v1311, %v1486
        %v1560 = vadd.f32 %v1312, %v1489
        %v1561 = vadd.f32 %v1313, %v1491
        %v1562 = vadd.f32 %v1314, %v1494
        %v1563 = vadd.f32 %v1315, %v1496
        %v1564 = vadd.f32 %v1316, %v1499
        %v1565 = vadd.f32 %v1317, %v1501
        %s1566 = scalar_lea.vmem %s1, 6
        %v1567 = vld [vmem:[%s1566] sm:$0x1]
        %v1569 = vlaneseq
        %v1570 = vshrl.u32 %v1569, 7
        %v1571 = vsub.s32 0, %v1570
        %v1572 = vrot.slane %v1567, %v1571
        %v1574 = vmul.f32 %v413, %v1572
        %v1575 = vmul.f32 %v414, %v1572
        %v1576 = vmul.f32 %v416, %v1572
        %v1577 = vmul.f32 %v417, %v1572
        %v1578 = vmul.f32 %v419, %v1572
        %v1579 = vmul.f32 %v420, %v1572
        %v1580 = vmul.f32 %v422, %v1572
        %v1581 = vmul.f32 %v423, %v1572
        %v1582 = vmul.f32 %v425, %v1572
        %v1583 = vmul.f32 %v426, %v1572
        %v1584 = vmul.f32 %v428, %v1572
        %v1585 = vmul.f32 %v429, %v1572
        %v1586 = vmul.f32 %v431, %v1572
        %v1587 = vmul.f32 %v432, %v1572
        %v1588 = vmul.f32 %v434, %v1572
        %v1589 = vmul.f32 %v435, %v1572
        %v1590 = vmul.f32 %v437, %v1572
        %v1591 = vmul.f32 %v438, %v1572
        %v1592 = vmul.f32 %v440, %v1572
        %v1593 = vmul.f32 %v441, %v1572
        %v1594 = vmul.f32 %v443, %v1572
        %v1595 = vmul.f32 %v444, %v1572
        %v1596 = vmul.f32 %v446, %v1572
        %v1597 = vmul.f32 %v447, %v1572
        %v1598 = vmul.f32 %v449, %v1572
        %v1599 = vmul.f32 %v450, %v1572
        %v1600 = vmul.f32 %v452, %v1572
        %v1601 = vmul.f32 %v453, %v1572
        %v1602 = vmul.f32 %v455, %v1572
        %v1603 = vmul.f32 %v456, %v1572
        %v1604 = vmul.f32 %v458, %v1572
        %v1605 = vmul.f32 %v459, %v1572
        %v1606 = vadd.f32 %v1534, %v1574
        %v1607 = vadd.f32 %v1535, %v1575
        %v1608 = vadd.f32 %v1536, %v1576
        %v1609 = vadd.f32 %v1537, %v1577
        %v1610 = vadd.f32 %v1538, %v1578
        %v1611 = vadd.f32 %v1539, %v1579
        %v1612 = vadd.f32 %v1540, %v1580
        %v1613 = vadd.f32 %v1541, %v1581
        %v1614 = vadd.f32 %v1542, %v1582
        %v1615 = vadd.f32 %v1543, %v1583
        %v1616 = vadd.f32 %v1544, %v1584
        %v1617 = vadd.f32 %v1545, %v1585
        %v1618 = vadd.f32 %v1546, %v1586
        %v1619 = vadd.f32 %v1547, %v1587
        %v1620 = vadd.f32 %v1548, %v1588
        %v1621 = vadd.f32 %v1549, %v1589
        %v1622 = vadd.f32 %v1550, %v1590
        %v1623 = vadd.f32 %v1551, %v1591
        %v1624 = vadd.f32 %v1552, %v1592
        %v1625 = vadd.f32 %v1553, %v1593
        %v1626 = vadd.f32 %v1554, %v1594
        %v1627 = vadd.f32 %v1555, %v1595
        %v1628 = vadd.f32 %v1556, %v1596
        %v1629 = vadd.f32 %v1557, %v1597
        %v1630 = vadd.f32 %v1558, %v1598
        %v1631 = vadd.f32 %v1559, %v1599
        %v1632 = vadd.f32 %v1560, %v1600
        %v1633 = vadd.f32 %v1561, %v1601
        %v1634 = vadd.f32 %v1562, %v1602
        %v1635 = vadd.f32 %v1563, %v1603
        %v1636 = vadd.f32 %v1564, %v1604
        %v1637 = vadd.f32 %v1565, %v1605
        %s1638 = scalar_lea.vmem %s1, 7
        %v1639 = vld [vmem:[%s1638] sm:$0x1]
        %v1641 = vlaneseq
        %v1642 = vshrl.u32 %v1641, 7
        %v1643 = vsub.s32 0, %v1642
        %v1644 = vrot.slane %v1639, %v1643
        %v1646 = vmul.f32 %v413, %v1644
        %v1647 = vmul.f32 %v414, %v1644
        %v1648 = vmul.f32 %v415, %v1644
        %v1649 = vmul.f32 %v416, %v1644
        %v1650 = vmul.f32 %v417, %v1644
        %v1651 = vmul.f32 %v418, %v1644
        %v1652 = vmul.f32 %v419, %v1644
        %v1653 = vmul.f32 %v420, %v1644
        %v1654 = vmul.f32 %v421, %v1644
        %v1655 = vmul.f32 %v422, %v1644
        %v1656 = vmul.f32 %v423, %v1644
        %v1657 = vmul.f32 %v424, %v1644
        %v1658 = vmul.f32 %v425, %v1644
        %v1659 = vmul.f32 %v426, %v1644
        %v1660 = vmul.f32 %v427, %v1644
        %v1661 = vmul.f32 %v428, %v1644
        %v1662 = vmul.f32 %v429, %v1644
        %v1663 = vmul.f32 %v430, %v1644
        %v1664 = vmul.f32 %v431, %v1644
        %v1665 = vmul.f32 %v432, %v1644
        %v1666 = vmul.f32 %v433, %v1644
        %v1667 = vmul.f32 %v434, %v1644
        %v1668 = vmul.f32 %v435, %v1644
        %v1669 = vmul.f32 %v436, %v1644
        %v1670 = vmul.f32 %v437, %v1644
        %v1671 = vmul.f32 %v438, %v1644
        %v1672 = vmul.f32 %v439, %v1644
        %v1673 = vmul.f32 %v440, %v1644
        %v1674 = vmul.f32 %v441, %v1644
        %v1675 = vmul.f32 %v442, %v1644
        %v1676 = vmul.f32 %v443, %v1644
        %v1677 = vmul.f32 %v444, %v1644
        %v1678 = vmul.f32 %v445, %v1644
        %v1679 = vmul.f32 %v446, %v1644
        %v1680 = vmul.f32 %v447, %v1644
        %v1681 = vmul.f32 %v448, %v1644
        %v1682 = vmul.f32 %v449, %v1644
        %v1683 = vmul.f32 %v450, %v1644
        %v1684 = vmul.f32 %v451, %v1644
        %v1685 = vmul.f32 %v452, %v1644
        %v1686 = vmul.f32 %v453, %v1644
        %v1687 = vmul.f32 %v454, %v1644
        %v1688 = vmul.f32 %v455, %v1644
        %v1689 = vmul.f32 %v456, %v1644
        %v1690 = vmul.f32 %v457, %v1644
        %v1691 = vmul.f32 %v458, %v1644
        %v1692 = vmul.f32 %v459, %v1644
        %v1693 = vmul.f32 %v460, %v1644
        %v1742 = vrot.slane %v1646, 1
        %v1743 = vrot.slane %v1647, 1
        %v1744 = vsel %vm604, %v1742, %v1743
        %v1745 = vrot.slane %v1648, 1
        %v1746 = vsel %vm604, %v1743, %v1745
        %v1747 = vrot.slane %v1649, 1
        %v1748 = vrot.slane %v1650, 1
        %v1749 = vsel %vm604, %v1747, %v1748
        %v1750 = vrot.slane %v1651, 1
        %v1751 = vsel %vm604, %v1748, %v1750
        %v1752 = vrot.slane %v1652, 1
        %v1753 = vrot.slane %v1653, 1
        %v1754 = vsel %vm604, %v1752, %v1753
        %v1755 = vrot.slane %v1654, 1
        %v1756 = vsel %vm604, %v1753, %v1755
        %v1757 = vrot.slane %v1655, 1
        %v1758 = vrot.slane %v1656, 1
        %v1759 = vsel %vm604, %v1757, %v1758
        %v1760 = vrot.slane %v1657, 1
        %v1761 = vsel %vm604, %v1758, %v1760
        %v1762 = vrot.slane %v1658, 1
        %v1763 = vrot.slane %v1659, 1
        %v1764 = vsel %vm604, %v1762, %v1763
        %v1765 = vrot.slane %v1660, 1
        %v1766 = vsel %vm604, %v1763, %v1765
        %v1767 = vrot.slane %v1661, 1
        %v1768 = vrot.slane %v1662, 1
        %v1769 = vsel %vm604, %v1767, %v1768
        %v1770 = vrot.slane %v1663, 1
        %v1771 = vsel %vm604, %v1768, %v1770
        %v1772 = vrot.slane %v1664, 1
        %v1773 = vrot.slane %v1665, 1
        %v1774 = vsel %vm604, %v1772, %v1773
        %v1775 = vrot.slane %v1666, 1
        %v1776 = vsel %vm604, %v1773, %v1775
        %v1777 = vrot.slane %v1667, 1
        %v1778 = vrot.slane %v1668, 1
        %v1779 = vsel %vm604, %v1777, %v1778
        %v1780 = vrot.slane %v1669, 1
        %v1781 = vsel %vm604, %v1778, %v1780
        %v1782 = vrot.slane %v1670, 1
        %v1783 = vrot.slane %v1671, 1
        %v1784 = vsel %vm604, %v1782, %v1783
        %v1785 = vrot.slane %v1672, 1
        %v1786 = vsel %vm604, %v1783, %v1785
        %v1787 = vrot.slane %v1673, 1
        %v1788 = vrot.slane %v1674, 1
        %v1789 = vsel %vm604, %v1787, %v1788
        %v1790 = vrot.slane %v1675, 1
        %v1791 = vsel %vm604, %v1788, %v1790
        %v1792 = vrot.slane %v1676, 1
        %v1793 = vrot.slane %v1677, 1
        %v1794 = vsel %vm604, %v1792, %v1793
        %v1795 = vrot.slane %v1678, 1
        %v1796 = vsel %vm604, %v1793, %v1795
        %v1797 = vrot.slane %v1679, 1
        %v1798 = vrot.slane %v1680, 1
        %v1799 = vsel %vm604, %v1797, %v1798
        %v1800 = vrot.slane %v1681, 1
        %v1801 = vsel %vm604, %v1798, %v1800
        %v1802 = vrot.slane %v1682, 1
        %v1803 = vrot.slane %v1683, 1
        %v1804 = vsel %vm604, %v1802, %v1803
        %v1805 = vrot.slane %v1684, 1
        %v1806 = vsel %vm604, %v1803, %v1805
        %v1807 = vrot.slane %v1685, 1
        %v1808 = vrot.slane %v1686, 1
        %v1809 = vsel %vm604, %v1807, %v1808
        %v1810 = vrot.slane %v1687, 1
        %v1811 = vsel %vm604, %v1808, %v1810
        %v1812 = vrot.slane %v1688, 1
        %v1813 = vrot.slane %v1689, 1
        %v1814 = vsel %vm604, %v1812, %v1813
        %v1815 = vrot.slane %v1690, 1
        %v1816 = vsel %vm604, %v1813, %v1815
        %v1817 = vrot.slane %v1691, 1
        %v1818 = vrot.slane %v1692, 1
        %v1819 = vsel %vm604, %v1817, %v1818
        %v1820 = vrot.slane %v1693, 1
        %v1821 = vsel %vm604, %v1818, %v1820
        %v1854 = vadd.f32 %v1606, %v1744
        %v1855 = vadd.f32 %v1607, %v1746
        %v1856 = vadd.f32 %v1608, %v1749
        %v1857 = vadd.f32 %v1609, %v1751
        %v1858 = vadd.f32 %v1610, %v1754
        %v1859 = vadd.f32 %v1611, %v1756
        %v1860 = vadd.f32 %v1612, %v1759
        %v1861 = vadd.f32 %v1613, %v1761
        %v1862 = vadd.f32 %v1614, %v1764
        %v1863 = vadd.f32 %v1615, %v1766
        %v1864 = vadd.f32 %v1616, %v1769
        %v1865 = vadd.f32 %v1617, %v1771
        %v1866 = vadd.f32 %v1618, %v1774
        %v1867 = vadd.f32 %v1619, %v1776
        %v1868 = vadd.f32 %v1620, %v1779
        %v1869 = vadd.f32 %v1621, %v1781
        %v1870 = vadd.f32 %v1622, %v1784
        %v1871 = vadd.f32 %v1623, %v1786
        %v1872 = vadd.f32 %v1624, %v1789
        %v1873 = vadd.f32 %v1625, %v1791
        %v1874 = vadd.f32 %v1626, %v1794
        %v1875 = vadd.f32 %v1627, %v1796
        %v1876 = vadd.f32 %v1628, %v1799
        %v1877 = vadd.f32 %v1629, %v1801
        %v1878 = vadd.f32 %v1630, %v1804
        %v1879 = vadd.f32 %v1631, %v1806
        %v1880 = vadd.f32 %v1632, %v1809
        %v1881 = vadd.f32 %v1633, %v1811
        %v1882 = vadd.f32 %v1634, %v1814
        %v1883 = vadd.f32 %v1635, %v1816
        %v1884 = vadd.f32 %v1636, %v1819
        %v1885 = vadd.f32 %v1637, %v1821
        %s1886 = scalar_lea.vmem %s1, 8
        %v1887 = vld [vmem:[%s1886] sm:$0x1]
        %v1889 = vlaneseq
        %v1890 = vshrl.u32 %v1889, 7
        %v1891 = vsub.s32 0, %v1890
        %v1892 = vrot.slane %v1887, %v1891
        %v1894 = vmul.f32 %v413, %v1892
        %v1895 = vmul.f32 %v414, %v1892
        %v1896 = vmul.f32 %v415, %v1892
        %v1897 = vmul.f32 %v416, %v1892
        %v1898 = vmul.f32 %v417, %v1892
        %v1899 = vmul.f32 %v418, %v1892
        %v1900 = vmul.f32 %v419, %v1892
        %v1901 = vmul.f32 %v420, %v1892
        %v1902 = vmul.f32 %v421, %v1892
        %v1903 = vmul.f32 %v422, %v1892
        %v1904 = vmul.f32 %v423, %v1892
        %v1905 = vmul.f32 %v424, %v1892
        %v1906 = vmul.f32 %v425, %v1892
        %v1907 = vmul.f32 %v426, %v1892
        %v1908 = vmul.f32 %v427, %v1892
        %v1909 = vmul.f32 %v428, %v1892
        %v1910 = vmul.f32 %v429, %v1892
        %v1911 = vmul.f32 %v430, %v1892
        %v1912 = vmul.f32 %v431, %v1892
        %v1913 = vmul.f32 %v432, %v1892
        %v1914 = vmul.f32 %v433, %v1892
        %v1915 = vmul.f32 %v434, %v1892
        %v1916 = vmul.f32 %v435, %v1892
        %v1917 = vmul.f32 %v436, %v1892
        %v1918 = vmul.f32 %v437, %v1892
        %v1919 = vmul.f32 %v438, %v1892
        %v1920 = vmul.f32 %v439, %v1892
        %v1921 = vmul.f32 %v440, %v1892
        %v1922 = vmul.f32 %v441, %v1892
        %v1923 = vmul.f32 %v442, %v1892
        %v1924 = vmul.f32 %v443, %v1892
        %v1925 = vmul.f32 %v444, %v1892
        %v1926 = vmul.f32 %v445, %v1892
        %v1927 = vmul.f32 %v446, %v1892
        %v1928 = vmul.f32 %v447, %v1892
        %v1929 = vmul.f32 %v448, %v1892
        %v1930 = vmul.f32 %v449, %v1892
        %v1931 = vmul.f32 %v450, %v1892
        %v1932 = vmul.f32 %v451, %v1892
        %v1933 = vmul.f32 %v452, %v1892
        %v1934 = vmul.f32 %v453, %v1892
        %v1935 = vmul.f32 %v454, %v1892
        %v1936 = vmul.f32 %v455, %v1892
        %v1937 = vmul.f32 %v456, %v1892
        %v1938 = vmul.f32 %v457, %v1892
        %v1939 = vmul.f32 %v458, %v1892
        %v1940 = vmul.f32 %v459, %v1892
        %v1941 = vmul.f32 %v460, %v1892
        %v1990 = vrot.slane %v1894, 2
        %v1991 = vrot.slane %v1895, 2
        %v1992 = vsel %vm853, %v1990, %v1991
        %v1993 = vrot.slane %v1896, 2
        %v1994 = vsel %vm853, %v1991, %v1993
        %v1995 = vrot.slane %v1897, 2
        %v1996 = vrot.slane %v1898, 2
        %v1997 = vsel %vm853, %v1995, %v1996
        %v1998 = vrot.slane %v1899, 2
        %v1999 = vsel %vm853, %v1996, %v1998
        %v2000 = vrot.slane %v1900, 2
        %v2001 = vrot.slane %v1901, 2
        %v2002 = vsel %vm853, %v2000, %v2001
        %v2003 = vrot.slane %v1902, 2
        %v2004 = vsel %vm853, %v2001, %v2003
        %v2005 = vrot.slane %v1903, 2
        %v2006 = vrot.slane %v1904, 2
        %v2007 = vsel %vm853, %v2005, %v2006
        %v2008 = vrot.slane %v1905, 2
        %v2009 = vsel %vm853, %v2006, %v2008
        %v2010 = vrot.slane %v1906, 2
        %v2011 = vrot.slane %v1907, 2
        %v2012 = vsel %vm853, %v2010, %v2011
        %v2013 = vrot.slane %v1908, 2
        %v2014 = vsel %vm853, %v2011, %v2013
        %v2015 = vrot.slane %v1909, 2
        %v2016 = vrot.slane %v1910, 2
        %v2017 = vsel %vm853, %v2015, %v2016
        %v2018 = vrot.slane %v1911, 2
        %v2019 = vsel %vm853, %v2016, %v2018
        %v2020 = vrot.slane %v1912, 2
        %v2021 = vrot.slane %v1913, 2
        %v2022 = vsel %vm853, %v2020, %v2021
        %v2023 = vrot.slane %v1914, 2
        %v2024 = vsel %vm853, %v2021, %v2023
        %v2025 = vrot.slane %v1915, 2
        %v2026 = vrot.slane %v1916, 2
        %v2027 = vsel %vm853, %v2025, %v2026
        %v2028 = vrot.slane %v1917, 2
        %v2029 = vsel %vm853, %v2026, %v2028
        %v2030 = vrot.slane %v1918, 2
        %v2031 = vrot.slane %v1919, 2
        %v2032 = vsel %vm853, %v2030, %v2031
        %v2033 = vrot.slane %v1920, 2
        %v2034 = vsel %vm853, %v2031, %v2033
        %v2035 = vrot.slane %v1921, 2
        %v2036 = vrot.slane %v1922, 2
        %v2037 = vsel %vm853, %v2035, %v2036
        %v2038 = vrot.slane %v1923, 2
        %v2039 = vsel %vm853, %v2036, %v2038
        %v2040 = vrot.slane %v1924, 2
        %v2041 = vrot.slane %v1925, 2
        %v2042 = vsel %vm853, %v2040, %v2041
        %v2043 = vrot.slane %v1926, 2
        %v2044 = vsel %vm853, %v2041, %v2043
        %v2045 = vrot.slane %v1927, 2
        %v2046 = vrot.slane %v1928, 2
        %v2047 = vsel %vm853, %v2045, %v2046
        %v2048 = vrot.slane %v1929, 2
        %v2049 = vsel %vm853, %v2046, %v2048
        %v2050 = vrot.slane %v1930, 2
        %v2051 = vrot.slane %v1931, 2
        %v2052 = vsel %vm853, %v2050, %v2051
        %v2053 = vrot.slane %v1932, 2
        %v2054 = vsel %vm853, %v2051, %v2053
        %v2055 = vrot.slane %v1933, 2
        %v2056 = vrot.slane %v1934, 2
        %v2057 = vsel %vm853, %v2055, %v2056
        %v2058 = vrot.slane %v1935, 2
        %v2059 = vsel %vm853, %v2056, %v2058
        %v2060 = vrot.slane %v1936, 2
        %v2061 = vrot.slane %v1937, 2
        %v2062 = vsel %vm853, %v2060, %v2061
        %v2063 = vrot.slane %v1938, 2
        %v2064 = vsel %vm853, %v2061, %v2063
        %v2065 = vrot.slane %v1939, 2
        %v2066 = vrot.slane %v1940, 2
        %v2067 = vsel %vm853, %v2065, %v2066
        %v2068 = vrot.slane %v1941, 2
        %v2069 = vsel %vm853, %v2066, %v2068
        %v2102 = vadd.f32 %v1854, %v1992
        %v2103 = vadd.f32 %v1855, %v1994
        %v2104 = vadd.f32 %v1856, %v1997
        %v2105 = vadd.f32 %v1857, %v1999
        %v2106 = vadd.f32 %v1858, %v2002
        %v2107 = vadd.f32 %v1859, %v2004
        %v2108 = vadd.f32 %v1860, %v2007
        %v2109 = vadd.f32 %v1861, %v2009
        %v2110 = vadd.f32 %v1862, %v2012
        %v2111 = vadd.f32 %v1863, %v2014
        %v2112 = vadd.f32 %v1864, %v2017
        %v2113 = vadd.f32 %v1865, %v2019
        %v2114 = vadd.f32 %v1866, %v2022
        %v2115 = vadd.f32 %v1867, %v2024
        %v2116 = vadd.f32 %v1868, %v2027
        %v2117 = vadd.f32 %v1869, %v2029
        %v2118 = vadd.f32 %v1870, %v2032
        %v2119 = vadd.f32 %v1871, %v2034
        %v2120 = vadd.f32 %v1872, %v2037
        %v2121 = vadd.f32 %v1873, %v2039
        %v2122 = vadd.f32 %v1874, %v2042
        %v2123 = vadd.f32 %v1875, %v2044
        %v2124 = vadd.f32 %v1876, %v2047
        %v2125 = vadd.f32 %v1877, %v2049
        %v2126 = vadd.f32 %v1878, %v2052
        %v2127 = vadd.f32 %v1879, %v2054
        %v2128 = vadd.f32 %v1880, %v2057
        %v2129 = vadd.f32 %v1881, %v2059
        %v2130 = vadd.f32 %v1882, %v2062
        %v2131 = vadd.f32 %v1883, %v2064
        %v2132 = vadd.f32 %v1884, %v2067
        %v2133 = vadd.f32 %v1885, %v2069
        %v2134 = vpack.c.bf16 %v2103, %v2102
        %v2135 = vpack.c.bf16 %v2105, %v2104
        %v2136 = vpack.c.bf16 %v2107, %v2106
        %v2137 = vpack.c.bf16 %v2109, %v2108
        %v2138 = vpack.c.bf16 %v2111, %v2110
        %v2139 = vpack.c.bf16 %v2113, %v2112
        %v2140 = vpack.c.bf16 %v2115, %v2114
        %v2141 = vpack.c.bf16 %v2117, %v2116
        %v2142 = vpack.c.bf16 %v2119, %v2118
        %v2143 = vpack.c.bf16 %v2121, %v2120
        %v2144 = vpack.c.bf16 %v2123, %v2122
        %v2145 = vpack.c.bf16 %v2125, %v2124
        %v2146 = vpack.c.bf16 %v2127, %v2126
        %v2147 = vpack.c.bf16 %v2129, %v2128
        %v2148 = vpack.c.bf16 %v2131, %v2130
        %v2149 = vpack.c.bf16 %v2133, %v2132
        %2150 = vst [vmem:[#allocation2] sm:$0xff] %v2134
        %2151 = vst [vmem:[#allocation2 + $0x8] sm:$0xff] %v2135
        %2152 = vst [vmem:[#allocation2 + $0x10] sm:$0xff] %v2136
        %2153 = vst [vmem:[#allocation2 + $0x18] sm:$0xff] %v2137
        %2154 = vst [vmem:[#allocation2 + $0x20] sm:$0xff] %v2138
        %2155 = vst [vmem:[#allocation2 + $0x28] sm:$0xff] %v2139
        %2156 = vst [vmem:[#allocation2 + $0x30] sm:$0xff] %v2140
        %2157 = vst [vmem:[#allocation2 + $0x38] sm:$0xff] %v2141
        %2158 = vst [vmem:[#allocation2 + $0x40] sm:$0xff] %v2142
        %2159 = vst [vmem:[#allocation2 + $0x48] sm:$0xff] %v2143
        %2160 = vst [vmem:[#allocation2 + $0x50] sm:$0xff] %v2144
        %2161 = vst [vmem:[#allocation2 + $0x58] sm:$0xff] %v2145
        %2162 = vst [vmem:[#allocation2 + $0x60] sm:$0xff] %v2146
        %2163 = vst [vmem:[#allocation2 + $0x68] sm:$0xff] %v2147
        %2164 = vst [vmem:[#allocation2 + $0x70] sm:$0xff] %v2148
        %2165 = vst [vmem:[#allocation2 + $0x78] sm:$0xff] %v2149
      $region48: #{middle_forward.8} parent=43 // pred_fallthru
        _
      %v2166 = vld [vmem:[#allocation2] sm:$0xff]
      %v2167 = vld [vmem:[#allocation2 + $0x8] sm:$0xff]
      %v2168 = vld [vmem:[#allocation2 + $0x10] sm:$0xff]
      %v2169 = vld [vmem:[#allocation2 + $0x18] sm:$0xff]
      %v2170 = vld [vmem:[#allocation2 + $0x20] sm:$0xff]
      %v2171 = vld [vmem:[#allocation2 + $0x28] sm:$0xff]
      %v2172 = vld [vmem:[#allocation2 + $0x30] sm:$0xff]
      %v2173 = vld [vmem:[#allocation2 + $0x38] sm:$0xff]
      %v2174 = vld [vmem:[#allocation2 + $0x40] sm:$0xff]
      %v2175 = vld [vmem:[#allocation2 + $0x48] sm:$0xff]
      %v2176 = vld [vmem:[#allocation2 + $0x50] sm:$0xff]
      %v2177 = vld [vmem:[#allocation2 + $0x58] sm:$0xff]
      %v2178 = vld [vmem:[#allocation2 + $0x60] sm:$0xff]
      %v2179 = vld [vmem:[#allocation2 + $0x68] sm:$0xff]
      %v2180 = vld [vmem:[#allocation2 + $0x70] sm:$0xff]
      %v2181 = vld [vmem:[#allocation2 + $0x78] sm:$0xff]
      %v2182 = vld [vmem:[%s325] sm:$0xf]
      %v2183 = vld [vmem:[%s325 + $0x4] sm:$0xf]
      %v2184 = vld [vmem:[%s325 + $0x8] sm:$0xf]
      %v2185 = vld [vmem:[%s325 + $0xc] sm:$0xf]
      %v2186 = vld [vmem:[%s325 + $0x10] sm:$0xf]
      %v2187 = vld [vmem:[%s325 + $0x14] sm:$0xf]
      %v2188 = vld [vmem:[%s325 + $0x18] sm:$0xf]
      %v2189 = vld [vmem:[%s325 + $0x1c] sm:$0xf]
      %v2190 = vld [vmem:[%s325 + $0x20] sm:$0xf]
      %v2191 = vld [vmem:[%s325 + $0x24] sm:$0xf]
      %v2192 = vld [vmem:[%s325 + $0x28] sm:$0xf]
      %v2193 = vld [vmem:[%s325 + $0x2c] sm:$0xf]
      %v2194 = vld [vmem:[%s325 + $0x30] sm:$0xf]
      %v2195 = vld [vmem:[%s325 + $0x34] sm:$0xf]
      %v2196 = vld [vmem:[%s325 + $0x38] sm:$0xf]
      %v2197 = vld [vmem:[%s325 + $0x3c] sm:$0xf]
      %v2214 = vunpack.c.l.b16 %v2182
      %v2215 = vunpack.c.l.b16 %v2183
      %v2216 = vunpack.c.l.b16 %v2184
      %v2217 = vunpack.c.l.b16 %v2185
      %v2218 = vunpack.c.l.b16 %v2186
      %v2219 = vunpack.c.l.b16 %v2187
      %v2220 = vunpack.c.l.b16 %v2188
      %v2221 = vunpack.c.l.b16 %v2189
      %v2222 = vunpack.c.l.b16 %v2190
      %v2223 = vunpack.c.l.b16 %v2191
      %v2224 = vunpack.c.l.b16 %v2192
      %v2225 = vunpack.c.l.b16 %v2193
      %v2226 = vunpack.c.l.b16 %v2194
      %v2227 = vunpack.c.l.b16 %v2195
      %v2228 = vunpack.c.l.b16 %v2196
      %v2229 = vunpack.c.l.b16 %v2197
      %v2230 = vpack.c.b16 %v2215, %v2214
      %v2231 = vpack.c.b16 %v2217, %v2216
      %v2232 = vpack.c.b16 %v2219, %v2218
      %v2233 = vpack.c.b16 %v2221, %v2220
      %v2234 = vpack.c.b16 %v2223, %v2222
      %v2235 = vpack.c.b16 %v2225, %v2224
      %v2236 = vpack.c.b16 %v2227, %v2226
      %v2237 = vpack.c.b16 %v2229, %v2228
      %2246 = vmatprep.subr.bf16.mxu0 0
      %2247 = vmatpush1.bf16.msra.mxu0 %v2230
      %2248 = vmatprep.subr.bf16.mxu0 0
      %2249 = vmatpush1.bf16.msra.mxu0 %v2231
      %2250 = vmatprep.subr.bf16.mxu0 0
      %2251 = vmatpush1.bf16.msra.mxu0 %v2232
      %2252 = vmatprep.subr.bf16.mxu0 0
      %2253 = vmatpush1.bf16.msra.mxu0 %v2233
      %2254 = vmatprep.subr.bf16.mxu0 0
      %2255 = vmatpush1.bf16.msra.mxu0 %v2234
      %2256 = vmatprep.subr.bf16.mxu0 0
      %2257 = vmatpush1.bf16.msra.mxu0 %v2235
      %2258 = vmatprep.subr.bf16.mxu0 0
      %2259 = vmatpush1.bf16.msra.mxu0 %v2236
      %2260 = vmatprep.subr.bf16.mxu0 0
      %2261 = vmatpush1.bf16.msra.mxu0 %v2237
      %2262 = vmatprep.subr.bf16.mxu0 0
      %2263 = vmatpush1.bf16.msra.mxu0 0
      %2264 = vmatprep.subr.bf16.mxu0 0
      %2265 = vmatpush1.bf16.msra.mxu0 0
      %2266 = vmatprep.subr.bf16.mxu0 0
      %2267 = vmatpush1.bf16.msra.mxu0 0
      %2268 = vmatprep.subr.bf16.mxu0 0
      %2269 = vmatpush1.bf16.msra.mxu0 0
      %2270 = vmatprep.subr.bf16.mxu0 0
      %2271 = vmatpush1.bf16.msra.mxu0 0
      %2272 = vmatprep.subr.bf16.mxu0 0
      %2273 = vmatpush1.bf16.msra.mxu0 0
      %2274 = vmatprep.subr.bf16.mxu0 0
      %2275 = vmatpush1.bf16.msra.mxu0 0
      %2276 = vmatprep.subr.bf16.mxu0 0
      %2277 = vmatpush1.bf16.msra.mxu0 0
      %2278 = vmatprep.mubr.bf16.mxu0 0
      %2279 = vmatmul.mubr.bf16.gmra.mrb[0].mxu0 %v2166
      %v2280 = vpop.f32.mrb[0].mxu0
      %v2281 = vadd.f32 0.0, %v2280
      %v2282 = vpop.f32.mrb[0].mxu0
      %v2283 = vpop.f32.mrb[0].mxu0
      %v2284 = vadd.f32 0.0, %v2283
      %v2285 = vpop.f32.mrb[0].mxu0
      %2286 = vmatprep.mubr.bf16.mxu0 0
      %2287 = vmatmul.mubr.bf16.gmra.mrb[0].mxu0 %v2167
      %v2288 = vpop.f32.mrb[0].mxu0
      %v2289 = vadd.f32 0.0, %v2288
      %v2290 = vpop.f32.mrb[0].mxu0
      %v2291 = vpop.f32.mrb[0].mxu0
      %v2292 = vadd.f32 0.0, %v2291
      %v2293 = vpop.f32.mrb[0].mxu0
      %2294 = vmatprep.mubr.bf16.mxu0 0
      %2295 = vmatmul.mubr.bf16.gmra.mrb[0].mxu0 %v2168
      %v2296 = vpop.f32.mrb[0].mxu0
      %v2297 = vadd.f32 0.0, %v2296
      %v2298 = vpop.f32.mrb[0].mxu0
      %v2299 = vpop.f32.mrb[0].mxu0
      %v2300 = vadd.f32 0.0, %v2299
      %v2301 = vpop.f32.mrb[0].mxu0
      %2302 = vmatprep.mubr.bf16.mxu0 0
      %2303 = vmatmul.mubr.bf16.gmra.mrb[0].mxu0 %v2169
      %v2304 = vpop.f32.mrb[0].mxu0
      %v2305 = vadd.f32 0.0, %v2304
      %v2306 = vpop.f32.mrb[0].mxu0
      %v2307 = vpop.f32.mrb[0].mxu0
      %v2308 = vadd.f32 0.0, %v2307
      %v2309 = vpop.f32.mrb[0].mxu0
      %2310 = vmatprep.mubr.bf16.mxu0 0
      %2311 = vmatmul.mubr.bf16.gmra.mrb[0].mxu0 %v2170
      %v2312 = vpop.f32.mrb[0].mxu0
      %v2313 = vadd.f32 0.0, %v2312
      %v2314 = vpop.f32.mrb[0].mxu0
      %v2315 = vpop.f32.mrb[0].mxu0
      %v2316 = vadd.f32 0.0, %v2315
      %v2317 = vpop.f32.mrb[0].mxu0
      %2318 = vmatprep.mubr.bf16.mxu0 0
      %2319 = vmatmul.mubr.bf16.gmra.mrb[0].mxu0 %v2171
      %v2320 = vpop.f32.mrb[0].mxu0
      %v2321 = vadd.f32 0.0, %v2320
      %v2322 = vpop.f32.mrb[0].mxu0
      %v2323 = vpop.f32.mrb[0].mxu0
      %v2324 = vadd.f32 0.0, %v2323
      %v2325 = vpop.f32.mrb[0].mxu0
      %2326 = vmatprep.mubr.bf16.mxu0 0
      %2327 = vmatmul.mubr.bf16.gmra.mrb[0].mxu0 %v2172
      %v2328 = vpop.f32.mrb[0].mxu0
      %v2329 = vadd.f32 0.0, %v2328
      %v2330 = vpop.f32.mrb[0].mxu0
      %v2331 = vpop.f32.mrb[0].mxu0
      %v2332 = vadd.f32 0.0, %v2331
      %v2333 = vpop.f32.mrb[0].mxu0
      %2334 = vmatprep.mubr.bf16.mxu0 0
      %2335 = vmatmul.mubr.bf16.gmra.mrb[0].mxu0 %v2173
      %v2336 = vpop.f32.mrb[0].mxu0
      %v2337 = vadd.f32 0.0, %v2336
      %v2338 = vpop.f32.mrb[0].mxu0
      %v2339 = vpop.f32.mrb[0].mxu0
      %v2340 = vadd.f32 0.0, %v2339
      %v2341 = vpop.f32.mrb[0].mxu0
      %2342 = vmatprep.mubr.bf16.mxu0 0
      %2343 = vmatmul.mubr.bf16.gmra.mrb[0].mxu0 %v2174
      %v2344 = vpop.f32.mrb[0].mxu0
      %v2345 = vadd.f32 0.0, %v2344
      %v2346 = vpop.f32.mrb[0].mxu0
      %v2347 = vpop.f32.mrb[0].mxu0
      %v2348 = vadd.f32 0.0, %v2347
      %v2349 = vpop.f32.mrb[0].mxu0
      %2350 = vmatprep.mubr.bf16.mxu0 0
      %2351 = vmatmul.mubr.bf16.gmra.mrb[0].mxu0 %v2175
      %v2352 = vpop.f32.mrb[0].mxu0
      %v2353 = vadd.f32 0.0, %v2352
      %v2354 = vpop.f32.mrb[0].mxu0
      %v2355 = vpop.f32.mrb[0].mxu0
      %v2356 = vadd.f32 0.0, %v2355
      %v2357 = vpop.f32.mrb[0].mxu0
      %2358 = vmatprep.mubr.bf16.mxu0 0
      %2359 = vmatmul.mubr.bf16.gmra.mrb[0].mxu0 %v2176
      %v2360 = vpop.f32.mrb[0].mxu0
      %v2361 = vadd.f32 0.0, %v2360
      %v2362 = vpop.f32.mrb[0].mxu0
      %v2363 = vpop.f32.mrb[0].mxu0
      %v2364 = vadd.f32 0.0, %v2363
      %v2365 = vpop.f32.mrb[0].mxu0
      %2366 = vmatprep.mubr.bf16.mxu0 0
      %2367 = vmatmul.mubr.bf16.gmra.mrb[0].mxu0 %v2177
      %v2368 = vpop.f32.mrb[0].mxu0
      %v2369 = vadd.f32 0.0, %v2368
      %v2370 = vpop.f32.mrb[0].mxu0
      %v2371 = vpop.f32.mrb[0].mxu0
      %v2372 = vadd.f32 0.0, %v2371
      %v2373 = vpop.f32.mrb[0].mxu0
      %2374 = vmatprep.mubr.bf16.mxu0 0
      %2375 = vmatmul.mubr.bf16.gmra.mrb[0].mxu0 %v2178
      %v2376 = vpop.f32.mrb[0].mxu0
      %v2377 = vadd.f32 0.0, %v2376
      %v2378 = vpop.f32.mrb[0].mxu0
      %v2379 = vpop.f32.mrb[0].mxu0
      %v2380 = vadd.f32 0.0, %v2379
      %v2381 = vpop.f32.mrb[0].mxu0
      %2382 = vmatprep.mubr.bf16.mxu0 0
      %2383 = vmatmul.mubr.bf16.gmra.mrb[0].mxu0 %v2179
      %v2384 = vpop.f32.mrb[0].mxu0
      %v2385 = vadd.f32 0.0, %v2384
      %v2386 = vpop.f32.mrb[0].mxu0
      %v2387 = vpop.f32.mrb[0].mxu0
      %v2388 = vadd.f32 0.0, %v2387
      %v2389 = vpop.f32.mrb[0].mxu0
      %2390 = vmatprep.mubr.bf16.mxu0 0
      %2391 = vmatmul.mubr.bf16.gmra.mrb[0].mxu0 %v2180
      %v2392 = vpop.f32.mrb[0].mxu0
      %v2393 = vadd.f32 0.0, %v2392
      %v2394 = vpop.f32.mrb[0].mxu0
      %v2395 = vpop.f32.mrb[0].mxu0
      %v2396 = vadd.f32 0.0, %v2395
      %v2397 = vpop.f32.mrb[0].mxu0
      %2398 = vmatprep.mubr.bf16.mxu0 0
      %2399 = vmatmul.mubr.bf16.gmra.mrb[0].mxu0 %v2181
      %v2400 = vpop.f32.mrb[0].mxu0
      %v2401 = vadd.f32 0.0, %v2400
      %v2402 = vpop.f32.mrb[0].mxu0
      %v2403 = vpop.f32.mrb[0].mxu0
      %v2404 = vadd.f32 0.0, %v2403
      %v2405 = vpop.f32.mrb[0].mxu0
      %2406 = vdwg.mxu0
      %v2407 = vld [vmem:[%s328] sm:$0x1]
      %v2409 = vlaneseq
      %v2410 = vshrl.u32 %v2409, 7
      %v2411 = vsub.s32 0, %v2410
      %v2412 = vrot.slane %v2407, %v2411
      %v2414 = vmul.f32 %v2281, %v2412
      %v2415 = vmul.f32 %v2284, %v2412
      %v2416 = vmul.f32 %v2289, %v2412
      %v2417 = vmul.f32 %v2292, %v2412
      %v2418 = vmul.f32 %v2297, %v2412
      %v2419 = vmul.f32 %v2300, %v2412
      %v2420 = vmul.f32 %v2305, %v2412
      %v2421 = vmul.f32 %v2308, %v2412
      %v2422 = vmul.f32 %v2313, %v2412
      %v2423 = vmul.f32 %v2316, %v2412
      %v2424 = vmul.f32 %v2321, %v2412
      %v2425 = vmul.f32 %v2324, %v2412
      %v2426 = vmul.f32 %v2329, %v2412
      %v2427 = vmul.f32 %v2332, %v2412
      %v2428 = vmul.f32 %v2337, %v2412
      %v2429 = vmul.f32 %v2340, %v2412
      %v2430 = vmul.f32 %v2345, %v2412
      %v2431 = vmul.f32 %v2348, %v2412
      %v2432 = vmul.f32 %v2353, %v2412
      %v2433 = vmul.f32 %v2356, %v2412
      %v2434 = vmul.f32 %v2361, %v2412
      %v2435 = vmul.f32 %v2364, %v2412
      %v2436 = vmul.f32 %v2369, %v2412
      %v2437 = vmul.f32 %v2372, %v2412
      %v2438 = vmul.f32 %v2377, %v2412
      %v2439 = vmul.f32 %v2380, %v2412
      %v2440 = vmul.f32 %v2385, %v2412
      %v2441 = vmul.f32 %v2388, %v2412
      %v2442 = vmul.f32 %v2393, %v2412
      %v2443 = vmul.f32 %v2396, %v2412
      %v2444 = vmul.f32 %v2401, %v2412
      %v2445 = vmul.f32 %v2404, %v2412
      %v2446 = vld [vmem:[%s331] sm:$0x1]
      %v2448 = vlaneseq
      %v2449 = vshrl.u32 %v2448, 7
      %v2450 = vsub.s32 0, %v2449
      %v2451 = vrot.slane %v2446, %v2450
      %v2453 = vadd.f32 %v2414, %v2451
      %v2454 = vadd.f32 %v2415, %v2451
      %v2455 = vadd.f32 %v2416, %v2451
      %v2456 = vadd.f32 %v2417, %v2451
      %v2457 = vadd.f32 %v2418, %v2451
      %v2458 = vadd.f32 %v2419, %v2451
      %v2459 = vadd.f32 %v2420, %v2451
      %v2460 = vadd.f32 %v2421, %v2451
      %v2461 = vadd.f32 %v2422, %v2451
      %v2462 = vadd.f32 %v2423, %v2451
      %v2463 = vadd.f32 %v2424, %v2451
      %v2464 = vadd.f32 %v2425, %v2451
      %v2465 = vadd.f32 %v2426, %v2451
      %v2466 = vadd.f32 %v2427, %v2451
      %v2467 = vadd.f32 %v2428, %v2451
      %v2468 = vadd.f32 %v2429, %v2451
      %v2469 = vadd.f32 %v2430, %v2451
      %v2470 = vadd.f32 %v2431, %v2451
      %v2471 = vadd.f32 %v2432, %v2451
      %v2472 = vadd.f32 %v2433, %v2451
      %v2473 = vadd.f32 %v2434, %v2451
      %v2474 = vadd.f32 %v2435, %v2451
      %v2475 = vadd.f32 %v2436, %v2451
      %v2476 = vadd.f32 %v2437, %v2451
      %v2477 = vadd.f32 %v2438, %v2451
      %v2478 = vadd.f32 %v2439, %v2451
      %v2479 = vadd.f32 %v2440, %v2451
      %v2480 = vadd.f32 %v2441, %v2451
      %v2481 = vadd.f32 %v2442, %v2451
      %v2482 = vadd.f32 %v2443, %v2451
      %v2483 = vadd.f32 %v2444, %v2451
      %v2484 = vadd.f32 %v2445, %v2451
      %v2485 = vld [vmem:[%s339] sm:$0xff]
      %v2486 = vld [vmem:[%s339 + $0x8] sm:$0xff]
      %v2487 = vld [vmem:[%s339 + $0x10] sm:$0xff]
      %v2488 = vld [vmem:[%s339 + $0x18] sm:$0xff]
      %v2489 = vld [vmem:[%s339 + $0x20] sm:$0xff]
      %v2490 = vld [vmem:[%s339 + $0x28] sm:$0xff]
      %v2491 = vld [vmem:[%s339 + $0x30] sm:$0xff]
      %v2492 = vld [vmem:[%s339 + $0x38] sm:$0xff]
      %v2493 = vld [vmem:[%s339 + $0x40] sm:$0xff]
      %v2494 = vld [vmem:[%s339 + $0x48] sm:$0xff]
      %v2495 = vld [vmem:[%s339 + $0x50] sm:$0xff]
      %v2496 = vld [vmem:[%s339 + $0x58] sm:$0xff]
      %v2497 = vld [vmem:[%s339 + $0x60] sm:$0xff]
      %v2498 = vld [vmem:[%s339 + $0x68] sm:$0xff]
      %v2499 = vld [vmem:[%s339 + $0x70] sm:$0xff]
      %v2500 = vld [vmem:[%s339 + $0x78] sm:$0xff]
      %v2501 = vld [vmem:[%s339 + $0x80] sm:$0xff]
      %v2502 = vld [vmem:[%s339 + $0x88] sm:$0xff]
      %v2503 = vld [vmem:[%s339 + $0x90] sm:$0xff]
      %v2504 = vld [vmem:[%s339 + $0x98] sm:$0xff]
      %v2505 = vld [vmem:[%s339 + $0xa0] sm:$0xff]
      %v2506 = vld [vmem:[%s339 + $0xa8] sm:$0xff]
      %v2507 = vld [vmem:[%s339 + $0xb0] sm:$0xff]
      %v2508 = vld [vmem:[%s339 + $0xb8] sm:$0xff]
      %v2509 = vld [vmem:[%s339 + $0xc0] sm:$0xff]
      %v2510 = vld [vmem:[%s339 + $0xc8] sm:$0xff]
      %v2511 = vld [vmem:[%s339 + $0xd0] sm:$0xff]
      %v2512 = vld [vmem:[%s339 + $0xd8] sm:$0xff]
      %v2513 = vld [vmem:[%s339 + $0xe0] sm:$0xff]
      %v2514 = vld [vmem:[%s339 + $0xe8] sm:$0xff]
      %v2515 = vld [vmem:[%s339 + $0xf0] sm:$0xff]
      %v2516 = vld [vmem:[%s339 + $0xf8] sm:$0xff]
      %v2517 = vadd.f32 %v2453, %v2485
      %v2518 = vadd.f32 %v2454, %v2486
      %v2519 = vadd.f32 %v2455, %v2487
      %v2520 = vadd.f32 %v2456, %v2488
      %v2521 = vadd.f32 %v2457, %v2489
      %v2522 = vadd.f32 %v2458, %v2490
      %v2523 = vadd.f32 %v2459, %v2491
      %v2524 = vadd.f32 %v2460, %v2492
      %v2525 = vadd.f32 %v2461, %v2493
      %v2526 = vadd.f32 %v2462, %v2494
      %v2527 = vadd.f32 %v2463, %v2495
      %v2528 = vadd.f32 %v2464, %v2496
      %v2529 = vadd.f32 %v2465, %v2497
      %v2530 = vadd.f32 %v2466, %v2498
      %v2531 = vadd.f32 %v2467, %v2499
      %v2532 = vadd.f32 %v2468, %v2500
      %v2533 = vadd.f32 %v2469, %v2501
      %v2534 = vadd.f32 %v2470, %v2502
      %v2535 = vadd.f32 %v2471, %v2503
      %v2536 = vadd.f32 %v2472, %v2504
      %v2537 = vadd.f32 %v2473, %v2505
      %v2538 = vadd.f32 %v2474, %v2506
      %v2539 = vadd.f32 %v2475, %v2507
      %v2540 = vadd.f32 %v2476, %v2508
      %v2541 = vadd.f32 %v2477, %v2509
      %v2542 = vadd.f32 %v2478, %v2510
      %v2543 = vadd.f32 %v2479, %v2511
      %v2544 = vadd.f32 %v2480, %v2512
      %v2545 = vadd.f32 %v2481, %v2513
      %v2546 = vadd.f32 %v2482, %v2514
      %v2547 = vadd.f32 %v2483, %v2515
      %v2548 = vadd.f32 %v2484, %v2516
      %2549 = vst [vmem:[%s347] sm:$0xff] %v2517
      %2550 = vst [vmem:[%s347 + $0x8] sm:$0xff] %v2518
      %2551 = vst [vmem:[%s347 + $0x10] sm:$0xff] %v2519
      %2552 = vst [vmem:[%s347 + $0x18] sm:$0xff] %v2520
      %2553 = vst [vmem:[%s347 + $0x20] sm:$0xff] %v2521
      %2554 = vst [vmem:[%s347 + $0x28] sm:$0xff] %v2522
      %2555 = vst [vmem:[%s347 + $0x30] sm:$0xff] %v2523
      %2556 = vst [vmem:[%s347 + $0x38] sm:$0xff] %v2524
      %2557 = vst [vmem:[%s347 + $0x40] sm:$0xff] %v2525
      %2558 = vst [vmem:[%s347 + $0x48] sm:$0xff] %v2526
      %2559 = vst [vmem:[%s347 + $0x50] sm:$0xff] %v2527
      %2560 = vst [vmem:[%s347 + $0x58] sm:$0xff] %v2528
      %2561 = vst [vmem:[%s347 + $0x60] sm:$0xff] %v2529
      %2562 = vst [vmem:[%s347 + $0x68] sm:$0xff] %v2530
      %2563 = vst [vmem:[%s347 + $0x70] sm:$0xff] %v2531
      %2564 = vst [vmem:[%s347 + $0x78] sm:$0xff] %v2532
      %2565 = vst [vmem:[%s347 + $0x80] sm:$0xff] %v2533
      %2566 = vst [vmem:[%s347 + $0x88] sm:$0xff] %v2534
      %2567 = vst [vmem:[%s347 + $0x90] sm:$0xff] %v2535
      %2568 = vst [vmem:[%s347 + $0x98] sm:$0xff] %v2536
      %2569 = vst [vmem:[%s347 + $0xa0] sm:$0xff] %v2537
      %2570 = vst [vmem:[%s347 + $0xa8] sm:$0xff] %v2538
      %2571 = vst [vmem:[%s347 + $0xb0] sm:$0xff] %v2539
      %2572 = vst [vmem:[%s347 + $0xb8] sm:$0xff] %v2540
      %2573 = vst [vmem:[%s347 + $0xc0] sm:$0xff] %v2541
      %2574 = vst [vmem:[%s347 + $0xc8] sm:$0xff] %v2542
      %2575 = vst [vmem:[%s347 + $0xd0] sm:$0xff] %v2543
      %2576 = vst [vmem:[%s347 + $0xd8] sm:$0xff] %v2544
      %2577 = vst [vmem:[%s347 + $0xe0] sm:$0xff] %v2545
      %2578 = vst [vmem:[%s347 + $0xe8] sm:$0xff] %v2546
      %2579 = vst [vmem:[%s347 + $0xf0] sm:$0xff] %v2547
      %2580 = vst [vmem:[%s347 + $0xf8] sm:$0xff] %v2548
      %p2581 = scmp.lt.s32.totalorder %s21, 1
      %s2582 = scalar_select %p2581, %s21, 1
      %p2583 = scmp.lt.s32.totalorder %s22, 0
      %s2584 = scalar_select %p2583, %s22, 0
      %s2585 = smul.addr %s2582, 32
      %s2586 = sadd.s32 %s2584, %s2585
      %s2587 = smul.addr %s2586, 8
      %s2588 = scalar_lea.vmem %s6, %s2587
      // Predicated region
      $region49: #{middle_forward.8} parent=43 // pred_check
        %p2589 = pneg %p202
      $region50: #{middle_forward.8} parent=43 // pred_check_branch
        %2591 = sbr.rel (%p2589) target = $region52
      $region51: #{middle_forward.8} parent=43 // pred_region
        _
      $region52: #{middle_forward.8} parent=43 // pred_fallthru
        _
    $region44: #{middle_forward.8} parent=5 // pred_fallthru
      _
    %p2592 = scmp.le.s32.totalorder 2, %s12
    // Predicated region
    $region53: #{middle_forward.8} parent=5 // pred_check
      %p2593 = pneg %p2592
    $region54: #{middle_forward.8} parent=5 // pred_check_branch
      %2595 = sbr.rel (%p2593) target = $region56
    $region55: #{middle_forward.8} parent=5 // pred_region
      %s2596 = ssub.s32 %s12, 2
      // Predicated region
      $region57: #{middle_forward.8} parent=55 // pred_check
        %p2597 = pneg %p208
      $region58: #{middle_forward.8} parent=55 // pred_check_branch
        %2599 = sbr.rel (%p2597) target = $region60
      $region59: #{middle_forward.8} parent=55 // pred_region
        %p2600 = scmp.lt.s32.totalorder %s23, 1
        %s2601 = scalar_select %p2600, %s23, 1
        %p2602 = scmp.lt.s32.totalorder %s24, 0
        %s2603 = scalar_select %p2602, %s24, 0
        %s2604 = smul.addr %s2601, 32
        %s2605 = sadd.s32 %s2603, %s2604
        %s2606 = smul.addr %s2605, 8
        %s2607 = scalar_lea.vmem %s6, %s2606
      $region60: #{middle_forward.8} parent=55 // pred_fallthru
        _
    $region56: #{middle_forward.8} parent=5 // pred_fallthru
      _
  $region6: #{middle_forward.8} parent=0 // loop_footer
    %s16 = sadd.s32 1, %s12
  $region7: #{middle_forward.8} parent=0 // loop_footer_branch
    %11 = sbr.rel target = $region3
  $region8: #{middle_forward.8} parent=0 // loop_exit
    _

// kernel: middle_forward.11
$region0: #{middle_forward.11}
  #allocation0 [shape = 'u32[]', space=smem, size = 0x4, offset = 0x4, fixed_abs, tag = 'smem constant byte address 0x4 - core index']
  #allocation1 [shape = 'u32[144,128]{1,0:T(1,128)}', space=vmem, size = 0x12000, scoped, tag = 'internal scratch']
  #allocation2 [shape = 'bf16[256,128]{1,0:T(16,128)(2,1)}', space=vmem, size = 0x10000, scoped, tag = 'scratch operand']
  %s0 = inlined_call_operand.vmem [shape: f32[2,18,18,128], index: 0, kind: input, shape index: {}]
  %s1 = inlined_call_operand.vmem [shape: f32[9,1,128], index: 1, kind: input, shape index: {}]
  %s2 = inlined_call_operand.vmem [shape: bf16[128,128], index: 2, kind: input, shape index: {}]
  %s3 = inlined_call_operand.vmem [shape: f32[1,128], index: 3, kind: input, shape index: {}]
  %s4 = inlined_call_operand.vmem [shape: f32[1,128], index: 4, kind: input, shape index: {}]
  %s5 = inlined_call_operand.vmem [shape: f32[2,16,16,128], index: 5, kind: input, shape index: {}]
  %s6 = inlined_call_operand.vmem [shape: f32[2,16,16,128], index: 6, kind: input, shape index: {}]
  %s7 = inlined_call_operand.vmem [shape: f32[2,16,16,128], index: 7, kind: output, shape index: {}]
  %s8 = sld [smem:[#allocation0]]
  $region65: #{middle_forward.11} parent=0
    _
  %s10 = ssub.s32 1, %s8
  %s11 = scalar_select 0, %s10, %s8
  loop: start=0, step=1, limit=4
  $region2: #{middle_forward.11} parent=0 // loop_pre_header
    _
  $region3: #{middle_forward.11} parent=0 // loop_header
    %s13 = sphi 0, %s17
    %p14 = scmp.ge.s32.totalorder %s13, 4
    %s20 = sphi 0, %s32
    %s21 = sphi 0, %s28
    %s22 = sphi 0, %s20
    %s23 = sphi 0, %s21
    %s24 = sphi 0, %s22
    %s25 = sphi 0, %s23
    %s35 = sphi 0, %s37
    %s38 = sphi 0, %s35
    %s39 = sphi 0, %s38
    %s55 = sphi 0, %s39
    %s59 = sphi 0, %s59
    %s61 = sphi 0, %s59
    %s62 = sphi 0, %s61
    %s76 = sphi 0, %s62
    %s82 = sphi 0, %s84
    %s85 = sphi 0, %s82
    %s86 = sphi 0, %s85
    %s102 = sphi 0, %s86
    %s108 = sphi 0, %s110
    %s111 = sphi 0, %s108
    %s112 = sphi 0, %s111
    %s128 = sphi 0, %s112
    %s134 = sphi 0, %s136
    %s137 = sphi 0, %s134
    %s138 = sphi 0, %s137
    %s154 = sphi 0, %s138
    %s162 = sphi 0, %s164
    %s165 = sphi 0, %s162
    %s166 = sphi 0, %s165
    %s182 = sphi 0, %s166
    %s190 = sphi 0, %s192
    %s193 = sphi 0, %s190
    %s194 = sphi 0, %s193
    %s210 = sphi 0, %s194
    %s218 = sphi 0, %s220
    %s221 = sphi 0, %s218
    %s222 = sphi 0, %s221
    %s238 = sphi 0, %s222
  $region4: #{middle_forward.11} parent=0 // loop_header_branch
    %16 = sbr.rel (%p14) target = $region8
  $region5: #{middle_forward.11} parent=0 // loop_body
    %s18 = ssub.s32 %s13, 1
    %s19 = ssub.s32 %s13, 2
    %s26 = sadd.s32 1, %s21
    %p27 = scmp.ge.s32.totalorder %s26, 1
    %s28 = scalar_select %p27, 0, %s26
    %s29 = sadd.s32 1, %s20
    %s30 = scalar_select %p27, %s29, %s20
    %p31 = scmp.ge.s32.totalorder %s30, 2
    %s32 = scalar_select %p31, 0, %s30
    %s33 = ssub.s32 %s20, %s32
    %p34 = scmp.eq.s32.totalorder %s33, 0
    %s36 = sadd.s32 %s35, 1
    %s37 = scalar_select %p34, %s35, %s36
    %p40 = pneg %p34
    %p41 = scmp.eq.s32.totalorder %s13, 1
    %p42 = por %p40, %p41
    %p43 = scmp.ne.s32.totalorder %s35, %s38
    %p44 = scmp.eq.s32.totalorder %s13, 0
    %p45 = por %p43, %p44
    %p46 = scmp.ne.s32.totalorder %s35, %s38
    %p47 = scmp.eq.s32.totalorder %s18, 1
    %p48 = por %p46, %p47
    %p49 = scmp.ne.s32.totalorder %s38, %s39
    %p50 = scmp.eq.s32.totalorder %s18, 0
    %p51 = por %p49, %p50
    %p52 = scmp.ne.s32.totalorder %s38, %s39
    %p53 = scmp.eq.s32.totalorder %s19, 1
    %p54 = por %p52, %p53
    %p56 = scmp.ne.s32.totalorder %s39, %s55
    %p57 = scmp.eq.s32.totalorder %s19, 0
    %p58 = por %p56, %p57
    %s60 = sadd.s32 %s59, 1
    %p63 = scmp.eq.s32.totalorder %s13, 1
    %p64 = scmp.ne.s32.totalorder %s59, %s61
    %p65 = scmp.eq.s32.totalorder %s13, 0
    %p66 = por %p64, %p65
    %p67 = scmp.ne.s32.totalorder %s59, %s61
    %p68 = scmp.eq.s32.totalorder %s18, 1
    %p69 = por %p67, %p68
    %p70 = scmp.ne.s32.totalorder %s61, %s62
    %p71 = scmp.eq.s32.totalorder %s18, 0
    %p72 = por %p70, %p71
    %p73 = scmp.ne.s32.totalorder %s61, %s62
    %p74 = scmp.eq.s32.totalorder %s19, 1
    %p75 = por %p73, %p74
    %p77 = scmp.ne.s32.totalorder %s62, %s76
    %p78 = scmp.eq.s32.totalorder %s19, 0
    %p79 = por %p77, %p78
    %s80 = ssub.s32 %s21, %s28
    %p81 = scmp.eq.s32.totalorder %s80, 0
    %s83 = sadd.s32 %s82, 1
    %s84 = scalar_select %p81, %s82, %s83
    %p87 = pneg %p81
    %p88 = scmp.eq.s32.totalorder %s13, 1
    %p89 = por %p87, %p88
    %p90 = scmp.ne.s32.totalorder %s82, %s85
    %p91 = scmp.eq.s32.totalorder %s13, 0
    %p92 = por %p90, %p91
    %p93 = scmp.ne.s32.totalorder %s82, %s85
    %p94 = scmp.eq.s32.totalorder %s18, 1
    %p95 = por %p93, %p94
    %p96 = scmp.ne.s32.totalorder %s85, %s86
    %p97 = scmp.eq.s32.totalorder %s18, 0
    %p98 = por %p96, %p97
    %p99 = scmp.ne.s32.totalorder %s85, %s86
    %p100 = scmp.eq.s32.totalorder %s19, 1
    %p101 = por %p99, %p100
    %p103 = scmp.ne.s32.totalorder %s86, %s102
    %p104 = scmp.eq.s32.totalorder %s19, 0
    %p105 = por %p103, %p104
    %s106 = ssub.s32 %s21, %s28
    %p107 = scmp.eq.s32.totalorder %s106, 0
    %s109 = sadd.s32 %s108, 1
    %s110 = scalar_select %p107, %s108, %s109
    %p113 = pneg %p107
    %p114 = scmp.eq.s32.totalorder %s13, 1
    %p115 = por %p113, %p114
    %p116 = scmp.ne.s32.totalorder %s108, %s111
    %p117 = scmp.eq.s32.totalorder %s13, 0
    %p118 = por %p116, %p117
    %p119 = scmp.ne.s32.totalorder %s108, %s111
    %p120 = scmp.eq.s32.totalorder %s18, 1
    %p121 = por %p119, %p120
    %p122 = scmp.ne.s32.totalorder %s111, %s112
    %p123 = scmp.eq.s32.totalorder %s18, 0
    %p124 = por %p122, %p123
    %p125 = scmp.ne.s32.totalorder %s111, %s112
    %p126 = scmp.eq.s32.totalorder %s19, 1
    %p127 = por %p125, %p126
    %p129 = scmp.ne.s32.totalorder %s112, %s128
    %p130 = scmp.eq.s32.totalorder %s19, 0
    %p131 = por %p129, %p130
    %s132 = ssub.s32 %s21, %s28
    %p133 = scmp.eq.s32.totalorder %s132, 0
    %s135 = sadd.s32 %s134, 1
    %s136 = scalar_select %p133, %s134, %s135
    %p139 = pneg %p133
    %p140 = scmp.eq.s32.totalorder %s13, 1
    %p141 = por %p139, %p140
    %p142 = scmp.ne.s32.totalorder %s134, %s137
    %p143 = scmp.eq.s32.totalorder %s13, 0
    %p144 = por %p142, %p143
    %p145 = scmp.ne.s32.totalorder %s134, %s137
    %p146 = scmp.eq.s32.totalorder %s18, 1
    %p147 = por %p145, %p146
    %p148 = scmp.ne.s32.totalorder %s137, %s138
    %p149 = scmp.eq.s32.totalorder %s18, 0
    %p150 = por %p148, %p149
    %p151 = scmp.ne.s32.totalorder %s137, %s138
    %p152 = scmp.eq.s32.totalorder %s19, 1
    %p153 = por %p151, %p152
    %p155 = scmp.ne.s32.totalorder %s138, %s154
    %p156 = scmp.eq.s32.totalorder %s19, 0
    %p157 = por %p155, %p156
    %s158 = ssub.s32 %s20, %s32
    %s159 = ssub.s32 %s21, %s28
    %s160 = sor.u32 %s158, %s159
    %p161 = scmp.eq.s32.totalorder %s160, 0
    %s163 = sadd.s32 %s162, 1
    %s164 = scalar_select %p161, %s162, %s163
    %p167 = pneg %p161
    %p168 = scmp.eq.s32.totalorder %s13, 1
    %p169 = por %p167, %p168
    %p170 = scmp.ne.s32.totalorder %s162, %s165
    %p171 = scmp.eq.s32.totalorder %s13, 0
    %p172 = por %p170, %p171
    %p173 = scmp.ne.s32.totalorder %s162, %s165
    %p174 = scmp.eq.s32.totalorder %s18, 1
    %p175 = por %p173, %p174
    %p176 = scmp.ne.s32.totalorder %s165, %s166
    %p177 = scmp.eq.s32.totalorder %s18, 0
    %p178 = por %p176, %p177
    %p179 = scmp.ne.s32.totalorder %s165, %s166
    %p180 = scmp.eq.s32.totalorder %s19, 1
    %p181 = por %p179, %p180
    %p183 = scmp.ne.s32.totalorder %s166, %s182
    %p184 = scmp.eq.s32.totalorder %s19, 0
    %p185 = por %p183, %p184
    %s186 = ssub.s32 %s20, %s32
    %s187 = ssub.s32 %s21, %s28
    %s188 = sor.u32 %s186, %s187
    %p189 = scmp.eq.s32.totalorder %s188, 0
    %s191 = sadd.s32 %s190, 1
    %s192 = scalar_select %p189, %s190, %s191
    %p195 = pneg %p189
    %p196 = scmp.eq.s32.totalorder %s13, 1
    %p197 = por %p195, %p196
    %p198 = scmp.ne.s32.totalorder %s190, %s193
    %p199 = scmp.eq.s32.totalorder %s13, 0
    %p200 = por %p198, %p199
    %p201 = scmp.ne.s32.totalorder %s190, %s193
    %p202 = scmp.eq.s32.totalorder %s18, 1
    %p203 = por %p201, %p202
    %p204 = scmp.ne.s32.totalorder %s193, %s194
    %p205 = scmp.eq.s32.totalorder %s18, 0
    %p206 = por %p204, %p205
    %p207 = scmp.ne.s32.totalorder %s193, %s194
    %p208 = scmp.eq.s32.totalorder %s19, 1
    %p209 = por %p207, %p208
    %p211 = scmp.ne.s32.totalorder %s194, %s210
    %p212 = scmp.eq.s32.totalorder %s19, 0
    %p213 = por %p211, %p212
    %s214 = ssub.s32 %s20, %s32
    %s215 = ssub.s32 %s21, %s28
    %s216 = sor.u32 %s214, %s215
    %p217 = scmp.eq.s32.totalorder %s216, 0
    %s219 = sadd.s32 %s218, 1
    %s220 = scalar_select %p217, %s218, %s219
    %p223 = pneg %p217
    %p224 = scmp.eq.s32.totalorder %s13, 1
    %p225 = por %p223, %p224
    %p226 = scmp.ne.s32.totalorder %s218, %s221
    %p227 = scmp.eq.s32.totalorder %s13, 0
    %p228 = por %p226, %p227
    %p229 = scmp.ne.s32.totalorder %s218, %s221
    %p230 = scmp.eq.s32.totalorder %s18, 1
    %p231 = por %p229, %p230
    %p232 = scmp.ne.s32.totalorder %s221, %s222
    %p233 = scmp.eq.s32.totalorder %s18, 0
    %p234 = por %p232, %p233
    %p235 = scmp.ne.s32.totalorder %s221, %s222
    %p236 = scmp.eq.s32.totalorder %s19, 1
    %p237 = por %p235, %p236
    %p239 = scmp.ne.s32.totalorder %s222, %s238
    %p240 = scmp.eq.s32.totalorder %s19, 0
    %p241 = por %p239, %p240
    %p242 = scmp.le.s32.totalorder 1, %s13
    %p243 = scmp.lt.s32.totalorder %s13, 3
    %p244 = pnand %p242, %p243
    %p245 = pneg %p244
    // Predicated region
    $region9: #{middle_forward.11} parent=5 // pred_check
      _
    $region10: #{middle_forward.11} parent=5 // pred_check_branch
      %247 = sbr.rel (%p244) target = $region12
    $region11: #{middle_forward.11} parent=5 // pred_region
      %s248 = ssub.s32 %s13, 1
      // Predicated region
      $region13: #{middle_forward.11} parent=11 // pred_check
        %p249 = pneg %p72
      $region14: #{middle_forward.11} parent=11 // pred_check_branch
        %251 = sbr.rel (%p249) target = $region16
      $region15: #{middle_forward.11} parent=11 // pred_region
        _
      $region16: #{middle_forward.11} parent=11 // pred_fallthru
        _
      // Predicated region
      $region17: #{middle_forward.11} parent=11 // pred_check
        %p252 = pneg %p98
      $region18: #{middle_forward.11} parent=11 // pred_check_branch
        %254 = sbr.rel (%p252) target = $region20
      $region19: #{middle_forward.11} parent=11 // pred_region
        %p255 = scmp.lt.s32.totalorder %s23, 0
        %s256 = scalar_select %p255, %s23, 0
        %s257 = smul.addr %s256, 4
        %s258 = scalar_lea.vmem %s2, %s257
      $region20: #{middle_forward.11} parent=11 // pred_fallthru
        _
      // Predicated region
      $region21: #{middle_forward.11} parent=11 // pred_check
        %p259 = pneg %p124
      $region22: #{middle_forward.11} parent=11 // pred_check_branch
        %261 = sbr.rel (%p259) target = $region24
      $region23: #{middle_forward.11} parent=11 // pred_region
        %p262 = scmp.lt.s32.totalorder %s23, 0
        %s263 = scalar_select %p262, %s23, 0
        %s264 = scalar_lea.vmem %s3, %s263
      $region24: #{middle_forward.11} parent=11 // pred_fallthru
        _
      // Predicated region
      $region25: #{middle_forward.11} parent=11 // pred_check
        %p265 = pneg %p150
      $region26: #{middle_forward.11} parent=11 // pred_check_branch
        %267 = sbr.rel (%p265) target = $region28
      $region27: #{middle_forward.11} parent=11 // pred_region
        %p268 = scmp.lt.s32.totalorder %s23, 0
        %s269 = scalar_select %p268, %s23, 0
        %s270 = scalar_lea.vmem %s4, %s269
      $region28: #{middle_forward.11} parent=11 // pred_fallthru
        _
    $region12: #{middle_forward.11} parent=5 // pred_fallthru
      _
    %p271 = scmp.lt.s32.totalorder %s13, 2
    // Predicated region
    $region29: #{middle_forward.11} parent=5 // pred_check
      %p272 = pneg %p271
    $region30: #{middle_forward.11} parent=5 // pred_check_branch
      %274 = sbr.rel (%p272) target = $region32
    $region31: #{middle_forward.11} parent=5 // pred_region
      // Predicated region
      $region33: #{middle_forward.11} parent=31 // pred_check
        %p275 = pneg %p45
      $region34: #{middle_forward.11} parent=31 // pred_check_branch
        %277 = sbr.rel (%p275) target = $region36
      $region35: #{middle_forward.11} parent=31 // pred_region
        %p278 = scmp.lt.s32.totalorder %s20, 1
        %s279 = scalar_select %p278, %s20, 1
        %s280 = smul.addr %s279, 54
        %s281 = smul.addr %s280, 8
        %s282 = scalar_lea.vmem %s0, %s281
      $region36: #{middle_forward.11} parent=31 // pred_fallthru
        _
      // Predicated region
      $region37: #{middle_forward.11} parent=31 // pred_check
        %p283 = pneg %p172
      $region38: #{middle_forward.11} parent=31 // pred_check_branch
        %285 = sbr.rel (%p283) target = $region40
      $region39: #{middle_forward.11} parent=31 // pred_region
        %p286 = scmp.lt.s32.totalorder %s20, 1
        %s287 = scalar_select %p286, %s20, 1
        %p288 = scmp.lt.s32.totalorder %s21, 0
        %s289 = scalar_select %p288, %s21, 0
        %s290 = smul.addr %s287, 32
        %s291 = sadd.s32 %s289, %s290
        %s292 = smul.addr %s291, 8
        %s293 = scalar_lea.vmem %s5, %s292
      $region40: #{middle_forward.11} parent=31 // pred_fallthru
        _
      // Predicated region
      $region41: #{middle_forward.11} parent=31 // pred_check
        %p294 = pneg %p200
      $region42: #{middle_forward.11} parent=31 // pred_check_branch
        %296 = sbr.rel (%p294) target = $region44
      $region43: #{middle_forward.11} parent=31 // pred_region
        %p297 = scmp.lt.s32.totalorder %s20, 1
        %s298 = scalar_select %p297, %s20, 1
        %p299 = scmp.lt.s32.totalorder %s21, 0
        %s300 = scalar_select %p299, %s21, 0
        %s301 = smul.addr %s298, 32
        %s302 = sadd.s32 %s300, %s301
        %s303 = smul.addr %s302, 8
        %s304 = scalar_lea.vmem %s6, %s303
      $region44: #{middle_forward.11} parent=31 // pred_fallthru
        _
    $region32: #{middle_forward.11} parent=5 // pred_fallthru
      _
    %p305 = scmp.le.s32.totalorder 1, %s13
    %p306 = scmp.lt.s32.totalorder %s13, 3
    %p307 = pnand %p305, %p306
    %p308 = pneg %p307
    // Predicated region
    $region45: #{middle_forward.11} parent=5 // pred_check
      _
    $region46: #{middle_forward.11} parent=5 // pred_check_branch
      %310 = sbr.rel (%p307) target = $region48
    $region47: #{middle_forward.11} parent=5 // pred_region
      %s311 = ssub.s32 %s13, 1
      %p312 = scmp.lt.s32.totalorder %s22, 1
      %s313 = scalar_select %p312, %s22, 1
      %s314 = smul.addr %s313, 54
      %s315 = smul.addr %s314, 8
      %s316 = scalar_lea.vmem %s0, %s315
      %p317 = pneg %p51
      %p318 = pneg %p48
      %p319 = pneg %p72
      %p320 = pneg %p69
      %p321 = scmp.lt.s32.totalorder %s23, 0
      %s322 = scalar_select %p321, %s23, 0
      %s323 = smul.addr %s322, 4
      %s324 = scalar_lea.vmem %s2, %s323
      %p325 = pneg %p98
      %p326 = pneg %p95
      %p327 = scmp.lt.s32.totalorder %s23, 0
      %s328 = scalar_select %p327, %s23, 0
      %s329 = scalar_lea.vmem %s3, %s328
      %p330 = pneg %p124
      %p331 = pneg %p121
      %p332 = scmp.lt.s32.totalorder %s23, 0
      %s333 = scalar_select %p332, %s23, 0
      %s334 = scalar_lea.vmem %s4, %s333
      %p335 = pneg %p150
      %p336 = pneg %p147
      %p337 = scmp.lt.s32.totalorder %s22, 1
      %s338 = scalar_select %p337, %s22, 1
      %p339 = scmp.lt.s32.totalorder %s23, 0
      %s340 = scalar_select %p339, %s23, 0
      %s341 = smul.addr %s338, 32
      %s342 = sadd.s32 %s340, %s341
      %s343 = smul.addr %s342, 8
      %s344 = scalar_lea.vmem %s5, %s343
      %p345 = pneg %p178
      %p346 = pneg %p175
      %p347 = scmp.lt.s32.totalorder %s22, 1
      %s348 = scalar_select %p347, %s22, 1
      %p349 = scmp.lt.s32.totalorder %s23, 0
      %s350 = scalar_select %p349, %s23, 0
      %s351 = smul.addr %s348, 32
      %s352 = sadd.s32 %s350, %s351
      %s353 = smul.addr %s352, 8
      %s354 = scalar_lea.vmem %s6, %s353
      %p355 = pneg %p206
      %p356 = pneg %p203
      %p357 = pneg %p234
      %p358 = pneg %p231
      %p359 = scmp.lt.s32.totalorder %s22, 1
      %s360 = scalar_select %p359, %s22, 1
      %p361 = scmp.lt.s32.totalorder %s23, 0
      %s362 = scalar_select %p361, %s23, 0
      %s363 = smul.addr %s360, 32
      %s364 = sadd.s32 %s362, %s363
      %s365 = smul.addr %s364, 8
      %s366 = scalar_lea.vmem %s7, %s365
      %p367 = scmp.lt.s32.totalorder %s22, 1
      %s368 = scalar_select %p367, %s22, 1
      %s369 = smul.addr %s368, 54
      %s370 = smul.addr %s369, 8
      %s371 = scalar_lea.vmem %s0, %s370
      %p372 = scmp.lt.s32.totalorder %s23, 0
      %s373 = scalar_select %p372, %s23, 0
      %s374 = smul.addr %s373, 4
      %s375 = scalar_lea.vmem %s2, %s374
      %p376 = scmp.lt.s32.totalorder %s23, 0
      %s377 = scalar_select %p376, %s23, 0
      %s378 = scalar_lea.vmem %s3, %s377
      %p379 = scmp.lt.s32.totalorder %s23, 0
      %s380 = scalar_select %p379, %s23, 0
      %s381 = scalar_lea.vmem %s4, %s380
      %p382 = scmp.lt.s32.totalorder %s22, 1
      %s383 = scalar_select %p382, %s22, 1
      %p384 = scmp.lt.s32.totalorder %s23, 0
      %s385 = scalar_select %p384, %s23, 0
      %s386 = smul.addr %s383, 32
      %s387 = sadd.s32 %s385, %s386
      %s388 = smul.addr %s387, 8
      %s389 = scalar_lea.vmem %s5, %s388
      %p390 = scmp.lt.s32.totalorder %s22, 1
      %s391 = scalar_select %p390, %s22, 1
      %p392 = scmp.lt.s32.totalorder %s23, 0
      %s393 = scalar_select %p392, %s23, 0
      %s394 = smul.addr %s391, 32
      %s395 = sadd.s32 %s393, %s394
      %s396 = smul.addr %s395, 8
      %s397 = scalar_lea.vmem %s6, %s396
      %p398 = scmp.lt.s32.totalorder %s22, 1
      %s399 = scalar_select %p398, %s22, 1
      %p400 = scmp.lt.s32.totalorder %s23, 0
      %s401 = scalar_select %p400, %s23, 0
      %s402 = smul.addr %s399, 32
      %s403 = sadd.s32 %s401, %s402
      %s404 = smul.addr %s403, 8
      %s405 = scalar_lea.vmem %s7, %s404
      %p407 = scmp.eq.s32.totalorder %s23, 0
      // Predicated region
      $region49: #{middle_forward.11} parent=47 // pred_check
        %p408 = pneg %p407
      $region50: #{middle_forward.11} parent=47 // pred_check_branch
        %410 = sbr.rel (%p408) target = $region52
      $region51: #{middle_forward.11} parent=47 // pred_region
        %v411 = vld [vmem:[%s371] sm:$0xff]
        %v412 = vld [vmem:[%s371 + $0x8] sm:$0xff]
        %v413 = vld [vmem:[%s371 + $0x10] sm:$0x3]
        %v414 = vld [vmem:[%s371 + $0x18] sm:$0xff]
        %v415 = vld [vmem:[%s371 + $0x20] sm:$0xff]
        %v416 = vld [vmem:[%s371 + $0x28] sm:$0x3]
        %v417 = vld [vmem:[%s371 + $0x30] sm:$0xff]
        %v418 = vld [vmem:[%s371 + $0x38] sm:$0xff]
        %v419 = vld [vmem:[%s371 + $0x40] sm:$0x3]
        %v420 = vld [vmem:[%s371 + $0x48] sm:$0xff]
        %v421 = vld [vmem:[%s371 + $0x50] sm:$0xff]
        %v422 = vld [vmem:[%s371 + $0x58] sm:$0x3]
        %v423 = vld [vmem:[%s371 + $0x60] sm:$0xff]
        %v424 = vld [vmem:[%s371 + $0x68] sm:$0xff]
        %v425 = vld [vmem:[%s371 + $0x70] sm:$0x3]
        %v426 = vld [vmem:[%s371 + $0x78] sm:$0xff]
        %v427 = vld [vmem:[%s371 + $0x80] sm:$0xff]
        %v428 = vld [vmem:[%s371 + $0x88] sm:$0x3]
        %v429 = vld [vmem:[%s371 + $0x90] sm:$0xff]
        %v430 = vld [vmem:[%s371 + $0x98] sm:$0xff]
        %v431 = vld [vmem:[%s371 + $0xa0] sm:$0x3]
        %v432 = vld [vmem:[%s371 + $0xa8] sm:$0xff]
        %v433 = vld [vmem:[%s371 + $0xb0] sm:$0xff]
        %v434 = vld [vmem:[%s371 + $0xb8] sm:$0x3]
        %v435 = vld [vmem:[%s371 + $0xc0] sm:$0xff]
        %v436 = vld [vmem:[%s371 + $0xc8] sm:$0xff]
        %v437 = vld [vmem:[%s371 + $0xd0] sm:$0x3]
        %v438 = vld [vmem:[%s371 + $0xd8] sm:$0xff]
        %v439 = vld [vmem:[%s371 + $0xe0] sm:$0xff]
        %v440 = vld [vmem:[%s371 + $0xe8] sm:$0x3]
        %v441 = vld [vmem:[%s371 + $0xf0] sm:$0xff]
        %v442 = vld [vmem:[%s371 + $0xf8] sm:$0xff]
        %v443 = vld [vmem:[%s371 + $0x100] sm:$0x3]
        %v444 = vld [vmem:[%s371 + $0x108] sm:$0xff]
        %v445 = vld [vmem:[%s371 + $0x110] sm:$0xff]
        %v446 = vld [vmem:[%s371 + $0x118] sm:$0x3]
        %v447 = vld [vmem:[%s371 + $0x120] sm:$0xff]
        %v448 = vld [vmem:[%s371 + $0x128] sm:$0xff]
        %v449 = vld [vmem:[%s371 + $0x130] sm:$0x3]
        %v450 = vld [vmem:[%s371 + $0x138] sm:$0xff]
        %v451 = vld [vmem:[%s371 + $0x140] sm:$0xff]
        %v452 = vld [vmem:[%s371 + $0x148] sm:$0x3]
        %v453 = vld [vmem:[%s371 + $0x150] sm:$0xff]
        %v454 = vld [vmem:[%s371 + $0x158] sm:$0xff]
        %v455 = vld [vmem:[%s371 + $0x160] sm:$0x3]
        %v456 = vld [vmem:[%s371 + $0x168] sm:$0xff]
        %v457 = vld [vmem:[%s371 + $0x170] sm:$0xff]
        %v458 = vld [vmem:[%s371 + $0x178] sm:$0x3]
        %v459 = vld [vmem:[%s371 + $0x180] sm:$0xff]
        %v460 = vld [vmem:[%s371 + $0x188] sm:$0xff]
        %v461 = vld [vmem:[%s371 + $0x190] sm:$0x3]
        %v462 = vld [vmem:[%s371 + $0x198] sm:$0xff]
        %v463 = vld [vmem:[%s371 + $0x1a0] sm:$0xff]
        %v464 = vld [vmem:[%s371 + $0x1a8] sm:$0x3]
        %v465 = vmax.f32 %v411, 0.0
        %v466 = vmax.f32 %v412, 0.0
        %v467 = vmax.f32 %v413, 0.0
        %v468 = vmax.f32 %v414, 0.0
        %v469 = vmax.f32 %v415, 0.0
        %v470 = vmax.f32 %v416, 0.0
        %v471 = vmax.f32 %v417, 0.0
        %v472 = vmax.f32 %v418, 0.0
        %v473 = vmax.f32 %v419, 0.0
        %v474 = vmax.f32 %v420, 0.0
        %v475 = vmax.f32 %v421, 0.0
        %v476 = vmax.f32 %v422, 0.0
        %v477 = vmax.f32 %v423, 0.0
        %v478 = vmax.f32 %v424, 0.0
        %v479 = vmax.f32 %v425, 0.0
        %v480 = vmax.f32 %v426, 0.0
        %v481 = vmax.f32 %v427, 0.0
        %v482 = vmax.f32 %v428, 0.0
        %v483 = vmax.f32 %v429, 0.0
        %v484 = vmax.f32 %v430, 0.0
        %v485 = vmax.f32 %v431, 0.0
        %v486 = vmax.f32 %v432, 0.0
        %v487 = vmax.f32 %v433, 0.0
        %v488 = vmax.f32 %v434, 0.0
        %v489 = vmax.f32 %v435, 0.0
        %v490 = vmax.f32 %v436, 0.0
        %v491 = vmax.f32 %v437, 0.0
        %v492 = vmax.f32 %v438, 0.0
        %v493 = vmax.f32 %v439, 0.0
        %v494 = vmax.f32 %v440, 0.0
        %v495 = vmax.f32 %v441, 0.0
        %v496 = vmax.f32 %v442, 0.0
        %v497 = vmax.f32 %v443, 0.0
        %v498 = vmax.f32 %v444, 0.0
        %v499 = vmax.f32 %v445, 0.0
        %v500 = vmax.f32 %v446, 0.0
        %v501 = vmax.f32 %v447, 0.0
        %v502 = vmax.f32 %v448, 0.0
        %v503 = vmax.f32 %v449, 0.0
        %v504 = vmax.f32 %v450, 0.0
        %v505 = vmax.f32 %v451, 0.0
        %v506 = vmax.f32 %v452, 0.0
        %v507 = vmax.f32 %v453, 0.0
        %v508 = vmax.f32 %v454, 0.0
        %v509 = vmax.f32 %v455, 0.0
        %v510 = vmax.f32 %v456, 0.0
        %v511 = vmax.f32 %v457, 0.0
        %v512 = vmax.f32 %v458, 0.0
        %v513 = vmax.f32 %v459, 0.0
        %v514 = vmax.f32 %v460, 0.0
        %v515 = vmax.f32 %v461, 0.0
        %v516 = vmax.f32 %v462, 0.0
        %v517 = vmax.f32 %v463, 0.0
        %v518 = vmax.f32 %v464, 0.0
        %v519 = vld [vmem:[%s1] sm:$0x1]
        %v521 = vlaneseq
        %v522 = vshrl.u32 %v521, 7
        %v523 = vsub.s32 0, %v522
        %v524 = vrot.slane %v519, %v523
        %v526 = vmul.f32 %v465, %v524
        %v527 = vmul.f32 %v466, %v524
        %v528 = vmul.f32 %v468, %v524
        %v529 = vmul.f32 %v469, %v524
        %v530 = vmul.f32 %v471, %v524
        %v531 = vmul.f32 %v472, %v524
        %v532 = vmul.f32 %v474, %v524
        %v533 = vmul.f32 %v475, %v524
        %v534 = vmul.f32 %v477, %v524
        %v535 = vmul.f32 %v478, %v524
        %v536 = vmul.f32 %v480, %v524
        %v537 = vmul.f32 %v481, %v524
        %v538 = vmul.f32 %v483, %v524
        %v539 = vmul.f32 %v484, %v524
        %v540 = vmul.f32 %v486, %v524
        %v541 = vmul.f32 %v487, %v524
        %v542 = vmul.f32 %v489, %v524
        %v543 = vmul.f32 %v490, %v524
        %v544 = vmul.f32 %v492, %v524
        %v545 = vmul.f32 %v493, %v524
        %v546 = vmul.f32 %v495, %v524
        %v547 = vmul.f32 %v496, %v524
        %v548 = vmul.f32 %v498, %v524
        %v549 = vmul.f32 %v499, %v524
        %v550 = vmul.f32 %v501, %v524
        %v551 = vmul.f32 %v502, %v524
        %v552 = vmul.f32 %v504, %v524
        %v553 = vmul.f32 %v505, %v524
        %v554 = vmul.f32 %v507, %v524
        %v555 = vmul.f32 %v508, %v524
        %v556 = vmul.f32 %v510, %v524
        %v557 = vmul.f32 %v511, %v524
        %s558 = scalar_lea.vmem %s1, 1
        %v559 = vld [vmem:[%s558] sm:$0x1]
        %v561 = vlaneseq
        %v562 = vshrl.u32 %v561, 7
        %v563 = vsub.s32 0, %v562
        %v564 = vrot.slane %v559, %v563
        %v566 = vmul.f32 %v465, %v564
        %v567 = vmul.f32 %v466, %v564
        %v568 = vmul.f32 %v467, %v564
        %v569 = vmul.f32 %v468, %v564
        %v570 = vmul.f32 %v469, %v564
        %v571 = vmul.f32 %v470, %v564
        %v572 = vmul.f32 %v471, %v564
        %v573 = vmul.f32 %v472, %v564
        %v574 = vmul.f32 %v473, %v564
        %v575 = vmul.f32 %v474, %v564
        %v576 = vmul.f32 %v475, %v564
        %v577 = vmul.f32 %v476, %v564
        %v578 = vmul.f32 %v477, %v564
        %v579 = vmul.f32 %v478, %v564
        %v580 = vmul.f32 %v479, %v564
        %v581 = vmul.f32 %v480, %v564
        %v582 = vmul.f32 %v481, %v564
        %v583 = vmul.f32 %v482, %v564
        %v584 = vmul.f32 %v483, %v564
        %v585 = vmul.f32 %v484, %v564
        %v586 = vmul.f32 %v485, %v564
        %v587 = vmul.f32 %v486, %v564
        %v588 = vmul.f32 %v487, %v564
        %v589 = vmul.f32 %v488, %v564
        %v590 = vmul.f32 %v489, %v564
        %v591 = vmul.f32 %v490, %v564
        %v592 = vmul.f32 %v491, %v564
        %v593 = vmul.f32 %v492, %v564
        %v594 = vmul.f32 %v493, %v564
        %v595 = vmul.f32 %v494, %v564
        %v596 = vmul.f32 %v495, %v564
        %v597 = vmul.f32 %v496, %v564
        %v598 = vmul.f32 %v497, %v564
        %v599 = vmul.f32 %v498, %v564
        %v600 = vmul.f32 %v499, %v564
        %v601 = vmul.f32 %v500, %v564
        %v602 = vmul.f32 %v501, %v564
        %v603 = vmul.f32 %v502, %v564
        %v604 = vmul.f32 %v503, %v564
        %v605 = vmul.f32 %v504, %v564
        %v606 = vmul.f32 %v505, %v564
        %v607 = vmul.f32 %v506, %v564
        %v608 = vmul.f32 %v507, %v564
        %v609 = vmul.f32 %v508, %v564
        %v610 = vmul.f32 %v509, %v564
        %v611 = vmul.f32 %v510, %v564
        %v612 = vmul.f32 %v511, %v564
        %v613 = vmul.f32 %v512, %v564
        %vm662 = vcmask 1046528
        %v663 = vrot.slane %v566, 1
        %v664 = vrot.slane %v567, 1
        %v665 = vsel %vm662, %v663, %v664
        %v666 = vrot.slane %v568, 1
        %v667 = vsel %vm662, %v664, %v666
        %v668 = vrot.slane %v569, 1
        %v669 = vrot.slane %v570, 1
        %v670 = vsel %vm662, %v668, %v669
        %v671 = vrot.slane %v571, 1
        %v672 = vsel %vm662, %v669, %v671
        %v673 = vrot.slane %v572, 1
        %v674 = vrot.slane %v573, 1
        %v675 = vsel %vm662, %v673, %v674
        %v676 = vrot.slane %v574, 1
        %v677 = vsel %vm662, %v674, %v676
        %v678 = vrot.slane %v575, 1
        %v679 = vrot.slane %v576, 1
        %v680 = vsel %vm662, %v678, %v679
        %v681 = vrot.slane %v577, 1
        %v682 = vsel %vm662, %v679, %v681
        %v683 = vrot.slane %v578, 1
        %v684 = vrot.slane %v579, 1
        %v685 = vsel %vm662, %v683, %v684
        %v686 = vrot.slane %v580, 1
        %v687 = vsel %vm662, %v684, %v686
        %v688 = vrot.slane %v581, 1
        %v689 = vrot.slane %v582, 1
        %v690 = vsel %vm662, %v688, %v689
        %v691 = vrot.slane %v583, 1
        %v692 = vsel %vm662, %v689, %v691
        %v693 = vrot.slane %v584, 1
        %v694 = vrot.slane %v585, 1
        %v695 = vsel %vm662, %v693, %v694
        %v696 = vrot.slane %v586, 1
        %v697 = vsel %vm662, %v694, %v696
        %v698 = vrot.slane %v587, 1
        %v699 = vrot.slane %v588, 1
        %v700 = vsel %vm662, %v698, %v699
        %v701 = vrot.slane %v589, 1
        %v702 = vsel %vm662, %v699, %v701
        %v703 = vrot.slane %v590, 1
        %v704 = vrot.slane %v591, 1
        %v705 = vsel %vm662, %v703, %v704
        %v706 = vrot.slane %v592, 1
        %v707 = vsel %vm662, %v704, %v706
        %v708 = vrot.slane %v593, 1
        %v709 = vrot.slane %v594, 1
        %v710 = vsel %vm662, %v708, %v709
        %v711 = vrot.slane %v595, 1
        %v712 = vsel %vm662, %v709, %v711
        %v713 = vrot.slane %v596, 1
        %v714 = vrot.slane %v597, 1
        %v715 = vsel %vm662, %v713, %v714
        %v716 = vrot.slane %v598, 1
        %v717 = vsel %vm662, %v714, %v716
        %v718 = vrot.slane %v599, 1
        %v719 = vrot.slane %v600, 1
        %v720 = vsel %vm662, %v718, %v719
        %v721 = vrot.slane %v601, 1
        %v722 = vsel %vm662, %v719, %v721
        %v723 = vrot.slane %v602, 1
        %v724 = vrot.slane %v603, 1
        %v725 = vsel %vm662, %v723, %v724
        %v726 = vrot.slane %v604, 1
        %v727 = vsel %vm662, %v724, %v726
        %v728 = vrot.slane %v605, 1
        %v729 = vrot.slane %v606, 1
        %v730 = vsel %vm662, %v728, %v729
        %v731 = vrot.slane %v607, 1
        %v732 = vsel %vm662, %v729, %v731
        %v733 = vrot.slane %v608, 1
        %v734 = vrot.slane %v609, 1
        %v735 = vsel %vm662, %v733, %v734
        %v736 = vrot.slane %v610, 1
        %v737 = vsel %vm662, %v734, %v736
        %v738 = vrot.slane %v611, 1
        %v739 = vrot.slane %v612, 1
        %v740 = vsel %vm662, %v738, %v739
        %v741 = vrot.slane %v613, 1
        %v742 = vsel %vm662, %v739, %v741
        %v775 = vadd.f32 %v526, %v665
        %v776 = vadd.f32 %v527, %v667
        %v777 = vadd.f32 %v528, %v670
        %v778 = vadd.f32 %v529, %v672
        %v779 = vadd.f32 %v530, %v675
        %v780 = vadd.f32 %v531, %v677
        %v781 = vadd.f32 %v532, %v680
        %v782 = vadd.f32 %v533, %v682
        %v783 = vadd.f32 %v534, %v685
        %v784 = vadd.f32 %v535, %v687
        %v785 = vadd.f32 %v536, %v690
        %v786 = vadd.f32 %v537, %v692
        %v787 = vadd.f32 %v538, %v695
        %v788 = vadd.f32 %v539, %v697
        %v789 = vadd.f32 %v540, %v700
        %v790 = vadd.f32 %v541, %v702
        %v791 = vadd.f32 %v542, %v705
        %v792 = vadd.f32 %v543, %v707
        %v793 = vadd.f32 %v544, %v710
        %v794 = vadd.f32 %v545, %v712
        %v795 = vadd.f32 %v546, %v715
        %v796 = vadd.f32 %v547, %v717
        %v797 = vadd.f32 %v548, %v720
        %v798 = vadd.f32 %v549, %v722
        %v799 = vadd.f32 %v550, %v725
        %v800 = vadd.f32 %v551, %v727
        %v801 = vadd.f32 %v552, %v730
        %v802 = vadd.f32 %v553, %v732
        %v803 = vadd.f32 %v554, %v735
        %v804 = vadd.f32 %v555, %v737
        %v805 = vadd.f32 %v556, %v740
        %v806 = vadd.f32 %v557, %v742
        %s807 = scalar_lea.vmem %s1, 2
        %v808 = vld [vmem:[%s807] sm:$0x1]
        %v810 = vlaneseq
        %v811 = vshrl.u32 %v810, 7
        %v812 = vsub.s32 0, %v811
        %v813 = vrot.slane %v808, %v812
        %v815 = vmul.f32 %v465, %v813
        %v816 = vmul.f32 %v466, %v813
        %v817 = vmul.f32 %v467, %v813
        %v818 = vmul.f32 %v468, %v813
        %v819 = vmul.f32 %v469, %v813
        %v820 = vmul.f32 %v470, %v813
        %v821 = vmul.f32 %v471, %v813
        %v822 = vmul.f32 %v472, %v813
        %v823 = vmul.f32 %v473, %v813
        %v824 = vmul.f32 %v474, %v813
        %v825 = vmul.f32 %v475, %v813
        %v826 = vmul.f32 %v476, %v813
        %v827 = vmul.f32 %v477, %v813
        %v828 = vmul.f32 %v478, %v813
        %v829 = vmul.f32 %v479, %v813
        %v830 = vmul.f32 %v480, %v813
        %v831 = vmul.f32 %v481, %v813
        %v832 = vmul.f32 %v482, %v813
        %v833 = vmul.f32 %v483, %v813
        %v834 = vmul.f32 %v484, %v813
        %v835 = vmul.f32 %v485, %v813
        %v836 = vmul.f32 %v486, %v813
        %v837 = vmul.f32 %v487, %v813
        %v838 = vmul.f32 %v488, %v813
        %v839 = vmul.f32 %v489, %v813
        %v840 = vmul.f32 %v490, %v813
        %v841 = vmul.f32 %v491, %v813
        %v842 = vmul.f32 %v492, %v813
        %v843 = vmul.f32 %v493, %v813
        %v844 = vmul.f32 %v494, %v813
        %v845 = vmul.f32 %v495, %v813
        %v846 = vmul.f32 %v496, %v813
        %v847 = vmul.f32 %v497, %v813
        %v848 = vmul.f32 %v498, %v813
        %v849 = vmul.f32 %v499, %v813
        %v850 = vmul.f32 %v500, %v813
        %v851 = vmul.f32 %v501, %v813
        %v852 = vmul.f32 %v502, %v813
        %v853 = vmul.f32 %v503, %v813
        %v854 = vmul.f32 %v504, %v813
        %v855 = vmul.f32 %v505, %v813
        %v856 = vmul.f32 %v506, %v813
        %v857 = vmul.f32 %v507, %v813
        %v858 = vmul.f32 %v508, %v813
        %v859 = vmul.f32 %v509, %v813
        %v860 = vmul.f32 %v510, %v813
        %v861 = vmul.f32 %v511, %v813
        %v862 = vmul.f32 %v512, %v813
        %vm911 = vcmask 1045504
        %v912 = vrot.slane %v815, 2
        %v913 = vrot.slane %v816, 2
        %v914 = vsel %vm911, %v912, %v913
        %v915 = vrot.slane %v817, 2
        %v916 = vsel %vm911, %v913, %v915
        %v917 = vrot.slane %v818, 2
        %v918 = vrot.slane %v819, 2
        %v919 = vsel %vm911, %v917, %v918
        %v920 = vrot.slane %v820, 2
        %v921 = vsel %vm911, %v918, %v920
        %v922 = vrot.slane %v821, 2
        %v923 = vrot.slane %v822, 2
        %v924 = vsel %vm911, %v922, %v923
        %v925 = vrot.slane %v823, 2
        %v926 = vsel %vm911, %v923, %v925
        %v927 = vrot.slane %v824, 2
        %v928 = vrot.slane %v825, 2
        %v929 = vsel %vm911, %v927, %v928
        %v930 = vrot.slane %v826, 2
        %v931 = vsel %vm911, %v928, %v930
        %v932 = vrot.slane %v827, 2
        %v933 = vrot.slane %v828, 2
        %v934 = vsel %vm911, %v932, %v933
        %v935 = vrot.slane %v829, 2
        %v936 = vsel %vm911, %v933, %v935
        %v937 = vrot.slane %v830, 2
        %v938 = vrot.slane %v831, 2
        %v939 = vsel %vm911, %v937, %v938
        %v940 = vrot.slane %v832, 2
        %v941 = vsel %vm911, %v938, %v940
        %v942 = vrot.slane %v833, 2
        %v943 = vrot.slane %v834, 2
        %v944 = vsel %vm911, %v942, %v943
        %v945 = vrot.slane %v835, 2
        %v946 = vsel %vm911, %v943, %v945
        %v947 = vrot.slane %v836, 2
        %v948 = vrot.slane %v837, 2
        %v949 = vsel %vm911, %v947, %v948
        %v950 = vrot.slane %v838, 2
        %v951 = vsel %vm911, %v948, %v950
        %v952 = vrot.slane %v839, 2
        %v953 = vrot.slane %v840, 2
        %v954 = vsel %vm911, %v952, %v953
        %v955 = vrot.slane %v841, 2
        %v956 = vsel %vm911, %v953, %v955
        %v957 = vrot.slane %v842, 2
        %v958 = vrot.slane %v843, 2
        %v959 = vsel %vm911, %v957, %v958
        %v960 = vrot.slane %v844, 2
        %v961 = vsel %vm911, %v958, %v960
        %v962 = vrot.slane %v845, 2
        %v963 = vrot.slane %v846, 2
        %v964 = vsel %vm911, %v962, %v963
        %v965 = vrot.slane %v847, 2
        %v966 = vsel %vm911, %v963, %v965
        %v967 = vrot.slane %v848, 2
        %v968 = vrot.slane %v849, 2
        %v969 = vsel %vm911, %v967, %v968
        %v970 = vrot.slane %v850, 2
        %v971 = vsel %vm911, %v968, %v970
        %v972 = vrot.slane %v851, 2
        %v973 = vrot.slane %v852, 2
        %v974 = vsel %vm911, %v972, %v973
        %v975 = vrot.slane %v853, 2
        %v976 = vsel %vm911, %v973, %v975
        %v977 = vrot.slane %v854, 2
        %v978 = vrot.slane %v855, 2
        %v979 = vsel %vm911, %v977, %v978
        %v980 = vrot.slane %v856, 2
        %v981 = vsel %vm911, %v978, %v980
        %v982 = vrot.slane %v857, 2
        %v983 = vrot.slane %v858, 2
        %v984 = vsel %vm911, %v982, %v983
        %v985 = vrot.slane %v859, 2
        %v986 = vsel %vm911, %v983, %v985
        %v987 = vrot.slane %v860, 2
        %v988 = vrot.slane %v861, 2
        %v989 = vsel %vm911, %v987, %v988
        %v990 = vrot.slane %v862, 2
        %v991 = vsel %vm911, %v988, %v990
        %v1024 = vadd.f32 %v775, %v914
        %v1025 = vadd.f32 %v776, %v916
        %v1026 = vadd.f32 %v777, %v919
        %v1027 = vadd.f32 %v778, %v921
        %v1028 = vadd.f32 %v779, %v924
        %v1029 = vadd.f32 %v780, %v926
        %v1030 = vadd.f32 %v781, %v929
        %v1031 = vadd.f32 %v782, %v931
        %v1032 = vadd.f32 %v783, %v934
        %v1033 = vadd.f32 %v784, %v936
        %v1034 = vadd.f32 %v785, %v939
        %v1035 = vadd.f32 %v786, %v941
        %v1036 = vadd.f32 %v787, %v944
        %v1037 = vadd.f32 %v788, %v946
        %v1038 = vadd.f32 %v789, %v949
        %v1039 = vadd.f32 %v790, %v951
        %v1040 = vadd.f32 %v791, %v954
        %v1041 = vadd.f32 %v792, %v956
        %v1042 = vadd.f32 %v793, %v959
        %v1043 = vadd.f32 %v794, %v961
        %v1044 = vadd.f32 %v795, %v964
        %v1045 = vadd.f32 %v796, %v966
        %v1046 = vadd.f32 %v797, %v969
        %v1047 = vadd.f32 %v798, %v971
        %v1048 = vadd.f32 %v799, %v974
        %v1049 = vadd.f32 %v800, %v976
        %v1050 = vadd.f32 %v801, %v979
        %v1051 = vadd.f32 %v802, %v981
        %v1052 = vadd.f32 %v803, %v984
        %v1053 = vadd.f32 %v804, %v986
        %v1054 = vadd.f32 %v805, %v989
        %v1055 = vadd.f32 %v806, %v991
        %s1056 = scalar_lea.vmem %s1, 3
        %v1057 = vld [vmem:[%s1056] sm:$0x1]
        %v1059 = vlaneseq
        %v1060 = vshrl.u32 %v1059, 7
        %v1061 = vsub.s32 0, %v1060
        %v1062 = vrot.slane %v1057, %v1061
        %v1064 = vmul.f32 %v468, %v1062
        %v1065 = vmul.f32 %v469, %v1062
        %v1066 = vmul.f32 %v471, %v1062
        %v1067 = vmul.f32 %v472, %v1062
        %v1068 = vmul.f32 %v474, %v1062
        %v1069 = vmul.f32 %v475, %v1062
        %v1070 = vmul.f32 %v477, %v1062
        %v1071 = vmul.f32 %v478, %v1062
        %v1072 = vmul.f32 %v480, %v1062
        %v1073 = vmul.f32 %v481, %v1062
        %v1074 = vmul.f32 %v483, %v1062
        %v1075 = vmul.f32 %v484, %v1062
        %v1076 = vmul.f32 %v486, %v1062
        %v1077 = vmul.f32 %v487, %v1062
        %v1078 = vmul.f32 %v489, %v1062
        %v1079 = vmul.f32 %v490, %v1062
        %v1080 = vmul.f32 %v492, %v1062
        %v1081 = vmul.f32 %v493, %v1062
        %v1082 = vmul.f32 %v495, %v1062
        %v1083 = vmul.f32 %v496, %v1062
        %v1084 = vmul.f32 %v498, %v1062
        %v1085 = vmul.f32 %v499, %v1062
        %v1086 = vmul.f32 %v501, %v1062
        %v1087 = vmul.f32 %v502, %v1062
        %v1088 = vmul.f32 %v504, %v1062
        %v1089 = vmul.f32 %v505, %v1062
        %v1090 = vmul.f32 %v507, %v1062
        %v1091 = vmul.f32 %v508, %v1062
        %v1092 = vmul.f32 %v510, %v1062
        %v1093 = vmul.f32 %v511, %v1062
        %v1094 = vmul.f32 %v513, %v1062
        %v1095 = vmul.f32 %v514, %v1062
        %v1096 = vadd.f32 %v1024, %v1064
        %v1097 = vadd.f32 %v1025, %v1065
        %v1098 = vadd.f32 %v1026, %v1066
        %v1099 = vadd.f32 %v1027, %v1067
        %v1100 = vadd.f32 %v1028, %v1068
        %v1101 = vadd.f32 %v1029, %v1069
        %v1102 = vadd.f32 %v1030, %v1070
        %v1103 = vadd.f32 %v1031, %v1071
        %v1104 = vadd.f32 %v1032, %v1072
        %v1105 = vadd.f32 %v1033, %v1073
        %v1106 = vadd.f32 %v1034, %v1074
        %v1107 = vadd.f32 %v1035, %v1075
        %v1108 = vadd.f32 %v1036, %v1076
        %v1109 = vadd.f32 %v1037, %v1077
        %v1110 = vadd.f32 %v1038, %v1078
        %v1111 = vadd.f32 %v1039, %v1079
        %v1112 = vadd.f32 %v1040, %v1080
        %v1113 = vadd.f32 %v1041, %v1081
        %v1114 = vadd.f32 %v1042, %v1082
        %v1115 = vadd.f32 %v1043, %v1083
        %v1116 = vadd.f32 %v1044, %v1084
        %v1117 = vadd.f32 %v1045, %v1085
        %v1118 = vadd.f32 %v1046, %v1086
        %v1119 = vadd.f32 %v1047, %v1087
        %v1120 = vadd.f32 %v1048, %v1088
        %v1121 = vadd.f32 %v1049, %v1089
        %v1122 = vadd.f32 %v1050, %v1090
        %v1123 = vadd.f32 %v1051, %v1091
        %v1124 = vadd.f32 %v1052, %v1092
        %v1125 = vadd.f32 %v1053, %v1093
        %v1126 = vadd.f32 %v1054, %v1094
        %v1127 = vadd.f32 %v1055, %v1095
        %s1128 = scalar_lea.vmem %s1, 4
        %v1129 = vld [vmem:[%s1128] sm:$0x1]
        %v1131 = vlaneseq
        %v1132 = vshrl.u32 %v1131, 7
        %v1133 = vsub.s32 0, %v1132
        %v1134 = vrot.slane %v1129, %v1133
        %v1136 = vmul.f32 %v468, %v1134
        %v1137 = vmul.f32 %v469, %v1134
        %v1138 = vmul.f32 %v470, %v1134
        %v1139 = vmul.f32 %v471, %v1134
        %v1140 = vmul.f32 %v472, %v1134
        %v1141 = vmul.f32 %v473, %v1134
        %v1142 = vmul.f32 %v474, %v1134
        %v1143 = vmul.f32 %v475, %v1134
        %v1144 = vmul.f32 %v476, %v1134
        %v1145 = vmul.f32 %v477, %v1134
        %v1146 = vmul.f32 %v478, %v1134
        %v1147 = vmul.f32 %v479, %v1134
        %v1148 = vmul.f32 %v480, %v1134
        %v1149 = vmul.f32 %v481, %v1134
        %v1150 = vmul.f32 %v482, %v1134
        %v1151 = vmul.f32 %v483, %v1134
        %v1152 = vmul.f32 %v484, %v1134
        %v1153 = vmul.f32 %v485, %v1134
        %v1154 = vmul.f32 %v486, %v1134
        %v1155 = vmul.f32 %v487, %v1134
        %v1156 = vmul.f32 %v488, %v1134
        %v1157 = vmul.f32 %v489, %v1134
        %v1158 = vmul.f32 %v490, %v1134
        %v1159 = vmul.f32 %v491, %v1134
        %v1160 = vmul.f32 %v492, %v1134
        %v1161 = vmul.f32 %v493, %v1134
        %v1162 = vmul.f32 %v494, %v1134
        %v1163 = vmul.f32 %v495, %v1134
        %v1164 = vmul.f32 %v496, %v1134
        %v1165 = vmul.f32 %v497, %v1134
        %v1166 = vmul.f32 %v498, %v1134
        %v1167 = vmul.f32 %v499, %v1134
        %v1168 = vmul.f32 %v500, %v1134
        %v1169 = vmul.f32 %v501, %v1134
        %v1170 = vmul.f32 %v502, %v1134
        %v1171 = vmul.f32 %v503, %v1134
        %v1172 = vmul.f32 %v504, %v1134
        %v1173 = vmul.f32 %v505, %v1134
        %v1174 = vmul.f32 %v506, %v1134
        %v1175 = vmul.f32 %v507, %v1134
        %v1176 = vmul.f32 %v508, %v1134
        %v1177 = vmul.f32 %v509, %v1134
        %v1178 = vmul.f32 %v510, %v1134
        %v1179 = vmul.f32 %v511, %v1134
        %v1180 = vmul.f32 %v512, %v1134
        %v1181 = vmul.f32 %v513, %v1134
        %v1182 = vmul.f32 %v514, %v1134
        %v1183 = vmul.f32 %v515, %v1134
        %v1232 = vrot.slane %v1136, 1
        %v1233 = vrot.slane %v1137, 1
        %v1234 = vsel %vm662, %v1232, %v1233
        %v1235 = vrot.slane %v1138, 1
        %v1236 = vsel %vm662, %v1233, %v1235
        %v1237 = vrot.slane %v1139, 1
        %v1238 = vrot.slane %v1140, 1
        %v1239 = vsel %vm662, %v1237, %v1238
        %v1240 = vrot.slane %v1141, 1
        %v1241 = vsel %vm662, %v1238, %v1240
        %v1242 = vrot.slane %v1142, 1
        %v1243 = vrot.slane %v1143, 1
        %v1244 = vsel %vm662, %v1242, %v1243
        %v1245 = vrot.slane %v1144, 1
        %v1246 = vsel %vm662, %v1243, %v1245
        %v1247 = vrot.slane %v1145, 1
        %v1248 = vrot.slane %v1146, 1
        %v1249 = vsel %vm662, %v1247, %v1248
        %v1250 = vrot.slane %v1147, 1
        %v1251 = vsel %vm662, %v1248, %v1250
        %v1252 = vrot.slane %v1148, 1
        %v1253 = vrot.slane %v1149, 1
        %v1254 = vsel %vm662, %v1252, %v1253
        %v1255 = vrot.slane %v1150, 1
        %v1256 = vsel %vm662, %v1253, %v1255
        %v1257 = vrot.slane %v1151, 1
        %v1258 = vrot.slane %v1152, 1
        %v1259 = vsel %vm662, %v1257, %v1258
        %v1260 = vrot.slane %v1153, 1
        %v1261 = vsel %vm662, %v1258, %v1260
        %v1262 = vrot.slane %v1154, 1
        %v1263 = vrot.slane %v1155, 1
        %v1264 = vsel %vm662, %v1262, %v1263
        %v1265 = vrot.slane %v1156, 1
        %v1266 = vsel %vm662, %v1263, %v1265
        %v1267 = vrot.slane %v1157, 1
        %v1268 = vrot.slane %v1158, 1
        %v1269 = vsel %vm662, %v1267, %v1268
        %v1270 = vrot.slane %v1159, 1
        %v1271 = vsel %vm662, %v1268, %v1270
        %v1272 = vrot.slane %v1160, 1
        %v1273 = vrot.slane %v1161, 1
        %v1274 = vsel %vm662, %v1272, %v1273
        %v1275 = vrot.slane %v1162, 1
        %v1276 = vsel %vm662, %v1273, %v1275
        %v1277 = vrot.slane %v1163, 1
        %v1278 = vrot.slane %v1164, 1
        %v1279 = vsel %vm662, %v1277, %v1278
        %v1280 = vrot.slane %v1165, 1
        %v1281 = vsel %vm662, %v1278, %v1280
        %v1282 = vrot.slane %v1166, 1
        %v1283 = vrot.slane %v1167, 1
        %v1284 = vsel %vm662, %v1282, %v1283
        %v1285 = vrot.slane %v1168, 1
        %v1286 = vsel %vm662, %v1283, %v1285
        %v1287 = vrot.slane %v1169, 1
        %v1288 = vrot.slane %v1170, 1
        %v1289 = vsel %vm662, %v1287, %v1288
        %v1290 = vrot.slane %v1171, 1
        %v1291 = vsel %vm662, %v1288, %v1290
        %v1292 = vrot.slane %v1172, 1
        %v1293 = vrot.slane %v1173, 1
        %v1294 = vsel %vm662, %v1292, %v1293
        %v1295 = vrot.slane %v1174, 1
        %v1296 = vsel %vm662, %v1293, %v1295
        %v1297 = vrot.slane %v1175, 1
        %v1298 = vrot.slane %v1176, 1
        %v1299 = vsel %vm662, %v1297, %v1298
        %v1300 = vrot.slane %v1177, 1
        %v1301 = vsel %vm662, %v1298, %v1300
        %v1302 = vrot.slane %v1178, 1
        %v1303 = vrot.slane %v1179, 1
        %v1304 = vsel %vm662, %v1302, %v1303
        %v1305 = vrot.slane %v1180, 1
        %v1306 = vsel %vm662, %v1303, %v1305
        %v1307 = vrot.slane %v1181, 1
        %v1308 = vrot.slane %v1182, 1
        %v1309 = vsel %vm662, %v1307, %v1308
        %v1310 = vrot.slane %v1183, 1
        %v1311 = vsel %vm662, %v1308, %v1310
        %v1344 = vadd.f32 %v1096, %v1234
        %v1345 = vadd.f32 %v1097, %v1236
        %v1346 = vadd.f32 %v1098, %v1239
        %v1347 = vadd.f32 %v1099, %v1241
        %v1348 = vadd.f32 %v1100, %v1244
        %v1349 = vadd.f32 %v1101, %v1246
        %v1350 = vadd.f32 %v1102, %v1249
        %v1351 = vadd.f32 %v1103, %v1251
        %v1352 = vadd.f32 %v1104, %v1254
        %v1353 = vadd.f32 %v1105, %v1256
        %v1354 = vadd.f32 %v1106, %v1259
        %v1355 = vadd.f32 %v1107, %v1261
        %v1356 = vadd.f32 %v1108, %v1264
        %v1357 = vadd.f32 %v1109, %v1266
        %v1358 = vadd.f32 %v1110, %v1269
        %v1359 = vadd.f32 %v1111, %v1271
        %v1360 = vadd.f32 %v1112, %v1274
        %v1361 = vadd.f32 %v1113, %v1276
        %v1362 = vadd.f32 %v1114, %v1279
        %v1363 = vadd.f32 %v1115, %v1281
        %v1364 = vadd.f32 %v1116, %v1284
        %v1365 = vadd.f32 %v1117, %v1286
        %v1366 = vadd.f32 %v1118, %v1289
        %v1367 = vadd.f32 %v1119, %v1291
        %v1368 = vadd.f32 %v1120, %v1294
        %v1369 = vadd.f32 %v1121, %v1296
        %v1370 = vadd.f32 %v1122, %v1299
        %v1371 = vadd.f32 %v1123, %v1301
        %v1372 = vadd.f32 %v1124, %v1304
        %v1373 = vadd.f32 %v1125, %v1306
        %v1374 = vadd.f32 %v1126, %v1309
        %v1375 = vadd.f32 %v1127, %v1311
        %s1376 = scalar_lea.vmem %s1, 5
        %v1377 = vld [vmem:[%s1376] sm:$0x1]
        %v1379 = vlaneseq
        %v1380 = vshrl.u32 %v1379, 7
        %v1381 = vsub.s32 0, %v1380
        %v1382 = vrot.slane %v1377, %v1381
        %v1384 = vmul.f32 %v468, %v1382
        %v1385 = vmul.f32 %v469, %v1382
        %v1386 = vmul.f32 %v470, %v1382
        %v1387 = vmul.f32 %v471, %v1382
        %v1388 = vmul.f32 %v472, %v1382
        %v1389 = vmul.f32 %v473, %v1382
        %v1390 = vmul.f32 %v474, %v1382
        %v1391 = vmul.f32 %v475, %v1382
        %v1392 = vmul.f32 %v476, %v1382
        %v1393 = vmul.f32 %v477, %v1382
        %v1394 = vmul.f32 %v478, %v1382
        %v1395 = vmul.f32 %v479, %v1382
        %v1396 = vmul.f32 %v480, %v1382
        %v1397 = vmul.f32 %v481, %v1382
        %v1398 = vmul.f32 %v482, %v1382
        %v1399 = vmul.f32 %v483, %v1382
        %v1400 = vmul.f32 %v484, %v1382
        %v1401 = vmul.f32 %v485, %v1382
        %v1402 = vmul.f32 %v486, %v1382
        %v1403 = vmul.f32 %v487, %v1382
        %v1404 = vmul.f32 %v488, %v1382
        %v1405 = vmul.f32 %v489, %v1382
        %v1406 = vmul.f32 %v490, %v1382
        %v1407 = vmul.f32 %v491, %v1382
        %v1408 = vmul.f32 %v492, %v1382
        %v1409 = vmul.f32 %v493, %v1382
        %v1410 = vmul.f32 %v494, %v1382
        %v1411 = vmul.f32 %v495, %v1382
        %v1412 = vmul.f32 %v496, %v1382
        %v1413 = vmul.f32 %v497, %v1382
        %v1414 = vmul.f32 %v498, %v1382
        %v1415 = vmul.f32 %v499, %v1382
        %v1416 = vmul.f32 %v500, %v1382
        %v1417 = vmul.f32 %v501, %v1382
        %v1418 = vmul.f32 %v502, %v1382
        %v1419 = vmul.f32 %v503, %v1382
        %v1420 = vmul.f32 %v504, %v1382
        %v1421 = vmul.f32 %v505, %v1382
        %v1422 = vmul.f32 %v506, %v1382
        %v1423 = vmul.f32 %v507, %v1382
        %v1424 = vmul.f32 %v508, %v1382
        %v1425 = vmul.f32 %v509, %v1382
        %v1426 = vmul.f32 %v510, %v1382
        %v1427 = vmul.f32 %v511, %v1382
        %v1428 = vmul.f32 %v512, %v1382
        %v1429 = vmul.f32 %v513, %v1382
        %v1430 = vmul.f32 %v514, %v1382
        %v1431 = vmul.f32 %v515, %v1382
        %v1480 = vrot.slane %v1384, 2
        %v1481 = vrot.slane %v1385, 2
        %v1482 = vsel %vm911, %v1480, %v1481
        %v1483 = vrot.slane %v1386, 2
        %v1484 = vsel %vm911, %v1481, %v1483
        %v1485 = vrot.slane %v1387, 2
        %v1486 = vrot.slane %v1388, 2
        %v1487 = vsel %vm911, %v1485, %v1486
        %v1488 = vrot.slane %v1389, 2
        %v1489 = vsel %vm911, %v1486, %v1488
        %v1490 = vrot.slane %v1390, 2
        %v1491 = vrot.slane %v1391, 2
        %v1492 = vsel %vm911, %v1490, %v1491
        %v1493 = vrot.slane %v1392, 2
        %v1494 = vsel %vm911, %v1491, %v1493
        %v1495 = vrot.slane %v1393, 2
        %v1496 = vrot.slane %v1394, 2
        %v1497 = vsel %vm911, %v1495, %v1496
        %v1498 = vrot.slane %v1395, 2
        %v1499 = vsel %vm911, %v1496, %v1498
        %v1500 = vrot.slane %v1396, 2
        %v1501 = vrot.slane %v1397, 2
        %v1502 = vsel %vm911, %v1500, %v1501
        %v1503 = vrot.slane %v1398, 2
        %v1504 = vsel %vm911, %v1501, %v1503
        %v1505 = vrot.slane %v1399, 2
        %v1506 = vrot.slane %v1400, 2
        %v1507 = vsel %vm911, %v1505, %v1506
        %v1508 = vrot.slane %v1401, 2
        %v1509 = vsel %vm911, %v1506, %v1508
        %v1510 = vrot.slane %v1402, 2
        %v1511 = vrot.slane %v1403, 2
        %v1512 = vsel %vm911, %v1510, %v1511
        %v1513 = vrot.slane %v1404, 2
        %v1514 = vsel %vm911, %v1511, %v1513
        %v1515 = vrot.slane %v1405, 2
        %v1516 = vrot.slane %v1406, 2
        %v1517 = vsel %vm911, %v1515, %v1516
        %v1518 = vrot.slane %v1407, 2
        %v1519 = vsel %vm911, %v1516, %v1518
        %v1520 = vrot.slane %v1408, 2
        %v1521 = vrot.slane %v1409, 2
        %v1522 = vsel %vm911, %v1520, %v1521
        %v1523 = vrot.slane %v1410, 2
        %v1524 = vsel %vm911, %v1521, %v1523
        %v1525 = vrot.slane %v1411, 2
        %v1526 = vrot.slane %v1412, 2
        %v1527 = vsel %vm911, %v1525, %v1526
        %v1528 = vrot.slane %v1413, 2
        %v1529 = vsel %vm911, %v1526, %v1528
        %v1530 = vrot.slane %v1414, 2
        %v1531 = vrot.slane %v1415, 2
        %v1532 = vsel %vm911, %v1530, %v1531
        %v1533 = vrot.slane %v1416, 2
        %v1534 = vsel %vm911, %v1531, %v1533
        %v1535 = vrot.slane %v1417, 2
        %v1536 = vrot.slane %v1418, 2
        %v1537 = vsel %vm911, %v1535, %v1536
        %v1538 = vrot.slane %v1419, 2
        %v1539 = vsel %vm911, %v1536, %v1538
        %v1540 = vrot.slane %v1420, 2
        %v1541 = vrot.slane %v1421, 2
        %v1542 = vsel %vm911, %v1540, %v1541
        %v1543 = vrot.slane %v1422, 2
        %v1544 = vsel %vm911, %v1541, %v1543
        %v1545 = vrot.slane %v1423, 2
        %v1546 = vrot.slane %v1424, 2
        %v1547 = vsel %vm911, %v1545, %v1546
        %v1548 = vrot.slane %v1425, 2
        %v1549 = vsel %vm911, %v1546, %v1548
        %v1550 = vrot.slane %v1426, 2
        %v1551 = vrot.slane %v1427, 2
        %v1552 = vsel %vm911, %v1550, %v1551
        %v1553 = vrot.slane %v1428, 2
        %v1554 = vsel %vm911, %v1551, %v1553
        %v1555 = vrot.slane %v1429, 2
        %v1556 = vrot.slane %v1430, 2
        %v1557 = vsel %vm911, %v1555, %v1556
        %v1558 = vrot.slane %v1431, 2
        %v1559 = vsel %vm911, %v1556, %v1558
        %v1592 = vadd.f32 %v1344, %v1482
        %v1593 = vadd.f32 %v1345, %v1484
        %v1594 = vadd.f32 %v1346, %v1487
        %v1595 = vadd.f32 %v1347, %v1489
        %v1596 = vadd.f32 %v1348, %v1492
        %v1597 = vadd.f32 %v1349, %v1494
        %v1598 = vadd.f32 %v1350, %v1497
        %v1599 = vadd.f32 %v1351, %v1499
        %v1600 = vadd.f32 %v1352, %v1502
        %v1601 = vadd.f32 %v1353, %v1504
        %v1602 = vadd.f32 %v1354, %v1507
        %v1603 = vadd.f32 %v1355, %v1509
        %v1604 = vadd.f32 %v1356, %v1512
        %v1605 = vadd.f32 %v1357, %v1514
        %v1606 = vadd.f32 %v1358, %v1517
        %v1607 = vadd.f32 %v1359, %v1519
        %v1608 = vadd.f32 %v1360, %v1522
        %v1609 = vadd.f32 %v1361, %v1524
        %v1610 = vadd.f32 %v1362, %v1527
        %v1611 = vadd.f32 %v1363, %v1529
        %v1612 = vadd.f32 %v1364, %v1532
        %v1613 = vadd.f32 %v1365, %v1534
        %v1614 = vadd.f32 %v1366, %v1537
        %v1615 = vadd.f32 %v1367, %v1539
        %v1616 = vadd.f32 %v1368, %v1542
        %v1617 = vadd.f32 %v1369, %v1544
        %v1618 = vadd.f32 %v1370, %v1547
        %v1619 = vadd.f32 %v1371, %v1549
        %v1620 = vadd.f32 %v1372, %v1552
        %v1621 = vadd.f32 %v1373, %v1554
        %v1622 = vadd.f32 %v1374, %v1557
        %v1623 = vadd.f32 %v1375, %v1559
        %s1624 = scalar_lea.vmem %s1, 6
        %v1625 = vld [vmem:[%s1624] sm:$0x1]
        %v1627 = vlaneseq
        %v1628 = vshrl.u32 %v1627, 7
        %v1629 = vsub.s32 0, %v1628
        %v1630 = vrot.slane %v1625, %v1629
        %v1632 = vmul.f32 %v471, %v1630
        %v1633 = vmul.f32 %v472, %v1630
        %v1634 = vmul.f32 %v474, %v1630
        %v1635 = vmul.f32 %v475, %v1630
        %v1636 = vmul.f32 %v477, %v1630
        %v1637 = vmul.f32 %v478, %v1630
        %v1638 = vmul.f32 %v480, %v1630
        %v1639 = vmul.f32 %v481, %v1630
        %v1640 = vmul.f32 %v483, %v1630
        %v1641 = vmul.f32 %v484, %v1630
        %v1642 = vmul.f32 %v486, %v1630
        %v1643 = vmul.f32 %v487, %v1630
        %v1644 = vmul.f32 %v489, %v1630
        %v1645 = vmul.f32 %v490, %v1630
        %v1646 = vmul.f32 %v492, %v1630
        %v1647 = vmul.f32 %v493, %v1630
        %v1648 = vmul.f32 %v495, %v1630
        %v1649 = vmul.f32 %v496, %v1630
        %v1650 = vmul.f32 %v498, %v1630
        %v1651 = vmul.f32 %v499, %v1630
        %v1652 = vmul.f32 %v501, %v1630
        %v1653 = vmul.f32 %v502, %v1630
        %v1654 = vmul.f32 %v504, %v1630
        %v1655 = vmul.f32 %v505, %v1630
        %v1656 = vmul.f32 %v507, %v1630
        %v1657 = vmul.f32 %v508, %v1630
        %v1658 = vmul.f32 %v510, %v1630
        %v1659 = vmul.f32 %v511, %v1630
        %v1660 = vmul.f32 %v513, %v1630
        %v1661 = vmul.f32 %v514, %v1630
        %v1662 = vmul.f32 %v516, %v1630
        %v1663 = vmul.f32 %v517, %v1630
        %v1664 = vadd.f32 %v1592, %v1632
        %v1665 = vadd.f32 %v1593, %v1633
        %v1666 = vadd.f32 %v1594, %v1634
        %v1667 = vadd.f32 %v1595, %v1635
        %v1668 = vadd.f32 %v1596, %v1636
        %v1669 = vadd.f32 %v1597, %v1637
        %v1670 = vadd.f32 %v1598, %v1638
        %v1671 = vadd.f32 %v1599, %v1639
        %v1672 = vadd.f32 %v1600, %v1640
        %v1673 = vadd.f32 %v1601, %v1641
        %v1674 = vadd.f32 %v1602, %v1642
        %v1675 = vadd.f32 %v1603, %v1643
        %v1676 = vadd.f32 %v1604, %v1644
        %v1677 = vadd.f32 %v1605, %v1645
        %v1678 = vadd.f32 %v1606, %v1646
        %v1679 = vadd.f32 %v1607, %v1647
        %v1680 = vadd.f32 %v1608, %v1648
        %v1681 = vadd.f32 %v1609, %v1649
        %v1682 = vadd.f32 %v1610, %v1650
        %v1683 = vadd.f32 %v1611, %v1651
        %v1684 = vadd.f32 %v1612, %v1652
        %v1685 = vadd.f32 %v1613, %v1653
        %v1686 = vadd.f32 %v1614, %v1654
        %v1687 = vadd.f32 %v1615, %v1655
        %v1688 = vadd.f32 %v1616, %v1656
        %v1689 = vadd.f32 %v1617, %v1657
        %v1690 = vadd.f32 %v1618, %v1658
        %v1691 = vadd.f32 %v1619, %v1659
        %v1692 = vadd.f32 %v1620, %v1660
        %v1693 = vadd.f32 %v1621, %v1661
        %v1694 = vadd.f32 %v1622, %v1662
        %v1695 = vadd.f32 %v1623, %v1663
        %s1696 = scalar_lea.vmem %s1, 7
        %v1697 = vld [vmem:[%s1696] sm:$0x1]
        %v1699 = vlaneseq
        %v1700 = vshrl.u32 %v1699, 7
        %v1701 = vsub.s32 0, %v1700
        %v1702 = vrot.slane %v1697, %v1701
        %v1704 = vmul.f32 %v471, %v1702
        %v1705 = vmul.f32 %v472, %v1702
        %v1706 = vmul.f32 %v473, %v1702
        %v1707 = vmul.f32 %v474, %v1702
        %v1708 = vmul.f32 %v475, %v1702
        %v1709 = vmul.f32 %v476, %v1702
        %v1710 = vmul.f32 %v477, %v1702
        %v1711 = vmul.f32 %v478, %v1702
        %v1712 = vmul.f32 %v479, %v1702
        %v1713 = vmul.f32 %v480, %v1702
        %v1714 = vmul.f32 %v481, %v1702
        %v1715 = vmul.f32 %v482, %v1702
        %v1716 = vmul.f32 %v483, %v1702
        %v1717 = vmul.f32 %v484, %v1702
        %v1718 = vmul.f32 %v485, %v1702
        %v1719 = vmul.f32 %v486, %v1702
        %v1720 = vmul.f32 %v487, %v1702
        %v1721 = vmul.f32 %v488, %v1702
        %v1722 = vmul.f32 %v489, %v1702
        %v1723 = vmul.f32 %v490, %v1702
        %v1724 = vmul.f32 %v491, %v1702
        %v1725 = vmul.f32 %v492, %v1702
        %v1726 = vmul.f32 %v493, %v1702
        %v1727 = vmul.f32 %v494, %v1702
        %v1728 = vmul.f32 %v495, %v1702
        %v1729 = vmul.f32 %v496, %v1702
        %v1730 = vmul.f32 %v497, %v1702
        %v1731 = vmul.f32 %v498, %v1702
        %v1732 = vmul.f32 %v499, %v1702
        %v1733 = vmul.f32 %v500, %v1702
        %v1734 = vmul.f32 %v501, %v1702
        %v1735 = vmul.f32 %v502, %v1702
        %v1736 = vmul.f32 %v503, %v1702
        %v1737 = vmul.f32 %v504, %v1702
        %v1738 = vmul.f32 %v505, %v1702
        %v1739 = vmul.f32 %v506, %v1702
        %v1740 = vmul.f32 %v507, %v1702
        %v1741 = vmul.f32 %v508, %v1702
        %v1742 = vmul.f32 %v509, %v1702
        %v1743 = vmul.f32 %v510, %v1702
        %v1744 = vmul.f32 %v511, %v1702
        %v1745 = vmul.f32 %v512, %v1702
        %v1746 = vmul.f32 %v513, %v1702
        %v1747 = vmul.f32 %v514, %v1702
        %v1748 = vmul.f32 %v515, %v1702
        %v1749 = vmul.f32 %v516, %v1702
        %v1750 = vmul.f32 %v517, %v1702
        %v1751 = vmul.f32 %v518, %v1702
        %v1800 = vrot.slane %v1704, 1
        %v1801 = vrot.slane %v1705, 1
        %v1802 = vsel %vm662, %v1800, %v1801
        %v1803 = vrot.slane %v1706, 1
        %v1804 = vsel %vm662, %v1801, %v1803
        %v1805 = vrot.slane %v1707, 1
        %v1806 = vrot.slane %v1708, 1
        %v1807 = vsel %vm662, %v1805, %v1806
        %v1808 = vrot.slane %v1709, 1
        %v1809 = vsel %vm662, %v1806, %v1808
        %v1810 = vrot.slane %v1710, 1
        %v1811 = vrot.slane %v1711, 1
        %v1812 = vsel %vm662, %v1810, %v1811
        %v1813 = vrot.slane %v1712, 1
        %v1814 = vsel %vm662, %v1811, %v1813
        %v1815 = vrot.slane %v1713, 1
        %v1816 = vrot.slane %v1714, 1
        %v1817 = vsel %vm662, %v1815, %v1816
        %v1818 = vrot.slane %v1715, 1
        %v1819 = vsel %vm662, %v1816, %v1818
        %v1820 = vrot.slane %v1716, 1
        %v1821 = vrot.slane %v1717, 1
        %v1822 = vsel %vm662, %v1820, %v1821
        %v1823 = vrot.slane %v1718, 1
        %v1824 = vsel %vm662, %v1821, %v1823
        %v1825 = vrot.slane %v1719, 1
        %v1826 = vrot.slane %v1720, 1
        %v1827 = vsel %vm662, %v1825, %v1826
        %v1828 = vrot.slane %v1721, 1
        %v1829 = vsel %vm662, %v1826, %v1828
        %v1830 = vrot.slane %v1722, 1
        %v1831 = vrot.slane %v1723, 1
        %v1832 = vsel %vm662, %v1830, %v1831
        %v1833 = vrot.slane %v1724, 1
        %v1834 = vsel %vm662, %v1831, %v1833
        %v1835 = vrot.slane %v1725, 1
        %v1836 = vrot.slane %v1726, 1
        %v1837 = vsel %vm662, %v1835, %v1836
        %v1838 = vrot.slane %v1727, 1
        %v1839 = vsel %vm662, %v1836, %v1838
        %v1840 = vrot.slane %v1728, 1
        %v1841 = vrot.slane %v1729, 1
        %v1842 = vsel %vm662, %v1840, %v1841
        %v1843 = vrot.slane %v1730, 1
        %v1844 = vsel %vm662, %v1841, %v1843
        %v1845 = vrot.slane %v1731, 1
        %v1846 = vrot.slane %v1732, 1
        %v1847 = vsel %vm662, %v1845, %v1846
        %v1848 = vrot.slane %v1733, 1
        %v1849 = vsel %vm662, %v1846, %v1848
        %v1850 = vrot.slane %v1734, 1
        %v1851 = vrot.slane %v1735, 1
        %v1852 = vsel %vm662, %v1850, %v1851
        %v1853 = vrot.slane %v1736, 1
        %v1854 = vsel %vm662, %v1851, %v1853
        %v1855 = vrot.slane %v1737, 1
        %v1856 = vrot.slane %v1738, 1
        %v1857 = vsel %vm662, %v1855, %v1856
        %v1858 = vrot.slane %v1739, 1
        %v1859 = vsel %vm662, %v1856, %v1858
        %v1860 = vrot.slane %v1740, 1
        %v1861 = vrot.slane %v1741, 1
        %v1862 = vsel %vm662, %v1860, %v1861
        %v1863 = vrot.slane %v1742, 1
        %v1864 = vsel %vm662, %v1861, %v1863
        %v1865 = vrot.slane %v1743, 1
        %v1866 = vrot.slane %v1744, 1
        %v1867 = vsel %vm662, %v1865, %v1866
        %v1868 = vrot.slane %v1745, 1
        %v1869 = vsel %vm662, %v1866, %v1868
        %v1870 = vrot.slane %v1746, 1
        %v1871 = vrot.slane %v1747, 1
        %v1872 = vsel %vm662, %v1870, %v1871
        %v1873 = vrot.slane %v1748, 1
        %v1874 = vsel %vm662, %v1871, %v1873
        %v1875 = vrot.slane %v1749, 1
        %v1876 = vrot.slane %v1750, 1
        %v1877 = vsel %vm662, %v1875, %v1876
        %v1878 = vrot.slane %v1751, 1
        %v1879 = vsel %vm662, %v1876, %v1878
        %v1912 = vadd.f32 %v1664, %v1802
        %v1913 = vadd.f32 %v1665, %v1804
        %v1914 = vadd.f32 %v1666, %v1807
        %v1915 = vadd.f32 %v1667, %v1809
        %v1916 = vadd.f32 %v1668, %v1812
        %v1917 = vadd.f32 %v1669, %v1814
        %v1918 = vadd.f32 %v1670, %v1817
        %v1919 = vadd.f32 %v1671, %v1819
        %v1920 = vadd.f32 %v1672, %v1822
        %v1921 = vadd.f32 %v1673, %v1824
        %v1922 = vadd.f32 %v1674, %v1827
        %v1923 = vadd.f32 %v1675, %v1829
        %v1924 = vadd.f32 %v1676, %v1832
        %v1925 = vadd.f32 %v1677, %v1834
        %v1926 = vadd.f32 %v1678, %v1837
        %v1927 = vadd.f32 %v1679, %v1839
        %v1928 = vadd.f32 %v1680, %v1842
        %v1929 = vadd.f32 %v1681, %v1844
        %v1930 = vadd.f32 %v1682, %v1847
        %v1931 = vadd.f32 %v1683, %v1849
        %v1932 = vadd.f32 %v1684, %v1852
        %v1933 = vadd.f32 %v1685, %v1854
        %v1934 = vadd.f32 %v1686, %v1857
        %v1935 = vadd.f32 %v1687, %v1859
        %v1936 = vadd.f32 %v1688, %v1862
        %v1937 = vadd.f32 %v1689, %v1864
        %v1938 = vadd.f32 %v1690, %v1867
        %v1939 = vadd.f32 %v1691, %v1869
        %v1940 = vadd.f32 %v1692, %v1872
        %v1941 = vadd.f32 %v1693, %v1874
        %v1942 = vadd.f32 %v1694, %v1877
        %v1943 = vadd.f32 %v1695, %v1879
        %s1944 = scalar_lea.vmem %s1, 8
        %v1945 = vld [vmem:[%s1944] sm:$0x1]
        %v1947 = vlaneseq
        %v1948 = vshrl.u32 %v1947, 7
        %v1949 = vsub.s32 0, %v1948
        %v1950 = vrot.slane %v1945, %v1949
        %v1952 = vmul.f32 %v471, %v1950
        %v1953 = vmul.f32 %v472, %v1950
        %v1954 = vmul.f32 %v473, %v1950
        %v1955 = vmul.f32 %v474, %v1950
        %v1956 = vmul.f32 %v475, %v1950
        %v1957 = vmul.f32 %v476, %v1950
        %v1958 = vmul.f32 %v477, %v1950
        %v1959 = vmul.f32 %v478, %v1950
        %v1960 = vmul.f32 %v479, %v1950
        %v1961 = vmul.f32 %v480, %v1950
        %v1962 = vmul.f32 %v481, %v1950
        %v1963 = vmul.f32 %v482, %v1950
        %v1964 = vmul.f32 %v483, %v1950
        %v1965 = vmul.f32 %v484, %v1950
        %v1966 = vmul.f32 %v485, %v1950
        %v1967 = vmul.f32 %v486, %v1950
        %v1968 = vmul.f32 %v487, %v1950
        %v1969 = vmul.f32 %v488, %v1950
        %v1970 = vmul.f32 %v489, %v1950
        %v1971 = vmul.f32 %v490, %v1950
        %v1972 = vmul.f32 %v491, %v1950
        %v1973 = vmul.f32 %v492, %v1950
        %v1974 = vmul.f32 %v493, %v1950
        %v1975 = vmul.f32 %v494, %v1950
        %v1976 = vmul.f32 %v495, %v1950
        %v1977 = vmul.f32 %v496, %v1950
        %v1978 = vmul.f32 %v497, %v1950
        %v1979 = vmul.f32 %v498, %v1950
        %v1980 = vmul.f32 %v499, %v1950
        %v1981 = vmul.f32 %v500, %v1950
        %v1982 = vmul.f32 %v501, %v1950
        %v1983 = vmul.f32 %v502, %v1950
        %v1984 = vmul.f32 %v503, %v1950
        %v1985 = vmul.f32 %v504, %v1950
        %v1986 = vmul.f32 %v505, %v1950
        %v1987 = vmul.f32 %v506, %v1950
        %v1988 = vmul.f32 %v507, %v1950
        %v1989 = vmul.f32 %v508, %v1950
        %v1990 = vmul.f32 %v509, %v1950
        %v1991 = vmul.f32 %v510, %v1950
        %v1992 = vmul.f32 %v511, %v1950
        %v1993 = vmul.f32 %v512, %v1950
        %v1994 = vmul.f32 %v513, %v1950
        %v1995 = vmul.f32 %v514, %v1950
        %v1996 = vmul.f32 %v515, %v1950
        %v1997 = vmul.f32 %v516, %v1950
        %v1998 = vmul.f32 %v517, %v1950
        %v1999 = vmul.f32 %v518, %v1950
        %v2048 = vrot.slane %v1952, 2
        %v2049 = vrot.slane %v1953, 2
        %v2050 = vsel %vm911, %v2048, %v2049
        %v2051 = vrot.slane %v1954, 2
        %v2052 = vsel %vm911, %v2049, %v2051
        %v2053 = vrot.slane %v1955, 2
        %v2054 = vrot.slane %v1956, 2
        %v2055 = vsel %vm911, %v2053, %v2054
        %v2056 = vrot.slane %v1957, 2
        %v2057 = vsel %vm911, %v2054, %v2056
        %v2058 = vrot.slane %v1958, 2
        %v2059 = vrot.slane %v1959, 2
        %v2060 = vsel %vm911, %v2058, %v2059
        %v2061 = vrot.slane %v1960, 2
        %v2062 = vsel %vm911, %v2059, %v2061
        %v2063 = vrot.slane %v1961, 2
        %v2064 = vrot.slane %v1962, 2
        %v2065 = vsel %vm911, %v2063, %v2064
        %v2066 = vrot.slane %v1963, 2
        %v2067 = vsel %vm911, %v2064, %v2066
        %v2068 = vrot.slane %v1964, 2
        %v2069 = vrot.slane %v1965, 2
        %v2070 = vsel %vm911, %v2068, %v2069
        %v2071 = vrot.slane %v1966, 2
        %v2072 = vsel %vm911, %v2069, %v2071
        %v2073 = vrot.slane %v1967, 2
        %v2074 = vrot.slane %v1968, 2
        %v2075 = vsel %vm911, %v2073, %v2074
        %v2076 = vrot.slane %v1969, 2
        %v2077 = vsel %vm911, %v2074, %v2076
        %v2078 = vrot.slane %v1970, 2
        %v2079 = vrot.slane %v1971, 2
        %v2080 = vsel %vm911, %v2078, %v2079
        %v2081 = vrot.slane %v1972, 2
        %v2082 = vsel %vm911, %v2079, %v2081
        %v2083 = vrot.slane %v1973, 2
        %v2084 = vrot.slane %v1974, 2
        %v2085 = vsel %vm911, %v2083, %v2084
        %v2086 = vrot.slane %v1975, 2
        %v2087 = vsel %vm911, %v2084, %v2086
        %v2088 = vrot.slane %v1976, 2
        %v2089 = vrot.slane %v1977, 2
        %v2090 = vsel %vm911, %v2088, %v2089
        %v2091 = vrot.slane %v1978, 2
        %v2092 = vsel %vm911, %v2089, %v2091
        %v2093 = vrot.slane %v1979, 2
        %v2094 = vrot.slane %v1980, 2
        %v2095 = vsel %vm911, %v2093, %v2094
        %v2096 = vrot.slane %v1981, 2
        %v2097 = vsel %vm911, %v2094, %v2096
        %v2098 = vrot.slane %v1982, 2
        %v2099 = vrot.slane %v1983, 2
        %v2100 = vsel %vm911, %v2098, %v2099
        %v2101 = vrot.slane %v1984, 2
        %v2102 = vsel %vm911, %v2099, %v2101
        %v2103 = vrot.slane %v1985, 2
        %v2104 = vrot.slane %v1986, 2
        %v2105 = vsel %vm911, %v2103, %v2104
        %v2106 = vrot.slane %v1987, 2
        %v2107 = vsel %vm911, %v2104, %v2106
        %v2108 = vrot.slane %v1988, 2
        %v2109 = vrot.slane %v1989, 2
        %v2110 = vsel %vm911, %v2108, %v2109
        %v2111 = vrot.slane %v1990, 2
        %v2112 = vsel %vm911, %v2109, %v2111
        %v2113 = vrot.slane %v1991, 2
        %v2114 = vrot.slane %v1992, 2
        %v2115 = vsel %vm911, %v2113, %v2114
        %v2116 = vrot.slane %v1993, 2
        %v2117 = vsel %vm911, %v2114, %v2116
        %v2118 = vrot.slane %v1994, 2
        %v2119 = vrot.slane %v1995, 2
        %v2120 = vsel %vm911, %v2118, %v2119
        %v2121 = vrot.slane %v1996, 2
        %v2122 = vsel %vm911, %v2119, %v2121
        %v2123 = vrot.slane %v1997, 2
        %v2124 = vrot.slane %v1998, 2
        %v2125 = vsel %vm911, %v2123, %v2124
        %v2126 = vrot.slane %v1999, 2
        %v2127 = vsel %vm911, %v2124, %v2126
        %v2160 = vadd.f32 %v1912, %v2050
        %v2161 = vadd.f32 %v1913, %v2052
        %v2162 = vadd.f32 %v1914, %v2055
        %v2163 = vadd.f32 %v1915, %v2057
        %v2164 = vadd.f32 %v1916, %v2060
        %v2165 = vadd.f32 %v1917, %v2062
        %v2166 = vadd.f32 %v1918, %v2065
        %v2167 = vadd.f32 %v1919, %v2067
        %v2168 = vadd.f32 %v1920, %v2070
        %v2169 = vadd.f32 %v1921, %v2072
        %v2170 = vadd.f32 %v1922, %v2075
        %v2171 = vadd.f32 %v1923, %v2077
        %v2172 = vadd.f32 %v1924, %v2080
        %v2173 = vadd.f32 %v1925, %v2082
        %v2174 = vadd.f32 %v1926, %v2085
        %v2175 = vadd.f32 %v1927, %v2087
        %v2176 = vadd.f32 %v1928, %v2090
        %v2177 = vadd.f32 %v1929, %v2092
        %v2178 = vadd.f32 %v1930, %v2095
        %v2179 = vadd.f32 %v1931, %v2097
        %v2180 = vadd.f32 %v1932, %v2100
        %v2181 = vadd.f32 %v1933, %v2102
        %v2182 = vadd.f32 %v1934, %v2105
        %v2183 = vadd.f32 %v1935, %v2107
        %v2184 = vadd.f32 %v1936, %v2110
        %v2185 = vadd.f32 %v1937, %v2112
        %v2186 = vadd.f32 %v1938, %v2115
        %v2187 = vadd.f32 %v1939, %v2117
        %v2188 = vadd.f32 %v1940, %v2120
        %v2189 = vadd.f32 %v1941, %v2122
        %v2190 = vadd.f32 %v1942, %v2125
        %v2191 = vadd.f32 %v1943, %v2127
        %v2192 = vpack.c.bf16 %v2161, %v2160
        %v2193 = vpack.c.bf16 %v2163, %v2162
        %v2194 = vpack.c.bf16 %v2165, %v2164
        %v2195 = vpack.c.bf16 %v2167, %v2166
        %v2196 = vpack.c.bf16 %v2169, %v2168
        %v2197 = vpack.c.bf16 %v2171, %v2170
        %v2198 = vpack.c.bf16 %v2173, %v2172
        %v2199 = vpack.c.bf16 %v2175, %v2174
        %v2200 = vpack.c.bf16 %v2177, %v2176
        %v2201 = vpack.c.bf16 %v2179, %v2178
        %v2202 = vpack.c.bf16 %v2181, %v2180
        %v2203 = vpack.c.bf16 %v2183, %v2182
        %v2204 = vpack.c.bf16 %v2185, %v2184
        %v2205 = vpack.c.bf16 %v2187, %v2186
        %v2206 = vpack.c.bf16 %v2189, %v2188
        %v2207 = vpack.c.bf16 %v2191, %v2190
        %2208 = vst [vmem:[#allocation2] sm:$0xff] %v2192
        %2209 = vst [vmem:[#allocation2 + $0x8] sm:$0xff] %v2193
        %2210 = vst [vmem:[#allocation2 + $0x10] sm:$0xff] %v2194
        %2211 = vst [vmem:[#allocation2 + $0x18] sm:$0xff] %v2195
        %2212 = vst [vmem:[#allocation2 + $0x20] sm:$0xff] %v2196
        %2213 = vst [vmem:[#allocation2 + $0x28] sm:$0xff] %v2197
        %2214 = vst [vmem:[#allocation2 + $0x30] sm:$0xff] %v2198
        %2215 = vst [vmem:[#allocation2 + $0x38] sm:$0xff] %v2199
        %2216 = vst [vmem:[#allocation2 + $0x40] sm:$0xff] %v2200
        %2217 = vst [vmem:[#allocation2 + $0x48] sm:$0xff] %v2201
        %2218 = vst [vmem:[#allocation2 + $0x50] sm:$0xff] %v2202
        %2219 = vst [vmem:[#allocation2 + $0x58] sm:$0xff] %v2203
        %2220 = vst [vmem:[#allocation2 + $0x60] sm:$0xff] %v2204
        %2221 = vst [vmem:[#allocation2 + $0x68] sm:$0xff] %v2205
        %2222 = vst [vmem:[#allocation2 + $0x70] sm:$0xff] %v2206
        %2223 = vst [vmem:[#allocation2 + $0x78] sm:$0xff] %v2207
      $region52: #{middle_forward.11} parent=47 // pred_fallthru
        _
      %v2224 = vld [vmem:[#allocation2] sm:$0xff]
      %v2225 = vld [vmem:[#allocation2 + $0x8] sm:$0xff]
      %v2226 = vld [vmem:[#allocation2 + $0x10] sm:$0xff]
      %v2227 = vld [vmem:[#allocation2 + $0x18] sm:$0xff]
      %v2228 = vld [vmem:[#allocation2 + $0x20] sm:$0xff]
      %v2229 = vld [vmem:[#allocation2 + $0x28] sm:$0xff]
      %v2230 = vld [vmem:[#allocation2 + $0x30] sm:$0xff]
      %v2231 = vld [vmem:[#allocation2 + $0x38] sm:$0xff]
      %v2232 = vld [vmem:[#allocation2 + $0x40] sm:$0xff]
      %v2233 = vld [vmem:[#allocation2 + $0x48] sm:$0xff]
      %v2234 = vld [vmem:[#allocation2 + $0x50] sm:$0xff]
      %v2235 = vld [vmem:[#allocation2 + $0x58] sm:$0xff]
      %v2236 = vld [vmem:[#allocation2 + $0x60] sm:$0xff]
      %v2237 = vld [vmem:[#allocation2 + $0x68] sm:$0xff]
      %v2238 = vld [vmem:[#allocation2 + $0x70] sm:$0xff]
      %v2239 = vld [vmem:[#allocation2 + $0x78] sm:$0xff]
      %v2240 = vld [vmem:[%s375] sm:$0xf]
      %v2241 = vld [vmem:[%s375 + $0x4] sm:$0xf]
      %v2242 = vld [vmem:[%s375 + $0x8] sm:$0xf]
      %v2243 = vld [vmem:[%s375 + $0xc] sm:$0xf]
      %v2244 = vld [vmem:[%s375 + $0x10] sm:$0xf]
      %v2245 = vld [vmem:[%s375 + $0x14] sm:$0xf]
      %v2246 = vld [vmem:[%s375 + $0x18] sm:$0xf]
      %v2247 = vld [vmem:[%s375 + $0x1c] sm:$0xf]
      %v2248 = vld [vmem:[%s375 + $0x20] sm:$0xf]
      %v2249 = vld [vmem:[%s375 + $0x24] sm:$0xf]
      %v2250 = vld [vmem:[%s375 + $0x28] sm:$0xf]
      %v2251 = vld [vmem:[%s375 + $0x2c] sm:$0xf]
      %v2252 = vld [vmem:[%s375 + $0x30] sm:$0xf]
      %v2253 = vld [vmem:[%s375 + $0x34] sm:$0xf]
      %v2254 = vld [vmem:[%s375 + $0x38] sm:$0xf]
      %v2255 = vld [vmem:[%s375 + $0x3c] sm:$0xf]
      %v2272 = vunpack.c.l.b16 %v2240
      %v2273 = vunpack.c.l.b16 %v2241
      %v2274 = vunpack.c.l.b16 %v2242
      %v2275 = vunpack.c.l.b16 %v2243
      %v2276 = vunpack.c.l.b16 %v2244
      %v2277 = vunpack.c.l.b16 %v2245
      %v2278 = vunpack.c.l.b16 %v2246
      %v2279 = vunpack.c.l.b16 %v2247
      %v2280 = vunpack.c.l.b16 %v2248
      %v2281 = vunpack.c.l.b16 %v2249
      %v2282 = vunpack.c.l.b16 %v2250
      %v2283 = vunpack.c.l.b16 %v2251
      %v2284 = vunpack.c.l.b16 %v2252
      %v2285 = vunpack.c.l.b16 %v2253
      %v2286 = vunpack.c.l.b16 %v2254
      %v2287 = vunpack.c.l.b16 %v2255
      %v2288 = vpack.c.b16 %v2273, %v2272
      %v2289 = vpack.c.b16 %v2275, %v2274
      %v2290 = vpack.c.b16 %v2277, %v2276
      %v2291 = vpack.c.b16 %v2279, %v2278
      %v2292 = vpack.c.b16 %v2281, %v2280
      %v2293 = vpack.c.b16 %v2283, %v2282
      %v2294 = vpack.c.b16 %v2285, %v2284
      %v2295 = vpack.c.b16 %v2287, %v2286
      %2304 = vmatprep.subr.bf16.mxu0 0
      %2305 = vmatpush1.bf16.msra.mxu0 %v2288
      %2306 = vmatprep.subr.bf16.mxu0 0
      %2307 = vmatpush1.bf16.msra.mxu0 %v2289
      %2308 = vmatprep.subr.bf16.mxu0 0
      %2309 = vmatpush1.bf16.msra.mxu0 %v2290
      %2310 = vmatprep.subr.bf16.mxu0 0
      %2311 = vmatpush1.bf16.msra.mxu0 %v2291
      %2312 = vmatprep.subr.bf16.mxu0 0
      %2313 = vmatpush1.bf16.msra.mxu0 %v2292
      %2314 = vmatprep.subr.bf16.mxu0 0
      %2315 = vmatpush1.bf16.msra.mxu0 %v2293
      %2316 = vmatprep.subr.bf16.mxu0 0
      %2317 = vmatpush1.bf16.msra.mxu0 %v2294
      %2318 = vmatprep.subr.bf16.mxu0 0
      %2319 = vmatpush1.bf16.msra.mxu0 %v2295
      %2320 = vmatprep.subr.bf16.mxu0 0
      %2321 = vmatpush1.bf16.msra.mxu0 0
      %2322 = vmatprep.subr.bf16.mxu0 0
      %2323 = vmatpush1.bf16.msra.mxu0 0
      %2324 = vmatprep.subr.bf16.mxu0 0
      %2325 = vmatpush1.bf16.msra.mxu0 0
      %2326 = vmatprep.subr.bf16.mxu0 0
      %2327 = vmatpush1.bf16.msra.mxu0 0
      %2328 = vmatprep.subr.bf16.mxu0 0
      %2329 = vmatpush1.bf16.msra.mxu0 0
      %2330 = vmatprep.subr.bf16.mxu0 0
      %2331 = vmatpush1.bf16.msra.mxu0 0
      %2332 = vmatprep.subr.bf16.mxu0 0
      %2333 = vmatpush1.bf16.msra.mxu0 0
      %2334 = vmatprep.subr.bf16.mxu0 0
      %2335 = vmatpush1.bf16.msra.mxu0 0
      %2336 = vmatprep.mubr.bf16.mxu0 0
      %2337 = vmatmul.mubr.bf16.gmra.mrb[0].mxu0 %v2224
      %v2338 = vpop.f32.mrb[0].mxu0
      %v2339 = vadd.f32 0.0, %v2338
      %v2340 = vpop.f32.mrb[0].mxu0
      %v2341 = vpop.f32.mrb[0].mxu0
      %v2342 = vadd.f32 0.0, %v2341
      %v2343 = vpop.f32.mrb[0].mxu0
      %2344 = vmatprep.mubr.bf16.mxu0 0
      %2345 = vmatmul.mubr.bf16.gmra.mrb[0].mxu0 %v2225
      %v2346 = vpop.f32.mrb[0].mxu0
      %v2347 = vadd.f32 0.0, %v2346
      %v2348 = vpop.f32.mrb[0].mxu0
      %v2349 = vpop.f32.mrb[0].mxu0
      %v2350 = vadd.f32 0.0, %v2349
      %v2351 = vpop.f32.mrb[0].mxu0
      %2352 = vmatprep.mubr.bf16.mxu0 0
      %2353 = vmatmul.mubr.bf16.gmra.mrb[0].mxu0 %v2226
      %v2354 = vpop.f32.mrb[0].mxu0
      %v2355 = vadd.f32 0.0, %v2354
      %v2356 = vpop.f32.mrb[0].mxu0
      %v2357 = vpop.f32.mrb[0].mxu0
      %v2358 = vadd.f32 0.0, %v2357
      %v2359 = vpop.f32.mrb[0].mxu0
      %2360 = vmatprep.mubr.bf16.mxu0 0
      %2361 = vmatmul.mubr.bf16.gmra.mrb[0].mxu0 %v2227
      %v2362 = vpop.f32.mrb[0].mxu0
      %v2363 = vadd.f32 0.0, %v2362
      %v2364 = vpop.f32.mrb[0].mxu0
      %v2365 = vpop.f32.mrb[0].mxu0
      %v2366 = vadd.f32 0.0, %v2365
      %v2367 = vpop.f32.mrb[0].mxu0
      %2368 = vmatprep.mubr.bf16.mxu0 0
      %2369 = vmatmul.mubr.bf16.gmra.mrb[0].mxu0 %v2228
      %v2370 = vpop.f32.mrb[0].mxu0
      %v2371 = vadd.f32 0.0, %v2370
      %v2372 = vpop.f32.mrb[0].mxu0
      %v2373 = vpop.f32.mrb[0].mxu0
      %v2374 = vadd.f32 0.0, %v2373
      %v2375 = vpop.f32.mrb[0].mxu0
      %2376 = vmatprep.mubr.bf16.mxu0 0
      %2377 = vmatmul.mubr.bf16.gmra.mrb[0].mxu0 %v2229
      %v2378 = vpop.f32.mrb[0].mxu0
      %v2379 = vadd.f32 0.0, %v2378
      %v2380 = vpop.f32.mrb[0].mxu0
      %v2381 = vpop.f32.mrb[0].mxu0
      %v2382 = vadd.f32 0.0, %v2381
      %v2383 = vpop.f32.mrb[0].mxu0
      %2384 = vmatprep.mubr.bf16.mxu0 0
      %2385 = vmatmul.mubr.bf16.gmra.mrb[0].mxu0 %v2230
      %v2386 = vpop.f32.mrb[0].mxu0
      %v2387 = vadd.f32 0.0, %v2386
      %v2388 = vpop.f32.mrb[0].mxu0
      %v2389 = vpop.f32.mrb[0].mxu0
      %v2390 = vadd.f32 0.0, %v2389
      %v2391 = vpop.f32.mrb[0].mxu0
      %2392 = vmatprep.mubr.bf16.mxu0 0
      %2393 = vmatmul.mubr.bf16.gmra.mrb[0].mxu0 %v2231
      %v2394 = vpop.f32.mrb[0].mxu0
      %v2395 = vadd.f32 0.0, %v2394
      %v2396 = vpop.f32.mrb[0].mxu0
      %v2397 = vpop.f32.mrb[0].mxu0
      %v2398 = vadd.f32 0.0, %v2397
      %v2399 = vpop.f32.mrb[0].mxu0
      %2400 = vmatprep.mubr.bf16.mxu0 0
      %2401 = vmatmul.mubr.bf16.gmra.mrb[0].mxu0 %v2232
      %v2402 = vpop.f32.mrb[0].mxu0
      %v2403 = vadd.f32 0.0, %v2402
      %v2404 = vpop.f32.mrb[0].mxu0
      %v2405 = vpop.f32.mrb[0].mxu0
      %v2406 = vadd.f32 0.0, %v2405
      %v2407 = vpop.f32.mrb[0].mxu0
      %2408 = vmatprep.mubr.bf16.mxu0 0
      %2409 = vmatmul.mubr.bf16.gmra.mrb[0].mxu0 %v2233
      %v2410 = vpop.f32.mrb[0].mxu0
      %v2411 = vadd.f32 0.0, %v2410
      %v2412 = vpop.f32.mrb[0].mxu0
      %v2413 = vpop.f32.mrb[0].mxu0
      %v2414 = vadd.f32 0.0, %v2413
      %v2415 = vpop.f32.mrb[0].mxu0
      %2416 = vmatprep.mubr.bf16.mxu0 0
      %2417 = vmatmul.mubr.bf16.gmra.mrb[0].mxu0 %v2234
      %v2418 = vpop.f32.mrb[0].mxu0
      %v2419 = vadd.f32 0.0, %v2418
      %v2420 = vpop.f32.mrb[0].mxu0
      %v2421 = vpop.f32.mrb[0].mxu0
      %v2422 = vadd.f32 0.0, %v2421
      %v2423 = vpop.f32.mrb[0].mxu0
      %2424 = vmatprep.mubr.bf16.mxu0 0
      %2425 = vmatmul.mubr.bf16.gmra.mrb[0].mxu0 %v2235
      %v2426 = vpop.f32.mrb[0].mxu0
      %v2427 = vadd.f32 0.0, %v2426
      %v2428 = vpop.f32.mrb[0].mxu0
      %v2429 = vpop.f32.mrb[0].mxu0
      %v2430 = vadd.f32 0.0, %v2429
      %v2431 = vpop.f32.mrb[0].mxu0
      %2432 = vmatprep.mubr.bf16.mxu0 0
      %2433 = vmatmul.mubr.bf16.gmra.mrb[0].mxu0 %v2236
      %v2434 = vpop.f32.mrb[0].mxu0
      %v2435 = vadd.f32 0.0, %v2434
      %v2436 = vpop.f32.mrb[0].mxu0
      %v2437 = vpop.f32.mrb[0].mxu0
      %v2438 = vadd.f32 0.0, %v2437
      %v2439 = vpop.f32.mrb[0].mxu0
      %2440 = vmatprep.mubr.bf16.mxu0 0
      %2441 = vmatmul.mubr.bf16.gmra.mrb[0].mxu0 %v2237
      %v2442 = vpop.f32.mrb[0].mxu0
      %v2443 = vadd.f32 0.0, %v2442
      %v2444 = vpop.f32.mrb[0].mxu0
      %v2445 = vpop.f32.mrb[0].mxu0
      %v2446 = vadd.f32 0.0, %v2445
      %v2447 = vpop.f32.mrb[0].mxu0
      %2448 = vmatprep.mubr.bf16.mxu0 0
      %2449 = vmatmul.mubr.bf16.gmra.mrb[0].mxu0 %v2238
      %v2450 = vpop.f32.mrb[0].mxu0
      %v2451 = vadd.f32 0.0, %v2450
      %v2452 = vpop.f32.mrb[0].mxu0
      %v2453 = vpop.f32.mrb[0].mxu0
      %v2454 = vadd.f32 0.0, %v2453
      %v2455 = vpop.f32.mrb[0].mxu0
      %2456 = vmatprep.mubr.bf16.mxu0 0
      %2457 = vmatmul.mubr.bf16.gmra.mrb[0].mxu0 %v2239
      %v2458 = vpop.f32.mrb[0].mxu0
      %v2459 = vadd.f32 0.0, %v2458
      %v2460 = vpop.f32.mrb[0].mxu0
      %v2461 = vpop.f32.mrb[0].mxu0
      %v2462 = vadd.f32 0.0, %v2461
      %v2463 = vpop.f32.mrb[0].mxu0
      %2464 = vdwg.mxu0
      %v2465 = vld [vmem:[%s378] sm:$0x1]
      %v2467 = vlaneseq
      %v2468 = vshrl.u32 %v2467, 7
      %v2469 = vsub.s32 0, %v2468
      %v2470 = vrot.slane %v2465, %v2469
      %v2472 = vmul.f32 %v2339, %v2470
      %v2473 = vmul.f32 %v2342, %v2470
      %v2474 = vmul.f32 %v2347, %v2470
      %v2475 = vmul.f32 %v2350, %v2470
      %v2476 = vmul.f32 %v2355, %v2470
      %v2477 = vmul.f32 %v2358, %v2470
      %v2478 = vmul.f32 %v2363, %v2470
      %v2479 = vmul.f32 %v2366, %v2470
      %v2480 = vmul.f32 %v2371, %v2470
      %v2481 = vmul.f32 %v2374, %v2470
      %v2482 = vmul.f32 %v2379, %v2470
      %v2483 = vmul.f32 %v2382, %v2470
      %v2484 = vmul.f32 %v2387, %v2470
      %v2485 = vmul.f32 %v2390, %v2470
      %v2486 = vmul.f32 %v2395, %v2470
      %v2487 = vmul.f32 %v2398, %v2470
      %v2488 = vmul.f32 %v2403, %v2470
      %v2489 = vmul.f32 %v2406, %v2470
      %v2490 = vmul.f32 %v2411, %v2470
      %v2491 = vmul.f32 %v2414, %v2470
      %v2492 = vmul.f32 %v2419, %v2470
      %v2493 = vmul.f32 %v2422, %v2470
      %v2494 = vmul.f32 %v2427, %v2470
      %v2495 = vmul.f32 %v2430, %v2470
      %v2496 = vmul.f32 %v2435, %v2470
      %v2497 = vmul.f32 %v2438, %v2470
      %v2498 = vmul.f32 %v2443, %v2470
      %v2499 = vmul.f32 %v2446, %v2470
      %v2500 = vmul.f32 %v2451, %v2470
      %v2501 = vmul.f32 %v2454, %v2470
      %v2502 = vmul.f32 %v2459, %v2470
      %v2503 = vmul.f32 %v2462, %v2470
      %v2504 = vld [vmem:[%s381] sm:$0x1]
      %v2506 = vlaneseq
      %v2507 = vshrl.u32 %v2506, 7
      %v2508 = vsub.s32 0, %v2507
      %v2509 = vrot.slane %v2504, %v2508
      %v2511 = vadd.f32 %v2472, %v2509
      %v2512 = vadd.f32 %v2473, %v2509
      %v2513 = vadd.f32 %v2474, %v2509
      %v2514 = vadd.f32 %v2475, %v2509
      %v2515 = vadd.f32 %v2476, %v2509
      %v2516 = vadd.f32 %v2477, %v2509
      %v2517 = vadd.f32 %v2478, %v2509
      %v2518 = vadd.f32 %v2479, %v2509
      %v2519 = vadd.f32 %v2480, %v2509
      %v2520 = vadd.f32 %v2481, %v2509
      %v2521 = vadd.f32 %v2482, %v2509
      %v2522 = vadd.f32 %v2483, %v2509
      %v2523 = vadd.f32 %v2484, %v2509
      %v2524 = vadd.f32 %v2485, %v2509
      %v2525 = vadd.f32 %v2486, %v2509
      %v2526 = vadd.f32 %v2487, %v2509
      %v2527 = vadd.f32 %v2488, %v2509
      %v2528 = vadd.f32 %v2489, %v2509
      %v2529 = vadd.f32 %v2490, %v2509
      %v2530 = vadd.f32 %v2491, %v2509
      %v2531 = vadd.f32 %v2492, %v2509
      %v2532 = vadd.f32 %v2493, %v2509
      %v2533 = vadd.f32 %v2494, %v2509
      %v2534 = vadd.f32 %v2495, %v2509
      %v2535 = vadd.f32 %v2496, %v2509
      %v2536 = vadd.f32 %v2497, %v2509
      %v2537 = vadd.f32 %v2498, %v2509
      %v2538 = vadd.f32 %v2499, %v2509
      %v2539 = vadd.f32 %v2500, %v2509
      %v2540 = vadd.f32 %v2501, %v2509
      %v2541 = vadd.f32 %v2502, %v2509
      %v2542 = vadd.f32 %v2503, %v2509
      %v2543 = vld [vmem:[%s389] sm:$0xff]
      %v2544 = vld [vmem:[%s389 + $0x8] sm:$0xff]
      %v2545 = vld [vmem:[%s389 + $0x10] sm:$0xff]
      %v2546 = vld [vmem:[%s389 + $0x18] sm:$0xff]
      %v2547 = vld [vmem:[%s389 + $0x20] sm:$0xff]
      %v2548 = vld [vmem:[%s389 + $0x28] sm:$0xff]
      %v2549 = vld [vmem:[%s389 + $0x30] sm:$0xff]
      %v2550 = vld [vmem:[%s389 + $0x38] sm:$0xff]
      %v2551 = vld [vmem:[%s389 + $0x40] sm:$0xff]
      %v2552 = vld [vmem:[%s389 + $0x48] sm:$0xff]
      %v2553 = vld [vmem:[%s389 + $0x50] sm:$0xff]
      %v2554 = vld [vmem:[%s389 + $0x58] sm:$0xff]
      %v2555 = vld [vmem:[%s389 + $0x60] sm:$0xff]
      %v2556 = vld [vmem:[%s389 + $0x68] sm:$0xff]
      %v2557 = vld [vmem:[%s389 + $0x70] sm:$0xff]
      %v2558 = vld [vmem:[%s389 + $0x78] sm:$0xff]
      %v2559 = vld [vmem:[%s389 + $0x80] sm:$0xff]
      %v2560 = vld [vmem:[%s389 + $0x88] sm:$0xff]
      %v2561 = vld [vmem:[%s389 + $0x90] sm:$0xff]
      %v2562 = vld [vmem:[%s389 + $0x98] sm:$0xff]
      %v2563 = vld [vmem:[%s389 + $0xa0] sm:$0xff]
      %v2564 = vld [vmem:[%s389 + $0xa8] sm:$0xff]
      %v2565 = vld [vmem:[%s389 + $0xb0] sm:$0xff]
      %v2566 = vld [vmem:[%s389 + $0xb8] sm:$0xff]
      %v2567 = vld [vmem:[%s389 + $0xc0] sm:$0xff]
      %v2568 = vld [vmem:[%s389 + $0xc8] sm:$0xff]
      %v2569 = vld [vmem:[%s389 + $0xd0] sm:$0xff]
      %v2570 = vld [vmem:[%s389 + $0xd8] sm:$0xff]
      %v2571 = vld [vmem:[%s389 + $0xe0] sm:$0xff]
      %v2572 = vld [vmem:[%s389 + $0xe8] sm:$0xff]
      %v2573 = vld [vmem:[%s389 + $0xf0] sm:$0xff]
      %v2574 = vld [vmem:[%s389 + $0xf8] sm:$0xff]
      %v2575 = vadd.f32 %v2511, %v2543
      %v2576 = vadd.f32 %v2512, %v2544
      %v2577 = vadd.f32 %v2513, %v2545
      %v2578 = vadd.f32 %v2514, %v2546
      %v2579 = vadd.f32 %v2515, %v2547
      %v2580 = vadd.f32 %v2516, %v2548
      %v2581 = vadd.f32 %v2517, %v2549
      %v2582 = vadd.f32 %v2518, %v2550
      %v2583 = vadd.f32 %v2519, %v2551
      %v2584 = vadd.f32 %v2520, %v2552
      %v2585 = vadd.f32 %v2521, %v2553
      %v2586 = vadd.f32 %v2522, %v2554
      %v2587 = vadd.f32 %v2523, %v2555
      %v2588 = vadd.f32 %v2524, %v2556
      %v2589 = vadd.f32 %v2525, %v2557
      %v2590 = vadd.f32 %v2526, %v2558
      %v2591 = vadd.f32 %v2527, %v2559
      %v2592 = vadd.f32 %v2528, %v2560
      %v2593 = vadd.f32 %v2529, %v2561
      %v2594 = vadd.f32 %v2530, %v2562
      %v2595 = vadd.f32 %v2531, %v2563
      %v2596 = vadd.f32 %v2532, %v2564
      %v2597 = vadd.f32 %v2533, %v2565
      %v2598 = vadd.f32 %v2534, %v2566
      %v2599 = vadd.f32 %v2535, %v2567
      %v2600 = vadd.f32 %v2536, %v2568
      %v2601 = vadd.f32 %v2537, %v2569
      %v2602 = vadd.f32 %v2538, %v2570
      %v2603 = vadd.f32 %v2539, %v2571
      %v2604 = vadd.f32 %v2540, %v2572
      %v2605 = vadd.f32 %v2541, %v2573
      %v2606 = vadd.f32 %v2542, %v2574
      %v2607 = vld [vmem:[%s397] sm:$0xff]
      %v2608 = vld [vmem:[%s397 + $0x8] sm:$0xff]
      %v2609 = vld [vmem:[%s397 + $0x10] sm:$0xff]
      %v2610 = vld [vmem:[%s397 + $0x18] sm:$0xff]
      %v2611 = vld [vmem:[%s397 + $0x20] sm:$0xff]
      %v2612 = vld [vmem:[%s397 + $0x28] sm:$0xff]
      %v2613 = vld [vmem:[%s397 + $0x30] sm:$0xff]
      %v2614 = vld [vmem:[%s397 + $0x38] sm:$0xff]
      %v2615 = vld [vmem:[%s397 + $0x40] sm:$0xff]
      %v2616 = vld [vmem:[%s397 + $0x48] sm:$0xff]
      %v2617 = vld [vmem:[%s397 + $0x50] sm:$0xff]
      %v2618 = vld [vmem:[%s397 + $0x58] sm:$0xff]
      %v2619 = vld [vmem:[%s397 + $0x60] sm:$0xff]
      %v2620 = vld [vmem:[%s397 + $0x68] sm:$0xff]
      %v2621 = vld [vmem:[%s397 + $0x70] sm:$0xff]
      %v2622 = vld [vmem:[%s397 + $0x78] sm:$0xff]
      %v2623 = vld [vmem:[%s397 + $0x80] sm:$0xff]
      %v2624 = vld [vmem:[%s397 + $0x88] sm:$0xff]
      %v2625 = vld [vmem:[%s397 + $0x90] sm:$0xff]
      %v2626 = vld [vmem:[%s397 + $0x98] sm:$0xff]
      %v2627 = vld [vmem:[%s397 + $0xa0] sm:$0xff]
      %v2628 = vld [vmem:[%s397 + $0xa8] sm:$0xff]
      %v2629 = vld [vmem:[%s397 + $0xb0] sm:$0xff]
      %v2630 = vld [vmem:[%s397 + $0xb8] sm:$0xff]
      %v2631 = vld [vmem:[%s397 + $0xc0] sm:$0xff]
      %v2632 = vld [vmem:[%s397 + $0xc8] sm:$0xff]
      %v2633 = vld [vmem:[%s397 + $0xd0] sm:$0xff]
      %v2634 = vld [vmem:[%s397 + $0xd8] sm:$0xff]
      %v2635 = vld [vmem:[%s397 + $0xe0] sm:$0xff]
      %v2636 = vld [vmem:[%s397 + $0xe8] sm:$0xff]
      %v2637 = vld [vmem:[%s397 + $0xf0] sm:$0xff]
      %v2638 = vld [vmem:[%s397 + $0xf8] sm:$0xff]
      %v2639 = vadd.f32 %v2575, %v2607
      %v2640 = vadd.f32 %v2576, %v2608
      %v2641 = vadd.f32 %v2577, %v2609
      %v2642 = vadd.f32 %v2578, %v2610
      %v2643 = vadd.f32 %v2579, %v2611
      %v2644 = vadd.f32 %v2580, %v2612
      %v2645 = vadd.f32 %v2581, %v2613
      %v2646 = vadd.f32 %v2582, %v2614
      %v2647 = vadd.f32 %v2583, %v2615
      %v2648 = vadd.f32 %v2584, %v2616
      %v2649 = vadd.f32 %v2585, %v2617
      %v2650 = vadd.f32 %v2586, %v2618
      %v2651 = vadd.f32 %v2587, %v2619
      %v2652 = vadd.f32 %v2588, %v2620
      %v2653 = vadd.f32 %v2589, %v2621
      %v2654 = vadd.f32 %v2590, %v2622
      %v2655 = vadd.f32 %v2591, %v2623
      %v2656 = vadd.f32 %v2592, %v2624
      %v2657 = vadd.f32 %v2593, %v2625
      %v2658 = vadd.f32 %v2594, %v2626
      %v2659 = vadd.f32 %v2595, %v2627
      %v2660 = vadd.f32 %v2596, %v2628
      %v2661 = vadd.f32 %v2597, %v2629
      %v2662 = vadd.f32 %v2598, %v2630
      %v2663 = vadd.f32 %v2599, %v2631
      %v2664 = vadd.f32 %v2600, %v2632
      %v2665 = vadd.f32 %v2601, %v2633
      %v2666 = vadd.f32 %v2602, %v2634
      %v2667 = vadd.f32 %v2603, %v2635
      %v2668 = vadd.f32 %v2604, %v2636
      %v2669 = vadd.f32 %v2605, %v2637
      %v2670 = vadd.f32 %v2606, %v2638
      %2671 = vst [vmem:[%s405] sm:$0xff] %v2639
      %2672 = vst [vmem:[%s405 + $0x8] sm:$0xff] %v2640
      %2673 = vst [vmem:[%s405 + $0x10] sm:$0xff] %v2641
      %2674 = vst [vmem:[%s405 + $0x18] sm:$0xff] %v2642
      %2675 = vst [vmem:[%s405 + $0x20] sm:$0xff] %v2643
      %2676 = vst [vmem:[%s405 + $0x28] sm:$0xff] %v2644
      %2677 = vst [vmem:[%s405 + $0x30] sm:$0xff] %v2645
      %2678 = vst [vmem:[%s405 + $0x38] sm:$0xff] %v2646
      %2679 = vst [vmem:[%s405 + $0x40] sm:$0xff] %v2647
      %2680 = vst [vmem:[%s405 + $0x48] sm:$0xff] %v2648
      %2681 = vst [vmem:[%s405 + $0x50] sm:$0xff] %v2649
      %2682 = vst [vmem:[%s405 + $0x58] sm:$0xff] %v2650
      %2683 = vst [vmem:[%s405 + $0x60] sm:$0xff] %v2651
      %2684 = vst [vmem:[%s405 + $0x68] sm:$0xff] %v2652
      %2685 = vst [vmem:[%s405 + $0x70] sm:$0xff] %v2653
      %2686 = vst [vmem:[%s405 + $0x78] sm:$0xff] %v2654
      %2687 = vst [vmem:[%s405 + $0x80] sm:$0xff] %v2655
      %2688 = vst [vmem:[%s405 + $0x88] sm:$0xff] %v2656
      %2689 = vst [vmem:[%s405 + $0x90] sm:$0xff] %v2657
      %2690 = vst [vmem:[%s405 + $0x98] sm:$0xff] %v2658
      %2691 = vst [vmem:[%s405 + $0xa0] sm:$0xff] %v2659
      %2692 = vst [vmem:[%s405 + $0xa8] sm:$0xff] %v2660
      %2693 = vst [vmem:[%s405 + $0xb0] sm:$0xff] %v2661
      %2694 = vst [vmem:[%s405 + $0xb8] sm:$0xff] %v2662
      %2695 = vst [vmem:[%s405 + $0xc0] sm:$0xff] %v2663
      %2696 = vst [vmem:[%s405 + $0xc8] sm:$0xff] %v2664
      %2697 = vst [vmem:[%s405 + $0xd0] sm:$0xff] %v2665
      %2698 = vst [vmem:[%s405 + $0xd8] sm:$0xff] %v2666
      %2699 = vst [vmem:[%s405 + $0xe0] sm:$0xff] %v2667
      %2700 = vst [vmem:[%s405 + $0xe8] sm:$0xff] %v2668
      %2701 = vst [vmem:[%s405 + $0xf0] sm:$0xff] %v2669
      %2702 = vst [vmem:[%s405 + $0xf8] sm:$0xff] %v2670
      %p2703 = scmp.lt.s32.totalorder %s22, 1
      %s2704 = scalar_select %p2703, %s22, 1
      %p2705 = scmp.lt.s32.totalorder %s23, 0
      %s2706 = scalar_select %p2705, %s23, 0
      %s2707 = smul.addr %s2704, 32
      %s2708 = sadd.s32 %s2706, %s2707
      %s2709 = smul.addr %s2708, 8
      %s2710 = scalar_lea.vmem %s7, %s2709
      // Predicated region
      $region53: #{middle_forward.11} parent=47 // pred_check
        %p2711 = pneg %p231
      $region54: #{middle_forward.11} parent=47 // pred_check_branch
        %2713 = sbr.rel (%p2711) target = $region56
      $region55: #{middle_forward.11} parent=47 // pred_region
        _
      $region56: #{middle_forward.11} parent=47 // pred_fallthru
        _
    $region48: #{middle_forward.11} parent=5 // pred_fallthru
      _
    %p2714 = scmp.le.s32.totalorder 2, %s13
    // Predicated region
    $region57: #{middle_forward.11} parent=5 // pred_check
      %p2715 = pneg %p2714
    $region58: #{middle_forward.11} parent=5 // pred_check_branch
      %2717 = sbr.rel (%p2715) target = $region60
    $region59: #{middle_forward.11} parent=5 // pred_region
      %s2718 = ssub.s32 %s13, 2
      // Predicated region
      $region61: #{middle_forward.11} parent=59 // pred_check
        %p2719 = pneg %p237
      $region62: #{middle_forward.11} parent=59 // pred_check_branch
        %2721 = sbr.rel (%p2719) target = $region64
      $region63: #{middle_forward.11} parent=59 // pred_region
        %p2722 = scmp.lt.s32.totalorder %s24, 1
        %s2723 = scalar_select %p2722, %s24, 1
        %p2724 = scmp.lt.s32.totalorder %s25, 0
        %s2725 = scalar_select %p2724, %s25, 0
        %s2726 = smul.addr %s2723, 32
        %s2727 = sadd.s32 %s2725, %s2726
        %s2728 = smul.addr %s2727, 8
        %s2729 = scalar_lea.vmem %s7, %s2728
      $region64: #{middle_forward.11} parent=59 // pred_fallthru
        _
    $region60: #{middle_forward.11} parent=5 // pred_fallthru
      _
  $region6: #{middle_forward.11} parent=0 // loop_footer
    %s17 = sadd.s32 1, %s13
  $region7: #{middle_forward.11} parent=0 // loop_footer_branch
    %12 = sbr.rel target = $region3
  $region8: #{middle_forward.11} parent=0 // loop_exit
    _

</llo_original>
